<compile_context>
chip_gen: v6e
topology: v6e:2x2x1
jax: 0.10.0
libtpu: 0.0.40
codegen_flags: <defaults>
</compile_context>

<pallas_src>
import functools

import jax
import jax.numpy as jnp
from jax.experimental import pallas as pl
from jax.experimental.pallas import tpu as pltpu

LN_EPS = 1e-5      # nn.LayerNorm default
NEG_INF = -1e30    # finite mask value for padded keys


def _mha_flash_kernel(q_ref, k_ref, v_ref,
                      wq_ref, wk_ref, wv_ref,
                      wfc_ref, bfc_ref, gamma_ref, beta_ref,
                      o_ref,
                      qp_ref, m_ref, l_ref, acc_ref,
                      *, n_head, d_k, d_v, inv_temp, tile_k, len_k, mask_k):
    kv = pl.program_id(2)

    # ---- init: first K/V tile of this (batch, q-tile) --------------------------------
    @pl.when(kv == 0)
    def _init():
        q_bf = q_ref[...].astype(jnp.bfloat16)                     # (tile_q, d_model)
        for h in range(n_head):                                     # static unroll (H small)
            qp_ref[h] = jnp.dot(q_bf, wq_ref[h],
                                preferred_element_type=jnp.float32).astype(jnp.bfloat16)
        m_ref[...] = jnp.full(m_ref.shape, -jnp.inf, m_ref.dtype)
        l_ref[...] = jnp.zeros(l_ref.shape, l_ref.dtype)
        acc_ref[...] = jnp.zeros(acc_ref.shape, acc_ref.dtype)

    # ---- online-softmax update with this K/V tile -------------------------------------
    k_bf = k_ref[...]                                               # (tile_k, d_model) bf16
    v_bf = v_ref[...]                                               # (tile_k, d_model) bf16

    if mask_k:  # static: only emitted when len_k was padded
        key_ids = kv * tile_k + jax.lax.broadcasted_iota(jnp.int32, (1, tile_k), 1)
        key_valid = key_ids < len_k                                 # (1, tile_k)

    for h in range(n_head):                                         # static unroll
        Kh = jnp.dot(k_bf, wk_ref[h],
                     preferred_element_type=jnp.float32).astype(jnp.bfloat16)  # (tile_k, d_k)
        Vh = jnp.dot(v_bf, wv_ref[h],
                     preferred_element_type=jnp.float32).astype(jnp.bfloat16)  # (tile_k, d_v)
        # scores = Qh @ Kh^T / temperature   (contract d_k on the MXU)
        s = jax.lax.dot_general(qp_ref[h], Kh, (((1,), (1,)), ((), ())),
                                preferred_element_type=jnp.float32) * inv_temp
        if mask_k:
            s = jnp.where(key_valid, s, NEG_INF)
        m_prev = m_ref[h]                                           # (tile_q, 1)
        m_new = jnp.maximum(m_prev, jnp.max(s, axis=-1, keepdims=True))
        alpha = jnp.exp(m_prev - m_new)
        p = jnp.exp(s - m_new)                                      # un-normalized probs
        # TODO(synk): attention dropout (p=0.1) omitted -- inference/eval semantics.
        l_ref[h] = alpha * l_ref[h] + jnp.sum(p, axis=-1, keepdims=True)
        acc_ref[h] = alpha * acc_ref[h] + jnp.dot(p.astype(jnp.bfloat16), Vh,
                                                  preferred_element_type=jnp.float32)
        m_ref[h] = m_new

    # ---- finalize: fc + bias + residual + LayerNorm ------------------------------------
    @pl.when(kv == pl.num_programs(2) - 1)
    def _finalize():
        tile_q, d_model = o_ref.shape
        out = jnp.zeros((tile_q, d_model), jnp.float32)
        for h in range(n_head):
            inv_l = pl.reciprocal(l_ref[h], approx=True)            # (tile_q, 1) on the EUP
            head = (acc_ref[h] * inv_l).astype(jnp.bfloat16)        # (tile_q, d_v)
            # concat(heads) @ Wfc  ==  sum_h head_h @ Wfc[h]
            out = out + jnp.dot(head, wfc_ref[h], preferred_element_type=jnp.float32)
        # TODO(synk): output dropout (p=0.1) omitted -- inference/eval semantics.
        out = out + bfc_ref[...] + q_ref[...].astype(jnp.float32)   # bias + residual
        mean = jnp.mean(out, axis=-1, keepdims=True)
        cen = out - mean
        var = jnp.mean(cen * cen, axis=-1, keepdims=True)
        out = cen * jax.lax.rsqrt(var + LN_EPS) * gamma_ref[...] + beta_ref[...]
        o_ref[...] = out.astype(o_ref.dtype)


def _pick_tile(length, tile):
    tile = min(tile, length)
    if tile < length:
        tile = max(8, (tile // 8) * 8)   # keep the (8,128) tiling rule satisfied
    return tile


def multi_head_attention(q, k, v, params, *, n_head, d_k, d_v,
                         tile_q=512, tile_k=256, vmem_limit_bytes=None):
    """q: (B, Lq, d_model), k/v: (B, Lk, d_model). Weights stored as (in, out) == W.T."""
    B, Lq, d_model = q.shape
    _, Lk, _ = k.shape
    H_dk, H_dv = n_head * d_k, n_head * d_v

    tile_q = _pick_tile(Lq, tile_q)
    tile_k = _pick_tile(Lk, tile_k)
    q_pad = (-Lq) % tile_q
    k_pad = (-Lk) % tile_k
    Lq_p = Lq + q_pad

    q_in = jnp.pad(q, ((0, 0), (0, q_pad), (0, 0))) if q_pad else q
    k_bf = k.astype(jnp.bfloat16)
    v_bf = v.astype(jnp.bfloat16)
    if k_pad:
        k_bf = jnp.pad(k_bf, ((0, 0), (0, k_pad), (0, 0)))
        v_bf = jnp.pad(v_bf, ((0, 0), (0, k_pad), (0, 0)))
    Lk_p = Lk + k_pad

    # Per-head-stacked bf16 weights: no lane slicing / concatenation inside the kernel.
    wq = params["wq"].reshape(d_model, n_head, d_k).transpose(1, 0, 2).astype(jnp.bfloat16)
    wk = params["wk"].reshape(d_model, n_head, d_k).transpose(1, 0, 2).astype(jnp.bfloat16)
    wv = params["wv"].reshape(d_model, n_head, d_v).transpose(1, 0, 2).astype(jnp.bfloat16)
    wfc = params["wfc"].reshape(n_head, d_v, d_model).astype(jnp.bfloat16)
    bfc = params["bfc"].astype(jnp.float32)
    gamma = params["gamma"].astype(jnp.float32)
    beta = params["beta"].astype(jnp.float32)

    grid = (B, Lq_p // tile_q, Lk_p // tile_k)
    kernel = functools.partial(
        _mha_flash_kernel, n_head=n_head, d_k=d_k, d_v=d_v,
        inv_temp=1.0 / float(d_k) ** 0.5, tile_k=tile_k, len_k=Lk, mask_k=bool(k_pad))

    # Constant-index residents: single-buffered (halves their VMEM footprint).
    def resident(shape):
        return pl.BlockSpec(shape, lambda b, i, j, _n=len(shape): (0,) * _n,
                            pipeline_mode=pl.Buffered(1))

    flops = 2 * B * (Lq * d_model * H_dk                       # Q projection
                     + Lk * d_model * (H_dk + H_dv)            # K/V projections
                     + n_head * Lq * Lk * (d_k + d_v)          # scores + PV
                     + Lq * H_dv * d_model)                     # fc
    bytes_accessed = (q.size * 4 + (k.size + v.size) * 2 + q.size * 4
                      + 2 * (wq.size + wk.size + wv.size + wfc.size))
    cost = pl.CostEstimate(flops=flops, transcendentals=B * n_head * Lq * Lk,
                           bytes_accessed=bytes_accessed)

    cp_kwargs = dict(dimension_semantics=("parallel", "parallel", "arbitrary"))
    if vmem_limit_bytes is not None:
        cp_kwargs["vmem_limit_bytes"] = vmem_limit_bytes

    out = pl.pallas_call(
        kernel,
        out_shape=jax.ShapeDtypeStruct((B, Lq_p, d_model), q.dtype),
        grid_spec=pltpu.PrefetchScalarGridSpec(
            num_scalar_prefetch=0,
            grid=grid,
            in_specs=[
                pl.BlockSpec((None, tile_q, d_model), lambda b, i, j: (b, i, 0)),  # q tile
                pl.BlockSpec((None, tile_k, d_model), lambda b, i, j: (b, j, 0)),  # k tile
                pl.BlockSpec((None, tile_k, d_model), lambda b, i, j: (b, j, 0)),  # v tile
                resident((n_head, d_model, d_k)),    # Wq (head-stacked)
                resident((n_head, d_model, d_k)),    # Wk
                resident((n_head, d_model, d_v)),    # Wv
                resident((n_head, d_v, d_model)),    # Wfc
                resident((1, d_model)),              # b_fc
                resident((1, d_model)),              # gamma
                resident((1, d_model)),              # beta
            ],
            out_specs=pl.BlockSpec((None, tile_q, d_model), lambda b, i, j: (b, i, 0)),
            scratch_shapes=[
                pltpu.VMEM((n_head, tile_q, d_k), jnp.bfloat16),   # projected Q (per head)
                pltpu.VMEM((n_head, tile_q, 1), jnp.float32),      # running max m
                pltpu.VMEM((n_head, tile_q, 1), jnp.float32),      # running sum l
                pltpu.VMEM((n_head, tile_q, d_v), jnp.float32),    # running exp(s) @ V
            ],
        ),
        compiler_params=pltpu.CompilerParams(**cp_kwargs),
        cost_estimate=cost,
    )(q_in, k_bf, v_bf, wq, wk, wv, wfc, bfc, gamma, beta)

    return out[:, :Lq] if q_pad else out


def mha_ref(q, k, v, params, *, n_head, d_k, d_v):
    """Pure-JAX f32 reference mirroring the PyTorch forward (dropout = identity)."""
    hp = jax.lax.Precision.HIGHEST
    B, Lq, d_model = q.shape
    _, Lk, _ = k.shape
    residual = q
    Q = jnp.einsum("bld,dh->blh", q, params["wq"], precision=hp).reshape(B, Lq, n_head, d_k)
    K = jnp.einsum("bld,dh->blh", k, params["wk"], precision=hp).reshape(B, Lk, n_head, d_k)
    V = jnp.einsum("bld,dh->blh", v, params["wv"], precision=hp).reshape(B, Lk, n_head, d_v)
    Q = jnp.transpose(Q, (2, 0, 1, 3)).reshape(-1, Lq, d_k)
    K = jnp.transpose(K, (2, 0, 1, 3)).reshape(-1, Lk, d_k)
    V = jnp.transpose(V, (2, 0, 1, 3)).reshape(-1, Lk, d_v)
    attn = jnp.einsum("bqd,bkd->bqk", Q, K, precision=hp) / (float(d_k) ** 0.5)
    attn = jax.nn.softmax(attn, axis=-1)
    out = jnp.einsum("bqk,bkd->bqd", attn, V, precision=hp)
    out = out.reshape(n_head, B, Lq, d_v)
    out = jnp.transpose(out, (1, 2, 0, 3)).reshape(B, Lq, n_head * d_v)
    out = jnp.einsum("blh,hd->bld", out, params["wfc"], precision=hp) + params["bfc"]
    out = out + residual
    mean = out.mean(-1, keepdims=True)
    var = ((out - mean) ** 2).mean(-1, keepdims=True)
    return (out - mean) / jnp.sqrt(var + LN_EPS) * params["gamma"] + params["beta"]


def init_params(key, d_model, n_head, d_k, d_v):
    ks = jax.random.split(key, 5)
    std_qk = (2.0 / (d_model + d_k)) ** 0.5
    std_v = (2.0 / (d_model + d_v)) ** 0.5
    std_fc = (2.0 / (n_head * d_v + d_model)) ** 0.5   # xavier_normal
    return {
        # Linear weights stored as (in, out) == PyTorch W.T
        "wq":  std_qk * jax.random.normal(ks[0], (d_model, n_head * d_k), jnp.float32),
        "wk":  std_qk * jax.random.normal(ks[1], (d_model, n_head * d_k), jnp.float32),
        "wv":  std_v * jax.random.normal(ks[2], (d_model, n_head * d_v), jnp.float32),
        "wfc": std_fc * jax.random.normal(ks[3], (n_head * d_v, d_model), jnp.float32),
        "bfc": 0.01 * jax.random.normal(ks[4], (1, d_model), jnp.float32),
        # LayerNorm affine (defaults)
        "gamma": jnp.ones((1, d_model), jnp.float32),
        "beta":  jnp.zeros((1, d_model), jnp.float32),
    }


if __name__ == "__main__":
    key = jax.random.PRNGKey(0)
    kq, kk, kv_, kp = jax.random.split(key, 4)

    batch, seq, d_model = 2, 128, 128
    n_head, d_k, d_v = 4, 32, 32

    q = jax.random.normal(kq, (batch, seq, d_model), jnp.float32)
    k = jax.random.normal(kk, (batch, seq, d_model), jnp.float32)
    v = jax.random.normal(kv_, (batch, seq, d_model), jnp.float32)
    params = init_params(kp, d_model, n_head, d_k, d_v)

    out = multi_head_attention(q, k, v, params, n_head=n_head, d_k=d_k, d_v=d_v)
    jax.block_until_ready(out)

    ref = mha_ref(q, k, v, params, n_head=n_head, d_k=d_k, d_v=d_v)
    assert out.shape == (batch, seq, d_model)
    # bf16 MXU operands (f32 accumulation) vs an f32-HIGHEST reference -> bf16 tolerance.
    assert jnp.allclose(out, ref, rtol=2e-2, atol=3e-2), "mismatch vs reference"

    print("KERNEL_OK")
</pallas_src>

<mosaic_0001>
module attributes {stable_mosaic.version = 11 : i64} {
  func.func @_mha_flash_kernel(%arg0: i32, %arg1: i32, %arg2: i32, %arg3: memref<1x128x128xf32, #tpu.memory_space<vmem>>, %arg4: memref<1x128x128xbf16, #tpu.memory_space<vmem>>, %arg5: memref<1x128x128xbf16, #tpu.memory_space<vmem>>, %arg6: memref<4x128x32xbf16, #tpu.memory_space<vmem>>, %arg7: memref<4x128x32xbf16, #tpu.memory_space<vmem>>, %arg8: memref<4x128x32xbf16, #tpu.memory_space<vmem>>, %arg9: memref<4x32x128xbf16, #tpu.memory_space<vmem>>, %arg10: memref<1x128xf32, #tpu.memory_space<vmem>>, %arg11: memref<1x128xf32, #tpu.memory_space<vmem>>, %arg12: memref<1x128xf32, #tpu.memory_space<vmem>>, %arg13: memref<1x128x128xf32, #tpu.memory_space<vmem>>, %arg14: memref<4x128x32xbf16, #tpu.memory_space<vmem>>, %arg15: memref<4x128x1xf32, #tpu.memory_space<vmem>>, %arg16: memref<4x128x1xf32, #tpu.memory_space<vmem>>, %arg17: memref<4x128x32xf32, #tpu.memory_space<vmem>>) attributes {dimension_semantics = [#tpu.dimension_semantics<parallel>, #tpu.dimension_semantics<parallel>, #tpu.dimension_semantics<arbitrary>], iteration_bounds = array<i64: 2, 1, 1>, scalar_prefetch = 0 : i64, scratch_operands = 4 : i64, tpu.core_type = #tpu.core_type<tc>, window_params = [{transform_indices = @transform_0, window_bounds = array<i64: 1, 128, 128>}, {transform_indices = @transform_1, window_bounds = array<i64: 1, 128, 128>}, {transform_indices = @transform_2, window_bounds = array<i64: 1, 128, 128>}, {pipeline_mode = #tpu.pipeline_mode<synchronous>, transform_indices = @transform_3, window_bounds = array<i64: 4, 128, 32>}, {pipeline_mode = #tpu.pipeline_mode<synchronous>, transform_indices = @transform_4, window_bounds = array<i64: 4, 128, 32>}, {pipeline_mode = #tpu.pipeline_mode<synchronous>, transform_indices = @transform_5, window_bounds = array<i64: 4, 128, 32>}, {pipeline_mode = #tpu.pipeline_mode<synchronous>, transform_indices = @transform_6, window_bounds = array<i64: 4, 32, 128>}, {pipeline_mode = #tpu.pipeline_mode<synchronous>, transform_indices = @transform_7, window_bounds = array<i64: 1, 128>}, {pipeline_mode = #tpu.pipeline_mode<synchronous>, transform_indices = @transform_8, window_bounds = array<i64: 1, 128>}, {pipeline_mode = #tpu.pipeline_mode<synchronous>, transform_indices = @transform_9, window_bounds = array<i64: 1, 128>}, {transform_indices = @transform_10, window_bounds = array<i64: 1, 128, 128>}]} {
    %c0_i32 = arith.constant 0 : i32
    %0 = arith.cmpi eq, %arg2, %c0_i32 : i32
    %1 = arith.extui %0 : i1 to i32
    %c0_i32_0 = arith.constant 0 : i32
    %2 = arith.cmpi ne, %1, %c0_i32_0 : i32
    scf.if %2 {
      %c0_140 = arith.constant 0 : index
      %c0_141 = arith.constant 0 : index
      %c0_142 = arith.constant 0 : index
      %190 = vector.load %arg3[%c0_140, %c0_141, %c0_142] : memref<1x128x128xf32, #tpu.memory_space<vmem>>, vector<1x128x128xf32>
      %191 = vector.shape_cast %190 : vector<1x128x128xf32> to vector<128x128xf32>
      %192 = arith.truncf %191 : vector<128x128xf32> to vector<128x128xbf16>
      %c0_143 = arith.constant 0 : index
      %c0_144 = arith.constant 0 : index
      %c0_145 = arith.constant 0 : index
      %193 = vector.load %arg6[%c0_143, %c0_144, %c0_145] : memref<4x128x32xbf16, #tpu.memory_space<vmem>>, vector<1x128x32xbf16>
      %194 = vector.shape_cast %193 : vector<1x128x32xbf16> to vector<128x32xbf16>
      %cst_146 = arith.constant dense<0.000000e+00> : vector<128x32xf32>
      %195 = tpu.matmul %192, %194, %cst_146 {dimension_numbers = #tpu.dot_dimension_numbers<[1], [0], [0], [1], [0, 0, 1, 1], [], []>} : vector<128x128xbf16>, vector<128x32xbf16>, vector<128x32xf32> -> vector<128x32xf32>
      %196 = arith.truncf %195 : vector<128x32xf32> to vector<128x32xbf16>
      %c0_147 = arith.constant 0 : index
      %c0_148 = arith.constant 0 : index
      %c0_149 = arith.constant 0 : index
      %197 = vector.load %arg14[%c0_147, %c0_148, %c0_149] : memref<4x128x32xbf16, #tpu.memory_space<vmem>>, vector<1x128x32xbf16>
      %198 = vector.shape_cast %197 : vector<1x128x32xbf16> to vector<128x32xbf16>
      %199 = vector.shape_cast %196 : vector<128x32xbf16> to vector<1x128x32xbf16>
      tpu.vector_store %arg14[%c0_147, %c0_148, %c0_149], %199 {strides = array<i32>} : memref<4x128x32xbf16, #tpu.memory_space<vmem>>, vector<1x128x32xbf16>,
      %c1_150 = arith.constant 1 : index
      %c0_151 = arith.constant 0 : index
      %c0_152 = arith.constant 0 : index
      %200 = vector.load %arg6[%c1_150, %c0_151, %c0_152] : memref<4x128x32xbf16, #tpu.memory_space<vmem>>, vector<1x128x32xbf16>
      %201 = vector.shape_cast %200 : vector<1x128x32xbf16> to vector<128x32xbf16>
      %cst_153 = arith.constant dense<0.000000e+00> : vector<128x32xf32>
      %202 = tpu.matmul %192, %201, %cst_153 {dimension_numbers = #tpu.dot_dimension_numbers<[1], [0], [0], [1], [0, 0, 1, 1], [], []>} : vector<128x128xbf16>, vector<128x32xbf16>, vector<128x32xf32> -> vector<128x32xf32>
      %203 = arith.truncf %202 : vector<128x32xf32> to vector<128x32xbf16>
      %c1_154 = arith.constant 1 : index
      %c0_155 = arith.constant 0 : index
      %c0_156 = arith.constant 0 : index
      %204 = vector.load %arg14[%c1_154, %c0_155, %c0_156] : memref<4x128x32xbf16, #tpu.memory_space<vmem>>, vector<1x128x32xbf16>
      %205 = vector.shape_cast %204 : vector<1x128x32xbf16> to vector<128x32xbf16>
      %206 = vector.shape_cast %203 : vector<128x32xbf16> to vector<1x128x32xbf16>
      tpu.vector_store %arg14[%c1_154, %c0_155, %c0_156], %206 {strides = array<i32>} : memref<4x128x32xbf16, #tpu.memory_space<vmem>>, vector<1x128x32xbf16>,
      %c2_157 = arith.constant 2 : index
      %c0_158 = arith.constant 0 : index
      %c0_159 = arith.constant 0 : index
      %207 = vector.load %arg6[%c2_157, %c0_158, %c0_159] : memref<4x128x32xbf16, #tpu.memory_space<vmem>>, vector<1x128x32xbf16>
      %208 = vector.shape_cast %207 : vector<1x128x32xbf16> to vector<128x32xbf16>
      %cst_160 = arith.constant dense<0.000000e+00> : vector<128x32xf32>
      %209 = tpu.matmul %192, %208, %cst_160 {dimension_numbers = #tpu.dot_dimension_numbers<[1], [0], [0], [1], [0, 0, 1, 1], [], []>} : vector<128x128xbf16>, vector<128x32xbf16>, vector<128x32xf32> -> vector<128x32xf32>
      %210 = arith.truncf %209 : vector<128x32xf32> to vector<128x32xbf16>
      %c2_161 = arith.constant 2 : index
      %c0_162 = arith.constant 0 : index
      %c0_163 = arith.constant 0 : index
      %211 = vector.load %arg14[%c2_161, %c0_162, %c0_163] : memref<4x128x32xbf16, #tpu.memory_space<vmem>>, vector<1x128x32xbf16>
      %212 = vector.shape_cast %211 : vector<1x128x32xbf16> to vector<128x32xbf16>
      %213 = vector.shape_cast %210 : vector<128x32xbf16> to vector<1x128x32xbf16>
      tpu.vector_store %arg14[%c2_161, %c0_162, %c0_163], %213 {strides = array<i32>} : memref<4x128x32xbf16, #tpu.memory_space<vmem>>, vector<1x128x32xbf16>,
      %c3_164 = arith.constant 3 : index
      %c0_165 = arith.constant 0 : index
      %c0_166 = arith.constant 0 : index
      %214 = vector.load %arg6[%c3_164, %c0_165, %c0_166] : memref<4x128x32xbf16, #tpu.memory_space<vmem>>, vector<1x128x32xbf16>
      %215 = vector.shape_cast %214 : vector<1x128x32xbf16> to vector<128x32xbf16>
      %cst_167 = arith.constant dense<0.000000e+00> : vector<128x32xf32>
      %216 = tpu.matmul %192, %215, %cst_167 {dimension_numbers = #tpu.dot_dimension_numbers<[1], [0], [0], [1], [0, 0, 1, 1], [], []>} : vector<128x128xbf16>, vector<128x32xbf16>, vector<128x32xf32> -> vector<128x32xf32>
      %217 = arith.truncf %216 : vector<128x32xf32> to vector<128x32xbf16>
      %c3_168 = arith.constant 3 : index
      %c0_169 = arith.constant 0 : index
      %c0_170 = arith.constant 0 : index
      %218 = vector.load %arg14[%c3_168, %c0_169, %c0_170] : memref<4x128x32xbf16, #tpu.memory_space<vmem>>, vector<1x128x32xbf16>
      %219 = vector.shape_cast %218 : vector<1x128x32xbf16> to vector<128x32xbf16>
      %220 = vector.shape_cast %217 : vector<128x32xbf16> to vector<1x128x32xbf16>
      tpu.vector_store %arg14[%c3_168, %c0_169, %c0_170], %220 {strides = array<i32>} : memref<4x128x32xbf16, #tpu.memory_space<vmem>>, vector<1x128x32xbf16>,
      %cst_171 = arith.constant 0xFF800000 : f32
      %221 = vector.broadcast %cst_171 : f32 to vector<4x128x1xf32>
      %c0_172 = arith.constant 0 : index
      %c0_173 = arith.constant 0 : index
      %c0_174 = arith.constant 0 : index
      %222 = vector.load %arg15[%c0_172, %c0_173, %c0_174] : memref<4x128x1xf32, #tpu.memory_space<vmem>>, vector<4x128x1xf32>
      tpu.vector_store %arg15[%c0_172, %c0_173, %c0_174], %221 {strides = array<i32>} : memref<4x128x1xf32, #tpu.memory_space<vmem>>, vector<4x128x1xf32>,
      %cst_175 = arith.constant 0.000000e+00 : f32
      %223 = vector.broadcast %cst_175 : f32 to vector<4x128x1xf32>
      %c0_176 = arith.constant 0 : index
      %c0_177 = arith.constant 0 : index
      %c0_178 = arith.constant 0 : index
      %224 = vector.load %arg16[%c0_176, %c0_177, %c0_178] : memref<4x128x1xf32, #tpu.memory_space<vmem>>, vector<4x128x1xf32>
      tpu.vector_store %arg16[%c0_176, %c0_177, %c0_178], %223 {strides = array<i32>} : memref<4x128x1xf32, #tpu.memory_space<vmem>>, vector<4x128x1xf32>,
      %cst_179 = arith.constant 0.000000e+00 : f32
      %225 = vector.broadcast %cst_179 : f32 to vector<4x128x32xf32>
      %c0_180 = arith.constant 0 : index
      %c0_181 = arith.constant 0 : index
      %c0_182 = arith.constant 0 : index
      %226 = vector.load %arg17[%c0_180, %c0_181, %c0_182] : memref<4x128x32xf32, #tpu.memory_space<vmem>>, vector<4x128x32xf32>
      tpu.vector_store %arg17[%c0_180, %c0_181, %c0_182], %225 {strides = array<i32>} : memref<4x128x32xf32, #tpu.memory_space<vmem>>, vector<4x128x32xf32>,
    } else {
    }
    %c0 = arith.constant 0 : index
    %c0_1 = arith.constant 0 : index
    %c0_2 = arith.constant 0 : index
    %3 = vector.load %arg4[%c0, %c0_1, %c0_2] : memref<1x128x128xbf16, #tpu.memory_space<vmem>>, vector<1x128x128xbf16>
    %4 = vector.shape_cast %3 : vector<1x128x128xbf16> to vector<128x128xbf16>
    %c0_3 = arith.constant 0 : index
    %c0_4 = arith.constant 0 : index
    %c0_5 = arith.constant 0 : index
    %5 = vector.load %arg5[%c0_3, %c0_4, %c0_5] : memref<1x128x128xbf16, #tpu.memory_space<vmem>>, vector<1x128x128xbf16>
    %6 = vector.shape_cast %5 : vector<1x128x128xbf16> to vector<128x128xbf16>
    %c0_6 = arith.constant 0 : index
    %c0_7 = arith.constant 0 : index
    %c0_8 = arith.constant 0 : index
    %7 = vector.load %arg7[%c0_6, %c0_7, %c0_8] : memref<4x128x32xbf16, #tpu.memory_space<vmem>>, vector<1x128x32xbf16>
    %8 = vector.shape_cast %7 : vector<1x128x32xbf16> to vector<128x32xbf16>
    %cst = arith.constant dense<0.000000e+00> : vector<128x32xf32>
    %9 = tpu.matmul %4, %8, %cst {dimension_numbers = #tpu.dot_dimension_numbers<[1], [0], [0], [1], [0, 0, 1, 1], [], []>} : vector<128x128xbf16>, vector<128x32xbf16>, vector<128x32xf32> -> vector<128x32xf32>
    %10 = arith.truncf %9 : vector<128x32xf32> to vector<128x32xbf16>
    %c0_9 = arith.constant 0 : index
    %c0_10 = arith.constant 0 : index
    %c0_11 = arith.constant 0 : index
    %11 = vector.load %arg8[%c0_9, %c0_10, %c0_11] : memref<4x128x32xbf16, #tpu.memory_space<vmem>>, vector<1x128x32xbf16>
    %12 = vector.shape_cast %11 : vector<1x128x32xbf16> to vector<128x32xbf16>
    %cst_12 = arith.constant dense<0.000000e+00> : vector<128x32xf32>
    %13 = tpu.matmul %6, %12, %cst_12 {dimension_numbers = #tpu.dot_dimension_numbers<[1], [0], [0], [1], [0, 0, 1, 1], [], []>} : vector<128x128xbf16>, vector<128x32xbf16>, vector<128x32xf32> -> vector<128x32xf32>
    %14 = arith.truncf %13 : vector<128x32xf32> to vector<128x32xbf16>
    %c0_13 = arith.constant 0 : index
    %c0_14 = arith.constant 0 : index
    %c0_15 = arith.constant 0 : index
    %15 = vector.load %arg14[%c0_13, %c0_14, %c0_15] : memref<4x128x32xbf16, #tpu.memory_space<vmem>>, vector<1x128x32xbf16>
    %16 = vector.shape_cast %15 : vector<1x128x32xbf16> to vector<128x32xbf16>
    %cst_16 = arith.constant dense<0.000000e+00> : vector<128x128xf32>
    %17 = tpu.matmul %16, %10, %cst_16 {dimension_numbers = #tpu.dot_dimension_numbers<[1], [1], [0], [0], [0, 0, 1, 0], [], []>} : vector<128x32xbf16>, vector<128x32xbf16>, vector<128x128xf32> -> vector<128x128xf32>
    %cst_17 = arith.constant 0.176776692 : f32
    %18 = vector.broadcast %cst_17 : f32 to vector<128x128xf32>
    %19 = arith.mulf %17, %18 : vector<128x128xf32>
    %c0_18 = arith.constant 0 : index
    %c0_19 = arith.constant 0 : index
    %c0_20 = arith.constant 0 : index
    %20 = vector.load %arg15[%c0_18, %c0_19, %c0_20] : memref<4x128x1xf32, #tpu.memory_space<vmem>>, vector<1x128x1xf32>
    %21 = vector.shape_cast %20 : vector<1x128x1xf32> to vector<128x1xf32>
    %cst_21 = arith.constant dense<0xFF800000> : vector<128xf32>
    %22 = vector.multi_reduction <maximumf>, %19, %cst_21 [1] : vector<128x128xf32> to vector<128xf32>
    %23 = vector.shape_cast %22 : vector<128xf32> to vector<128x1xf32>
    %24 = arith.maximumf %21, %23 : vector<128x1xf32>
    %25 = arith.subf %21, %24 : vector<128x1xf32>
    %26 = math.exp %25 : vector<128x1xf32>
    %27 = vector.broadcast %24 : vector<128x1xf32> to vector<128x128xf32>
    %28 = arith.subf %19, %27 : vector<128x128xf32>
    %29 = math.exp %28 : vector<128x128xf32>
    %c0_22 = arith.constant 0 : index
    %c0_23 = arith.constant 0 : index
    %c0_24 = arith.constant 0 : index
    %30 = vector.load %arg16[%c0_22, %c0_23, %c0_24] : memref<4x128x1xf32, #tpu.memory_space<vmem>>, vector<1x128x1xf32>
    %31 = vector.shape_cast %30 : vector<1x128x1xf32> to vector<128x1xf32>
    %32 = arith.mulf %26, %31 : vector<128x1xf32>
    %cst_25 = arith.constant dense<0.000000e+00> : vector<128xf32>
    %33 = vector.multi_reduction <add>, %29, %cst_25 [1] : vector<128x128xf32> to vector<128xf32>
    %34 = vector.shape_cast %33 : vector<128xf32> to vector<128x1xf32>
    %35 = arith.addf %32, %34 : vector<128x1xf32>
    %c0_26 = arith.constant 0 : index
    %c0_27 = arith.constant 0 : index
    %c0_28 = arith.constant 0 : index
    %36 = vector.load %arg16[%c0_26, %c0_27, %c0_28] : memref<4x128x1xf32, #tpu.memory_space<vmem>>, vector<1x128x1xf32>
    %37 = vector.shape_cast %36 : vector<1x128x1xf32> to vector<128x1xf32>
    %38 = vector.shape_cast %35 : vector<128x1xf32> to vector<1x128x1xf32>
    tpu.vector_store %arg16[%c0_26, %c0_27, %c0_28], %38 {strides = array<i32>} : memref<4x128x1xf32, #tpu.memory_space<vmem>>, vector<1x128x1xf32>,
    %c0_29 = arith.constant 0 : index
    %c0_30 = arith.constant 0 : index
    %c0_31 = arith.constant 0 : index
    %39 = vector.load %arg17[%c0_29, %c0_30, %c0_31] : memref<4x128x32xf32, #tpu.memory_space<vmem>>, vector<1x128x32xf32>
    %40 = vector.shape_cast %39 : vector<1x128x32xf32> to vector<128x32xf32>
    %41 = vector.broadcast %26 : vector<128x1xf32> to vector<128x32xf32>
    %42 = arith.mulf %41, %40 : vector<128x32xf32>
    %43 = arith.truncf %29 : vector<128x128xf32> to vector<128x128xbf16>
    %cst_32 = arith.constant dense<0.000000e+00> : vector<128x32xf32>
    %44 = tpu.matmul %43, %14, %cst_32 {dimension_numbers = #tpu.dot_dimension_numbers<[1], [0], [0], [1], [0, 0, 1, 1], [], []>} : vector<128x128xbf16>, vector<128x32xbf16>, vector<128x32xf32> -> vector<128x32xf32>
    %45 = arith.addf %42, %44 : vector<128x32xf32>
    %c0_33 = arith.constant 0 : index
    %c0_34 = arith.constant 0 : index
    %c0_35 = arith.constant 0 : index
    %46 = vector.load %arg17[%c0_33, %c0_34, %c0_35] : memref<4x128x32xf32, #tpu.memory_space<vmem>>, vector<1x128x32xf32>
    %47 = vector.shape_cast %46 : vector<1x128x32xf32> to vector<128x32xf32>
    %48 = vector.shape_cast %45 : vector<128x32xf32> to vector<1x128x32xf32>
    tpu.vector_store %arg17[%c0_33, %c0_34, %c0_35], %48 {strides = array<i32>} : memref<4x128x32xf32, #tpu.memory_space<vmem>>, vector<1x128x32xf32>,
    %c0_36 = arith.constant 0 : index
    %c0_37 = arith.constant 0 : index
    %c0_38 = arith.constant 0 : index
    %49 = vector.load %arg15[%c0_36, %c0_37, %c0_38] : memref<4x128x1xf32, #tpu.memory_space<vmem>>, vector<1x128x1xf32>
    %50 = vector.shape_cast %49 : vector<1x128x1xf32> to vector<128x1xf32>
    %51 = vector.shape_cast %24 : vector<128x1xf32> to vector<1x128x1xf32>
    tpu.vector_store %arg15[%c0_36, %c0_37, %c0_38], %51 {strides = array<i32>} : memref<4x128x1xf32, #tpu.memory_space<vmem>>, vector<1x128x1xf32>,
    %c1 = arith.constant 1 : index
    %c0_39 = arith.constant 0 : index
    %c0_40 = arith.constant 0 : index
    %52 = vector.load %arg7[%c1, %c0_39, %c0_40] : memref<4x128x32xbf16, #tpu.memory_space<vmem>>, vector<1x128x32xbf16>
    %53 = vector.shape_cast %52 : vector<1x128x32xbf16> to vector<128x32xbf16>
    %cst_41 = arith.constant dense<0.000000e+00> : vector<128x32xf32>
    %54 = tpu.matmul %4, %53, %cst_41 {dimension_numbers = #tpu.dot_dimension_numbers<[1], [0], [0], [1], [0, 0, 1, 1], [], []>} : vector<128x128xbf16>, vector<128x32xbf16>, vector<128x32xf32> -> vector<128x32xf32>
    %55 = arith.truncf %54 : vector<128x32xf32> to vector<128x32xbf16>
    %c1_42 = arith.constant 1 : index
    %c0_43 = arith.constant 0 : index
    %c0_44 = arith.constant 0 : index
    %56 = vector.load %arg8[%c1_42, %c0_43, %c0_44] : memref<4x128x32xbf16, #tpu.memory_space<vmem>>, vector<1x128x32xbf16>
    %57 = vector.shape_cast %56 : vector<1x128x32xbf16> to vector<128x32xbf16>
    %cst_45 = arith.constant dense<0.000000e+00> : vector<128x32xf32>
    %58 = tpu.matmul %6, %57, %cst_45 {dimension_numbers = #tpu.dot_dimension_numbers<[1], [0], [0], [1], [0, 0, 1, 1], [], []>} : vector<128x128xbf16>, vector<128x32xbf16>, vector<128x32xf32> -> vector<128x32xf32>
    %59 = arith.truncf %58 : vector<128x32xf32> to vector<128x32xbf16>
    %c1_46 = arith.constant 1 : index
    %c0_47 = arith.constant 0 : index
    %c0_48 = arith.constant 0 : index
    %60 = vector.load %arg14[%c1_46, %c0_47, %c0_48] : memref<4x128x32xbf16, #tpu.memory_space<vmem>>, vector<1x128x32xbf16>
    %61 = vector.shape_cast %60 : vector<1x128x32xbf16> to vector<128x32xbf16>
    %cst_49 = arith.constant dense<0.000000e+00> : vector<128x128xf32>
    %62 = tpu.matmul %61, %55, %cst_49 {dimension_numbers = #tpu.dot_dimension_numbers<[1], [1], [0], [0], [0, 0, 1, 0], [], []>} : vector<128x32xbf16>, vector<128x32xbf16>, vector<128x128xf32> -> vector<128x128xf32>
    %cst_50 = arith.constant 0.176776692 : f32
    %63 = vector.broadcast %cst_50 : f32 to vector<128x128xf32>
    %64 = arith.mulf %62, %63 : vector<128x128xf32>
    %c1_51 = arith.constant 1 : index
    %c0_52 = arith.constant 0 : index
    %c0_53 = arith.constant 0 : index
    %65 = vector.load %arg15[%c1_51, %c0_52, %c0_53] : memref<4x128x1xf32, #tpu.memory_space<vmem>>, vector<1x128x1xf32>
    %66 = vector.shape_cast %65 : vector<1x128x1xf32> to vector<128x1xf32>
    %cst_54 = arith.constant dense<0xFF800000> : vector<128xf32>
    %67 = vector.multi_reduction <maximumf>, %64, %cst_54 [1] : vector<128x128xf32> to vector<128xf32>
    %68 = vector.shape_cast %67 : vector<128xf32> to vector<128x1xf32>
    %69 = arith.maximumf %66, %68 : vector<128x1xf32>
    %70 = arith.subf %66, %69 : vector<128x1xf32>
    %71 = math.exp %70 : vector<128x1xf32>
    %72 = vector.broadcast %69 : vector<128x1xf32> to vector<128x128xf32>
    %73 = arith.subf %64, %72 : vector<128x128xf32>
    %74 = math.exp %73 : vector<128x128xf32>
    %c1_55 = arith.constant 1 : index
    %c0_56 = arith.constant 0 : index
    %c0_57 = arith.constant 0 : index
    %75 = vector.load %arg16[%c1_55, %c0_56, %c0_57] : memref<4x128x1xf32, #tpu.memory_space<vmem>>, vector<1x128x1xf32>
    %76 = vector.shape_cast %75 : vector<1x128x1xf32> to vector<128x1xf32>
    %77 = arith.mulf %71, %76 : vector<128x1xf32>
    %cst_58 = arith.constant dense<0.000000e+00> : vector<128xf32>
    %78 = vector.multi_reduction <add>, %74, %cst_58 [1] : vector<128x128xf32> to vector<128xf32>
    %79 = vector.shape_cast %78 : vector<128xf32> to vector<128x1xf32>
    %80 = arith.addf %77, %79 : vector<128x1xf32>
    %c1_59 = arith.constant 1 : index
    %c0_60 = arith.constant 0 : index
    %c0_61 = arith.constant 0 : index
    %81 = vector.load %arg16[%c1_59, %c0_60, %c0_61] : memref<4x128x1xf32, #tpu.memory_space<vmem>>, vector<1x128x1xf32>
    %82 = vector.shape_cast %81 : vector<1x128x1xf32> to vector<128x1xf32>
    %83 = vector.shape_cast %80 : vector<128x1xf32> to vector<1x128x1xf32>
    tpu.vector_store %arg16[%c1_59, %c0_60, %c0_61], %83 {strides = array<i32>} : memref<4x128x1xf32, #tpu.memory_space<vmem>>, vector<1x128x1xf32>,
    %c1_62 = arith.constant 1 : index
    %c0_63 = arith.constant 0 : index
    %c0_64 = arith.constant 0 : index
    %84 = vector.load %arg17[%c1_62, %c0_63, %c0_64] : memref<4x128x32xf32, #tpu.memory_space<vmem>>, vector<1x128x32xf32>
    %85 = vector.shape_cast %84 : vector<1x128x32xf32> to vector<128x32xf32>
    %86 = vector.broadcast %71 : vector<128x1xf32> to vector<128x32xf32>
    %87 = arith.mulf %86, %85 : vector<128x32xf32>
    %88 = arith.truncf %74 : vector<128x128xf32> to vector<128x128xbf16>
    %cst_65 = arith.constant dense<0.000000e+00> : vector<128x32xf32>
    %89 = tpu.matmul %88, %59, %cst_65 {dimension_numbers = #tpu.dot_dimension_numbers<[1], [0], [0], [1], [0, 0, 1, 1], [], []>} : vector<128x128xbf16>, vector<128x32xbf16>, vector<128x32xf32> -> vector<128x32xf32>
    %90 = arith.addf %87, %89 : vector<128x32xf32>
    %c1_66 = arith.constant 1 : index
    %c0_67 = arith.constant 0 : index
    %c0_68 = arith.constant 0 : index
    %91 = vector.load %arg17[%c1_66, %c0_67, %c0_68] : memref<4x128x32xf32, #tpu.memory_space<vmem>>, vector<1x128x32xf32>
    %92 = vector.shape_cast %91 : vector<1x128x32xf32> to vector<128x32xf32>
    %93 = vector.shape_cast %90 : vector<128x32xf32> to vector<1x128x32xf32>
    tpu.vector_store %arg17[%c1_66, %c0_67, %c0_68], %93 {strides = array<i32>} : memref<4x128x32xf32, #tpu.memory_space<vmem>>, vector<1x128x32xf32>,
    %c1_69 = arith.constant 1 : index
    %c0_70 = arith.constant 0 : index
    %c0_71 = arith.constant 0 : index
    %94 = vector.load %arg15[%c1_69, %c0_70, %c0_71] : memref<4x128x1xf32, #tpu.memory_space<vmem>>, vector<1x128x1xf32>
    %95 = vector.shape_cast %94 : vector<1x128x1xf32> to vector<128x1xf32>
    %96 = vector.shape_cast %69 : vector<128x1xf32> to vector<1x128x1xf32>
    tpu.vector_store %arg15[%c1_69, %c0_70, %c0_71], %96 {strides = array<i32>} : memref<4x128x1xf32, #tpu.memory_space<vmem>>, vector<1x128x1xf32>,
    %c2 = arith.constant 2 : index
    %c0_72 = arith.constant 0 : index
    %c0_73 = arith.constant 0 : index
    %97 = vector.load %arg7[%c2, %c0_72, %c0_73] : memref<4x128x32xbf16, #tpu.memory_space<vmem>>, vector<1x128x32xbf16>
    %98 = vector.shape_cast %97 : vector<1x128x32xbf16> to vector<128x32xbf16>
    %cst_74 = arith.constant dense<0.000000e+00> : vector<128x32xf32>
    %99 = tpu.matmul %4, %98, %cst_74 {dimension_numbers = #tpu.dot_dimension_numbers<[1], [0], [0], [1], [0, 0, 1, 1], [], []>} : vector<128x128xbf16>, vector<128x32xbf16>, vector<128x32xf32> -> vector<128x32xf32>
    %100 = arith.truncf %99 : vector<128x32xf32> to vector<128x32xbf16>
    %c2_75 = arith.constant 2 : index
    %c0_76 = arith.constant 0 : index
    %c0_77 = arith.constant 0 : index
    %101 = vector.load %arg8[%c2_75, %c0_76, %c0_77] : memref<4x128x32xbf16, #tpu.memory_space<vmem>>, vector<1x128x32xbf16>
    %102 = vector.shape_cast %101 : vector<1x128x32xbf16> to vector<128x32xbf16>
    %cst_78 = arith.constant dense<0.000000e+00> : vector<128x32xf32>
    %103 = tpu.matmul %6, %102, %cst_78 {dimension_numbers = #tpu.dot_dimension_numbers<[1], [0], [0], [1], [0, 0, 1, 1], [], []>} : vector<128x128xbf16>, vector<128x32xbf16>, vector<128x32xf32> -> vector<128x32xf32>
    %104 = arith.truncf %103 : vector<128x32xf32> to vector<128x32xbf16>
    %c2_79 = arith.constant 2 : index
    %c0_80 = arith.constant 0 : index
    %c0_81 = arith.constant 0 : index
    %105 = vector.load %arg14[%c2_79, %c0_80, %c0_81] : memref<4x128x32xbf16, #tpu.memory_space<vmem>>, vector<1x128x32xbf16>
    %106 = vector.shape_cast %105 : vector<1x128x32xbf16> to vector<128x32xbf16>
    %cst_82 = arith.constant dense<0.000000e+00> : vector<128x128xf32>
    %107 = tpu.matmul %106, %100, %cst_82 {dimension_numbers = #tpu.dot_dimension_numbers<[1], [1], [0], [0], [0, 0, 1, 0], [], []>} : vector<128x32xbf16>, vector<128x32xbf16>, vector<128x128xf32> -> vector<128x128xf32>
    %cst_83 = arith.constant 0.176776692 : f32
    %108 = vector.broadcast %cst_83 : f32 to vector<128x128xf32>
    %109 = arith.mulf %107, %108 : vector<128x128xf32>
    %c2_84 = arith.constant 2 : index
    %c0_85 = arith.constant 0 : index
    %c0_86 = arith.constant 0 : index
    %110 = vector.load %arg15[%c2_84, %c0_85, %c0_86] : memref<4x128x1xf32, #tpu.memory_space<vmem>>, vector<1x128x1xf32>
    %111 = vector.shape_cast %110 : vector<1x128x1xf32> to vector<128x1xf32>
    %cst_87 = arith.constant dense<0xFF800000> : vector<128xf32>
    %112 = vector.multi_reduction <maximumf>, %109, %cst_87 [1] : vector<128x128xf32> to vector<128xf32>
    %113 = vector.shape_cast %112 : vector<128xf32> to vector<128x1xf32>
    %114 = arith.maximumf %111, %113 : vector<128x1xf32>
    %115 = arith.subf %111, %114 : vector<128x1xf32>
    %116 = math.exp %115 : vector<128x1xf32>
    %117 = vector.broadcast %114 : vector<128x1xf32> to vector<128x128xf32>
    %118 = arith.subf %109, %117 : vector<128x128xf32>
    %119 = math.exp %118 : vector<128x128xf32>
    %c2_88 = arith.constant 2 : index
    %c0_89 = arith.constant 0 : index
    %c0_90 = arith.constant 0 : index
    %120 = vector.load %arg16[%c2_88, %c0_89, %c0_90] : memref<4x128x1xf32, #tpu.memory_space<vmem>>, vector<1x128x1xf32>
    %121 = vector.shape_cast %120 : vector<1x128x1xf32> to vector<128x1xf32>
    %122 = arith.mulf %116, %121 : vector<128x1xf32>
    %cst_91 = arith.constant dense<0.000000e+00> : vector<128xf32>
    %123 = vector.multi_reduction <add>, %119, %cst_91 [1] : vector<128x128xf32> to vector<128xf32>
    %124 = vector.shape_cast %123 : vector<128xf32> to vector<128x1xf32>
    %125 = arith.addf %122, %124 : vector<128x1xf32>
    %c2_92 = arith.constant 2 : index
    %c0_93 = arith.constant 0 : index
    %c0_94 = arith.constant 0 : index
    %126 = vector.load %arg16[%c2_92, %c0_93, %c0_94] : memref<4x128x1xf32, #tpu.memory_space<vmem>>, vector<1x128x1xf32>
    %127 = vector.shape_cast %126 : vector<1x128x1xf32> to vector<128x1xf32>
    %128 = vector.shape_cast %125 : vector<128x1xf32> to vector<1x128x1xf32>
    tpu.vector_store %arg16[%c2_92, %c0_93, %c0_94], %128 {strides = array<i32>} : memref<4x128x1xf32, #tpu.memory_space<vmem>>, vector<1x128x1xf32>,
    %c2_95 = arith.constant 2 : index
    %c0_96 = arith.constant 0 : index
    %c0_97 = arith.constant 0 : index
    %129 = vector.load %arg17[%c2_95, %c0_96, %c0_97] : memref<4x128x32xf32, #tpu.memory_space<vmem>>, vector<1x128x32xf32>
    %130 = vector.shape_cast %129 : vector<1x128x32xf32> to vector<128x32xf32>
    %131 = vector.broadcast %116 : vector<128x1xf32> to vector<128x32xf32>
    %132 = arith.mulf %131, %130 : vector<128x32xf32>
    %133 = arith.truncf %119 : vector<128x128xf32> to vector<128x128xbf16>
    %cst_98 = arith.constant dense<0.000000e+00> : vector<128x32xf32>
    %134 = tpu.matmul %133, %104, %cst_98 {dimension_numbers = #tpu.dot_dimension_numbers<[1], [0], [0], [1], [0, 0, 1, 1], [], []>} : vector<128x128xbf16>, vector<128x32xbf16>, vector<128x32xf32> -> vector<128x32xf32>
    %135 = arith.addf %132, %134 : vector<128x32xf32>
    %c2_99 = arith.constant 2 : index
    %c0_100 = arith.constant 0 : index
    %c0_101 = arith.constant 0 : index
    %136 = vector.load %arg17[%c2_99, %c0_100, %c0_101] : memref<4x128x32xf32, #tpu.memory_space<vmem>>, vector<1x128x32xf32>
    %137 = vector.shape_cast %136 : vector<1x128x32xf32> to vector<128x32xf32>
    %138 = vector.shape_cast %135 : vector<128x32xf32> to vector<1x128x32xf32>
    tpu.vector_store %arg17[%c2_99, %c0_100, %c0_101], %138 {strides = array<i32>} : memref<4x128x32xf32, #tpu.memory_space<vmem>>, vector<1x128x32xf32>,
    %c2_102 = arith.constant 2 : index
    %c0_103 = arith.constant 0 : index
    %c0_104 = arith.constant 0 : index
    %139 = vector.load %arg15[%c2_102, %c0_103, %c0_104] : memref<4x128x1xf32, #tpu.memory_space<vmem>>, vector<1x128x1xf32>
    %140 = vector.shape_cast %139 : vector<1x128x1xf32> to vector<128x1xf32>
    %141 = vector.shape_cast %114 : vector<128x1xf32> to vector<1x128x1xf32>
    tpu.vector_store %arg15[%c2_102, %c0_103, %c0_104], %141 {strides = array<i32>} : memref<4x128x1xf32, #tpu.memory_space<vmem>>, vector<1x128x1xf32>,
    %c3 = arith.constant 3 : index
    %c0_105 = arith.constant 0 : index
    %c0_106 = arith.constant 0 : index
    %142 = vector.load %arg7[%c3, %c0_105, %c0_106] : memref<4x128x32xbf16, #tpu.memory_space<vmem>>, vector<1x128x32xbf16>
    %143 = vector.shape_cast %142 : vector<1x128x32xbf16> to vector<128x32xbf16>
    %cst_107 = arith.constant dense<0.000000e+00> : vector<128x32xf32>
    %144 = tpu.matmul %4, %143, %cst_107 {dimension_numbers = #tpu.dot_dimension_numbers<[1], [0], [0], [1], [0, 0, 1, 1], [], []>} : vector<128x128xbf16>, vector<128x32xbf16>, vector<128x32xf32> -> vector<128x32xf32>
    %145 = arith.truncf %144 : vector<128x32xf32> to vector<128x32xbf16>
    %c3_108 = arith.constant 3 : index
    %c0_109 = arith.constant 0 : index
    %c0_110 = arith.constant 0 : index
    %146 = vector.load %arg8[%c3_108, %c0_109, %c0_110] : memref<4x128x32xbf16, #tpu.memory_space<vmem>>, vector<1x128x32xbf16>
    %147 = vector.shape_cast %146 : vector<1x128x32xbf16> to vector<128x32xbf16>
    %cst_111 = arith.constant dense<0.000000e+00> : vector<128x32xf32>
    %148 = tpu.matmul %6, %147, %cst_111 {dimension_numbers = #tpu.dot_dimension_numbers<[1], [0], [0], [1], [0, 0, 1, 1], [], []>} : vector<128x128xbf16>, vector<128x32xbf16>, vector<128x32xf32> -> vector<128x32xf32>
    %149 = arith.truncf %148 : vector<128x32xf32> to vector<128x32xbf16>
    %c3_112 = arith.constant 3 : index
    %c0_113 = arith.constant 0 : index
    %c0_114 = arith.constant 0 : index
    %150 = vector.load %arg14[%c3_112, %c0_113, %c0_114] : memref<4x128x32xbf16, #tpu.memory_space<vmem>>, vector<1x128x32xbf16>
    %151 = vector.shape_cast %150 : vector<1x128x32xbf16> to vector<128x32xbf16>
    %cst_115 = arith.constant dense<0.000000e+00> : vector<128x128xf32>
    %152 = tpu.matmul %151, %145, %cst_115 {dimension_numbers = #tpu.dot_dimension_numbers<[1], [1], [0], [0], [0, 0, 1, 0], [], []>} : vector<128x32xbf16>, vector<128x32xbf16>, vector<128x128xf32> -> vector<128x128xf32>
    %cst_116 = arith.constant 0.176776692 : f32
    %153 = vector.broadcast %cst_116 : f32 to vector<128x128xf32>
    %154 = arith.mulf %152, %153 : vector<128x128xf32>
    %c3_117 = arith.constant 3 : index
    %c0_118 = arith.constant 0 : index
    %c0_119 = arith.constant 0 : index
    %155 = vector.load %arg15[%c3_117, %c0_118, %c0_119] : memref<4x128x1xf32, #tpu.memory_space<vmem>>, vector<1x128x1xf32>
    %156 = vector.shape_cast %155 : vector<1x128x1xf32> to vector<128x1xf32>
    %cst_120 = arith.constant dense<0xFF800000> : vector<128xf32>
    %157 = vector.multi_reduction <maximumf>, %154, %cst_120 [1] : vector<128x128xf32> to vector<128xf32>
    %158 = vector.shape_cast %157 : vector<128xf32> to vector<128x1xf32>
    %159 = arith.maximumf %156, %158 : vector<128x1xf32>
    %160 = arith.subf %156, %159 : vector<128x1xf32>
    %161 = math.exp %160 : vector<128x1xf32>
    %162 = vector.broadcast %159 : vector<128x1xf32> to vector<128x128xf32>
    %163 = arith.subf %154, %162 : vector<128x128xf32>
    %164 = math.exp %163 : vector<128x128xf32>
    %c3_121 = arith.constant 3 : index
    %c0_122 = arith.constant 0 : index
    %c0_123 = arith.constant 0 : index
    %165 = vector.load %arg16[%c3_121, %c0_122, %c0_123] : memref<4x128x1xf32, #tpu.memory_space<vmem>>, vector<1x128x1xf32>
    %166 = vector.shape_cast %165 : vector<1x128x1xf32> to vector<128x1xf32>
    %167 = arith.mulf %161, %166 : vector<128x1xf32>
    %cst_124 = arith.constant dense<0.000000e+00> : vector<128xf32>
    %168 = vector.multi_reduction <add>, %164, %cst_124 [1] : vector<128x128xf32> to vector<128xf32>
    %169 = vector.shape_cast %168 : vector<128xf32> to vector<128x1xf32>
    %170 = arith.addf %167, %169 : vector<128x1xf32>
    %c3_125 = arith.constant 3 : index
    %c0_126 = arith.constant 0 : index
    %c0_127 = arith.constant 0 : index
    %171 = vector.load %arg16[%c3_125, %c0_126, %c0_127] : memref<4x128x1xf32, #tpu.memory_space<vmem>>, vector<1x128x1xf32>
    %172 = vector.shape_cast %171 : vector<1x128x1xf32> to vector<128x1xf32>
    %173 = vector.shape_cast %170 : vector<128x1xf32> to vector<1x128x1xf32>
    tpu.vector_store %arg16[%c3_125, %c0_126, %c0_127], %173 {strides = array<i32>} : memref<4x128x1xf32, #tpu.memory_space<vmem>>, vector<1x128x1xf32>,
    %c3_128 = arith.constant 3 : index
    %c0_129 = arith.constant 0 : index
    %c0_130 = arith.constant 0 : index
    %174 = vector.load %arg17[%c3_128, %c0_129, %c0_130] : memref<4x128x32xf32, #tpu.memory_space<vmem>>, vector<1x128x32xf32>
    %175 = vector.shape_cast %174 : vector<1x128x32xf32> to vector<128x32xf32>
    %176 = vector.broadcast %161 : vector<128x1xf32> to vector<128x32xf32>
    %177 = arith.mulf %176, %175 : vector<128x32xf32>
    %178 = arith.truncf %164 : vector<128x128xf32> to vector<128x128xbf16>
    %cst_131 = arith.constant dense<0.000000e+00> : vector<128x32xf32>
    %179 = tpu.matmul %178, %149, %cst_131 {dimension_numbers = #tpu.dot_dimension_numbers<[1], [0], [0], [1], [0, 0, 1, 1], [], []>} : vector<128x128xbf16>, vector<128x32xbf16>, vector<128x32xf32> -> vector<128x32xf32>
    %180 = arith.addf %177, %179 : vector<128x32xf32>
    %c3_132 = arith.constant 3 : index
    %c0_133 = arith.constant 0 : index
    %c0_134 = arith.constant 0 : index
    %181 = vector.load %arg17[%c3_132, %c0_133, %c0_134] : memref<4x128x32xf32, #tpu.memory_space<vmem>>, vector<1x128x32xf32>
    %182 = vector.shape_cast %181 : vector<1x128x32xf32> to vector<128x32xf32>
    %183 = vector.shape_cast %180 : vector<128x32xf32> to vector<1x128x32xf32>
    tpu.vector_store %arg17[%c3_132, %c0_133, %c0_134], %183 {strides = array<i32>} : memref<4x128x32xf32, #tpu.memory_space<vmem>>, vector<1x128x32xf32>,
    %c3_135 = arith.constant 3 : index
    %c0_136 = arith.constant 0 : index
    %c0_137 = arith.constant 0 : index
    %184 = vector.load %arg15[%c3_135, %c0_136, %c0_137] : memref<4x128x1xf32, #tpu.memory_space<vmem>>, vector<1x128x1xf32>
    %185 = vector.shape_cast %184 : vector<1x128x1xf32> to vector<128x1xf32>
    %186 = vector.shape_cast %159 : vector<128x1xf32> to vector<1x128x1xf32>
    tpu.vector_store %arg15[%c3_135, %c0_136, %c0_137], %186 {strides = array<i32>} : memref<4x128x1xf32, #tpu.memory_space<vmem>>, vector<1x128x1xf32>,
    %c0_i32_138 = arith.constant 0 : i32
    %187 = arith.cmpi eq, %arg2, %c0_i32_138 : i32
    %188 = arith.extui %187 : i1 to i32
    %c0_i32_139 = arith.constant 0 : i32
    %189 = arith.cmpi ne, %188, %c0_i32_139 : i32
    scf.if %189 {
      %cst_140 = arith.constant 0.000000e+00 : f32
      %190 = vector.broadcast %cst_140 : f32 to vector<128x128xf32>
      %c0_141 = arith.constant 0 : index
      %c0_142 = arith.constant 0 : index
      %c0_143 = arith.constant 0 : index
      %191 = vector.load %arg16[%c0_141, %c0_142, %c0_143] : memref<4x128x1xf32, #tpu.memory_space<vmem>>, vector<1x128x1xf32>
      %192 = vector.shape_cast %191 : vector<1x128x1xf32> to vector<128x1xf32>
      %193 = tpu.reciprocal %192 {approx = true} : vector<128x1xf32> -> vector<128x1xf32>
      %c0_144 = arith.constant 0 : index
      %c0_145 = arith.constant 0 : index
      %c0_146 = arith.constant 0 : index
      %194 = vector.load %arg17[%c0_144, %c0_145, %c0_146] : memref<4x128x32xf32, #tpu.memory_space<vmem>>, vector<1x128x32xf32>
      %195 = vector.shape_cast %194 : vector<1x128x32xf32> to vector<128x32xf32>
      %196 = vector.broadcast %193 : vector<128x1xf32> to vector<128x32xf32>
      %197 = arith.mulf %195, %196 : vector<128x32xf32>
      %198 = arith.truncf %197 : vector<128x32xf32> to vector<128x32xbf16>
      %c0_147 = arith.constant 0 : index
      %c0_148 = arith.constant 0 : index
      %c0_149 = arith.constant 0 : index
      %199 = vector.load %arg9[%c0_147, %c0_148, %c0_149] : memref<4x32x128xbf16, #tpu.memory_space<vmem>>, vector<1x32x128xbf16>
      %200 = vector.shape_cast %199 : vector<1x32x128xbf16> to vector<32x128xbf16>
      %cst_150 = arith.constant dense<0.000000e+00> : vector<128x128xf32>
      %201 = tpu.matmul %198, %200, %cst_150 {dimension_numbers = #tpu.dot_dimension_numbers<[1], [0], [0], [1], [0, 0, 1, 1], [], []>} : vector<128x32xbf16>, vector<32x128xbf16>, vector<128x128xf32> -> vector<128x128xf32>
      %202 = arith.addf %190, %201 : vector<128x128xf32>
      %c1_151 = arith.constant 1 : index
      %c0_152 = arith.constant 0 : index
      %c0_153 = arith.constant 0 : index
      %203 = vector.load %arg16[%c1_151, %c0_152, %c0_153] : memref<4x128x1xf32, #tpu.memory_space<vmem>>, vector<1x128x1xf32>
      %204 = vector.shape_cast %203 : vector<1x128x1xf32> to vector<128x1xf32>
      %205 = tpu.reciprocal %204 {approx = true} : vector<128x1xf32> -> vector<128x1xf32>
      %c1_154 = arith.constant 1 : index
      %c0_155 = arith.constant 0 : index
      %c0_156 = arith.constant 0 : index
      %206 = vector.load %arg17[%c1_154, %c0_155, %c0_156] : memref<4x128x32xf32, #tpu.memory_space<vmem>>, vector<1x128x32xf32>
      %207 = vector.shape_cast %206 : vector<1x128x32xf32> to vector<128x32xf32>
      %208 = vector.broadcast %205 : vector<128x1xf32> to vector<128x32xf32>
      %209 = arith.mulf %207, %208 : vector<128x32xf32>
      %210 = arith.truncf %209 : vector<128x32xf32> to vector<128x32xbf16>
      %c1_157 = arith.constant 1 : index
      %c0_158 = arith.constant 0 : index
      %c0_159 = arith.constant 0 : index
      %211 = vector.load %arg9[%c1_157, %c0_158, %c0_159] : memref<4x32x128xbf16, #tpu.memory_space<vmem>>, vector<1x32x128xbf16>
      %212 = vector.shape_cast %211 : vector<1x32x128xbf16> to vector<32x128xbf16>
      %cst_160 = arith.constant dense<0.000000e+00> : vector<128x128xf32>
      %213 = tpu.matmul %210, %212, %cst_160 {dimension_numbers = #tpu.dot_dimension_numbers<[1], [0], [0], [1], [0, 0, 1, 1], [], []>} : vector<128x32xbf16>, vector<32x128xbf16>, vector<128x128xf32> -> vector<128x128xf32>
      %214 = arith.addf %202, %213 : vector<128x128xf32>
      %c2_161 = arith.constant 2 : index
      %c0_162 = arith.constant 0 : index
      %c0_163 = arith.constant 0 : index
      %215 = vector.load %arg16[%c2_161, %c0_162, %c0_163] : memref<4x128x1xf32, #tpu.memory_space<vmem>>, vector<1x128x1xf32>
      %216 = vector.shape_cast %215 : vector<1x128x1xf32> to vector<128x1xf32>
      %217 = tpu.reciprocal %216 {approx = true} : vector<128x1xf32> -> vector<128x1xf32>
      %c2_164 = arith.constant 2 : index
      %c0_165 = arith.constant 0 : index
      %c0_166 = arith.constant 0 : index
      %218 = vector.load %arg17[%c2_164, %c0_165, %c0_166] : memref<4x128x32xf32, #tpu.memory_space<vmem>>, vector<1x128x32xf32>
      %219 = vector.shape_cast %218 : vector<1x128x32xf32> to vector<128x32xf32>
      %220 = vector.broadcast %217 : vector<128x1xf32> to vector<128x32xf32>
      %221 = arith.mulf %219, %220 : vector<128x32xf32>
      %222 = arith.truncf %221 : vector<128x32xf32> to vector<128x32xbf16>
      %c2_167 = arith.constant 2 : index
      %c0_168 = arith.constant 0 : index
      %c0_169 = arith.constant 0 : index
      %223 = vector.load %arg9[%c2_167, %c0_168, %c0_169] : memref<4x32x128xbf16, #tpu.memory_space<vmem>>, vector<1x32x128xbf16>
      %224 = vector.shape_cast %223 : vector<1x32x128xbf16> to vector<32x128xbf16>
      %cst_170 = arith.constant dense<0.000000e+00> : vector<128x128xf32>
      %225 = tpu.matmul %222, %224, %cst_170 {dimension_numbers = #tpu.dot_dimension_numbers<[1], [0], [0], [1], [0, 0, 1, 1], [], []>} : vector<128x32xbf16>, vector<32x128xbf16>, vector<128x128xf32> -> vector<128x128xf32>
      %226 = arith.addf %214, %225 : vector<128x128xf32>
      %c3_171 = arith.constant 3 : index
      %c0_172 = arith.constant 0 : index
      %c0_173 = arith.constant 0 : index
      %227 = vector.load %arg16[%c3_171, %c0_172, %c0_173] : memref<4x128x1xf32, #tpu.memory_space<vmem>>, vector<1x128x1xf32>
      %228 = vector.shape_cast %227 : vector<1x128x1xf32> to vector<128x1xf32>
      %229 = tpu.reciprocal %228 {approx = true} : vector<128x1xf32> -> vector<128x1xf32>
      %c3_174 = arith.constant 3 : index
      %c0_175 = arith.constant 0 : index
      %c0_176 = arith.constant 0 : index
      %230 = vector.load %arg17[%c3_174, %c0_175, %c0_176] : memref<4x128x32xf32, #tpu.memory_space<vmem>>, vector<1x128x32xf32>
      %231 = vector.shape_cast %230 : vector<1x128x32xf32> to vector<128x32xf32>
      %232 = vector.broadcast %229 : vector<128x1xf32> to vector<128x32xf32>
      %233 = arith.mulf %231, %232 : vector<128x32xf32>
      %234 = arith.truncf %233 : vector<128x32xf32> to vector<128x32xbf16>
      %c3_177 = arith.constant 3 : index
      %c0_178 = arith.constant 0 : index
      %c0_179 = arith.constant 0 : index
      %235 = vector.load %arg9[%c3_177, %c0_178, %c0_179] : memref<4x32x128xbf16, #tpu.memory_space<vmem>>, vector<1x32x128xbf16>
      %236 = vector.shape_cast %235 : vector<1x32x128xbf16> to vector<32x128xbf16>
      %cst_180 = arith.constant dense<0.000000e+00> : vector<128x128xf32>
      %237 = tpu.matmul %234, %236, %cst_180 {dimension_numbers = #tpu.dot_dimension_numbers<[1], [0], [0], [1], [0, 0, 1, 1], [], []>} : vector<128x32xbf16>, vector<32x128xbf16>, vector<128x128xf32> -> vector<128x128xf32>
      %238 = arith.addf %226, %237 : vector<128x128xf32>
      %c0_181 = arith.constant 0 : index
      %c0_182 = arith.constant 0 : index
      %239 = vector.load %arg10[%c0_181, %c0_182] : memref<1x128xf32, #tpu.memory_space<vmem>>, vector<1x128xf32>
      %240 = vector.broadcast %239 : vector<1x128xf32> to vector<128x128xf32>
      %241 = arith.addf %238, %240 : vector<128x128xf32>
      %c0_183 = arith.constant 0 : index
      %c0_184 = arith.constant 0 : index
      %c0_185 = arith.constant 0 : index
      %242 = vector.load %arg3[%c0_183, %c0_184, %c0_185] : memref<1x128x128xf32, #tpu.memory_space<vmem>>, vector<1x128x128xf32>
      %243 = vector.shape_cast %242 : vector<1x128x128xf32> to vector<128x128xf32>
      %244 = arith.addf %241, %243 : vector<128x128xf32>
      %cst_186 = arith.constant dense<0.000000e+00> : vector<128xf32>
      %245 = vector.multi_reduction <add>, %244, %cst_186 [1] : vector<128x128xf32> to vector<128xf32>
      %246 = vector.shape_cast %245 : vector<128xf32> to vector<128x1xf32>
      %cst_187 = arith.constant 1.280000e+02 : f32
      %247 = vector.broadcast %cst_187 : f32 to vector<128x1xf32>
      %248 = arith.divf %246, %247 : vector<128x1xf32>
      %249 = vector.broadcast %248 : vector<128x1xf32> to vector<128x128xf32>
      %250 = arith.subf %244, %249 : vector<128x128xf32>
      %251 = arith.mulf %250, %250 : vector<128x128xf32>
      %cst_188 = arith.constant dense<0.000000e+00> : vector<128xf32>
      %252 = vector.multi_reduction <add>, %251, %cst_188 [1] : vector<128x128xf32> to vector<128xf32>
      %253 = vector.shape_cast %252 : vector<128xf32> to vector<128x1xf32>
      %cst_189 = arith.constant 1.280000e+02 : f32
      %254 = vector.broadcast %cst_189 : f32 to vector<128x1xf32>
      %255 = arith.divf %253, %254 : vector<128x1xf32>
      %cst_190 = arith.constant 9.99999974E-6 : f32
      %256 = vector.broadcast %cst_190 : f32 to vector<128x1xf32>
      %257 = arith.addf %255, %256 : vector<128x1xf32>
      %258 = math.rsqrt %257 : vector<128x1xf32>
      %259 = vector.broadcast %258 : vector<128x1xf32> to vector<128x128xf32>
      %260 = arith.mulf %250, %259 : vector<128x128xf32>
      %c0_191 = arith.constant 0 : index
      %c0_192 = arith.constant 0 : index
      %261 = vector.load %arg11[%c0_191, %c0_192] : memref<1x128xf32, #tpu.memory_space<vmem>>, vector<1x128xf32>
      %262 = vector.broadcast %261 : vector<1x128xf32> to vector<128x128xf32>
      %263 = arith.mulf %260, %262 : vector<128x128xf32>
      %c0_193 = arith.constant 0 : index
      %c0_194 = arith.constant 0 : index
      %264 = vector.load %arg12[%c0_193, %c0_194] : memref<1x128xf32, #tpu.memory_space<vmem>>, vector<1x128xf32>
      %265 = vector.broadcast %264 : vector<1x128xf32> to vector<128x128xf32>
      %266 = arith.addf %263, %265 : vector<128x128xf32>
      %c0_195 = arith.constant 0 : index
      %c0_196 = arith.constant 0 : index
      %c0_197 = arith.constant 0 : index
      %267 = vector.load %arg13[%c0_195, %c0_196, %c0_197] : memref<1x128x128xf32, #tpu.memory_space<vmem>>, vector<1x128x128xf32>
      %268 = vector.shape_cast %267 : vector<1x128x128xf32> to vector<128x128xf32>
      %269 = vector.shape_cast %266 : vector<128x128xf32> to vector<1x128x128xf32>
      tpu.vector_store %arg13[%c0_195, %c0_196, %c0_197], %269 {strides = array<i32>} : memref<1x128x128xf32, #tpu.memory_space<vmem>>, vector<1x128x128xf32>,
    } else {
    }
    return
  }
  func.func @transform_0(%arg0: i32, %arg1: i32, %arg2: i32) -> (i32, i32, i32) {
    %c0_i32 = arith.constant 0 : i32
    %c0_i32_0 = arith.constant 0 : i32
    return %arg0, %arg1, %c0_i32 : i32, i32, i32
  }
  func.func @transform_1(%arg0: i32, %arg1: i32, %arg2: i32) -> (i32, i32, i32) {
    %c0_i32 = arith.constant 0 : i32
    %c0_i32_0 = arith.constant 0 : i32
    return %arg0, %arg2, %c0_i32 : i32, i32, i32
  }
  func.func @transform_2(%arg0: i32, %arg1: i32, %arg2: i32) -> (i32, i32, i32) {
    %c0_i32 = arith.constant 0 : i32
    %c0_i32_0 = arith.constant 0 : i32
    return %arg0, %arg2, %c0_i32 : i32, i32, i32
  }
  func.func @transform_3(%arg0: i32, %arg1: i32, %arg2: i32) -> (i32, i32, i32) {
    %c0_i32 = arith.constant 0 : i32
    %c0_i32_0 = arith.constant 0 : i32
    %c0_i32_1 = arith.constant 0 : i32
    %c0_i32_2 = arith.constant 0 : i32
    return %c0_i32, %c0_i32_0, %c0_i32_1 : i32, i32, i32
  }
  func.func @transform_4(%arg0: i32, %arg1: i32, %arg2: i32) -> (i32, i32, i32) {
    %c0_i32 = arith.constant 0 : i32
    %c0_i32_0 = arith.constant 0 : i32
    %c0_i32_1 = arith.constant 0 : i32
    %c0_i32_2 = arith.constant 0 : i32
    return %c0_i32, %c0_i32_0, %c0_i32_1 : i32, i32, i32
  }
  func.func @transform_5(%arg0: i32, %arg1: i32, %arg2: i32) -> (i32, i32, i32) {
    %c0_i32 = arith.constant 0 : i32
    %c0_i32_0 = arith.constant 0 : i32
    %c0_i32_1 = arith.constant 0 : i32
    %c0_i32_2 = arith.constant 0 : i32
    return %c0_i32, %c0_i32_0, %c0_i32_1 : i32, i32, i32
  }
  func.func @transform_6(%arg0: i32, %arg1: i32, %arg2: i32) -> (i32, i32, i32) {
    %c0_i32 = arith.constant 0 : i32
    %c0_i32_0 = arith.constant 0 : i32
    %c0_i32_1 = arith.constant 0 : i32
    %c0_i32_2 = arith.constant 0 : i32
    return %c0_i32, %c0_i32_0, %c0_i32_1 : i32, i32, i32
  }
  func.func @transform_7(%arg0: i32, %arg1: i32, %arg2: i32) -> (i32, i32) {
    %c0_i32 = arith.constant 0 : i32
    %c0_i32_0 = arith.constant 0 : i32
    %c0_i32_1 = arith.constant 0 : i32
    return %c0_i32, %c0_i32_0 : i32, i32
  }
  func.func @transform_8(%arg0: i32, %arg1: i32, %arg2: i32) -> (i32, i32) {
    %c0_i32 = arith.constant 0 : i32
    %c0_i32_0 = arith.constant 0 : i32
    %c0_i32_1 = arith.constant 0 : i32
    return %c0_i32, %c0_i32_0 : i32, i32
  }
  func.func @transform_9(%arg0: i32, %arg1: i32, %arg2: i32) -> (i32, i32) {
    %c0_i32 = arith.constant 0 : i32
    %c0_i32_0 = arith.constant 0 : i32
    %c0_i32_1 = arith.constant 0 : i32
    return %c0_i32, %c0_i32_0 : i32, i32
  }
  func.func @transform_10(%arg0: i32, %arg1: i32, %arg2: i32) -> (i32, i32, i32) {
    %c0_i32 = arith.constant 0 : i32
    %c0_i32_0 = arith.constant 0 : i32
    return %arg0, %arg1, %c0_i32 : i32, i32, i32
  }
}

</mosaic_0001>

<llo_original>
// kernel: tpu_custom_call.1
$region0: #{tpu_custom_call.1}
  #allocation0 [shape = 'u32[]', space=smem, size = 0x4, offset = 0x4, fixed_abs, tag = 'smem constant byte address 0x4 - core index']
  #allocation1 [shape = 'u32[144,128]{1,0:T(1,128)}', space=vmem, size = 0x12000, scoped, tag = 'internal scratch']
  #allocation2 [shape = 'bf16[4,128,32]{2,1,0:T(8,128)(2,1)}', space=vmem, size = 0x20000, scoped, tag = 'scratch operand']
  #allocation3 [shape = 'f32[4,128,1]{2,1,0:T(8,128)}', space=vmem, size = 0x40000, scoped, tag = 'scratch operand']
  #allocation4 [shape = 'f32[4,128,1]{2,1,0:T(8,128)}', space=vmem, size = 0x40000, scoped, tag = 'scratch operand']
  #allocation5 [shape = 'f32[4,128,32]{2,1,0:T(8,128)}', space=vmem, size = 0x40000, scoped, tag = 'scratch operand']
  %s0 = inlined_call_operand.vmem [shape: f32[2,128,128], index: 0, kind: input, shape index: {}]
  %s1 = inlined_call_operand.vmem [shape: bf16[2,128,128], index: 1, kind: input, shape index: {}]
  %s2 = inlined_call_operand.vmem [shape: bf16[2,128,128], index: 2, kind: input, shape index: {}]
  %s3 = inlined_call_operand.vmem [shape: bf16[4,128,32], index: 3, kind: input, shape index: {}]
  %s4 = inlined_call_operand.vmem [shape: bf16[4,128,32], index: 4, kind: input, shape index: {}]
  %s5 = inlined_call_operand.vmem [shape: bf16[4,128,32], index: 5, kind: input, shape index: {}]
  %s6 = inlined_call_operand.vmem [shape: bf16[4,32,128], index: 6, kind: input, shape index: {}]
  %s7 = inlined_call_operand.vmem [shape: f32[1,128], index: 7, kind: input, shape index: {}]
  %s8 = inlined_call_operand.vmem [shape: f32[1,128], index: 8, kind: input, shape index: {}]
  %s9 = inlined_call_operand.vmem [shape: f32[1,128], index: 9, kind: input, shape index: {}]
  %s10 = inlined_call_operand.hbm [shape: f32[2,128,128], index: 10, kind: output, shape index: {}]
  %s11 = sld [smem:[#allocation0]]
  $region81: #{tpu_custom_call.1} parent=0
    _
  %s13 = ssub.s32 1, %s11
  %s14 = scalar_select 0, %s13, %s11
  $region1: #{tpu_custom_call.1} parent=0
    #allocation6 [shape = 'u8[131072]{0}', space=vmem, size = 0x20000, scoped, tag = 'output window, operand 0']
    #allocation7 [shape = 's32[2]{0}', space=sflag, size = 0x8, scoped, tag = 'scoped memory for tpu_custom_call.1']
    %15 = vsyncpa [#allocation7], 0
    %s16 = scalar_lea.sflag [#allocation7], 1
    %17 = vsyncpa %s16, 0
    loop: start=0, step=1, limit=4
    $region2: #{tpu_custom_call.1} parent=1 // loop_pre_header
      _
    $region3: #{tpu_custom_call.1} parent=1 // loop_header
      %s19 = sphi 0, %s23
      %p20 = scmp.ge.s32.totalorder %s19, 4
      %s26 = sphi 0, %s45
      %s27 = sphi 0, %s41
      %s28 = sphi 0, %s37
      %s29 = sphi 0, %s26
      %s30 = sphi 0, %s27
      %s31 = sphi 0, %s28
      %s32 = sphi 0, %s29
      %s33 = sphi 0, %s30
      %s34 = sphi 0, %s31
      %s50 = sphi 0, %s52
      %s53 = sphi 0, %s50
      %s54 = sphi 0, %s53
      %s70 = sphi 0, %s54
      %s78 = sphi 0, %s80
      %s81 = sphi 0, %s78
      %s82 = sphi 0, %s81
      %s98 = sphi 0, %s82
      %s106 = sphi 0, %s108
      %s109 = sphi 0, %s106
      %s110 = sphi 0, %s109
      %s126 = sphi 0, %s110
      %s130 = sphi 0, %s130
      %s132 = sphi 0, %s130
      %s133 = sphi 0, %s132
      %s147 = sphi 0, %s133
      %s151 = sphi 0, %s151
      %s153 = sphi 0, %s151
      %s154 = sphi 0, %s153
      %s168 = sphi 0, %s154
      %s172 = sphi 0, %s172
      %s174 = sphi 0, %s172
      %s175 = sphi 0, %s174
      %s189 = sphi 0, %s175
      %s193 = sphi 0, %s193
      %s195 = sphi 0, %s193
      %s196 = sphi 0, %s195
      %s210 = sphi 0, %s196
      %s214 = sphi 0, %s214
      %s216 = sphi 0, %s214
      %s217 = sphi 0, %s216
      %s231 = sphi 0, %s217
      %s235 = sphi 0, %s235
      %s237 = sphi 0, %s235
      %s238 = sphi 0, %s237
      %s252 = sphi 0, %s238
      %s256 = sphi 0, %s256
      %s258 = sphi 0, %s256
      %s259 = sphi 0, %s258
      %s273 = sphi 0, %s259
      %s281 = sphi 0, %s283
      %s284 = sphi 0, %s281
      %s285 = sphi 0, %s284
      %s301 = sphi 0, %s285
    $region4: #{tpu_custom_call.1} parent=1 // loop_header_branch
      %22 = sbr.rel (%p20) target = $region8
    $region5: #{tpu_custom_call.1} parent=1 // loop_body
      %s24 = ssub.s32 %s19, 1
      %s25 = ssub.s32 %s19, 2
      %s35 = sadd.s32 1, %s28
      %p36 = scmp.ge.s32.totalorder %s35, 1
      %s37 = scalar_select %p36, 0, %s35
      %s38 = sadd.s32 1, %s27
      %s39 = scalar_select %p36, %s38, %s27
      %p40 = scmp.ge.s32.totalorder %s39, 1
      %s41 = scalar_select %p40, 0, %s39
      %s42 = sadd.s32 1, %s26
      %s43 = scalar_select %p40, %s42, %s26
      %p44 = scmp.ge.s32.totalorder %s43, 2
      %s45 = scalar_select %p44, 0, %s43
      %s46 = ssub.s32 %s26, %s45
      %s47 = ssub.s32 %s27, %s41
      %s48 = sor.u32 %s46, %s47
      %p49 = scmp.eq.s32.totalorder %s48, 0
      %s51 = sadd.s32 %s50, 1
      %s52 = scalar_select %p49, %s50, %s51
      %p55 = pneg %p49
      %p56 = scmp.eq.s32.totalorder %s19, 1
      %p57 = por %p55, %p56
      %p58 = scmp.ne.s32.totalorder %s50, %s53
      %p59 = scmp.eq.s32.totalorder %s19, 0
      %p60 = por %p58, %p59
      %p61 = scmp.ne.s32.totalorder %s50, %s53
      %p62 = scmp.eq.s32.totalorder %s24, 1
      %p63 = por %p61, %p62
      %p64 = scmp.ne.s32.totalorder %s53, %s54
      %p65 = scmp.eq.s32.totalorder %s24, 0
      %p66 = por %p64, %p65
      %p67 = scmp.ne.s32.totalorder %s53, %s54
      %p68 = scmp.eq.s32.totalorder %s25, 1
      %p69 = por %p67, %p68
      %p71 = scmp.ne.s32.totalorder %s54, %s70
      %p72 = scmp.eq.s32.totalorder %s25, 0
      %p73 = por %p71, %p72
      %s74 = ssub.s32 %s26, %s45
      %s75 = ssub.s32 %s28, %s37
      %s76 = sor.u32 %s74, %s75
      %p77 = scmp.eq.s32.totalorder %s76, 0
      %s79 = sadd.s32 %s78, 1
      %s80 = scalar_select %p77, %s78, %s79
      %p83 = pneg %p77
      %p84 = scmp.eq.s32.totalorder %s19, 1
      %p85 = por %p83, %p84
      %p86 = scmp.ne.s32.totalorder %s78, %s81
      %p87 = scmp.eq.s32.totalorder %s19, 0
      %p88 = por %p86, %p87
      %p89 = scmp.ne.s32.totalorder %s78, %s81
      %p90 = scmp.eq.s32.totalorder %s24, 1
      %p91 = por %p89, %p90
      %p92 = scmp.ne.s32.totalorder %s81, %s82
      %p93 = scmp.eq.s32.totalorder %s24, 0
      %p94 = por %p92, %p93
      %p95 = scmp.ne.s32.totalorder %s81, %s82
      %p96 = scmp.eq.s32.totalorder %s25, 1
      %p97 = por %p95, %p96
      %p99 = scmp.ne.s32.totalorder %s82, %s98
      %p100 = scmp.eq.s32.totalorder %s25, 0
      %p101 = por %p99, %p100
      %s102 = ssub.s32 %s26, %s45
      %s103 = ssub.s32 %s28, %s37
      %s104 = sor.u32 %s102, %s103
      %p105 = scmp.eq.s32.totalorder %s104, 0
      %s107 = sadd.s32 %s106, 1
      %s108 = scalar_select %p105, %s106, %s107
      %p111 = pneg %p105
      %p112 = scmp.eq.s32.totalorder %s19, 1
      %p113 = por %p111, %p112
      %p114 = scmp.ne.s32.totalorder %s106, %s109
      %p115 = scmp.eq.s32.totalorder %s19, 0
      %p116 = por %p114, %p115
      %p117 = scmp.ne.s32.totalorder %s106, %s109
      %p118 = scmp.eq.s32.totalorder %s24, 1
      %p119 = por %p117, %p118
      %p120 = scmp.ne.s32.totalorder %s109, %s110
      %p121 = scmp.eq.s32.totalorder %s24, 0
      %p122 = por %p120, %p121
      %p123 = scmp.ne.s32.totalorder %s109, %s110
      %p124 = scmp.eq.s32.totalorder %s25, 1
      %p125 = por %p123, %p124
      %p127 = scmp.ne.s32.totalorder %s110, %s126
      %p128 = scmp.eq.s32.totalorder %s25, 0
      %p129 = por %p127, %p128
      %s131 = sadd.s32 %s130, 1
      %p134 = scmp.eq.s32.totalorder %s19, 1
      %p135 = scmp.ne.s32.totalorder %s130, %s132
      %p136 = scmp.eq.s32.totalorder %s19, 0
      %p137 = por %p135, %p136
      %p138 = scmp.ne.s32.totalorder %s130, %s132
      %p139 = scmp.eq.s32.totalorder %s24, 1
      %p140 = por %p138, %p139
      %p141 = scmp.ne.s32.totalorder %s132, %s133
      %p142 = scmp.eq.s32.totalorder %s24, 0
      %p143 = por %p141, %p142
      %p144 = scmp.ne.s32.totalorder %s132, %s133
      %p145 = scmp.eq.s32.totalorder %s25, 1
      %p146 = por %p144, %p145
      %p148 = scmp.ne.s32.totalorder %s133, %s147
      %p149 = scmp.eq.s32.totalorder %s25, 0
      %p150 = por %p148, %p149
      %s152 = sadd.s32 %s151, 1
      %p155 = scmp.eq.s32.totalorder %s19, 1
      %p156 = scmp.ne.s32.totalorder %s151, %s153
      %p157 = scmp.eq.s32.totalorder %s19, 0
      %p158 = por %p156, %p157
      %p159 = scmp.ne.s32.totalorder %s151, %s153
      %p160 = scmp.eq.s32.totalorder %s24, 1
      %p161 = por %p159, %p160
      %p162 = scmp.ne.s32.totalorder %s153, %s154
      %p163 = scmp.eq.s32.totalorder %s24, 0
      %p164 = por %p162, %p163
      %p165 = scmp.ne.s32.totalorder %s153, %s154
      %p166 = scmp.eq.s32.totalorder %s25, 1
      %p167 = por %p165, %p166
      %p169 = scmp.ne.s32.totalorder %s154, %s168
      %p170 = scmp.eq.s32.totalorder %s25, 0
      %p171 = por %p169, %p170
      %s173 = sadd.s32 %s172, 1
      %p176 = scmp.eq.s32.totalorder %s19, 1
      %p177 = scmp.ne.s32.totalorder %s172, %s174
      %p178 = scmp.eq.s32.totalorder %s19, 0
      %p179 = por %p177, %p178
      %p180 = scmp.ne.s32.totalorder %s172, %s174
      %p181 = scmp.eq.s32.totalorder %s24, 1
      %p182 = por %p180, %p181
      %p183 = scmp.ne.s32.totalorder %s174, %s175
      %p184 = scmp.eq.s32.totalorder %s24, 0
      %p185 = por %p183, %p184
      %p186 = scmp.ne.s32.totalorder %s174, %s175
      %p187 = scmp.eq.s32.totalorder %s25, 1
      %p188 = por %p186, %p187
      %p190 = scmp.ne.s32.totalorder %s175, %s189
      %p191 = scmp.eq.s32.totalorder %s25, 0
      %p192 = por %p190, %p191
      %s194 = sadd.s32 %s193, 1
      %p197 = scmp.eq.s32.totalorder %s19, 1
      %p198 = scmp.ne.s32.totalorder %s193, %s195
      %p199 = scmp.eq.s32.totalorder %s19, 0
      %p200 = por %p198, %p199
      %p201 = scmp.ne.s32.totalorder %s193, %s195
      %p202 = scmp.eq.s32.totalorder %s24, 1
      %p203 = por %p201, %p202
      %p204 = scmp.ne.s32.totalorder %s195, %s196
      %p205 = scmp.eq.s32.totalorder %s24, 0
      %p206 = por %p204, %p205
      %p207 = scmp.ne.s32.totalorder %s195, %s196
      %p208 = scmp.eq.s32.totalorder %s25, 1
      %p209 = por %p207, %p208
      %p211 = scmp.ne.s32.totalorder %s196, %s210
      %p212 = scmp.eq.s32.totalorder %s25, 0
      %p213 = por %p211, %p212
      %s215 = sadd.s32 %s214, 1
      %p218 = scmp.eq.s32.totalorder %s19, 1
      %p219 = scmp.ne.s32.totalorder %s214, %s216
      %p220 = scmp.eq.s32.totalorder %s19, 0
      %p221 = por %p219, %p220
      %p222 = scmp.ne.s32.totalorder %s214, %s216
      %p223 = scmp.eq.s32.totalorder %s24, 1
      %p224 = por %p222, %p223
      %p225 = scmp.ne.s32.totalorder %s216, %s217
      %p226 = scmp.eq.s32.totalorder %s24, 0
      %p227 = por %p225, %p226
      %p228 = scmp.ne.s32.totalorder %s216, %s217
      %p229 = scmp.eq.s32.totalorder %s25, 1
      %p230 = por %p228, %p229
      %p232 = scmp.ne.s32.totalorder %s217, %s231
      %p233 = scmp.eq.s32.totalorder %s25, 0
      %p234 = por %p232, %p233
      %s236 = sadd.s32 %s235, 1
      %p239 = scmp.eq.s32.totalorder %s19, 1
      %p240 = scmp.ne.s32.totalorder %s235, %s237
      %p241 = scmp.eq.s32.totalorder %s19, 0
      %p242 = por %p240, %p241
      %p243 = scmp.ne.s32.totalorder %s235, %s237
      %p244 = scmp.eq.s32.totalorder %s24, 1
      %p245 = por %p243, %p244
      %p246 = scmp.ne.s32.totalorder %s237, %s238
      %p247 = scmp.eq.s32.totalorder %s24, 0
      %p248 = por %p246, %p247
      %p249 = scmp.ne.s32.totalorder %s237, %s238
      %p250 = scmp.eq.s32.totalorder %s25, 1
      %p251 = por %p249, %p250
      %p253 = scmp.ne.s32.totalorder %s238, %s252
      %p254 = scmp.eq.s32.totalorder %s25, 0
      %p255 = por %p253, %p254
      %s257 = sadd.s32 %s256, 1
      %p260 = scmp.eq.s32.totalorder %s19, 1
      %p261 = scmp.ne.s32.totalorder %s256, %s258
      %p262 = scmp.eq.s32.totalorder %s19, 0
      %p263 = por %p261, %p262
      %p264 = scmp.ne.s32.totalorder %s256, %s258
      %p265 = scmp.eq.s32.totalorder %s24, 1
      %p266 = por %p264, %p265
      %p267 = scmp.ne.s32.totalorder %s258, %s259
      %p268 = scmp.eq.s32.totalorder %s24, 0
      %p269 = por %p267, %p268
      %p270 = scmp.ne.s32.totalorder %s258, %s259
      %p271 = scmp.eq.s32.totalorder %s25, 1
      %p272 = por %p270, %p271
      %p274 = scmp.ne.s32.totalorder %s259, %s273
      %p275 = scmp.eq.s32.totalorder %s25, 0
      %p276 = por %p274, %p275
      %s277 = ssub.s32 %s26, %s45
      %s278 = ssub.s32 %s27, %s41
      %s279 = sor.u32 %s277, %s278
      %p280 = scmp.eq.s32.totalorder %s279, 0
      %s282 = sadd.s32 %s281, 1
      %s283 = scalar_select %p280, %s281, %s282
      %p286 = pneg %p280
      %p287 = scmp.eq.s32.totalorder %s19, 1
      %p288 = por %p286, %p287
      %p289 = scmp.ne.s32.totalorder %s281, %s284
      %p290 = scmp.eq.s32.totalorder %s19, 0
      %p291 = por %p289, %p290
      %p292 = scmp.ne.s32.totalorder %s281, %s284
      %p293 = scmp.eq.s32.totalorder %s24, 1
      %p294 = por %p292, %p293
      %p295 = scmp.ne.s32.totalorder %s284, %s285
      %p296 = scmp.eq.s32.totalorder %s24, 0
      %p297 = por %p295, %p296
      %p298 = scmp.ne.s32.totalorder %s284, %s285
      %p299 = scmp.eq.s32.totalorder %s25, 1
      %p300 = por %p298, %p299
      %p302 = scmp.ne.s32.totalorder %s285, %s301
      %p303 = scmp.eq.s32.totalorder %s25, 0
      %p304 = por %p302, %p303
      %p305 = scmp.le.s32.totalorder 1, %s19
      %p306 = scmp.lt.s32.totalorder %s19, 3
      %p307 = pnand %p305, %p306
      %p308 = pneg %p307
      // Predicated region
      $region9: #{tpu_custom_call.1} parent=5 // pred_check
        _
      $region10: #{tpu_custom_call.1} parent=5 // pred_check_branch
        %310 = sbr.rel (%p307) target = $region12
      $region11: #{tpu_custom_call.1} parent=5 // pred_region
        %s311 = ssub.s32 %s19, 1
        // Predicated region
        $region13: #{tpu_custom_call.1} parent=11 // pred_check
          %p312 = pneg %p143
        $region14: #{tpu_custom_call.1} parent=11 // pred_check_branch
          %314 = sbr.rel (%p312) target = $region16
        $region15: #{tpu_custom_call.1} parent=11 // pred_region
          _
        $region16: #{tpu_custom_call.1} parent=11 // pred_fallthru
          _
        // Predicated region
        $region17: #{tpu_custom_call.1} parent=11 // pred_check
          %p315 = pneg %p164
        $region18: #{tpu_custom_call.1} parent=11 // pred_check_branch
          %317 = sbr.rel (%p315) target = $region20
        $region19: #{tpu_custom_call.1} parent=11 // pred_region
          _
        $region20: #{tpu_custom_call.1} parent=11 // pred_fallthru
          _
        // Predicated region
        $region21: #{tpu_custom_call.1} parent=11 // pred_check
          %p318 = pneg %p185
        $region22: #{tpu_custom_call.1} parent=11 // pred_check_branch
          %320 = sbr.rel (%p318) target = $region24
        $region23: #{tpu_custom_call.1} parent=11 // pred_region
          _
        $region24: #{tpu_custom_call.1} parent=11 // pred_fallthru
          _
        // Predicated region
        $region25: #{tpu_custom_call.1} parent=11 // pred_check
          %p321 = pneg %p206
        $region26: #{tpu_custom_call.1} parent=11 // pred_check_branch
          %323 = sbr.rel (%p321) target = $region28
        $region27: #{tpu_custom_call.1} parent=11 // pred_region
          _
        $region28: #{tpu_custom_call.1} parent=11 // pred_fallthru
          _
        // Predicated region
        $region29: #{tpu_custom_call.1} parent=11 // pred_check
          %p324 = pneg %p227
        $region30: #{tpu_custom_call.1} parent=11 // pred_check_branch
          %326 = sbr.rel (%p324) target = $region32
        $region31: #{tpu_custom_call.1} parent=11 // pred_region
          _
        $region32: #{tpu_custom_call.1} parent=11 // pred_fallthru
          _
        // Predicated region
        $region33: #{tpu_custom_call.1} parent=11 // pred_check
          %p327 = pneg %p248
        $region34: #{tpu_custom_call.1} parent=11 // pred_check_branch
          %329 = sbr.rel (%p327) target = $region36
        $region35: #{tpu_custom_call.1} parent=11 // pred_region
          _
        $region36: #{tpu_custom_call.1} parent=11 // pred_fallthru
          _
        // Predicated region
        $region37: #{tpu_custom_call.1} parent=11 // pred_check
          %p330 = pneg %p269
        $region38: #{tpu_custom_call.1} parent=11 // pred_check_branch
          %332 = sbr.rel (%p330) target = $region40
        $region39: #{tpu_custom_call.1} parent=11 // pred_region
          _
        $region40: #{tpu_custom_call.1} parent=11 // pred_fallthru
          _
      $region12: #{tpu_custom_call.1} parent=5 // pred_fallthru
        _
      %p333 = scmp.lt.s32.totalorder %s19, 2
      // Predicated region
      $region41: #{tpu_custom_call.1} parent=5 // pred_check
        %p334 = pneg %p333
      $region42: #{tpu_custom_call.1} parent=5 // pred_check_branch
        %336 = sbr.rel (%p334) target = $region44
      $region43: #{tpu_custom_call.1} parent=5 // pred_region
        // Predicated region
        $region45: #{tpu_custom_call.1} parent=43 // pred_check
          %p337 = pneg %p60
        $region46: #{tpu_custom_call.1} parent=43 // pred_check_branch
          %339 = sbr.rel (%p337) target = $region48
        $region47: #{tpu_custom_call.1} parent=43 // pred_region
          %s340 = smul.u32 16, %s27
          %p341 = scmp.lt.s32.totalorder %s26, 1
          %s342 = scalar_select %p341, %s26, 1
          %p343 = scmp.lt.s32.totalorder %s340, 15
          %s344 = scalar_select %p343, %s340, 15
          %s345 = smul.addr %s342, 16
          %s346 = sadd.s32 %s344, %s345
          %s347 = smul.addr %s346, 8
          %s348 = scalar_lea.vmem %s0, %s347
          %s349 = smul.u32 16, %s27
        $region48: #{tpu_custom_call.1} parent=43 // pred_fallthru
          _
        // Predicated region
        $region49: #{tpu_custom_call.1} parent=43 // pred_check
          %p350 = pneg %p88
        $region50: #{tpu_custom_call.1} parent=43 // pred_check_branch
          %352 = sbr.rel (%p350) target = $region52
        $region51: #{tpu_custom_call.1} parent=43 // pred_region
          %s353 = smul.u32 16, %s28
          %p354 = scmp.lt.s32.totalorder %s26, 1
          %s355 = scalar_select %p354, %s26, 1
          %p356 = scmp.lt.s32.totalorder %s353, 15
          %s357 = scalar_select %p356, %s353, 15
          %s358 = smul.addr %s355, 16
          %s359 = sadd.s32 %s357, %s358
          %s360 = smul.addr %s359, 4
          %s361 = scalar_lea.vmem %s1, %s360
          %s362 = smul.u32 16, %s28
        $region52: #{tpu_custom_call.1} parent=43 // pred_fallthru
          _
        // Predicated region
        $region53: #{tpu_custom_call.1} parent=43 // pred_check
          %p363 = pneg %p116
        $region54: #{tpu_custom_call.1} parent=43 // pred_check_branch
          %365 = sbr.rel (%p363) target = $region56
        $region55: #{tpu_custom_call.1} parent=43 // pred_region
          %s366 = smul.u32 16, %s28
          %p367 = scmp.lt.s32.totalorder %s26, 1
          %s368 = scalar_select %p367, %s26, 1
          %p369 = scmp.lt.s32.totalorder %s366, 15
          %s370 = scalar_select %p369, %s366, 15
          %s371 = smul.addr %s368, 16
          %s372 = sadd.s32 %s370, %s371
          %s373 = smul.addr %s372, 4
          %s374 = scalar_lea.vmem %s2, %s373
          %s375 = smul.u32 16, %s28
        $region56: #{tpu_custom_call.1} parent=43 // pred_fallthru
          _
      $region44: #{tpu_custom_call.1} parent=5 // pred_fallthru
        _
      %p376 = scmp.le.s32.totalorder 1, %s19
      %p377 = scmp.lt.s32.totalorder %s19, 3
      %p378 = pnand %p376, %p377
      %p379 = pneg %p378
      // Predicated region
      $region57: #{tpu_custom_call.1} parent=5 // pred_check
        _
      $region58: #{tpu_custom_call.1} parent=5 // pred_check_branch
        %381 = sbr.rel (%p378) target = $region60
      $region59: #{tpu_custom_call.1} parent=5 // pred_region
        %s382 = ssub.s32 %s19, 1
        %s383 = smul.u32 16, %s30
        %p384 = scmp.lt.s32.totalorder %s29, 1
        %s385 = scalar_select %p384, %s29, 1
        %p386 = scmp.lt.s32.totalorder %s383, 15
        %s387 = scalar_select %p386, %s383, 15
        %s388 = smul.addr %s385, 16
        %s389 = sadd.s32 %s387, %s388
        %s390 = smul.addr %s389, 8
        %s391 = scalar_lea.vmem %s0, %s390
        %p392 = pneg %p66
        %p393 = pneg %p63
        %s394 = smul.u32 16, %s31
        %p395 = scmp.lt.s32.totalorder %s29, 1
        %s396 = scalar_select %p395, %s29, 1
        %p397 = scmp.lt.s32.totalorder %s394, 15
        %s398 = scalar_select %p397, %s394, 15
        %s399 = smul.addr %s396, 16
        %s400 = sadd.s32 %s398, %s399
        %s401 = smul.addr %s400, 4
        %s402 = scalar_lea.vmem %s1, %s401
        %p403 = pneg %p94
        %p404 = pneg %p91
        %s405 = smul.u32 16, %s31
        %p406 = scmp.lt.s32.totalorder %s29, 1
        %s407 = scalar_select %p406, %s29, 1
        %p408 = scmp.lt.s32.totalorder %s405, 15
        %s409 = scalar_select %p408, %s405, 15
        %s410 = smul.addr %s407, 16
        %s411 = sadd.s32 %s409, %s410
        %s412 = smul.addr %s411, 4
        %s413 = scalar_lea.vmem %s2, %s412
        %p414 = pneg %p122
        %p415 = pneg %p119
        %p416 = pneg %p143
        %p417 = pneg %p140
        %p418 = pneg %p164
        %p419 = pneg %p161
        %p420 = pneg %p185
        %p421 = pneg %p182
        %p422 = pneg %p206
        %p423 = pneg %p203
        %p424 = pneg %p227
        %p425 = pneg %p224
        %p426 = pneg %p248
        %p427 = pneg %p245
        %p428 = pneg %p269
        %p429 = pneg %p266
        %p430 = pneg %p297
        %p431 = pneg %p294
        %s432 = sand.u32 %s284, 1
        %s433 = scalar_lea.sflag [#allocation7], %s432
        %s434 = sand.u32 %s284, 1
        %s435 = smul.addr %s434, 128
        %s436 = scalar_lea.vmem [#allocation6], %s435
        %s437 = smul.u32 16, %s30
        %p438 = scmp.lt.s32.totalorder %s29, 1
        %s439 = scalar_select %p438, %s29, 1
        %p440 = scmp.lt.s32.totalorder %s437, 15
        %s441 = scalar_select %p440, %s437, 15
        %s442 = smul.addr %s439, 16
        %s443 = sadd.s32 %s441, %s442
        %s444 = smul.addr %s443, 8
        %s445 = scalar_lea.vmem %s0, %s444
        %s446 = smul.u32 16, %s30
        %s447 = smul.u32 16, %s31
        %p448 = scmp.lt.s32.totalorder %s29, 1
        %s449 = scalar_select %p448, %s29, 1
        %p450 = scmp.lt.s32.totalorder %s447, 15
        %s451 = scalar_select %p450, %s447, 15
        %s452 = smul.addr %s449, 16
        %s453 = sadd.s32 %s451, %s452
        %s454 = smul.addr %s453, 4
        %s455 = scalar_lea.vmem %s1, %s454
        %s456 = smul.u32 16, %s31
        %s457 = smul.u32 16, %s31
        %p458 = scmp.lt.s32.totalorder %s29, 1
        %s459 = scalar_select %p458, %s29, 1
        %p460 = scmp.lt.s32.totalorder %s457, 15
        %s461 = scalar_select %p460, %s457, 15
        %s462 = smul.addr %s459, 16
        %s463 = sadd.s32 %s461, %s462
        %s464 = smul.addr %s463, 4
        %s465 = scalar_lea.vmem %s2, %s464
        %s466 = smul.u32 16, %s31
        %s467 = smul.u32 16, %s30
        %p469 = scmp.eq.s32.totalorder %s31, 0
        // Predicated region
        $region61: #{tpu_custom_call.1} parent=59 // pred_check
          %p470 = pneg %p469
        $region62: #{tpu_custom_call.1} parent=59 // pred_check_branch
          %472 = sbr.rel (%p470) target = $region64
        $region63: #{tpu_custom_call.1} parent=59 // pred_region
          %v473 = vld [vmem:[%s445] sm:$0xff]
          %v474 = vld [vmem:[%s445 + $0x8] sm:$0xff]
          %v475 = vld [vmem:[%s445 + $0x10] sm:$0xff]
          %v476 = vld [vmem:[%s445 + $0x18] sm:$0xff]
          %v477 = vld [vmem:[%s445 + $0x20] sm:$0xff]
          %v478 = vld [vmem:[%s445 + $0x28] sm:$0xff]
          %v479 = vld [vmem:[%s445 + $0x30] sm:$0xff]
          %v480 = vld [vmem:[%s445 + $0x38] sm:$0xff]
          %v481 = vld [vmem:[%s445 + $0x40] sm:$0xff]
          %v482 = vld [vmem:[%s445 + $0x48] sm:$0xff]
          %v483 = vld [vmem:[%s445 + $0x50] sm:$0xff]
          %v484 = vld [vmem:[%s445 + $0x58] sm:$0xff]
          %v485 = vld [vmem:[%s445 + $0x60] sm:$0xff]
          %v486 = vld [vmem:[%s445 + $0x68] sm:$0xff]
          %v487 = vld [vmem:[%s445 + $0x70] sm:$0xff]
          %v488 = vld [vmem:[%s445 + $0x78] sm:$0xff]
          %v489 = vpack.c.bf16 %v474, %v473
          %v490 = vpack.c.bf16 %v476, %v475
          %v491 = vpack.c.bf16 %v478, %v477
          %v492 = vpack.c.bf16 %v480, %v479
          %v493 = vpack.c.bf16 %v482, %v481
          %v494 = vpack.c.bf16 %v484, %v483
          %v495 = vpack.c.bf16 %v486, %v485
          %v496 = vpack.c.bf16 %v488, %v487
          %v497 = vld [vmem:[%s3] sm:$0xf]
          %v498 = vld [vmem:[%s3 + $0x4] sm:$0xf]
          %v499 = vld [vmem:[%s3 + $0x8] sm:$0xf]
          %v500 = vld [vmem:[%s3 + $0xc] sm:$0xf]
          %v501 = vld [vmem:[%s3 + $0x10] sm:$0xf]
          %v502 = vld [vmem:[%s3 + $0x14] sm:$0xf]
          %v503 = vld [vmem:[%s3 + $0x18] sm:$0xf]
          %v504 = vld [vmem:[%s3 + $0x1c] sm:$0xf]
          %v505 = vld [vmem:[%s3 + $0x20] sm:$0xf]
          %v506 = vld [vmem:[%s3 + $0x24] sm:$0xf]
          %v507 = vld [vmem:[%s3 + $0x28] sm:$0xf]
          %v508 = vld [vmem:[%s3 + $0x2c] sm:$0xf]
          %v509 = vld [vmem:[%s3 + $0x30] sm:$0xf]
          %v510 = vld [vmem:[%s3 + $0x34] sm:$0xf]
          %v511 = vld [vmem:[%s3 + $0x38] sm:$0xf]
          %v512 = vld [vmem:[%s3 + $0x3c] sm:$0xf]
          %v529 = vunpack.c.l.b16 %v497
          %v530 = vunpack.c.l.b16 %v498
          %v531 = vunpack.c.l.b16 %v499
          %v532 = vunpack.c.l.b16 %v500
          %v533 = vunpack.c.l.b16 %v501
          %v534 = vunpack.c.l.b16 %v502
          %v535 = vunpack.c.l.b16 %v503
          %v536 = vunpack.c.l.b16 %v504
          %v537 = vunpack.c.l.b16 %v505
          %v538 = vunpack.c.l.b16 %v506
          %v539 = vunpack.c.l.b16 %v507
          %v540 = vunpack.c.l.b16 %v508
          %v541 = vunpack.c.l.b16 %v509
          %v542 = vunpack.c.l.b16 %v510
          %v543 = vunpack.c.l.b16 %v511
          %v544 = vunpack.c.l.b16 %v512
          %v545 = vpack.c.b16 %v530, %v529
          %v546 = vpack.c.b16 %v532, %v531
          %v547 = vpack.c.b16 %v534, %v533
          %v548 = vpack.c.b16 %v536, %v535
          %v549 = vpack.c.b16 %v538, %v537
          %v550 = vpack.c.b16 %v540, %v539
          %v551 = vpack.c.b16 %v542, %v541
          %v552 = vpack.c.b16 %v544, %v543
          %561 = vmatprep.subr.bf16.mxu0 0
          %562 = vmatpush1.bf16.msra.mxu0 %v552
          %563 = vmatprep.subr.bf16.mxu0 0
          %564 = vmatpush1.bf16.msra.mxu0 %v551
          %565 = vmatprep.subr.bf16.mxu0 0
          %566 = vmatpush1.bf16.msra.mxu0 %v550
          %567 = vmatprep.subr.bf16.mxu0 0
          %568 = vmatpush1.bf16.msra.mxu0 %v549
          %569 = vmatprep.subr.bf16.mxu0 0
          %570 = vmatpush1.bf16.msra.mxu0 %v548
          %571 = vmatprep.subr.bf16.mxu0 0
          %572 = vmatpush1.bf16.msra.mxu0 %v547
          %573 = vmatprep.subr.bf16.mxu0 0
          %574 = vmatpush1.bf16.msra.mxu0 %v546
          %575 = vmatprep.subr.bf16.mxu0 0
          %576 = vmatpush1.bf16.msra.mxu0 %v545
          %577 = vmatprep.subr.bf16.mxu0 0
          %578 = vmatpush2.bf16.msra.mxu0 0
          %579 = vmatprep.subr.bf16.mxu0 0
          %580 = vmatpush2.bf16.msra.mxu0 0
          %581 = vmatprep.subr.bf16.mxu0 0
          %582 = vmatpush2.bf16.msra.mxu0 0
          %583 = vmatprep.subr.bf16.mxu0 0
          %584 = vmatpush2.bf16.msra.mxu0 0
          %585 = vmatprep.subr.bf16.mxu0 0
          %586 = vmatpush2.bf16.msra.mxu0 0
          %587 = vmatprep.subr.bf16.mxu0 0
          %588 = vmatpush2.bf16.msra.mxu0 0
          %589 = vmatprep.subr.bf16.mxu0 0
          %590 = vmatpush2.bf16.msra.mxu0 0
          %591 = vmatprep.subr.bf16.mxu0 0
          %592 = vmatpush2.bf16.msra.mxu0 0
          %593 = vmatprep.mubr.bf16.mxu0 0
          %594 = vmatmul.mubr.bf16.gmra.mxu0 %v489
          %v595 = vpop.f32.mrf.mxu0
          %v596 = vadd.f32 0.0, %v595
          %v597 = vpop.f32.mrf.mxu0
          %v598 = vpop.f32.mrf.mxu0
          %v599 = vadd.f32 0.0, %v598
          %v600 = vpop.f32.mrf.mxu0
          %601 = vmatprep.mubr.bf16.mxu0 0
          %602 = vmatmul.mubr.bf16.gmra.mxu0 %v490
          %v603 = vpop.f32.mrf.mxu0
          %v604 = vadd.f32 0.0, %v603
          %v605 = vpop.f32.mrf.mxu0
          %v606 = vpop.f32.mrf.mxu0
          %v607 = vadd.f32 0.0, %v606
          %v608 = vpop.f32.mrf.mxu0
          %609 = vmatprep.mubr.bf16.mxu0 0
          %610 = vmatmul.mubr.bf16.gmra.mxu0 %v491
          %v611 = vpop.f32.mrf.mxu0
          %v612 = vadd.f32 0.0, %v611
          %v613 = vpop.f32.mrf.mxu0
          %v614 = vpop.f32.mrf.mxu0
          %v615 = vadd.f32 0.0, %v614
          %v616 = vpop.f32.mrf.mxu0
          %617 = vmatprep.mubr.bf16.mxu0 0
          %618 = vmatmul.mubr.bf16.gmra.mxu0 %v492
          %v619 = vpop.f32.mrf.mxu0
          %v620 = vadd.f32 0.0, %v619
          %v621 = vpop.f32.mrf.mxu0
          %v622 = vpop.f32.mrf.mxu0
          %v623 = vadd.f32 0.0, %v622
          %v624 = vpop.f32.mrf.mxu0
          %625 = vmatprep.mubr.bf16.mxu0 0
          %626 = vmatmul.mubr.bf16.gmra.mxu0 %v493
          %v627 = vpop.f32.mrf.mxu0
          %v628 = vadd.f32 0.0, %v627
          %v629 = vpop.f32.mrf.mxu0
          %v630 = vpop.f32.mrf.mxu0
          %v631 = vadd.f32 0.0, %v630
          %v632 = vpop.f32.mrf.mxu0
          %633 = vmatprep.mubr.bf16.mxu0 0
          %634 = vmatmul.mubr.bf16.gmra.mxu0 %v494
          %v635 = vpop.f32.mrf.mxu0
          %v636 = vadd.f32 0.0, %v635
          %v637 = vpop.f32.mrf.mxu0
          %v638 = vpop.f32.mrf.mxu0
          %v639 = vadd.f32 0.0, %v638
          %v640 = vpop.f32.mrf.mxu0
          %641 = vmatprep.mubr.bf16.mxu0 0
          %642 = vmatmul.mubr.bf16.gmra.mxu0 %v495
          %v643 = vpop.f32.mrf.mxu0
          %v644 = vadd.f32 0.0, %v643
          %v645 = vpop.f32.mrf.mxu0
          %v646 = vpop.f32.mrf.mxu0
          %v647 = vadd.f32 0.0, %v646
          %v648 = vpop.f32.mrf.mxu0
          %649 = vmatprep.mubr.bf16.mxu0 0
          %650 = vmatmul.mubr.bf16.gmra.mxu0 %v496
          %v651 = vpop.f32.mrf.mxu0
          %v652 = vadd.f32 0.0, %v651
          %v653 = vpop.f32.mrf.mxu0
          %v654 = vpop.f32.mrf.mxu0
          %v655 = vadd.f32 0.0, %v654
          %v656 = vpop.f32.mrf.mxu0
          %657 = vdwg.mxu0
          %v658 = vpack.c.bf16 %v599, %v596
          %v659 = vpack.c.bf16 %v607, %v604
          %v660 = vpack.c.bf16 %v615, %v612
          %v661 = vpack.c.bf16 %v623, %v620
          %v662 = vpack.c.bf16 %v631, %v628
          %v663 = vpack.c.bf16 %v639, %v636
          %v664 = vpack.c.bf16 %v647, %v644
          %v665 = vpack.c.bf16 %v655, %v652
          %v674 = vunpack.c.l.b16 %v658
          %v675 = vunpack.c.h.b16 %v658
          %v676 = vunpack.c.l.b16 %v659
          %v677 = vunpack.c.h.b16 %v659
          %v678 = vunpack.c.l.b16 %v660
          %v679 = vunpack.c.h.b16 %v660
          %v680 = vunpack.c.l.b16 %v661
          %v681 = vunpack.c.h.b16 %v661
          %v682 = vunpack.c.l.b16 %v662
          %v683 = vunpack.c.h.b16 %v662
          %v684 = vunpack.c.l.b16 %v663
          %v685 = vunpack.c.h.b16 %v663
          %v686 = vunpack.c.l.b16 %v664
          %v687 = vunpack.c.h.b16 %v664
          %v688 = vunpack.c.l.b16 %v665
          %v689 = vunpack.c.h.b16 %v665
          %v690 = vpack.c.b16 %v674, %v674
          %v691 = vpack.c.b16 %v675, %v675
          %v692 = vpack.c.b16 %v676, %v676
          %v693 = vpack.c.b16 %v677, %v677
          %v694 = vpack.c.b16 %v678, %v678
          %v695 = vpack.c.b16 %v679, %v679
          %v696 = vpack.c.b16 %v680, %v680
          %v697 = vpack.c.b16 %v681, %v681
          %v698 = vpack.c.b16 %v682, %v682
          %v699 = vpack.c.b16 %v683, %v683
          %v700 = vpack.c.b16 %v684, %v684
          %v701 = vpack.c.b16 %v685, %v685
          %v702 = vpack.c.b16 %v686, %v686
          %v703 = vpack.c.b16 %v687, %v687
          %v704 = vpack.c.b16 %v688, %v688
          %v705 = vpack.c.b16 %v689, %v689
          %vm722 = vcmask 257024
          %723 = vst.msk [vmem:[#allocation2] sm:$0xf] %vm722, %v690
          %724 = vst.msk [vmem:[#allocation2 + $0x4] sm:$0xf] %vm722, %v691
          %725 = vst.msk [vmem:[#allocation2 + $0x8] sm:$0xf] %vm722, %v692
          %726 = vst.msk [vmem:[#allocation2 + $0xc] sm:$0xf] %vm722, %v693
          %727 = vst.msk [vmem:[#allocation2 + $0x10] sm:$0xf] %vm722, %v694
          %728 = vst.msk [vmem:[#allocation2 + $0x14] sm:$0xf] %vm722, %v695
          %729 = vst.msk [vmem:[#allocation2 + $0x18] sm:$0xf] %vm722, %v696
          %730 = vst.msk [vmem:[#allocation2 + $0x1c] sm:$0xf] %vm722, %v697
          %731 = vst.msk [vmem:[#allocation2 + $0x20] sm:$0xf] %vm722, %v698
          %732 = vst.msk [vmem:[#allocation2 + $0x24] sm:$0xf] %vm722, %v699
          %733 = vst.msk [vmem:[#allocation2 + $0x28] sm:$0xf] %vm722, %v700
          %734 = vst.msk [vmem:[#allocation2 + $0x2c] sm:$0xf] %vm722, %v701
          %735 = vst.msk [vmem:[#allocation2 + $0x30] sm:$0xf] %vm722, %v702
          %736 = vst.msk [vmem:[#allocation2 + $0x34] sm:$0xf] %vm722, %v703
          %737 = vst.msk [vmem:[#allocation2 + $0x38] sm:$0xf] %vm722, %v704
          %738 = vst.msk [vmem:[#allocation2 + $0x3c] sm:$0xf] %vm722, %v705
          %s739 = scalar_lea.vmem %s3, 64
          %v740 = vld [vmem:[%s739] sm:$0xf]
          %v741 = vld [vmem:[%s739 + $0x4] sm:$0xf]
          %v742 = vld [vmem:[%s739 + $0x8] sm:$0xf]
          %v743 = vld [vmem:[%s739 + $0xc] sm:$0xf]
          %v744 = vld [vmem:[%s739 + $0x10] sm:$0xf]
          %v745 = vld [vmem:[%s739 + $0x14] sm:$0xf]
          %v746 = vld [vmem:[%s739 + $0x18] sm:$0xf]
          %v747 = vld [vmem:[%s739 + $0x1c] sm:$0xf]
          %v748 = vld [vmem:[%s739 + $0x20] sm:$0xf]
          %v749 = vld [vmem:[%s739 + $0x24] sm:$0xf]
          %v750 = vld [vmem:[%s739 + $0x28] sm:$0xf]
          %v751 = vld [vmem:[%s739 + $0x2c] sm:$0xf]
          %v752 = vld [vmem:[%s739 + $0x30] sm:$0xf]
          %v753 = vld [vmem:[%s739 + $0x34] sm:$0xf]
          %v754 = vld [vmem:[%s739 + $0x38] sm:$0xf]
          %v755 = vld [vmem:[%s739 + $0x3c] sm:$0xf]
          %v772 = vunpack.c.l.b16 %v740
          %v773 = vunpack.c.l.b16 %v741
          %v774 = vunpack.c.l.b16 %v742
          %v775 = vunpack.c.l.b16 %v743
          %v776 = vunpack.c.l.b16 %v744
          %v777 = vunpack.c.l.b16 %v745
          %v778 = vunpack.c.l.b16 %v746
          %v779 = vunpack.c.l.b16 %v747
          %v780 = vunpack.c.l.b16 %v748
          %v781 = vunpack.c.l.b16 %v749
          %v782 = vunpack.c.l.b16 %v750
          %v783 = vunpack.c.l.b16 %v751
          %v784 = vunpack.c.l.b16 %v752
          %v785 = vunpack.c.l.b16 %v753
          %v786 = vunpack.c.l.b16 %v754
          %v787 = vunpack.c.l.b16 %v755
          %v788 = vpack.c.b16 %v773, %v772
          %v789 = vpack.c.b16 %v775, %v774
          %v790 = vpack.c.b16 %v777, %v776
          %v791 = vpack.c.b16 %v779, %v778
          %v792 = vpack.c.b16 %v781, %v780
          %v793 = vpack.c.b16 %v783, %v782
          %v794 = vpack.c.b16 %v785, %v784
          %v795 = vpack.c.b16 %v787, %v786
          %804 = vmatprep.subr.bf16.mxu0 0
          %805 = vmatpush1.bf16.msra.mxu0 %v795
          %806 = vmatprep.subr.bf16.mxu0 0
          %807 = vmatpush1.bf16.msra.mxu0 %v794
          %808 = vmatprep.subr.bf16.mxu0 0
          %809 = vmatpush1.bf16.msra.mxu0 %v793
          %810 = vmatprep.subr.bf16.mxu0 0
          %811 = vmatpush1.bf16.msra.mxu0 %v792
          %812 = vmatprep.subr.bf16.mxu0 0
          %813 = vmatpush1.bf16.msra.mxu0 %v791
          %814 = vmatprep.subr.bf16.mxu0 0
          %815 = vmatpush1.bf16.msra.mxu0 %v790
          %816 = vmatprep.subr.bf16.mxu0 0
          %817 = vmatpush1.bf16.msra.mxu0 %v789
          %818 = vmatprep.subr.bf16.mxu0 0
          %819 = vmatpush1.bf16.msra.mxu0 %v788
          %820 = vmatprep.subr.bf16.mxu0 0
          %821 = vmatpush2.bf16.msra.mxu0 0
          %822 = vmatprep.subr.bf16.mxu0 0
          %823 = vmatpush2.bf16.msra.mxu0 0
          %824 = vmatprep.subr.bf16.mxu0 0
          %825 = vmatpush2.bf16.msra.mxu0 0
          %826 = vmatprep.subr.bf16.mxu0 0
          %827 = vmatpush2.bf16.msra.mxu0 0
          %828 = vmatprep.subr.bf16.mxu0 0
          %829 = vmatpush2.bf16.msra.mxu0 0
          %830 = vmatprep.subr.bf16.mxu0 0
          %831 = vmatpush2.bf16.msra.mxu0 0
          %832 = vmatprep.subr.bf16.mxu0 0
          %833 = vmatpush2.bf16.msra.mxu0 0
          %834 = vmatprep.subr.bf16.mxu0 0
          %835 = vmatpush2.bf16.msra.mxu0 0
          %836 = vmatprep.mubr.bf16.mxu0 0
          %837 = vmatmul.mubr.bf16.gmra.mxu0 %v489
          %v838 = vpop.f32.mrf.mxu0
          %v839 = vadd.f32 0.0, %v838
          %v840 = vpop.f32.mrf.mxu0
          %v841 = vpop.f32.mrf.mxu0
          %v842 = vadd.f32 0.0, %v841
          %v843 = vpop.f32.mrf.mxu0
          %844 = vmatprep.mubr.bf16.mxu0 0
          %845 = vmatmul.mubr.bf16.gmra.mxu0 %v490
          %v846 = vpop.f32.mrf.mxu0
          %v847 = vadd.f32 0.0, %v846
          %v848 = vpop.f32.mrf.mxu0
          %v849 = vpop.f32.mrf.mxu0
          %v850 = vadd.f32 0.0, %v849
          %v851 = vpop.f32.mrf.mxu0
          %852 = vmatprep.mubr.bf16.mxu0 0
          %853 = vmatmul.mubr.bf16.gmra.mxu0 %v491
          %v854 = vpop.f32.mrf.mxu0
          %v855 = vadd.f32 0.0, %v854
          %v856 = vpop.f32.mrf.mxu0
          %v857 = vpop.f32.mrf.mxu0
          %v858 = vadd.f32 0.0, %v857
          %v859 = vpop.f32.mrf.mxu0
          %860 = vmatprep.mubr.bf16.mxu0 0
          %861 = vmatmul.mubr.bf16.gmra.mxu0 %v492
          %v862 = vpop.f32.mrf.mxu0
          %v863 = vadd.f32 0.0, %v862
          %v864 = vpop.f32.mrf.mxu0
          %v865 = vpop.f32.mrf.mxu0
          %v866 = vadd.f32 0.0, %v865
          %v867 = vpop.f32.mrf.mxu0
          %868 = vmatprep.mubr.bf16.mxu0 0
          %869 = vmatmul.mubr.bf16.gmra.mxu0 %v493
          %v870 = vpop.f32.mrf.mxu0
          %v871 = vadd.f32 0.0, %v870
          %v872 = vpop.f32.mrf.mxu0
          %v873 = vpop.f32.mrf.mxu0
          %v874 = vadd.f32 0.0, %v873
          %v875 = vpop.f32.mrf.mxu0
          %876 = vmatprep.mubr.bf16.mxu0 0
          %877 = vmatmul.mubr.bf16.gmra.mxu0 %v494
          %v878 = vpop.f32.mrf.mxu0
          %v879 = vadd.f32 0.0, %v878
          %v880 = vpop.f32.mrf.mxu0
          %v881 = vpop.f32.mrf.mxu0
          %v882 = vadd.f32 0.0, %v881
          %v883 = vpop.f32.mrf.mxu0
          %884 = vmatprep.mubr.bf16.mxu0 0
          %885 = vmatmul.mubr.bf16.gmra.mxu0 %v495
          %v886 = vpop.f32.mrf.mxu0
          %v887 = vadd.f32 0.0, %v886
          %v888 = vpop.f32.mrf.mxu0
          %v889 = vpop.f32.mrf.mxu0
          %v890 = vadd.f32 0.0, %v889
          %v891 = vpop.f32.mrf.mxu0
          %892 = vmatprep.mubr.bf16.mxu0 0
          %893 = vmatmul.mubr.bf16.gmra.mxu0 %v496
          %v894 = vpop.f32.mrf.mxu0
          %v895 = vadd.f32 0.0, %v894
          %v896 = vpop.f32.mrf.mxu0
          %v897 = vpop.f32.mrf.mxu0
          %v898 = vadd.f32 0.0, %v897
          %v899 = vpop.f32.mrf.mxu0
          %900 = vdwg.mxu0
          %v901 = vpack.c.bf16 %v842, %v839
          %v902 = vpack.c.bf16 %v850, %v847
          %v903 = vpack.c.bf16 %v858, %v855
          %v904 = vpack.c.bf16 %v866, %v863
          %v905 = vpack.c.bf16 %v874, %v871
          %v906 = vpack.c.bf16 %v882, %v879
          %v907 = vpack.c.bf16 %v890, %v887
          %v908 = vpack.c.bf16 %v898, %v895
          %v917 = vunpack.c.l.b16 %v901
          %v918 = vunpack.c.h.b16 %v901
          %v919 = vunpack.c.l.b16 %v902
          %v920 = vunpack.c.h.b16 %v902
          %v921 = vunpack.c.l.b16 %v903
          %v922 = vunpack.c.h.b16 %v903
          %v923 = vunpack.c.l.b16 %v904
          %v924 = vunpack.c.h.b16 %v904
          %v925 = vunpack.c.l.b16 %v905
          %v926 = vunpack.c.h.b16 %v905
          %v927 = vunpack.c.l.b16 %v906
          %v928 = vunpack.c.h.b16 %v906
          %v929 = vunpack.c.l.b16 %v907
          %v930 = vunpack.c.h.b16 %v907
          %v931 = vunpack.c.l.b16 %v908
          %v932 = vunpack.c.h.b16 %v908
          %v933 = vpack.c.b16 %v917, %v917
          %v934 = vpack.c.b16 %v918, %v918
          %v935 = vpack.c.b16 %v919, %v919
          %v936 = vpack.c.b16 %v920, %v920
          %v937 = vpack.c.b16 %v921, %v921
          %v938 = vpack.c.b16 %v922, %v922
          %v939 = vpack.c.b16 %v923, %v923
          %v940 = vpack.c.b16 %v924, %v924
          %v941 = vpack.c.b16 %v925, %v925
          %v942 = vpack.c.b16 %v926, %v926
          %v943 = vpack.c.b16 %v927, %v927
          %v944 = vpack.c.b16 %v928, %v928
          %v945 = vpack.c.b16 %v929, %v929
          %v946 = vpack.c.b16 %v930, %v930
          %v947 = vpack.c.b16 %v931, %v931
          %v948 = vpack.c.b16 %v932, %v932
          %s965 = scalar_lea.vmem [#allocation2], 64
          %966 = vst.msk [vmem:[%s965] sm:$0xf] %vm722, %v933
          %967 = vst.msk [vmem:[%s965 + $0x4] sm:$0xf] %vm722, %v934
          %968 = vst.msk [vmem:[%s965 + $0x8] sm:$0xf] %vm722, %v935
          %969 = vst.msk [vmem:[%s965 + $0xc] sm:$0xf] %vm722, %v936
          %970 = vst.msk [vmem:[%s965 + $0x10] sm:$0xf] %vm722, %v937
          %971 = vst.msk [vmem:[%s965 + $0x14] sm:$0xf] %vm722, %v938
          %972 = vst.msk [vmem:[%s965 + $0x18] sm:$0xf] %vm722, %v939
          %973 = vst.msk [vmem:[%s965 + $0x1c] sm:$0xf] %vm722, %v940
          %974 = vst.msk [vmem:[%s965 + $0x20] sm:$0xf] %vm722, %v941
          %975 = vst.msk [vmem:[%s965 + $0x24] sm:$0xf] %vm722, %v942
          %976 = vst.msk [vmem:[%s965 + $0x28] sm:$0xf] %vm722, %v943
          %977 = vst.msk [vmem:[%s965 + $0x2c] sm:$0xf] %vm722, %v944
          %978 = vst.msk [vmem:[%s965 + $0x30] sm:$0xf] %vm722, %v945
          %979 = vst.msk [vmem:[%s965 + $0x34] sm:$0xf] %vm722, %v946
          %980 = vst.msk [vmem:[%s965 + $0x38] sm:$0xf] %vm722, %v947
          %981 = vst.msk [vmem:[%s965 + $0x3c] sm:$0xf] %vm722, %v948
          %s982 = scalar_lea.vmem %s3, 128
          %v983 = vld [vmem:[%s982] sm:$0xf]
          %v984 = vld [vmem:[%s982 + $0x4] sm:$0xf]
          %v985 = vld [vmem:[%s982 + $0x8] sm:$0xf]
          %v986 = vld [vmem:[%s982 + $0xc] sm:$0xf]
          %v987 = vld [vmem:[%s982 + $0x10] sm:$0xf]
          %v988 = vld [vmem:[%s982 + $0x14] sm:$0xf]
          %v989 = vld [vmem:[%s982 + $0x18] sm:$0xf]
          %v990 = vld [vmem:[%s982 + $0x1c] sm:$0xf]
          %v991 = vld [vmem:[%s982 + $0x20] sm:$0xf]
          %v992 = vld [vmem:[%s982 + $0x24] sm:$0xf]
          %v993 = vld [vmem:[%s982 + $0x28] sm:$0xf]
          %v994 = vld [vmem:[%s982 + $0x2c] sm:$0xf]
          %v995 = vld [vmem:[%s982 + $0x30] sm:$0xf]
          %v996 = vld [vmem:[%s982 + $0x34] sm:$0xf]
          %v997 = vld [vmem:[%s982 + $0x38] sm:$0xf]
          %v998 = vld [vmem:[%s982 + $0x3c] sm:$0xf]
          %v1015 = vunpack.c.l.b16 %v983
          %v1016 = vunpack.c.l.b16 %v984
          %v1017 = vunpack.c.l.b16 %v985
          %v1018 = vunpack.c.l.b16 %v986
          %v1019 = vunpack.c.l.b16 %v987
          %v1020 = vunpack.c.l.b16 %v988
          %v1021 = vunpack.c.l.b16 %v989
          %v1022 = vunpack.c.l.b16 %v990
          %v1023 = vunpack.c.l.b16 %v991
          %v1024 = vunpack.c.l.b16 %v992
          %v1025 = vunpack.c.l.b16 %v993
          %v1026 = vunpack.c.l.b16 %v994
          %v1027 = vunpack.c.l.b16 %v995
          %v1028 = vunpack.c.l.b16 %v996
          %v1029 = vunpack.c.l.b16 %v997
          %v1030 = vunpack.c.l.b16 %v998
          %v1031 = vpack.c.b16 %v1016, %v1015
          %v1032 = vpack.c.b16 %v1018, %v1017
          %v1033 = vpack.c.b16 %v1020, %v1019
          %v1034 = vpack.c.b16 %v1022, %v1021
          %v1035 = vpack.c.b16 %v1024, %v1023
          %v1036 = vpack.c.b16 %v1026, %v1025
          %v1037 = vpack.c.b16 %v1028, %v1027
          %v1038 = vpack.c.b16 %v1030, %v1029
          %1047 = vmatprep.subr.bf16.mxu0 0
          %1048 = vmatpush1.bf16.msra.mxu0 %v1038
          %1049 = vmatprep.subr.bf16.mxu0 0
          %1050 = vmatpush1.bf16.msra.mxu0 %v1037
          %1051 = vmatprep.subr.bf16.mxu0 0
          %1052 = vmatpush1.bf16.msra.mxu0 %v1036
          %1053 = vmatprep.subr.bf16.mxu0 0
          %1054 = vmatpush1.bf16.msra.mxu0 %v1035
          %1055 = vmatprep.subr.bf16.mxu0 0
          %1056 = vmatpush1.bf16.msra.mxu0 %v1034
          %1057 = vmatprep.subr.bf16.mxu0 0
          %1058 = vmatpush1.bf16.msra.mxu0 %v1033
          %1059 = vmatprep.subr.bf16.mxu0 0
          %1060 = vmatpush1.bf16.msra.mxu0 %v1032
          %1061 = vmatprep.subr.bf16.mxu0 0
          %1062 = vmatpush1.bf16.msra.mxu0 %v1031
          %1063 = vmatprep.subr.bf16.mxu0 0
          %1064 = vmatpush2.bf16.msra.mxu0 0
          %1065 = vmatprep.subr.bf16.mxu0 0
          %1066 = vmatpush2.bf16.msra.mxu0 0
          %1067 = vmatprep.subr.bf16.mxu0 0
          %1068 = vmatpush2.bf16.msra.mxu0 0
          %1069 = vmatprep.subr.bf16.mxu0 0
          %1070 = vmatpush2.bf16.msra.mxu0 0
          %1071 = vmatprep.subr.bf16.mxu0 0
          %1072 = vmatpush2.bf16.msra.mxu0 0
          %1073 = vmatprep.subr.bf16.mxu0 0
          %1074 = vmatpush2.bf16.msra.mxu0 0
          %1075 = vmatprep.subr.bf16.mxu0 0
          %1076 = vmatpush2.bf16.msra.mxu0 0
          %1077 = vmatprep.subr.bf16.mxu0 0
          %1078 = vmatpush2.bf16.msra.mxu0 0
          %1079 = vmatprep.mubr.bf16.mxu0 0
          %1080 = vmatmul.mubr.bf16.gmra.mxu0 %v489
          %v1081 = vpop.f32.mrf.mxu0
          %v1082 = vadd.f32 0.0, %v1081
          %v1083 = vpop.f32.mrf.mxu0
          %v1084 = vpop.f32.mrf.mxu0
          %v1085 = vadd.f32 0.0, %v1084
          %v1086 = vpop.f32.mrf.mxu0
          %1087 = vmatprep.mubr.bf16.mxu0 0
          %1088 = vmatmul.mubr.bf16.gmra.mxu0 %v490
          %v1089 = vpop.f32.mrf.mxu0
          %v1090 = vadd.f32 0.0, %v1089
          %v1091 = vpop.f32.mrf.mxu0
          %v1092 = vpop.f32.mrf.mxu0
          %v1093 = vadd.f32 0.0, %v1092
          %v1094 = vpop.f32.mrf.mxu0
          %1095 = vmatprep.mubr.bf16.mxu0 0
          %1096 = vmatmul.mubr.bf16.gmra.mxu0 %v491
          %v1097 = vpop.f32.mrf.mxu0
          %v1098 = vadd.f32 0.0, %v1097
          %v1099 = vpop.f32.mrf.mxu0
          %v1100 = vpop.f32.mrf.mxu0
          %v1101 = vadd.f32 0.0, %v1100
          %v1102 = vpop.f32.mrf.mxu0
          %1103 = vmatprep.mubr.bf16.mxu0 0
          %1104 = vmatmul.mubr.bf16.gmra.mxu0 %v492
          %v1105 = vpop.f32.mrf.mxu0
          %v1106 = vadd.f32 0.0, %v1105
          %v1107 = vpop.f32.mrf.mxu0
          %v1108 = vpop.f32.mrf.mxu0
          %v1109 = vadd.f32 0.0, %v1108
          %v1110 = vpop.f32.mrf.mxu0
          %1111 = vmatprep.mubr.bf16.mxu0 0
          %1112 = vmatmul.mubr.bf16.gmra.mxu0 %v493
          %v1113 = vpop.f32.mrf.mxu0
          %v1114 = vadd.f32 0.0, %v1113
          %v1115 = vpop.f32.mrf.mxu0
          %v1116 = vpop.f32.mrf.mxu0
          %v1117 = vadd.f32 0.0, %v1116
          %v1118 = vpop.f32.mrf.mxu0
          %1119 = vmatprep.mubr.bf16.mxu0 0
          %1120 = vmatmul.mubr.bf16.gmra.mxu0 %v494
          %v1121 = vpop.f32.mrf.mxu0
          %v1122 = vadd.f32 0.0, %v1121
          %v1123 = vpop.f32.mrf.mxu0
          %v1124 = vpop.f32.mrf.mxu0
          %v1125 = vadd.f32 0.0, %v1124
          %v1126 = vpop.f32.mrf.mxu0
          %1127 = vmatprep.mubr.bf16.mxu0 0
          %1128 = vmatmul.mubr.bf16.gmra.mxu0 %v495
          %v1129 = vpop.f32.mrf.mxu0
          %v1130 = vadd.f32 0.0, %v1129
          %v1131 = vpop.f32.mrf.mxu0
          %v1132 = vpop.f32.mrf.mxu0
          %v1133 = vadd.f32 0.0, %v1132
          %v1134 = vpop.f32.mrf.mxu0
          %1135 = vmatprep.mubr.bf16.mxu0 0
          %1136 = vmatmul.mubr.bf16.gmra.mxu0 %v496
          %v1137 = vpop.f32.mrf.mxu0
          %v1138 = vadd.f32 0.0, %v1137
          %v1139 = vpop.f32.mrf.mxu0
          %v1140 = vpop.f32.mrf.mxu0
          %v1141 = vadd.f32 0.0, %v1140
          %v1142 = vpop.f32.mrf.mxu0
          %1143 = vdwg.mxu0
          %v1144 = vpack.c.bf16 %v1085, %v1082
          %v1145 = vpack.c.bf16 %v1093, %v1090
          %v1146 = vpack.c.bf16 %v1101, %v1098
          %v1147 = vpack.c.bf16 %v1109, %v1106
          %v1148 = vpack.c.bf16 %v1117, %v1114
          %v1149 = vpack.c.bf16 %v1125, %v1122
          %v1150 = vpack.c.bf16 %v1133, %v1130
          %v1151 = vpack.c.bf16 %v1141, %v1138
          %v1160 = vunpack.c.l.b16 %v1144
          %v1161 = vunpack.c.h.b16 %v1144
          %v1162 = vunpack.c.l.b16 %v1145
          %v1163 = vunpack.c.h.b16 %v1145
          %v1164 = vunpack.c.l.b16 %v1146
          %v1165 = vunpack.c.h.b16 %v1146
          %v1166 = vunpack.c.l.b16 %v1147
          %v1167 = vunpack.c.h.b16 %v1147
          %v1168 = vunpack.c.l.b16 %v1148
          %v1169 = vunpack.c.h.b16 %v1148
          %v1170 = vunpack.c.l.b16 %v1149
          %v1171 = vunpack.c.h.b16 %v1149
          %v1172 = vunpack.c.l.b16 %v1150
          %v1173 = vunpack.c.h.b16 %v1150
          %v1174 = vunpack.c.l.b16 %v1151
          %v1175 = vunpack.c.h.b16 %v1151
          %v1176 = vpack.c.b16 %v1160, %v1160
          %v1177 = vpack.c.b16 %v1161, %v1161
          %v1178 = vpack.c.b16 %v1162, %v1162
          %v1179 = vpack.c.b16 %v1163, %v1163
          %v1180 = vpack.c.b16 %v1164, %v1164
          %v1181 = vpack.c.b16 %v1165, %v1165
          %v1182 = vpack.c.b16 %v1166, %v1166
          %v1183 = vpack.c.b16 %v1167, %v1167
          %v1184 = vpack.c.b16 %v1168, %v1168
          %v1185 = vpack.c.b16 %v1169, %v1169
          %v1186 = vpack.c.b16 %v1170, %v1170
          %v1187 = vpack.c.b16 %v1171, %v1171
          %v1188 = vpack.c.b16 %v1172, %v1172
          %v1189 = vpack.c.b16 %v1173, %v1173
          %v1190 = vpack.c.b16 %v1174, %v1174
          %v1191 = vpack.c.b16 %v1175, %v1175
          %s1208 = scalar_lea.vmem [#allocation2], 128
          %1209 = vst.msk [vmem:[%s1208] sm:$0xf] %vm722, %v1176
          %1210 = vst.msk [vmem:[%s1208 + $0x4] sm:$0xf] %vm722, %v1177
          %1211 = vst.msk [vmem:[%s1208 + $0x8] sm:$0xf] %vm722, %v1178
          %1212 = vst.msk [vmem:[%s1208 + $0xc] sm:$0xf] %vm722, %v1179
          %1213 = vst.msk [vmem:[%s1208 + $0x10] sm:$0xf] %vm722, %v1180
          %1214 = vst.msk [vmem:[%s1208 + $0x14] sm:$0xf] %vm722, %v1181
          %1215 = vst.msk [vmem:[%s1208 + $0x18] sm:$0xf] %vm722, %v1182
          %1216 = vst.msk [vmem:[%s1208 + $0x1c] sm:$0xf] %vm722, %v1183
          %1217 = vst.msk [vmem:[%s1208 + $0x20] sm:$0xf] %vm722, %v1184
          %1218 = vst.msk [vmem:[%s1208 + $0x24] sm:$0xf] %vm722, %v1185
          %1219 = vst.msk [vmem:[%s1208 + $0x28] sm:$0xf] %vm722, %v1186
          %1220 = vst.msk [vmem:[%s1208 + $0x2c] sm:$0xf] %vm722, %v1187
          %1221 = vst.msk [vmem:[%s1208 + $0x30] sm:$0xf] %vm722, %v1188
          %1222 = vst.msk [vmem:[%s1208 + $0x34] sm:$0xf] %vm722, %v1189
          %1223 = vst.msk [vmem:[%s1208 + $0x38] sm:$0xf] %vm722, %v1190
          %1224 = vst.msk [vmem:[%s1208 + $0x3c] sm:$0xf] %vm722, %v1191
          %s1225 = scalar_lea.vmem %s3, 192
          %v1226 = vld [vmem:[%s1225] sm:$0xf]
          %v1227 = vld [vmem:[%s1225 + $0x4] sm:$0xf]
          %v1228 = vld [vmem:[%s1225 + $0x8] sm:$0xf]
          %v1229 = vld [vmem:[%s1225 + $0xc] sm:$0xf]
          %v1230 = vld [vmem:[%s1225 + $0x10] sm:$0xf]
          %v1231 = vld [vmem:[%s1225 + $0x14] sm:$0xf]
          %v1232 = vld [vmem:[%s1225 + $0x18] sm:$0xf]
          %v1233 = vld [vmem:[%s1225 + $0x1c] sm:$0xf]
          %v1234 = vld [vmem:[%s1225 + $0x20] sm:$0xf]
          %v1235 = vld [vmem:[%s1225 + $0x24] sm:$0xf]
          %v1236 = vld [vmem:[%s1225 + $0x28] sm:$0xf]
          %v1237 = vld [vmem:[%s1225 + $0x2c] sm:$0xf]
          %v1238 = vld [vmem:[%s1225 + $0x30] sm:$0xf]
          %v1239 = vld [vmem:[%s1225 + $0x34] sm:$0xf]
          %v1240 = vld [vmem:[%s1225 + $0x38] sm:$0xf]
          %v1241 = vld [vmem:[%s1225 + $0x3c] sm:$0xf]
          %v1258 = vunpack.c.l.b16 %v1226
          %v1259 = vunpack.c.l.b16 %v1227
          %v1260 = vunpack.c.l.b16 %v1228
          %v1261 = vunpack.c.l.b16 %v1229
          %v1262 = vunpack.c.l.b16 %v1230
          %v1263 = vunpack.c.l.b16 %v1231
          %v1264 = vunpack.c.l.b16 %v1232
          %v1265 = vunpack.c.l.b16 %v1233
          %v1266 = vunpack.c.l.b16 %v1234
          %v1267 = vunpack.c.l.b16 %v1235
          %v1268 = vunpack.c.l.b16 %v1236
          %v1269 = vunpack.c.l.b16 %v1237
          %v1270 = vunpack.c.l.b16 %v1238
          %v1271 = vunpack.c.l.b16 %v1239
          %v1272 = vunpack.c.l.b16 %v1240
          %v1273 = vunpack.c.l.b16 %v1241
          %v1274 = vpack.c.b16 %v1259, %v1258
          %v1275 = vpack.c.b16 %v1261, %v1260
          %v1276 = vpack.c.b16 %v1263, %v1262
          %v1277 = vpack.c.b16 %v1265, %v1264
          %v1278 = vpack.c.b16 %v1267, %v1266
          %v1279 = vpack.c.b16 %v1269, %v1268
          %v1280 = vpack.c.b16 %v1271, %v1270
          %v1281 = vpack.c.b16 %v1273, %v1272
          %1290 = vmatprep.subr.bf16.mxu0 0
          %1291 = vmatpush1.bf16.msra.mxu0 %v1281
          %1292 = vmatprep.subr.bf16.mxu0 0
          %1293 = vmatpush1.bf16.msra.mxu0 %v1280
          %1294 = vmatprep.subr.bf16.mxu0 0
          %1295 = vmatpush1.bf16.msra.mxu0 %v1279
          %1296 = vmatprep.subr.bf16.mxu0 0
          %1297 = vmatpush1.bf16.msra.mxu0 %v1278
          %1298 = vmatprep.subr.bf16.mxu0 0
          %1299 = vmatpush1.bf16.msra.mxu0 %v1277
          %1300 = vmatprep.subr.bf16.mxu0 0
          %1301 = vmatpush1.bf16.msra.mxu0 %v1276
          %1302 = vmatprep.subr.bf16.mxu0 0
          %1303 = vmatpush1.bf16.msra.mxu0 %v1275
          %1304 = vmatprep.subr.bf16.mxu0 0
          %1305 = vmatpush1.bf16.msra.mxu0 %v1274
          %1306 = vmatprep.subr.bf16.mxu0 0
          %1307 = vmatpush2.bf16.msra.mxu0 0
          %1308 = vmatprep.subr.bf16.mxu0 0
          %1309 = vmatpush2.bf16.msra.mxu0 0
          %1310 = vmatprep.subr.bf16.mxu0 0
          %1311 = vmatpush2.bf16.msra.mxu0 0
          %1312 = vmatprep.subr.bf16.mxu0 0
          %1313 = vmatpush2.bf16.msra.mxu0 0
          %1314 = vmatprep.subr.bf16.mxu0 0
          %1315 = vmatpush2.bf16.msra.mxu0 0
          %1316 = vmatprep.subr.bf16.mxu0 0
          %1317 = vmatpush2.bf16.msra.mxu0 0
          %1318 = vmatprep.subr.bf16.mxu0 0
          %1319 = vmatpush2.bf16.msra.mxu0 0
          %1320 = vmatprep.subr.bf16.mxu0 0
          %1321 = vmatpush2.bf16.msra.mxu0 0
          %1322 = vmatprep.mubr.bf16.mxu0 0
          %1323 = vmatmul.mubr.bf16.gmra.mxu0 %v489
          %v1324 = vpop.f32.mrf.mxu0
          %v1325 = vadd.f32 0.0, %v1324
          %v1326 = vpop.f32.mrf.mxu0
          %v1327 = vpop.f32.mrf.mxu0
          %v1328 = vadd.f32 0.0, %v1327
          %v1329 = vpop.f32.mrf.mxu0
          %1330 = vmatprep.mubr.bf16.mxu0 0
          %1331 = vmatmul.mubr.bf16.gmra.mxu0 %v490
          %v1332 = vpop.f32.mrf.mxu0
          %v1333 = vadd.f32 0.0, %v1332
          %v1334 = vpop.f32.mrf.mxu0
          %v1335 = vpop.f32.mrf.mxu0
          %v1336 = vadd.f32 0.0, %v1335
          %v1337 = vpop.f32.mrf.mxu0
          %1338 = vmatprep.mubr.bf16.mxu0 0
          %1339 = vmatmul.mubr.bf16.gmra.mxu0 %v491
          %v1340 = vpop.f32.mrf.mxu0
          %v1341 = vadd.f32 0.0, %v1340
          %v1342 = vpop.f32.mrf.mxu0
          %v1343 = vpop.f32.mrf.mxu0
          %v1344 = vadd.f32 0.0, %v1343
          %v1345 = vpop.f32.mrf.mxu0
          %1346 = vmatprep.mubr.bf16.mxu0 0
          %1347 = vmatmul.mubr.bf16.gmra.mxu0 %v492
          %v1348 = vpop.f32.mrf.mxu0
          %v1349 = vadd.f32 0.0, %v1348
          %v1350 = vpop.f32.mrf.mxu0
          %v1351 = vpop.f32.mrf.mxu0
          %v1352 = vadd.f32 0.0, %v1351
          %v1353 = vpop.f32.mrf.mxu0
          %1354 = vmatprep.mubr.bf16.mxu0 0
          %1355 = vmatmul.mubr.bf16.gmra.mxu0 %v493
          %v1356 = vpop.f32.mrf.mxu0
          %v1357 = vadd.f32 0.0, %v1356
          %v1358 = vpop.f32.mrf.mxu0
          %v1359 = vpop.f32.mrf.mxu0
          %v1360 = vadd.f32 0.0, %v1359
          %v1361 = vpop.f32.mrf.mxu0
          %1362 = vmatprep.mubr.bf16.mxu0 0
          %1363 = vmatmul.mubr.bf16.gmra.mxu0 %v494
          %v1364 = vpop.f32.mrf.mxu0
          %v1365 = vadd.f32 0.0, %v1364
          %v1366 = vpop.f32.mrf.mxu0
          %v1367 = vpop.f32.mrf.mxu0
          %v1368 = vadd.f32 0.0, %v1367
          %v1369 = vpop.f32.mrf.mxu0
          %1370 = vmatprep.mubr.bf16.mxu0 0
          %1371 = vmatmul.mubr.bf16.gmra.mxu0 %v495
          %v1372 = vpop.f32.mrf.mxu0
          %v1373 = vadd.f32 0.0, %v1372
          %v1374 = vpop.f32.mrf.mxu0
          %v1375 = vpop.f32.mrf.mxu0
          %v1376 = vadd.f32 0.0, %v1375
          %v1377 = vpop.f32.mrf.mxu0
          %1378 = vmatprep.mubr.bf16.mxu0 0
          %1379 = vmatmul.mubr.bf16.gmra.mxu0 %v496
          %v1380 = vpop.f32.mrf.mxu0
          %v1381 = vadd.f32 0.0, %v1380
          %v1382 = vpop.f32.mrf.mxu0
          %v1383 = vpop.f32.mrf.mxu0
          %v1384 = vadd.f32 0.0, %v1383
          %v1385 = vpop.f32.mrf.mxu0
          %1386 = vdwg.mxu0
          %v1387 = vpack.c.bf16 %v1328, %v1325
          %v1388 = vpack.c.bf16 %v1336, %v1333
          %v1389 = vpack.c.bf16 %v1344, %v1341
          %v1390 = vpack.c.bf16 %v1352, %v1349
          %v1391 = vpack.c.bf16 %v1360, %v1357
          %v1392 = vpack.c.bf16 %v1368, %v1365
          %v1393 = vpack.c.bf16 %v1376, %v1373
          %v1394 = vpack.c.bf16 %v1384, %v1381
          %v1403 = vunpack.c.l.b16 %v1387
          %v1404 = vunpack.c.h.b16 %v1387
          %v1405 = vunpack.c.l.b16 %v1388
          %v1406 = vunpack.c.h.b16 %v1388
          %v1407 = vunpack.c.l.b16 %v1389
          %v1408 = vunpack.c.h.b16 %v1389
          %v1409 = vunpack.c.l.b16 %v1390
          %v1410 = vunpack.c.h.b16 %v1390
          %v1411 = vunpack.c.l.b16 %v1391
          %v1412 = vunpack.c.h.b16 %v1391
          %v1413 = vunpack.c.l.b16 %v1392
          %v1414 = vunpack.c.h.b16 %v1392
          %v1415 = vunpack.c.l.b16 %v1393
          %v1416 = vunpack.c.h.b16 %v1393
          %v1417 = vunpack.c.l.b16 %v1394
          %v1418 = vunpack.c.h.b16 %v1394
          %v1419 = vpack.c.b16 %v1403, %v1403
          %v1420 = vpack.c.b16 %v1404, %v1404
          %v1421 = vpack.c.b16 %v1405, %v1405
          %v1422 = vpack.c.b16 %v1406, %v1406
          %v1423 = vpack.c.b16 %v1407, %v1407
          %v1424 = vpack.c.b16 %v1408, %v1408
          %v1425 = vpack.c.b16 %v1409, %v1409
          %v1426 = vpack.c.b16 %v1410, %v1410
          %v1427 = vpack.c.b16 %v1411, %v1411
          %v1428 = vpack.c.b16 %v1412, %v1412
          %v1429 = vpack.c.b16 %v1413, %v1413
          %v1430 = vpack.c.b16 %v1414, %v1414
          %v1431 = vpack.c.b16 %v1415, %v1415
          %v1432 = vpack.c.b16 %v1416, %v1416
          %v1433 = vpack.c.b16 %v1417, %v1417
          %v1434 = vpack.c.b16 %v1418, %v1418
          %s1451 = scalar_lea.vmem [#allocation2], 192
          %1452 = vst.msk [vmem:[%s1451] sm:$0xf] %vm722, %v1419
          %1453 = vst.msk [vmem:[%s1451 + $0x4] sm:$0xf] %vm722, %v1420
          %1454 = vst.msk [vmem:[%s1451 + $0x8] sm:$0xf] %vm722, %v1421
          %1455 = vst.msk [vmem:[%s1451 + $0xc] sm:$0xf] %vm722, %v1422
          %1456 = vst.msk [vmem:[%s1451 + $0x10] sm:$0xf] %vm722, %v1423
          %1457 = vst.msk [vmem:[%s1451 + $0x14] sm:$0xf] %vm722, %v1424
          %1458 = vst.msk [vmem:[%s1451 + $0x18] sm:$0xf] %vm722, %v1425
          %1459 = vst.msk [vmem:[%s1451 + $0x1c] sm:$0xf] %vm722, %v1426
          %1460 = vst.msk [vmem:[%s1451 + $0x20] sm:$0xf] %vm722, %v1427
          %1461 = vst.msk [vmem:[%s1451 + $0x24] sm:$0xf] %vm722, %v1428
          %1462 = vst.msk [vmem:[%s1451 + $0x28] sm:$0xf] %vm722, %v1429
          %1463 = vst.msk [vmem:[%s1451 + $0x2c] sm:$0xf] %vm722, %v1430
          %1464 = vst.msk [vmem:[%s1451 + $0x30] sm:$0xf] %vm722, %v1431
          %1465 = vst.msk [vmem:[%s1451 + $0x34] sm:$0xf] %vm722, %v1432
          %1466 = vst.msk [vmem:[%s1451 + $0x38] sm:$0xf] %vm722, %v1433
          %1467 = vst.msk [vmem:[%s1451 + $0x3c] sm:$0xf] %vm722, %v1434
          %vm1468 = vcmask 7168
          %1469 = vst.msk [vmem:[#allocation3] sm:$0xff] %vm1468, -inf
          %1470 = vst.msk [vmem:[#allocation3 + $0x8] sm:$0xff] %vm1468, -inf
          %1471 = vst.msk [vmem:[#allocation3 + $0x10] sm:$0xff] %vm1468, -inf
          %1472 = vst.msk [vmem:[#allocation3 + $0x18] sm:$0xff] %vm1468, -inf
          %1473 = vst.msk [vmem:[#allocation3 + $0x20] sm:$0xff] %vm1468, -inf
          %1474 = vst.msk [vmem:[#allocation3 + $0x28] sm:$0xff] %vm1468, -inf
          %1475 = vst.msk [vmem:[#allocation3 + $0x30] sm:$0xff] %vm1468, -inf
          %1476 = vst.msk [vmem:[#allocation3 + $0x38] sm:$0xff] %vm1468, -inf
          %1477 = vst.msk [vmem:[#allocation3 + $0x40] sm:$0xff] %vm1468, -inf
          %1478 = vst.msk [vmem:[#allocation3 + $0x48] sm:$0xff] %vm1468, -inf
          %1479 = vst.msk [vmem:[#allocation3 + $0x50] sm:$0xff] %vm1468, -inf
          %1480 = vst.msk [vmem:[#allocation3 + $0x58] sm:$0xff] %vm1468, -inf
          %1481 = vst.msk [vmem:[#allocation3 + $0x60] sm:$0xff] %vm1468, -inf
          %1482 = vst.msk [vmem:[#allocation3 + $0x68] sm:$0xff] %vm1468, -inf
          %1483 = vst.msk [vmem:[#allocation3 + $0x70] sm:$0xff] %vm1468, -inf
          %1484 = vst.msk [vmem:[#allocation3 + $0x78] sm:$0xff] %vm1468, -inf
          %1485 = vst.msk [vmem:[#allocation3 + $0x80] sm:$0xff] %vm1468, -inf
          %1486 = vst.msk [vmem:[#allocation3 + $0x88] sm:$0xff] %vm1468, -inf
          %1487 = vst.msk [vmem:[#allocation3 + $0x90] sm:$0xff] %vm1468, -inf
          %1488 = vst.msk [vmem:[#allocation3 + $0x98] sm:$0xff] %vm1468, -inf
          %1489 = vst.msk [vmem:[#allocation3 + $0xa0] sm:$0xff] %vm1468, -inf
          %1490 = vst.msk [vmem:[#allocation3 + $0xa8] sm:$0xff] %vm1468, -inf
          %1491 = vst.msk [vmem:[#allocation3 + $0xb0] sm:$0xff] %vm1468, -inf
          %1492 = vst.msk [vmem:[#allocation3 + $0xb8] sm:$0xff] %vm1468, -inf
          %1493 = vst.msk [vmem:[#allocation3 + $0xc0] sm:$0xff] %vm1468, -inf
          %1494 = vst.msk [vmem:[#allocation3 + $0xc8] sm:$0xff] %vm1468, -inf
          %1495 = vst.msk [vmem:[#allocation3 + $0xd0] sm:$0xff] %vm1468, -inf
          %1496 = vst.msk [vmem:[#allocation3 + $0xd8] sm:$0xff] %vm1468, -inf
          %1497 = vst.msk [vmem:[#allocation3 + $0xe0] sm:$0xff] %vm1468, -inf
          %1498 = vst.msk [vmem:[#allocation3 + $0xe8] sm:$0xff] %vm1468, -inf
          %1499 = vst.msk [vmem:[#allocation3 + $0xf0] sm:$0xff] %vm1468, -inf
          %1500 = vst.msk [vmem:[#allocation3 + $0xf8] sm:$0xff] %vm1468, -inf
          %1501 = vst.msk [vmem:[#allocation3 + $0x100] sm:$0xff] %vm1468, -inf
          %1502 = vst.msk [vmem:[#allocation3 + $0x108] sm:$0xff] %vm1468, -inf
          %1503 = vst.msk [vmem:[#allocation3 + $0x110] sm:$0xff] %vm1468, -inf
          %1504 = vst.msk [vmem:[#allocation3 + $0x118] sm:$0xff] %vm1468, -inf
          %1505 = vst.msk [vmem:[#allocation3 + $0x120] sm:$0xff] %vm1468, -inf
          %1506 = vst.msk [vmem:[#allocation3 + $0x128] sm:$0xff] %vm1468, -inf
          %1507 = vst.msk [vmem:[#allocation3 + $0x130] sm:$0xff] %vm1468, -inf
          %1508 = vst.msk [vmem:[#allocation3 + $0x138] sm:$0xff] %vm1468, -inf
          %1509 = vst.msk [vmem:[#allocation3 + $0x140] sm:$0xff] %vm1468, -inf
          %1510 = vst.msk [vmem:[#allocation3 + $0x148] sm:$0xff] %vm1468, -inf
          %1511 = vst.msk [vmem:[#allocation3 + $0x150] sm:$0xff] %vm1468, -inf
          %1512 = vst.msk [vmem:[#allocation3 + $0x158] sm:$0xff] %vm1468, -inf
          %1513 = vst.msk [vmem:[#allocation3 + $0x160] sm:$0xff] %vm1468, -inf
          %1514 = vst.msk [vmem:[#allocation3 + $0x168] sm:$0xff] %vm1468, -inf
          %1515 = vst.msk [vmem:[#allocation3 + $0x170] sm:$0xff] %vm1468, -inf
          %1516 = vst.msk [vmem:[#allocation3 + $0x178] sm:$0xff] %vm1468, -inf
          %1517 = vst.msk [vmem:[#allocation3 + $0x180] sm:$0xff] %vm1468, -inf
          %1518 = vst.msk [vmem:[#allocation3 + $0x188] sm:$0xff] %vm1468, -inf
          %1519 = vst.msk [vmem:[#allocation3 + $0x190] sm:$0xff] %vm1468, -inf
          %1520 = vst.msk [vmem:[#allocation3 + $0x198] sm:$0xff] %vm1468, -inf
          %1521 = vst.msk [vmem:[#allocation3 + $0x1a0] sm:$0xff] %vm1468, -inf
          %1522 = vst.msk [vmem:[#allocation3 + $0x1a8] sm:$0xff] %vm1468, -inf
          %1523 = vst.msk [vmem:[#allocation3 + $0x1b0] sm:$0xff] %vm1468, -inf
          %1524 = vst.msk [vmem:[#allocation3 + $0x1b8] sm:$0xff] %vm1468, -inf
          %1525 = vst.msk [vmem:[#allocation3 + $0x1c0] sm:$0xff] %vm1468, -inf
          %1526 = vst.msk [vmem:[#allocation3 + $0x1c8] sm:$0xff] %vm1468, -inf
          %1527 = vst.msk [vmem:[#allocation3 + $0x1d0] sm:$0xff] %vm1468, -inf
          %1528 = vst.msk [vmem:[#allocation3 + $0x1d8] sm:$0xff] %vm1468, -inf
          %1529 = vst.msk [vmem:[#allocation3 + $0x1e0] sm:$0xff] %vm1468, -inf
          %1530 = vst.msk [vmem:[#allocation3 + $0x1e8] sm:$0xff] %vm1468, -inf
          %1531 = vst.msk [vmem:[#allocation3 + $0x1f0] sm:$0xff] %vm1468, -inf
          %1532 = vst.msk [vmem:[#allocation3 + $0x1f8] sm:$0xff] %vm1468, -inf
          %1533 = vst.msk [vmem:[#allocation4] sm:$0xff] %vm1468, 0.0
          %1534 = vst.msk [vmem:[#allocation4 + $0x8] sm:$0xff] %vm1468, 0.0
          %1535 = vst.msk [vmem:[#allocation4 + $0x10] sm:$0xff] %vm1468, 0.0
          %1536 = vst.msk [vmem:[#allocation4 + $0x18] sm:$0xff] %vm1468, 0.0
          %1537 = vst.msk [vmem:[#allocation4 + $0x20] sm:$0xff] %vm1468, 0.0
          %1538 = vst.msk [vmem:[#allocation4 + $0x28] sm:$0xff] %vm1468, 0.0
          %1539 = vst.msk [vmem:[#allocation4 + $0x30] sm:$0xff] %vm1468, 0.0
          %1540 = vst.msk [vmem:[#allocation4 + $0x38] sm:$0xff] %vm1468, 0.0
          %1541 = vst.msk [vmem:[#allocation4 + $0x40] sm:$0xff] %vm1468, 0.0
          %1542 = vst.msk [vmem:[#allocation4 + $0x48] sm:$0xff] %vm1468, 0.0
          %1543 = vst.msk [vmem:[#allocation4 + $0x50] sm:$0xff] %vm1468, 0.0
          %1544 = vst.msk [vmem:[#allocation4 + $0x58] sm:$0xff] %vm1468, 0.0
          %1545 = vst.msk [vmem:[#allocation4 + $0x60] sm:$0xff] %vm1468, 0.0
          %1546 = vst.msk [vmem:[#allocation4 + $0x68] sm:$0xff] %vm1468, 0.0
          %1547 = vst.msk [vmem:[#allocation4 + $0x70] sm:$0xff] %vm1468, 0.0
          %1548 = vst.msk [vmem:[#allocation4 + $0x78] sm:$0xff] %vm1468, 0.0
          %1549 = vst.msk [vmem:[#allocation4 + $0x80] sm:$0xff] %vm1468, 0.0
          %1550 = vst.msk [vmem:[#allocation4 + $0x88] sm:$0xff] %vm1468, 0.0
          %1551 = vst.msk [vmem:[#allocation4 + $0x90] sm:$0xff] %vm1468, 0.0
          %1552 = vst.msk [vmem:[#allocation4 + $0x98] sm:$0xff] %vm1468, 0.0
          %1553 = vst.msk [vmem:[#allocation4 + $0xa0] sm:$0xff] %vm1468, 0.0
          %1554 = vst.msk [vmem:[#allocation4 + $0xa8] sm:$0xff] %vm1468, 0.0
          %1555 = vst.msk [vmem:[#allocation4 + $0xb0] sm:$0xff] %vm1468, 0.0
          %1556 = vst.msk [vmem:[#allocation4 + $0xb8] sm:$0xff] %vm1468, 0.0
          %1557 = vst.msk [vmem:[#allocation4 + $0xc0] sm:$0xff] %vm1468, 0.0
          %1558 = vst.msk [vmem:[#allocation4 + $0xc8] sm:$0xff] %vm1468, 0.0
          %1559 = vst.msk [vmem:[#allocation4 + $0xd0] sm:$0xff] %vm1468, 0.0
          %1560 = vst.msk [vmem:[#allocation4 + $0xd8] sm:$0xff] %vm1468, 0.0
          %1561 = vst.msk [vmem:[#allocation4 + $0xe0] sm:$0xff] %vm1468, 0.0
          %1562 = vst.msk [vmem:[#allocation4 + $0xe8] sm:$0xff] %vm1468, 0.0
          %1563 = vst.msk [vmem:[#allocation4 + $0xf0] sm:$0xff] %vm1468, 0.0
          %1564 = vst.msk [vmem:[#allocation4 + $0xf8] sm:$0xff] %vm1468, 0.0
          %1565 = vst.msk [vmem:[#allocation4 + $0x100] sm:$0xff] %vm1468, 0.0
          %1566 = vst.msk [vmem:[#allocation4 + $0x108] sm:$0xff] %vm1468, 0.0
          %1567 = vst.msk [vmem:[#allocation4 + $0x110] sm:$0xff] %vm1468, 0.0
          %1568 = vst.msk [vmem:[#allocation4 + $0x118] sm:$0xff] %vm1468, 0.0
          %1569 = vst.msk [vmem:[#allocation4 + $0x120] sm:$0xff] %vm1468, 0.0
          %1570 = vst.msk [vmem:[#allocation4 + $0x128] sm:$0xff] %vm1468, 0.0
          %1571 = vst.msk [vmem:[#allocation4 + $0x130] sm:$0xff] %vm1468, 0.0
          %1572 = vst.msk [vmem:[#allocation4 + $0x138] sm:$0xff] %vm1468, 0.0
          %1573 = vst.msk [vmem:[#allocation4 + $0x140] sm:$0xff] %vm1468, 0.0
          %1574 = vst.msk [vmem:[#allocation4 + $0x148] sm:$0xff] %vm1468, 0.0
          %1575 = vst.msk [vmem:[#allocation4 + $0x150] sm:$0xff] %vm1468, 0.0
          %1576 = vst.msk [vmem:[#allocation4 + $0x158] sm:$0xff] %vm1468, 0.0
          %1577 = vst.msk [vmem:[#allocation4 + $0x160] sm:$0xff] %vm1468, 0.0
          %1578 = vst.msk [vmem:[#allocation4 + $0x168] sm:$0xff] %vm1468, 0.0
          %1579 = vst.msk [vmem:[#allocation4 + $0x170] sm:$0xff] %vm1468, 0.0
          %1580 = vst.msk [vmem:[#allocation4 + $0x178] sm:$0xff] %vm1468, 0.0
          %1581 = vst.msk [vmem:[#allocation4 + $0x180] sm:$0xff] %vm1468, 0.0
          %1582 = vst.msk [vmem:[#allocation4 + $0x188] sm:$0xff] %vm1468, 0.0
          %1583 = vst.msk [vmem:[#allocation4 + $0x190] sm:$0xff] %vm1468, 0.0
          %1584 = vst.msk [vmem:[#allocation4 + $0x198] sm:$0xff] %vm1468, 0.0
          %1585 = vst.msk [vmem:[#allocation4 + $0x1a0] sm:$0xff] %vm1468, 0.0
          %1586 = vst.msk [vmem:[#allocation4 + $0x1a8] sm:$0xff] %vm1468, 0.0
          %1587 = vst.msk [vmem:[#allocation4 + $0x1b0] sm:$0xff] %vm1468, 0.0
          %1588 = vst.msk [vmem:[#allocation4 + $0x1b8] sm:$0xff] %vm1468, 0.0
          %1589 = vst.msk [vmem:[#allocation4 + $0x1c0] sm:$0xff] %vm1468, 0.0
          %1590 = vst.msk [vmem:[#allocation4 + $0x1c8] sm:$0xff] %vm1468, 0.0
          %1591 = vst.msk [vmem:[#allocation4 + $0x1d0] sm:$0xff] %vm1468, 0.0
          %1592 = vst.msk [vmem:[#allocation4 + $0x1d8] sm:$0xff] %vm1468, 0.0
          %1593 = vst.msk [vmem:[#allocation4 + $0x1e0] sm:$0xff] %vm1468, 0.0
          %1594 = vst.msk [vmem:[#allocation4 + $0x1e8] sm:$0xff] %vm1468, 0.0
          %1595 = vst.msk [vmem:[#allocation4 + $0x1f0] sm:$0xff] %vm1468, 0.0
          %1596 = vst.msk [vmem:[#allocation4 + $0x1f8] sm:$0xff] %vm1468, 0.0
          %vm1597 = vcmask 261120
          %1598 = vst.msk [vmem:[#allocation5] sm:$0xff] %vm1597, 0.0
          %1599 = vst.msk [vmem:[#allocation5 + $0x8] sm:$0xff] %vm1597, 0.0
          %1600 = vst.msk [vmem:[#allocation5 + $0x10] sm:$0xff] %vm1597, 0.0
          %1601 = vst.msk [vmem:[#allocation5 + $0x18] sm:$0xff] %vm1597, 0.0
          %1602 = vst.msk [vmem:[#allocation5 + $0x20] sm:$0xff] %vm1597, 0.0
          %1603 = vst.msk [vmem:[#allocation5 + $0x28] sm:$0xff] %vm1597, 0.0
          %1604 = vst.msk [vmem:[#allocation5 + $0x30] sm:$0xff] %vm1597, 0.0
          %1605 = vst.msk [vmem:[#allocation5 + $0x38] sm:$0xff] %vm1597, 0.0
          %1606 = vst.msk [vmem:[#allocation5 + $0x40] sm:$0xff] %vm1597, 0.0
          %1607 = vst.msk [vmem:[#allocation5 + $0x48] sm:$0xff] %vm1597, 0.0
          %1608 = vst.msk [vmem:[#allocation5 + $0x50] sm:$0xff] %vm1597, 0.0
          %1609 = vst.msk [vmem:[#allocation5 + $0x58] sm:$0xff] %vm1597, 0.0
          %1610 = vst.msk [vmem:[#allocation5 + $0x60] sm:$0xff] %vm1597, 0.0
          %1611 = vst.msk [vmem:[#allocation5 + $0x68] sm:$0xff] %vm1597, 0.0
          %1612 = vst.msk [vmem:[#allocation5 + $0x70] sm:$0xff] %vm1597, 0.0
          %1613 = vst.msk [vmem:[#allocation5 + $0x78] sm:$0xff] %vm1597, 0.0
          %1614 = vst.msk [vmem:[#allocation5 + $0x80] sm:$0xff] %vm1597, 0.0
          %1615 = vst.msk [vmem:[#allocation5 + $0x88] sm:$0xff] %vm1597, 0.0
          %1616 = vst.msk [vmem:[#allocation5 + $0x90] sm:$0xff] %vm1597, 0.0
          %1617 = vst.msk [vmem:[#allocation5 + $0x98] sm:$0xff] %vm1597, 0.0
          %1618 = vst.msk [vmem:[#allocation5 + $0xa0] sm:$0xff] %vm1597, 0.0
          %1619 = vst.msk [vmem:[#allocation5 + $0xa8] sm:$0xff] %vm1597, 0.0
          %1620 = vst.msk [vmem:[#allocation5 + $0xb0] sm:$0xff] %vm1597, 0.0
          %1621 = vst.msk [vmem:[#allocation5 + $0xb8] sm:$0xff] %vm1597, 0.0
          %1622 = vst.msk [vmem:[#allocation5 + $0xc0] sm:$0xff] %vm1597, 0.0
          %1623 = vst.msk [vmem:[#allocation5 + $0xc8] sm:$0xff] %vm1597, 0.0
          %1624 = vst.msk [vmem:[#allocation5 + $0xd0] sm:$0xff] %vm1597, 0.0
          %1625 = vst.msk [vmem:[#allocation5 + $0xd8] sm:$0xff] %vm1597, 0.0
          %1626 = vst.msk [vmem:[#allocation5 + $0xe0] sm:$0xff] %vm1597, 0.0
          %1627 = vst.msk [vmem:[#allocation5 + $0xe8] sm:$0xff] %vm1597, 0.0
          %1628 = vst.msk [vmem:[#allocation5 + $0xf0] sm:$0xff] %vm1597, 0.0
          %1629 = vst.msk [vmem:[#allocation5 + $0xf8] sm:$0xff] %vm1597, 0.0
          %1630 = vst.msk [vmem:[#allocation5 + $0x100] sm:$0xff] %vm1597, 0.0
          %1631 = vst.msk [vmem:[#allocation5 + $0x108] sm:$0xff] %vm1597, 0.0
          %1632 = vst.msk [vmem:[#allocation5 + $0x110] sm:$0xff] %vm1597, 0.0
          %1633 = vst.msk [vmem:[#allocation5 + $0x118] sm:$0xff] %vm1597, 0.0
          %1634 = vst.msk [vmem:[#allocation5 + $0x120] sm:$0xff] %vm1597, 0.0
          %1635 = vst.msk [vmem:[#allocation5 + $0x128] sm:$0xff] %vm1597, 0.0
          %1636 = vst.msk [vmem:[#allocation5 + $0x130] sm:$0xff] %vm1597, 0.0
          %1637 = vst.msk [vmem:[#allocation5 + $0x138] sm:$0xff] %vm1597, 0.0
          %1638 = vst.msk [vmem:[#allocation5 + $0x140] sm:$0xff] %vm1597, 0.0
          %1639 = vst.msk [vmem:[#allocation5 + $0x148] sm:$0xff] %vm1597, 0.0
          %1640 = vst.msk [vmem:[#allocation5 + $0x150] sm:$0xff] %vm1597, 0.0
          %1641 = vst.msk [vmem:[#allocation5 + $0x158] sm:$0xff] %vm1597, 0.0
          %1642 = vst.msk [vmem:[#allocation5 + $0x160] sm:$0xff] %vm1597, 0.0
          %1643 = vst.msk [vmem:[#allocation5 + $0x168] sm:$0xff] %vm1597, 0.0
          %1644 = vst.msk [vmem:[#allocation5 + $0x170] sm:$0xff] %vm1597, 0.0
          %1645 = vst.msk [vmem:[#allocation5 + $0x178] sm:$0xff] %vm1597, 0.0
          %1646 = vst.msk [vmem:[#allocation5 + $0x180] sm:$0xff] %vm1597, 0.0
          %1647 = vst.msk [vmem:[#allocation5 + $0x188] sm:$0xff] %vm1597, 0.0
          %1648 = vst.msk [vmem:[#allocation5 + $0x190] sm:$0xff] %vm1597, 0.0
          %1649 = vst.msk [vmem:[#allocation5 + $0x198] sm:$0xff] %vm1597, 0.0
          %1650 = vst.msk [vmem:[#allocation5 + $0x1a0] sm:$0xff] %vm1597, 0.0
          %1651 = vst.msk [vmem:[#allocation5 + $0x1a8] sm:$0xff] %vm1597, 0.0
          %1652 = vst.msk [vmem:[#allocation5 + $0x1b0] sm:$0xff] %vm1597, 0.0
          %1653 = vst.msk [vmem:[#allocation5 + $0x1b8] sm:$0xff] %vm1597, 0.0
          %1654 = vst.msk [vmem:[#allocation5 + $0x1c0] sm:$0xff] %vm1597, 0.0
          %1655 = vst.msk [vmem:[#allocation5 + $0x1c8] sm:$0xff] %vm1597, 0.0
          %1656 = vst.msk [vmem:[#allocation5 + $0x1d0] sm:$0xff] %vm1597, 0.0
          %1657 = vst.msk [vmem:[#allocation5 + $0x1d8] sm:$0xff] %vm1597, 0.0
          %1658 = vst.msk [vmem:[#allocation5 + $0x1e0] sm:$0xff] %vm1597, 0.0
          %1659 = vst.msk [vmem:[#allocation5 + $0x1e8] sm:$0xff] %vm1597, 0.0
          %1660 = vst.msk [vmem:[#allocation5 + $0x1f0] sm:$0xff] %vm1597, 0.0
          %1661 = vst.msk [vmem:[#allocation5 + $0x1f8] sm:$0xff] %vm1597, 0.0
        $region64: #{tpu_custom_call.1} parent=59 // pred_fallthru
          _
        %v1662 = vld [vmem:[%s455] sm:$0xf]
        %v1663 = vld [vmem:[%s455 + $0x4] sm:$0xf]
        %v1664 = vld [vmem:[%s455 + $0x8] sm:$0xf]
        %v1665 = vld [vmem:[%s455 + $0xc] sm:$0xf]
        %v1666 = vld [vmem:[%s455 + $0x10] sm:$0xf]
        %v1667 = vld [vmem:[%s455 + $0x14] sm:$0xf]
        %v1668 = vld [vmem:[%s455 + $0x18] sm:$0xf]
        %v1669 = vld [vmem:[%s455 + $0x1c] sm:$0xf]
        %v1670 = vld [vmem:[%s455 + $0x20] sm:$0xf]
        %v1671 = vld [vmem:[%s455 + $0x24] sm:$0xf]
        %v1672 = vld [vmem:[%s455 + $0x28] sm:$0xf]
        %v1673 = vld [vmem:[%s455 + $0x2c] sm:$0xf]
        %v1674 = vld [vmem:[%s455 + $0x30] sm:$0xf]
        %v1675 = vld [vmem:[%s455 + $0x34] sm:$0xf]
        %v1676 = vld [vmem:[%s455 + $0x38] sm:$0xf]
        %v1677 = vld [vmem:[%s455 + $0x3c] sm:$0xf]
        %v1678 = vld [vmem:[%s465] sm:$0xf]
        %v1679 = vld [vmem:[%s465 + $0x4] sm:$0xf]
        %v1680 = vld [vmem:[%s465 + $0x8] sm:$0xf]
        %v1681 = vld [vmem:[%s465 + $0xc] sm:$0xf]
        %v1682 = vld [vmem:[%s465 + $0x10] sm:$0xf]
        %v1683 = vld [vmem:[%s465 + $0x14] sm:$0xf]
        %v1684 = vld [vmem:[%s465 + $0x18] sm:$0xf]
        %v1685 = vld [vmem:[%s465 + $0x1c] sm:$0xf]
        %v1686 = vld [vmem:[%s465 + $0x20] sm:$0xf]
        %v1687 = vld [vmem:[%s465 + $0x24] sm:$0xf]
        %v1688 = vld [vmem:[%s465 + $0x28] sm:$0xf]
        %v1689 = vld [vmem:[%s465 + $0x2c] sm:$0xf]
        %v1690 = vld [vmem:[%s465 + $0x30] sm:$0xf]
        %v1691 = vld [vmem:[%s465 + $0x34] sm:$0xf]
        %v1692 = vld [vmem:[%s465 + $0x38] sm:$0xf]
        %v1693 = vld [vmem:[%s465 + $0x3c] sm:$0xf]
        %v1694 = vld [vmem:[%s4] sm:$0xf]
        %v1695 = vld [vmem:[%s4 + $0x4] sm:$0xf]
        %v1696 = vld [vmem:[%s4 + $0x8] sm:$0xf]
        %v1697 = vld [vmem:[%s4 + $0xc] sm:$0xf]
        %v1698 = vld [vmem:[%s4 + $0x10] sm:$0xf]
        %v1699 = vld [vmem:[%s4 + $0x14] sm:$0xf]
        %v1700 = vld [vmem:[%s4 + $0x18] sm:$0xf]
        %v1701 = vld [vmem:[%s4 + $0x1c] sm:$0xf]
        %v1702 = vld [vmem:[%s4 + $0x20] sm:$0xf]
        %v1703 = vld [vmem:[%s4 + $0x24] sm:$0xf]
        %v1704 = vld [vmem:[%s4 + $0x28] sm:$0xf]
        %v1705 = vld [vmem:[%s4 + $0x2c] sm:$0xf]
        %v1706 = vld [vmem:[%s4 + $0x30] sm:$0xf]
        %v1707 = vld [vmem:[%s4 + $0x34] sm:$0xf]
        %v1708 = vld [vmem:[%s4 + $0x38] sm:$0xf]
        %v1709 = vld [vmem:[%s4 + $0x3c] sm:$0xf]
        %v1726 = vunpack.c.l.b16 %v1662
        %v1727 = vunpack.c.l.b16 %v1663
        %v1728 = vunpack.c.l.b16 %v1664
        %v1729 = vunpack.c.l.b16 %v1665
        %v1730 = vunpack.c.l.b16 %v1666
        %v1731 = vunpack.c.l.b16 %v1667
        %v1732 = vunpack.c.l.b16 %v1668
        %v1733 = vunpack.c.l.b16 %v1669
        %v1734 = vunpack.c.l.b16 %v1670
        %v1735 = vunpack.c.l.b16 %v1671
        %v1736 = vunpack.c.l.b16 %v1672
        %v1737 = vunpack.c.l.b16 %v1673
        %v1738 = vunpack.c.l.b16 %v1674
        %v1739 = vunpack.c.l.b16 %v1675
        %v1740 = vunpack.c.l.b16 %v1676
        %v1741 = vunpack.c.l.b16 %v1677
        %v1742 = vpack.c.b16 %v1727, %v1726
        %v1743 = vpack.c.b16 %v1729, %v1728
        %v1744 = vpack.c.b16 %v1731, %v1730
        %v1745 = vpack.c.b16 %v1733, %v1732
        %v1746 = vpack.c.b16 %v1735, %v1734
        %v1747 = vpack.c.b16 %v1737, %v1736
        %v1748 = vpack.c.b16 %v1739, %v1738
        %v1749 = vpack.c.b16 %v1741, %v1740
        %v1774 = vunpack.c.l.b16 %v1694
        %v1775 = vunpack.c.l.b16 %v1695
        %v1776 = vunpack.c.l.b16 %v1696
        %v1777 = vunpack.c.l.b16 %v1697
        %v1778 = vunpack.c.l.b16 %v1698
        %v1779 = vunpack.c.l.b16 %v1699
        %v1780 = vunpack.c.l.b16 %v1700
        %v1781 = vunpack.c.l.b16 %v1701
        %v1782 = vunpack.c.l.b16 %v1702
        %v1783 = vunpack.c.l.b16 %v1703
        %v1784 = vunpack.c.l.b16 %v1704
        %v1785 = vunpack.c.l.b16 %v1705
        %v1786 = vunpack.c.l.b16 %v1706
        %v1787 = vunpack.c.l.b16 %v1707
        %v1788 = vunpack.c.l.b16 %v1708
        %v1789 = vunpack.c.l.b16 %v1709
        %v1790 = vpack.c.b16 %v1775, %v1774
        %v1791 = vpack.c.b16 %v1777, %v1776
        %v1792 = vpack.c.b16 %v1779, %v1778
        %v1793 = vpack.c.b16 %v1781, %v1780
        %v1794 = vpack.c.b16 %v1783, %v1782
        %v1795 = vpack.c.b16 %v1785, %v1784
        %v1796 = vpack.c.b16 %v1787, %v1786
        %v1797 = vpack.c.b16 %v1789, %v1788
        %1806 = vmatprep.subr.bf16.mxu0 0
        %1807 = vmatpush1.bf16.msra.mxu0 %v1797
        %1808 = vmatprep.subr.bf16.mxu0 0
        %1809 = vmatpush1.bf16.msra.mxu0 %v1796
        %1810 = vmatprep.subr.bf16.mxu0 0
        %1811 = vmatpush1.bf16.msra.mxu0 %v1795
        %1812 = vmatprep.subr.bf16.mxu0 0
        %1813 = vmatpush1.bf16.msra.mxu0 %v1794
        %1814 = vmatprep.subr.bf16.mxu0 0
        %1815 = vmatpush1.bf16.msra.mxu0 %v1793
        %1816 = vmatprep.subr.bf16.mxu0 0
        %1817 = vmatpush1.bf16.msra.mxu0 %v1792
        %1818 = vmatprep.subr.bf16.mxu0 0
        %1819 = vmatpush1.bf16.msra.mxu0 %v1791
        %1820 = vmatprep.subr.bf16.mxu0 0
        %1821 = vmatpush1.bf16.msra.mxu0 %v1790
        %1822 = vmatprep.subr.bf16.mxu0 0
        %1823 = vmatpush2.bf16.msra.mxu0 0
        %1824 = vmatprep.subr.bf16.mxu0 0
        %1825 = vmatpush2.bf16.msra.mxu0 0
        %1826 = vmatprep.subr.bf16.mxu0 0
        %1827 = vmatpush2.bf16.msra.mxu0 0
        %1828 = vmatprep.subr.bf16.mxu0 0
        %1829 = vmatpush2.bf16.msra.mxu0 0
        %1830 = vmatprep.subr.bf16.mxu0 0
        %1831 = vmatpush2.bf16.msra.mxu0 0
        %1832 = vmatprep.subr.bf16.mxu0 0
        %1833 = vmatpush2.bf16.msra.mxu0 0
        %1834 = vmatprep.subr.bf16.mxu0 0
        %1835 = vmatpush2.bf16.msra.mxu0 0
        %1836 = vmatprep.subr.bf16.mxu0 0
        %1837 = vmatpush2.bf16.msra.mxu0 0
        %1838 = vmatprep.mubr.bf16.mxu0 0
        %1839 = vmatmul.mubr.bf16.gmra.mxu0 %v1742
        %v1840 = vpop.f32.mrf.mxu0
        %v1841 = vadd.f32 0.0, %v1840
        %v1842 = vpop.f32.mrf.mxu0
        %v1843 = vpop.f32.mrf.mxu0
        %v1844 = vadd.f32 0.0, %v1843
        %v1845 = vpop.f32.mrf.mxu0
        %1846 = vmatprep.mubr.bf16.mxu0 0
        %1847 = vmatmul.mubr.bf16.gmra.mxu0 %v1743
        %v1848 = vpop.f32.mrf.mxu0
        %v1849 = vadd.f32 0.0, %v1848
        %v1850 = vpop.f32.mrf.mxu0
        %v1851 = vpop.f32.mrf.mxu0
        %v1852 = vadd.f32 0.0, %v1851
        %v1853 = vpop.f32.mrf.mxu0
        %1854 = vmatprep.mubr.bf16.mxu0 0
        %1855 = vmatmul.mubr.bf16.gmra.mxu0 %v1744
        %v1856 = vpop.f32.mrf.mxu0
        %v1857 = vadd.f32 0.0, %v1856
        %v1858 = vpop.f32.mrf.mxu0
        %v1859 = vpop.f32.mrf.mxu0
        %v1860 = vadd.f32 0.0, %v1859
        %v1861 = vpop.f32.mrf.mxu0
        %1862 = vmatprep.mubr.bf16.mxu0 0
        %1863 = vmatmul.mubr.bf16.gmra.mxu0 %v1745
        %v1864 = vpop.f32.mrf.mxu0
        %v1865 = vadd.f32 0.0, %v1864
        %v1866 = vpop.f32.mrf.mxu0
        %v1867 = vpop.f32.mrf.mxu0
        %v1868 = vadd.f32 0.0, %v1867
        %v1869 = vpop.f32.mrf.mxu0
        %1870 = vmatprep.mubr.bf16.mxu0 0
        %1871 = vmatmul.mubr.bf16.gmra.mxu0 %v1746
        %v1872 = vpop.f32.mrf.mxu0
        %v1873 = vadd.f32 0.0, %v1872
        %v1874 = vpop.f32.mrf.mxu0
        %v1875 = vpop.f32.mrf.mxu0
        %v1876 = vadd.f32 0.0, %v1875
        %v1877 = vpop.f32.mrf.mxu0
        %1878 = vmatprep.mubr.bf16.mxu0 0
        %1879 = vmatmul.mubr.bf16.gmra.mxu0 %v1747
        %v1880 = vpop.f32.mrf.mxu0
        %v1881 = vadd.f32 0.0, %v1880
        %v1882 = vpop.f32.mrf.mxu0
        %v1883 = vpop.f32.mrf.mxu0
        %v1884 = vadd.f32 0.0, %v1883
        %v1885 = vpop.f32.mrf.mxu0
        %1886 = vmatprep.mubr.bf16.mxu0 0
        %1887 = vmatmul.mubr.bf16.gmra.mxu0 %v1748
        %v1888 = vpop.f32.mrf.mxu0
        %v1889 = vadd.f32 0.0, %v1888
        %v1890 = vpop.f32.mrf.mxu0
        %v1891 = vpop.f32.mrf.mxu0
        %v1892 = vadd.f32 0.0, %v1891
        %v1893 = vpop.f32.mrf.mxu0
        %1894 = vmatprep.mubr.bf16.mxu0 0
        %1895 = vmatmul.mubr.bf16.gmra.mxu0 %v1749
        %v1896 = vpop.f32.mrf.mxu0
        %v1897 = vadd.f32 0.0, %v1896
        %v1898 = vpop.f32.mrf.mxu0
        %v1899 = vpop.f32.mrf.mxu0
        %v1900 = vadd.f32 0.0, %v1899
        %v1901 = vpop.f32.mrf.mxu0
        %1902 = vdwg.mxu0
        %v1903 = vpack.c.bf16 %v1844, %v1841
        %v1904 = vpack.c.bf16 %v1852, %v1849
        %v1905 = vpack.c.bf16 %v1860, %v1857
        %v1906 = vpack.c.bf16 %v1868, %v1865
        %v1907 = vpack.c.bf16 %v1876, %v1873
        %v1908 = vpack.c.bf16 %v1884, %v1881
        %v1909 = vpack.c.bf16 %v1892, %v1889
        %v1910 = vpack.c.bf16 %v1900, %v1897
        %v1911 = vld [vmem:[%s5] sm:$0xf]
        %v1912 = vld [vmem:[%s5 + $0x4] sm:$0xf]
        %v1913 = vld [vmem:[%s5 + $0x8] sm:$0xf]
        %v1914 = vld [vmem:[%s5 + $0xc] sm:$0xf]
        %v1915 = vld [vmem:[%s5 + $0x10] sm:$0xf]
        %v1916 = vld [vmem:[%s5 + $0x14] sm:$0xf]
        %v1917 = vld [vmem:[%s5 + $0x18] sm:$0xf]
        %v1918 = vld [vmem:[%s5 + $0x1c] sm:$0xf]
        %v1919 = vld [vmem:[%s5 + $0x20] sm:$0xf]
        %v1920 = vld [vmem:[%s5 + $0x24] sm:$0xf]
        %v1921 = vld [vmem:[%s5 + $0x28] sm:$0xf]
        %v1922 = vld [vmem:[%s5 + $0x2c] sm:$0xf]
        %v1923 = vld [vmem:[%s5 + $0x30] sm:$0xf]
        %v1924 = vld [vmem:[%s5 + $0x34] sm:$0xf]
        %v1925 = vld [vmem:[%s5 + $0x38] sm:$0xf]
        %v1926 = vld [vmem:[%s5 + $0x3c] sm:$0xf]
        %v1943 = vunpack.c.l.b16 %v1678
        %v1944 = vunpack.c.l.b16 %v1679
        %v1945 = vunpack.c.l.b16 %v1680
        %v1946 = vunpack.c.l.b16 %v1681
        %v1947 = vunpack.c.l.b16 %v1682
        %v1948 = vunpack.c.l.b16 %v1683
        %v1949 = vunpack.c.l.b16 %v1684
        %v1950 = vunpack.c.l.b16 %v1685
        %v1951 = vunpack.c.l.b16 %v1686
        %v1952 = vunpack.c.l.b16 %v1687
        %v1953 = vunpack.c.l.b16 %v1688
        %v1954 = vunpack.c.l.b16 %v1689
        %v1955 = vunpack.c.l.b16 %v1690
        %v1956 = vunpack.c.l.b16 %v1691
        %v1957 = vunpack.c.l.b16 %v1692
        %v1958 = vunpack.c.l.b16 %v1693
        %v1959 = vpack.c.b16 %v1944, %v1943
        %v1960 = vpack.c.b16 %v1946, %v1945
        %v1961 = vpack.c.b16 %v1948, %v1947
        %v1962 = vpack.c.b16 %v1950, %v1949
        %v1963 = vpack.c.b16 %v1952, %v1951
        %v1964 = vpack.c.b16 %v1954, %v1953
        %v1965 = vpack.c.b16 %v1956, %v1955
        %v1966 = vpack.c.b16 %v1958, %v1957
        %v1991 = vunpack.c.l.b16 %v1911
        %v1992 = vunpack.c.l.b16 %v1912
        %v1993 = vunpack.c.l.b16 %v1913
        %v1994 = vunpack.c.l.b16 %v1914
        %v1995 = vunpack.c.l.b16 %v1915
        %v1996 = vunpack.c.l.b16 %v1916
        %v1997 = vunpack.c.l.b16 %v1917
        %v1998 = vunpack.c.l.b16 %v1918
        %v1999 = vunpack.c.l.b16 %v1919
        %v2000 = vunpack.c.l.b16 %v1920
        %v2001 = vunpack.c.l.b16 %v1921
        %v2002 = vunpack.c.l.b16 %v1922
        %v2003 = vunpack.c.l.b16 %v1923
        %v2004 = vunpack.c.l.b16 %v1924
        %v2005 = vunpack.c.l.b16 %v1925
        %v2006 = vunpack.c.l.b16 %v1926
        %v2007 = vpack.c.b16 %v1992, %v1991
        %v2008 = vpack.c.b16 %v1994, %v1993
        %v2009 = vpack.c.b16 %v1996, %v1995
        %v2010 = vpack.c.b16 %v1998, %v1997
        %v2011 = vpack.c.b16 %v2000, %v1999
        %v2012 = vpack.c.b16 %v2002, %v2001
        %v2013 = vpack.c.b16 %v2004, %v2003
        %v2014 = vpack.c.b16 %v2006, %v2005
        %2023 = vmatprep.subr.bf16.mxu0 0
        %2024 = vmatpush1.bf16.msra.mxu0 %v2014
        %2025 = vmatprep.subr.bf16.mxu0 0
        %2026 = vmatpush1.bf16.msra.mxu0 %v2013
        %2027 = vmatprep.subr.bf16.mxu0 0
        %2028 = vmatpush1.bf16.msra.mxu0 %v2012
        %2029 = vmatprep.subr.bf16.mxu0 0
        %2030 = vmatpush1.bf16.msra.mxu0 %v2011
        %2031 = vmatprep.subr.bf16.mxu0 0
        %2032 = vmatpush1.bf16.msra.mxu0 %v2010
        %2033 = vmatprep.subr.bf16.mxu0 0
        %2034 = vmatpush1.bf16.msra.mxu0 %v2009
        %2035 = vmatprep.subr.bf16.mxu0 0
        %2036 = vmatpush1.bf16.msra.mxu0 %v2008
        %2037 = vmatprep.subr.bf16.mxu0 0
        %2038 = vmatpush1.bf16.msra.mxu0 %v2007
        %2039 = vmatprep.subr.bf16.mxu0 0
        %2040 = vmatpush2.bf16.msra.mxu0 0
        %2041 = vmatprep.subr.bf16.mxu0 0
        %2042 = vmatpush2.bf16.msra.mxu0 0
        %2043 = vmatprep.subr.bf16.mxu0 0
        %2044 = vmatpush2.bf16.msra.mxu0 0
        %2045 = vmatprep.subr.bf16.mxu0 0
        %2046 = vmatpush2.bf16.msra.mxu0 0
        %2047 = vmatprep.subr.bf16.mxu0 0
        %2048 = vmatpush2.bf16.msra.mxu0 0
        %2049 = vmatprep.subr.bf16.mxu0 0
        %2050 = vmatpush2.bf16.msra.mxu0 0
        %2051 = vmatprep.subr.bf16.mxu0 0
        %2052 = vmatpush2.bf16.msra.mxu0 0
        %2053 = vmatprep.subr.bf16.mxu0 0
        %2054 = vmatpush2.bf16.msra.mxu0 0
        %2055 = vmatprep.mubr.bf16.mxu0 0
        %2056 = vmatmul.mubr.bf16.gmra.mxu0 %v1959
        %v2057 = vpop.f32.mrf.mxu0
        %v2058 = vadd.f32 0.0, %v2057
        %v2059 = vpop.f32.mrf.mxu0
        %v2060 = vpop.f32.mrf.mxu0
        %v2061 = vadd.f32 0.0, %v2060
        %v2062 = vpop.f32.mrf.mxu0
        %2063 = vmatprep.mubr.bf16.mxu0 0
        %2064 = vmatmul.mubr.bf16.gmra.mxu0 %v1960
        %v2065 = vpop.f32.mrf.mxu0
        %v2066 = vadd.f32 0.0, %v2065
        %v2067 = vpop.f32.mrf.mxu0
        %v2068 = vpop.f32.mrf.mxu0
        %v2069 = vadd.f32 0.0, %v2068
        %v2070 = vpop.f32.mrf.mxu0
        %2071 = vmatprep.mubr.bf16.mxu0 0
        %2072 = vmatmul.mubr.bf16.gmra.mxu0 %v1961
        %v2073 = vpop.f32.mrf.mxu0
        %v2074 = vadd.f32 0.0, %v2073
        %v2075 = vpop.f32.mrf.mxu0
        %v2076 = vpop.f32.mrf.mxu0
        %v2077 = vadd.f32 0.0, %v2076
        %v2078 = vpop.f32.mrf.mxu0
        %2079 = vmatprep.mubr.bf16.mxu0 0
        %2080 = vmatmul.mubr.bf16.gmra.mxu0 %v1962
        %v2081 = vpop.f32.mrf.mxu0
        %v2082 = vadd.f32 0.0, %v2081
        %v2083 = vpop.f32.mrf.mxu0
        %v2084 = vpop.f32.mrf.mxu0
        %v2085 = vadd.f32 0.0, %v2084
        %v2086 = vpop.f32.mrf.mxu0
        %2087 = vmatprep.mubr.bf16.mxu0 0
        %2088 = vmatmul.mubr.bf16.gmra.mxu0 %v1963
        %v2089 = vpop.f32.mrf.mxu0
        %v2090 = vadd.f32 0.0, %v2089
        %v2091 = vpop.f32.mrf.mxu0
        %v2092 = vpop.f32.mrf.mxu0
        %v2093 = vadd.f32 0.0, %v2092
        %v2094 = vpop.f32.mrf.mxu0
        %2095 = vmatprep.mubr.bf16.mxu0 0
        %2096 = vmatmul.mubr.bf16.gmra.mxu0 %v1964
        %v2097 = vpop.f32.mrf.mxu0
        %v2098 = vadd.f32 0.0, %v2097
        %v2099 = vpop.f32.mrf.mxu0
        %v2100 = vpop.f32.mrf.mxu0
        %v2101 = vadd.f32 0.0, %v2100
        %v2102 = vpop.f32.mrf.mxu0
        %2103 = vmatprep.mubr.bf16.mxu0 0
        %2104 = vmatmul.mubr.bf16.gmra.mxu0 %v1965
        %v2105 = vpop.f32.mrf.mxu0
        %v2106 = vadd.f32 0.0, %v2105
        %v2107 = vpop.f32.mrf.mxu0
        %v2108 = vpop.f32.mrf.mxu0
        %v2109 = vadd.f32 0.0, %v2108
        %v2110 = vpop.f32.mrf.mxu0
        %2111 = vmatprep.mubr.bf16.mxu0 0
        %2112 = vmatmul.mubr.bf16.gmra.mxu0 %v1966
        %v2113 = vpop.f32.mrf.mxu0
        %v2114 = vadd.f32 0.0, %v2113
        %v2115 = vpop.f32.mrf.mxu0
        %v2116 = vpop.f32.mrf.mxu0
        %v2117 = vadd.f32 0.0, %v2116
        %v2118 = vpop.f32.mrf.mxu0
        %2119 = vdwg.mxu0
        %v2120 = vpack.c.bf16 %v2061, %v2058
        %v2121 = vpack.c.bf16 %v2069, %v2066
        %v2122 = vpack.c.bf16 %v2077, %v2074
        %v2123 = vpack.c.bf16 %v2085, %v2082
        %v2124 = vpack.c.bf16 %v2093, %v2090
        %v2125 = vpack.c.bf16 %v2101, %v2098
        %v2126 = vpack.c.bf16 %v2109, %v2106
        %v2127 = vpack.c.bf16 %v2117, %v2114
        %v2128 = vld [vmem:[#allocation2] sm:$0xf]
        %v2129 = vld [vmem:[#allocation2 + $0x4] sm:$0xf]
        %v2130 = vld [vmem:[#allocation2 + $0x8] sm:$0xf]
        %v2131 = vld [vmem:[#allocation2 + $0xc] sm:$0xf]
        %v2132 = vld [vmem:[#allocation2 + $0x10] sm:$0xf]
        %v2133 = vld [vmem:[#allocation2 + $0x14] sm:$0xf]
        %v2134 = vld [vmem:[#allocation2 + $0x18] sm:$0xf]
        %v2135 = vld [vmem:[#allocation2 + $0x1c] sm:$0xf]
        %v2136 = vld [vmem:[#allocation2 + $0x20] sm:$0xf]
        %v2137 = vld [vmem:[#allocation2 + $0x24] sm:$0xf]
        %v2138 = vld [vmem:[#allocation2 + $0x28] sm:$0xf]
        %v2139 = vld [vmem:[#allocation2 + $0x2c] sm:$0xf]
        %v2140 = vld [vmem:[#allocation2 + $0x30] sm:$0xf]
        %v2141 = vld [vmem:[#allocation2 + $0x34] sm:$0xf]
        %v2142 = vld [vmem:[#allocation2 + $0x38] sm:$0xf]
        %v2143 = vld [vmem:[#allocation2 + $0x3c] sm:$0xf]
        %v2160 = vunpack.c.l.b16 %v2128
        %v2161 = vunpack.c.l.b16 %v2129
        %v2162 = vunpack.c.l.b16 %v2130
        %v2163 = vunpack.c.l.b16 %v2131
        %v2164 = vunpack.c.l.b16 %v2132
        %v2165 = vunpack.c.l.b16 %v2133
        %v2166 = vunpack.c.l.b16 %v2134
        %v2167 = vunpack.c.l.b16 %v2135
        %v2168 = vunpack.c.l.b16 %v2136
        %v2169 = vunpack.c.l.b16 %v2137
        %v2170 = vunpack.c.l.b16 %v2138
        %v2171 = vunpack.c.l.b16 %v2139
        %v2172 = vunpack.c.l.b16 %v2140
        %v2173 = vunpack.c.l.b16 %v2141
        %v2174 = vunpack.c.l.b16 %v2142
        %v2175 = vunpack.c.l.b16 %v2143
        %v2176 = vpack.c.b16 %v2161, %v2160
        %v2177 = vpack.c.b16 %v2163, %v2162
        %v2178 = vpack.c.b16 %v2165, %v2164
        %v2179 = vpack.c.b16 %v2167, %v2166
        %v2180 = vpack.c.b16 %v2169, %v2168
        %v2181 = vpack.c.b16 %v2171, %v2170
        %v2182 = vpack.c.b16 %v2173, %v2172
        %v2183 = vpack.c.b16 %v2175, %v2174
        %vm2184 = vcmask 261120
        %v2186 = vsel %vm2184, %v2176, 0
        %v2189 = vsel %vm2184, %v2177, 0
        %v2192 = vsel %vm2184, %v2178, 0
        %v2195 = vsel %vm2184, %v2179, 0
        %v2198 = vsel %vm2184, %v2180, 0
        %v2201 = vsel %vm2184, %v2181, 0
        %v2204 = vsel %vm2184, %v2182, 0
        %v2207 = vsel %vm2184, %v2183, 0
        %v2210 = vsel %vm2184, %v1903, 0
        %v2213 = vsel %vm2184, %v1904, 0
        %v2216 = vsel %vm2184, %v1905, 0
        %v2219 = vsel %vm2184, %v1906, 0
        %v2222 = vsel %vm2184, %v1907, 0
        %v2225 = vsel %vm2184, %v1908, 0
        %v2228 = vsel %vm2184, %v1909, 0
        %v2231 = vsel %vm2184, %v1910, 0
        %2233 = vmatprep.subr.bf16.mxu0 0
        %2234 = vmatpush1.bf16.xpose.msra.mxu0 %v2231
        %2235 = vmatprep.subr.bf16.mxu0 0
        %2236 = vmatpush1.bf16.xpose.msra.mxu0 %v2228
        %2237 = vmatprep.subr.bf16.mxu0 0
        %2238 = vmatpush1.bf16.xpose.msra.mxu0 %v2225
        %2239 = vmatprep.subr.bf16.mxu0 0
        %2240 = vmatpush1.bf16.xpose.msra.mxu0 %v2222
        %2241 = vmatprep.subr.bf16.mxu0 0
        %2242 = vmatpush1.bf16.xpose.msra.mxu0 %v2219
        %2243 = vmatprep.subr.bf16.mxu0 0
        %2244 = vmatpush1.bf16.xpose.msra.mxu0 %v2216
        %2245 = vmatprep.subr.bf16.mxu0 0
        %2246 = vmatpush1.bf16.xpose.msra.mxu0 %v2213
        %2247 = vmatprep.subr.bf16.mxu0 0
        %2248 = vmatpush1.bf16.xpose.msra.mxu0 %v2210
        %2249 = vmatprep.subr.bf16.mxu0 0
        %2250 = vmatpush2.bf16.xpose.msra.mxu0 0
        %2251 = vmatprep.subr.bf16.mxu0 0
        %2252 = vmatpush2.bf16.xpose.msra.mxu0 0
        %2253 = vmatprep.subr.bf16.mxu0 0
        %2254 = vmatpush2.bf16.xpose.msra.mxu0 0
        %2255 = vmatprep.subr.bf16.mxu0 0
        %2256 = vmatpush2.bf16.xpose.msra.mxu0 0
        %2257 = vmatprep.subr.bf16.mxu0 0
        %2258 = vmatpush2.bf16.xpose.msra.mxu0 0
        %2259 = vmatprep.subr.bf16.mxu0 0
        %2260 = vmatpush2.bf16.xpose.msra.mxu0 0
        %2261 = vmatprep.subr.bf16.mxu0 0
        %2262 = vmatpush2.bf16.xpose.msra.mxu0 0
        %2263 = vmatprep.subr.bf16.mxu0 0
        %2264 = vmatpush2.bf16.xpose.msra.mxu0 0
        %2265 = vmatprep.mubr.bf16.mxu0 0
        %2266 = vmatmul.mubr.bf16.gmra.mxu0 %v2186
        %v2267 = vpop.f32.mrf.mxu0
        %v2268 = vadd.f32 0.0, %v2267
        %v2269 = vpop.f32.mrf.mxu0
        %v2270 = vpop.f32.mrf.mxu0
        %v2271 = vadd.f32 0.0, %v2270
        %v2272 = vpop.f32.mrf.mxu0
        %2273 = vmatprep.mubr.bf16.mxu0 0
        %2274 = vmatmul.mubr.bf16.gmra.mxu0 %v2189
        %v2275 = vpop.f32.mrf.mxu0
        %v2276 = vadd.f32 0.0, %v2275
        %v2277 = vpop.f32.mrf.mxu0
        %v2278 = vpop.f32.mrf.mxu0
        %v2279 = vadd.f32 0.0, %v2278
        %v2280 = vpop.f32.mrf.mxu0
        %2281 = vmatprep.mubr.bf16.mxu0 0
        %2282 = vmatmul.mubr.bf16.gmra.mxu0 %v2192
        %v2283 = vpop.f32.mrf.mxu0
        %v2284 = vadd.f32 0.0, %v2283
        %v2285 = vpop.f32.mrf.mxu0
        %v2286 = vpop.f32.mrf.mxu0
        %v2287 = vadd.f32 0.0, %v2286
        %v2288 = vpop.f32.mrf.mxu0
        %2289 = vmatprep.mubr.bf16.mxu0 0
        %2290 = vmatmul.mubr.bf16.gmra.mxu0 %v2195
        %v2291 = vpop.f32.mrf.mxu0
        %v2292 = vadd.f32 0.0, %v2291
        %v2293 = vpop.f32.mrf.mxu0
        %v2294 = vpop.f32.mrf.mxu0
        %v2295 = vadd.f32 0.0, %v2294
        %v2296 = vpop.f32.mrf.mxu0
        %2297 = vmatprep.mubr.bf16.mxu0 0
        %2298 = vmatmul.mubr.bf16.gmra.mxu0 %v2198
        %v2299 = vpop.f32.mrf.mxu0
        %v2300 = vadd.f32 0.0, %v2299
        %v2301 = vpop.f32.mrf.mxu0
        %v2302 = vpop.f32.mrf.mxu0
        %v2303 = vadd.f32 0.0, %v2302
        %v2304 = vpop.f32.mrf.mxu0
        %2305 = vmatprep.mubr.bf16.mxu0 0
        %2306 = vmatmul.mubr.bf16.gmra.mxu0 %v2201
        %v2307 = vpop.f32.mrf.mxu0
        %v2308 = vadd.f32 0.0, %v2307
        %v2309 = vpop.f32.mrf.mxu0
        %v2310 = vpop.f32.mrf.mxu0
        %v2311 = vadd.f32 0.0, %v2310
        %v2312 = vpop.f32.mrf.mxu0
        %2313 = vmatprep.mubr.bf16.mxu0 0
        %2314 = vmatmul.mubr.bf16.gmra.mxu0 %v2204
        %v2315 = vpop.f32.mrf.mxu0
        %v2316 = vadd.f32 0.0, %v2315
        %v2317 = vpop.f32.mrf.mxu0
        %v2318 = vpop.f32.mrf.mxu0
        %v2319 = vadd.f32 0.0, %v2318
        %v2320 = vpop.f32.mrf.mxu0
        %2321 = vmatprep.mubr.bf16.mxu0 0
        %2322 = vmatmul.mubr.bf16.gmra.mxu0 %v2207
        %v2323 = vpop.f32.mrf.mxu0
        %v2324 = vadd.f32 0.0, %v2323
        %v2325 = vpop.f32.mrf.mxu0
        %v2326 = vpop.f32.mrf.mxu0
        %v2327 = vadd.f32 0.0, %v2326
        %v2328 = vpop.f32.mrf.mxu0
        %2329 = vdwg.mxu0
        %v2330 = vmul.f32 %v2268, 0.17677669
        %v2331 = vmul.f32 %v2271, 0.17677669
        %v2332 = vmul.f32 %v2276, 0.17677669
        %v2333 = vmul.f32 %v2279, 0.17677669
        %v2334 = vmul.f32 %v2284, 0.17677669
        %v2335 = vmul.f32 %v2287, 0.17677669
        %v2336 = vmul.f32 %v2292, 0.17677669
        %v2337 = vmul.f32 %v2295, 0.17677669
        %v2338 = vmul.f32 %v2300, 0.17677669
        %v2339 = vmul.f32 %v2303, 0.17677669
        %v2340 = vmul.f32 %v2308, 0.17677669
        %v2341 = vmul.f32 %v2311, 0.17677669
        %v2342 = vmul.f32 %v2316, 0.17677669
        %v2343 = vmul.f32 %v2319, 0.17677669
        %v2344 = vmul.f32 %v2324, 0.17677669
        %v2345 = vmul.f32 %v2327, 0.17677669
        %v2346 = vld [vmem:[#allocation3] sm:$0xff]
        %v2347 = vld [vmem:[#allocation3 + $0x8] sm:$0xff]
        %v2348 = vld [vmem:[#allocation3 + $0x10] sm:$0xff]
        %v2349 = vld [vmem:[#allocation3 + $0x18] sm:$0xff]
        %v2350 = vld [vmem:[#allocation3 + $0x20] sm:$0xff]
        %v2351 = vld [vmem:[#allocation3 + $0x28] sm:$0xff]
        %v2352 = vld [vmem:[#allocation3 + $0x30] sm:$0xff]
        %v2353 = vld [vmem:[#allocation3 + $0x38] sm:$0xff]
        %v2354 = vld [vmem:[#allocation3 + $0x40] sm:$0xff]
        %v2355 = vld [vmem:[#allocation3 + $0x48] sm:$0xff]
        %v2356 = vld [vmem:[#allocation3 + $0x50] sm:$0xff]
        %v2357 = vld [vmem:[#allocation3 + $0x58] sm:$0xff]
        %v2358 = vld [vmem:[#allocation3 + $0x60] sm:$0xff]
        %v2359 = vld [vmem:[#allocation3 + $0x68] sm:$0xff]
        %v2360 = vld [vmem:[#allocation3 + $0x70] sm:$0xff]
        %v2361 = vld [vmem:[#allocation3 + $0x78] sm:$0xff]
        %2362 = vmax.xlane.f32.xlu0 %v2330
        %v2363 = vpop.xlane.xlu0 %2362
        %2364 = vmax.xlane.f32.xlu0 %v2331
        %v2365 = vpop.xlane.xlu0 %2364
        %2366 = vmax.xlane.f32.xlu0 %v2332
        %v2367 = vpop.xlane.xlu0 %2366
        %2368 = vmax.xlane.f32.xlu0 %v2333
        %v2369 = vpop.xlane.xlu0 %2368
        %2370 = vmax.xlane.f32.xlu0 %v2334
        %v2371 = vpop.xlane.xlu0 %2370
        %2372 = vmax.xlane.f32.xlu0 %v2335
        %v2373 = vpop.xlane.xlu0 %2372
        %2374 = vmax.xlane.f32.xlu0 %v2336
        %v2375 = vpop.xlane.xlu0 %2374
        %2376 = vmax.xlane.f32.xlu0 %v2337
        %v2377 = vpop.xlane.xlu0 %2376
        %2378 = vmax.xlane.f32.xlu0 %v2338
        %v2379 = vpop.xlane.xlu0 %2378
        %2380 = vmax.xlane.f32.xlu0 %v2339
        %v2381 = vpop.xlane.xlu0 %2380
        %2382 = vmax.xlane.f32.xlu0 %v2340
        %v2383 = vpop.xlane.xlu0 %2382
        %2384 = vmax.xlane.f32.xlu0 %v2341
        %v2385 = vpop.xlane.xlu0 %2384
        %2386 = vmax.xlane.f32.xlu0 %v2342
        %v2387 = vpop.xlane.xlu0 %2386
        %2388 = vmax.xlane.f32.xlu0 %v2343
        %v2389 = vpop.xlane.xlu0 %2388
        %2390 = vmax.xlane.f32.xlu0 %v2344
        %v2391 = vpop.xlane.xlu0 %2390
        %2392 = vmax.xlane.f32.xlu0 %v2345
        %v2393 = vpop.xlane.xlu0 %2392
        %v2394 = vmax.f32 %v2346, %v2363
        %v2395 = vmax.f32 %v2347, %v2365
        %v2396 = vmax.f32 %v2348, %v2367
        %v2397 = vmax.f32 %v2349, %v2369
        %v2398 = vmax.f32 %v2350, %v2371
        %v2399 = vmax.f32 %v2351, %v2373
        %v2400 = vmax.f32 %v2352, %v2375
        %v2401 = vmax.f32 %v2353, %v2377
        %v2402 = vmax.f32 %v2354, %v2379
        %v2403 = vmax.f32 %v2355, %v2381
        %v2404 = vmax.f32 %v2356, %v2383
        %v2405 = vmax.f32 %v2357, %v2385
        %v2406 = vmax.f32 %v2358, %v2387
        %v2407 = vmax.f32 %v2359, %v2389
        %v2408 = vmax.f32 %v2360, %v2391
        %v2409 = vmax.f32 %v2361, %v2393
        %v2410 = vsub.f32 %v2346, %v2394
        %v2411 = vsub.f32 %v2347, %v2395
        %v2412 = vsub.f32 %v2348, %v2396
        %v2413 = vsub.f32 %v2349, %v2397
        %v2414 = vsub.f32 %v2350, %v2398
        %v2415 = vsub.f32 %v2351, %v2399
        %v2416 = vsub.f32 %v2352, %v2400
        %v2417 = vsub.f32 %v2353, %v2401
        %v2418 = vsub.f32 %v2354, %v2402
        %v2419 = vsub.f32 %v2355, %v2403
        %v2420 = vsub.f32 %v2356, %v2404
        %v2421 = vsub.f32 %v2357, %v2405
        %v2422 = vsub.f32 %v2358, %v2406
        %v2423 = vsub.f32 %v2359, %v2407
        %v2424 = vsub.f32 %v2360, %v2408
        %v2425 = vsub.f32 %v2361, %v2409
        %v2426 = vmul.f32 %v2410, 1.442695
        %v2427 = vpow.pop %v2426
        %v2428 = vmul.f32 %v2411, 1.442695
        %v2429 = vpow.pop %v2428
        %v2430 = vmul.f32 %v2412, 1.442695
        %v2431 = vpow.pop %v2430
        %v2432 = vmul.f32 %v2413, 1.442695
        %v2433 = vpow.pop %v2432
        %v2434 = vmul.f32 %v2414, 1.442695
        %v2435 = vpow.pop %v2434
        %v2436 = vmul.f32 %v2415, 1.442695
        %v2437 = vpow.pop %v2436
        %v2438 = vmul.f32 %v2416, 1.442695
        %v2439 = vpow.pop %v2438
        %v2440 = vmul.f32 %v2417, 1.442695
        %v2441 = vpow.pop %v2440
        %v2442 = vmul.f32 %v2418, 1.442695
        %v2443 = vpow.pop %v2442
        %v2444 = vmul.f32 %v2419, 1.442695
        %v2445 = vpow.pop %v2444
        %v2446 = vmul.f32 %v2420, 1.442695
        %v2447 = vpow.pop %v2446
        %v2448 = vmul.f32 %v2421, 1.442695
        %v2449 = vpow.pop %v2448
        %v2450 = vmul.f32 %v2422, 1.442695
        %v2451 = vpow.pop %v2450
        %v2452 = vmul.f32 %v2423, 1.442695
        %v2453 = vpow.pop %v2452
        %v2454 = vmul.f32 %v2424, 1.442695
        %v2455 = vpow.pop %v2454
        %v2456 = vmul.f32 %v2425, 1.442695
        %v2457 = vpow.pop %v2456
        %2459 = vset.pattern.permute.xlu0 0
        %2460 = vperm.xlu0 %2459, %v2394
        %v2461 = vpop.permute.xlu0 %2460
        %2464 = vset.pattern.permute.xlu0 0
        %2465 = vperm.xlu0 %2464, %v2395
        %v2466 = vpop.permute.xlu0 %2465
        %2469 = vset.pattern.permute.xlu0 0
        %2470 = vperm.xlu0 %2469, %v2396
        %v2471 = vpop.permute.xlu0 %2470
        %2474 = vset.pattern.permute.xlu0 0
        %2475 = vperm.xlu0 %2474, %v2397
        %v2476 = vpop.permute.xlu0 %2475
        %2479 = vset.pattern.permute.xlu0 0
        %2480 = vperm.xlu0 %2479, %v2398
        %v2481 = vpop.permute.xlu0 %2480
        %2484 = vset.pattern.permute.xlu0 0
        %2485 = vperm.xlu0 %2484, %v2399
        %v2486 = vpop.permute.xlu0 %2485
        %2489 = vset.pattern.permute.xlu0 0
        %2490 = vperm.xlu0 %2489, %v2400
        %v2491 = vpop.permute.xlu0 %2490
        %2494 = vset.pattern.permute.xlu0 0
        %2495 = vperm.xlu0 %2494, %v2401
        %v2496 = vpop.permute.xlu0 %2495
        %2499 = vset.pattern.permute.xlu0 0
        %2500 = vperm.xlu0 %2499, %v2402
        %v2501 = vpop.permute.xlu0 %2500
        %2504 = vset.pattern.permute.xlu0 0
        %2505 = vperm.xlu0 %2504, %v2403
        %v2506 = vpop.permute.xlu0 %2505
        %2509 = vset.pattern.permute.xlu0 0
        %2510 = vperm.xlu0 %2509, %v2404
        %v2511 = vpop.permute.xlu0 %2510
        %2514 = vset.pattern.permute.xlu0 0
        %2515 = vperm.xlu0 %2514, %v2405
        %v2516 = vpop.permute.xlu0 %2515
        %2519 = vset.pattern.permute.xlu0 0
        %2520 = vperm.xlu0 %2519, %v2406
        %v2521 = vpop.permute.xlu0 %2520
        %2524 = vset.pattern.permute.xlu0 0
        %2525 = vperm.xlu0 %2524, %v2407
        %v2526 = vpop.permute.xlu0 %2525
        %2529 = vset.pattern.permute.xlu0 0
        %2530 = vperm.xlu0 %2529, %v2408
        %v2531 = vpop.permute.xlu0 %2530
        %2534 = vset.pattern.permute.xlu0 0
        %2535 = vperm.xlu0 %2534, %v2409
        %v2536 = vpop.permute.xlu0 %2535
        %v2538 = vsub.f32 %v2330, %v2461
        %v2539 = vsub.f32 %v2331, %v2466
        %v2540 = vsub.f32 %v2332, %v2471
        %v2541 = vsub.f32 %v2333, %v2476
        %v2542 = vsub.f32 %v2334, %v2481
        %v2543 = vsub.f32 %v2335, %v2486
        %v2544 = vsub.f32 %v2336, %v2491
        %v2545 = vsub.f32 %v2337, %v2496
        %v2546 = vsub.f32 %v2338, %v2501
        %v2547 = vsub.f32 %v2339, %v2506
        %v2548 = vsub.f32 %v2340, %v2511
        %v2549 = vsub.f32 %v2341, %v2516
        %v2550 = vsub.f32 %v2342, %v2521
        %v2551 = vsub.f32 %v2343, %v2526
        %v2552 = vsub.f32 %v2344, %v2531
        %v2553 = vsub.f32 %v2345, %v2536
        %v2554 = vmul.f32 %v2538, 1.442695
        %v2555 = vpow.pop %v2554
        %v2556 = vmul.f32 %v2539, 1.442695
        %v2557 = vpow.pop %v2556
        %v2558 = vmul.f32 %v2540, 1.442695
        %v2559 = vpow.pop %v2558
        %v2560 = vmul.f32 %v2541, 1.442695
        %v2561 = vpow.pop %v2560
        %v2562 = vmul.f32 %v2542, 1.442695
        %v2563 = vpow.pop %v2562
        %v2564 = vmul.f32 %v2543, 1.442695
        %v2565 = vpow.pop %v2564
        %v2566 = vmul.f32 %v2544, 1.442695
        %v2567 = vpow.pop %v2566
        %v2568 = vmul.f32 %v2545, 1.442695
        %v2569 = vpow.pop %v2568
        %v2570 = vmul.f32 %v2546, 1.442695
        %v2571 = vpow.pop %v2570
        %v2572 = vmul.f32 %v2547, 1.442695
        %v2573 = vpow.pop %v2572
        %v2574 = vmul.f32 %v2548, 1.442695
        %v2575 = vpow.pop %v2574
        %v2576 = vmul.f32 %v2549, 1.442695
        %v2577 = vpow.pop %v2576
        %v2578 = vmul.f32 %v2550, 1.442695
        %v2579 = vpow.pop %v2578
        %v2580 = vmul.f32 %v2551, 1.442695
        %v2581 = vpow.pop %v2580
        %v2582 = vmul.f32 %v2552, 1.442695
        %v2583 = vpow.pop %v2582
        %v2584 = vmul.f32 %v2553, 1.442695
        %v2585 = vpow.pop %v2584
        %v2586 = vld [vmem:[#allocation4] sm:$0xff]
        %v2587 = vld [vmem:[#allocation4 + $0x8] sm:$0xff]
        %v2588 = vld [vmem:[#allocation4 + $0x10] sm:$0xff]
        %v2589 = vld [vmem:[#allocation4 + $0x18] sm:$0xff]
        %v2590 = vld [vmem:[#allocation4 + $0x20] sm:$0xff]
        %v2591 = vld [vmem:[#allocation4 + $0x28] sm:$0xff]
        %v2592 = vld [vmem:[#allocation4 + $0x30] sm:$0xff]
        %v2593 = vld [vmem:[#allocation4 + $0x38] sm:$0xff]
        %v2594 = vld [vmem:[#allocation4 + $0x40] sm:$0xff]
        %v2595 = vld [vmem:[#allocation4 + $0x48] sm:$0xff]
        %v2596 = vld [vmem:[#allocation4 + $0x50] sm:$0xff]
        %v2597 = vld [vmem:[#allocation4 + $0x58] sm:$0xff]
        %v2598 = vld [vmem:[#allocation4 + $0x60] sm:$0xff]
        %v2599 = vld [vmem:[#allocation4 + $0x68] sm:$0xff]
        %v2600 = vld [vmem:[#allocation4 + $0x70] sm:$0xff]
        %v2601 = vld [vmem:[#allocation4 + $0x78] sm:$0xff]
        %v2602 = vmul.f32 %v2427, %v2586
        %v2603 = vmul.f32 %v2429, %v2587
        %v2604 = vmul.f32 %v2431, %v2588
        %v2605 = vmul.f32 %v2433, %v2589
        %v2606 = vmul.f32 %v2435, %v2590
        %v2607 = vmul.f32 %v2437, %v2591
        %v2608 = vmul.f32 %v2439, %v2592
        %v2609 = vmul.f32 %v2441, %v2593
        %v2610 = vmul.f32 %v2443, %v2594
        %v2611 = vmul.f32 %v2445, %v2595
        %v2612 = vmul.f32 %v2447, %v2596
        %v2613 = vmul.f32 %v2449, %v2597
        %v2614 = vmul.f32 %v2451, %v2598
        %v2615 = vmul.f32 %v2453, %v2599
        %v2616 = vmul.f32 %v2455, %v2600
        %v2617 = vmul.f32 %v2457, %v2601
        %2618 = vadd.xlane.f32.xlu0 %v2555
        %v2619 = vpop.xlane.xlu0 %2618
        %2620 = vadd.xlane.f32.xlu0 %v2557
        %v2621 = vpop.xlane.xlu0 %2620
        %2622 = vadd.xlane.f32.xlu0 %v2559
        %v2623 = vpop.xlane.xlu0 %2622
        %2624 = vadd.xlane.f32.xlu0 %v2561
        %v2625 = vpop.xlane.xlu0 %2624
        %2626 = vadd.xlane.f32.xlu0 %v2563
        %v2627 = vpop.xlane.xlu0 %2626
        %2628 = vadd.xlane.f32.xlu0 %v2565
        %v2629 = vpop.xlane.xlu0 %2628
        %2630 = vadd.xlane.f32.xlu0 %v2567
        %v2631 = vpop.xlane.xlu0 %2630
        %2632 = vadd.xlane.f32.xlu0 %v2569
        %v2633 = vpop.xlane.xlu0 %2632
        %2634 = vadd.xlane.f32.xlu0 %v2571
        %v2635 = vpop.xlane.xlu0 %2634
        %2636 = vadd.xlane.f32.xlu0 %v2573
        %v2637 = vpop.xlane.xlu0 %2636
        %2638 = vadd.xlane.f32.xlu0 %v2575
        %v2639 = vpop.xlane.xlu0 %2638
        %2640 = vadd.xlane.f32.xlu0 %v2577
        %v2641 = vpop.xlane.xlu0 %2640
        %2642 = vadd.xlane.f32.xlu0 %v2579
        %v2643 = vpop.xlane.xlu0 %2642
        %2644 = vadd.xlane.f32.xlu0 %v2581
        %v2645 = vpop.xlane.xlu0 %2644
        %2646 = vadd.xlane.f32.xlu0 %v2583
        %v2647 = vpop.xlane.xlu0 %2646
        %2648 = vadd.xlane.f32.xlu0 %v2585
        %v2649 = vpop.xlane.xlu0 %2648
        %v2650 = vadd.f32 %v2602, %v2619
        %v2651 = vadd.f32 %v2603, %v2621
        %v2652 = vadd.f32 %v2604, %v2623
        %v2653 = vadd.f32 %v2605, %v2625
        %v2654 = vadd.f32 %v2606, %v2627
        %v2655 = vadd.f32 %v2607, %v2629
        %v2656 = vadd.f32 %v2608, %v2631
        %v2657 = vadd.f32 %v2609, %v2633
        %v2658 = vadd.f32 %v2610, %v2635
        %v2659 = vadd.f32 %v2611, %v2637
        %v2660 = vadd.f32 %v2612, %v2639
        %v2661 = vadd.f32 %v2613, %v2641
        %v2662 = vadd.f32 %v2614, %v2643
        %v2663 = vadd.f32 %v2615, %v2645
        %v2664 = vadd.f32 %v2616, %v2647
        %v2665 = vadd.f32 %v2617, %v2649
        %vm2666 = vcmask 7168
        %2667 = vst.msk [vmem:[#allocation4] sm:$0xff] %vm2666, %v2650
        %2668 = vst.msk [vmem:[#allocation4 + $0x8] sm:$0xff] %vm2666, %v2651
        %2669 = vst.msk [vmem:[#allocation4 + $0x10] sm:$0xff] %vm2666, %v2652
        %2670 = vst.msk [vmem:[#allocation4 + $0x18] sm:$0xff] %vm2666, %v2653
        %2671 = vst.msk [vmem:[#allocation4 + $0x20] sm:$0xff] %vm2666, %v2654
        %2672 = vst.msk [vmem:[#allocation4 + $0x28] sm:$0xff] %vm2666, %v2655
        %2673 = vst.msk [vmem:[#allocation4 + $0x30] sm:$0xff] %vm2666, %v2656
        %2674 = vst.msk [vmem:[#allocation4 + $0x38] sm:$0xff] %vm2666, %v2657
        %2675 = vst.msk [vmem:[#allocation4 + $0x40] sm:$0xff] %vm2666, %v2658
        %2676 = vst.msk [vmem:[#allocation4 + $0x48] sm:$0xff] %vm2666, %v2659
        %2677 = vst.msk [vmem:[#allocation4 + $0x50] sm:$0xff] %vm2666, %v2660
        %2678 = vst.msk [vmem:[#allocation4 + $0x58] sm:$0xff] %vm2666, %v2661
        %2679 = vst.msk [vmem:[#allocation4 + $0x60] sm:$0xff] %vm2666, %v2662
        %2680 = vst.msk [vmem:[#allocation4 + $0x68] sm:$0xff] %vm2666, %v2663
        %2681 = vst.msk [vmem:[#allocation4 + $0x70] sm:$0xff] %vm2666, %v2664
        %2682 = vst.msk [vmem:[#allocation4 + $0x78] sm:$0xff] %vm2666, %v2665
        %v2683 = vld [vmem:[#allocation5] sm:$0xff]
        %v2684 = vld [vmem:[#allocation5 + $0x8] sm:$0xff]
        %v2685 = vld [vmem:[#allocation5 + $0x10] sm:$0xff]
        %v2686 = vld [vmem:[#allocation5 + $0x18] sm:$0xff]
        %v2687 = vld [vmem:[#allocation5 + $0x20] sm:$0xff]
        %v2688 = vld [vmem:[#allocation5 + $0x28] sm:$0xff]
        %v2689 = vld [vmem:[#allocation5 + $0x30] sm:$0xff]
        %v2690 = vld [vmem:[#allocation5 + $0x38] sm:$0xff]
        %v2691 = vld [vmem:[#allocation5 + $0x40] sm:$0xff]
        %v2692 = vld [vmem:[#allocation5 + $0x48] sm:$0xff]
        %v2693 = vld [vmem:[#allocation5 + $0x50] sm:$0xff]
        %v2694 = vld [vmem:[#allocation5 + $0x58] sm:$0xff]
        %v2695 = vld [vmem:[#allocation5 + $0x60] sm:$0xff]
        %v2696 = vld [vmem:[#allocation5 + $0x68] sm:$0xff]
        %v2697 = vld [vmem:[#allocation5 + $0x70] sm:$0xff]
        %v2698 = vld [vmem:[#allocation5 + $0x78] sm:$0xff]
        %2700 = vset.pattern.permute.xlu0 0
        %2701 = vperm.xlu0 %2700, %v2427
        %v2702 = vpop.permute.xlu0 %2701
        %2705 = vset.pattern.permute.xlu0 0
        %2706 = vperm.xlu0 %2705, %v2429
        %v2707 = vpop.permute.xlu0 %2706
        %2710 = vset.pattern.permute.xlu0 0
        %2711 = vperm.xlu0 %2710, %v2431
        %v2712 = vpop.permute.xlu0 %2711
        %2715 = vset.pattern.permute.xlu0 0
        %2716 = vperm.xlu0 %2715, %v2433
        %v2717 = vpop.permute.xlu0 %2716
        %2720 = vset.pattern.permute.xlu0 0
        %2721 = vperm.xlu0 %2720, %v2435
        %v2722 = vpop.permute.xlu0 %2721
        %2725 = vset.pattern.permute.xlu0 0
        %2726 = vperm.xlu0 %2725, %v2437
        %v2727 = vpop.permute.xlu0 %2726
        %2730 = vset.pattern.permute.xlu0 0
        %2731 = vperm.xlu0 %2730, %v2439
        %v2732 = vpop.permute.xlu0 %2731
        %2735 = vset.pattern.permute.xlu0 0
        %2736 = vperm.xlu0 %2735, %v2441
        %v2737 = vpop.permute.xlu0 %2736
        %2740 = vset.pattern.permute.xlu0 0
        %2741 = vperm.xlu0 %2740, %v2443
        %v2742 = vpop.permute.xlu0 %2741
        %2745 = vset.pattern.permute.xlu0 0
        %2746 = vperm.xlu0 %2745, %v2445
        %v2747 = vpop.permute.xlu0 %2746
        %2750 = vset.pattern.permute.xlu0 0
        %2751 = vperm.xlu0 %2750, %v2447
        %v2752 = vpop.permute.xlu0 %2751
        %2755 = vset.pattern.permute.xlu0 0
        %2756 = vperm.xlu0 %2755, %v2449
        %v2757 = vpop.permute.xlu0 %2756
        %2760 = vset.pattern.permute.xlu0 0
        %2761 = vperm.xlu0 %2760, %v2451
        %v2762 = vpop.permute.xlu0 %2761
        %2765 = vset.pattern.permute.xlu0 0
        %2766 = vperm.xlu0 %2765, %v2453
        %v2767 = vpop.permute.xlu0 %2766
        %2770 = vset.pattern.permute.xlu0 0
        %2771 = vperm.xlu0 %2770, %v2455
        %v2772 = vpop.permute.xlu0 %2771
        %2775 = vset.pattern.permute.xlu0 0
        %2776 = vperm.xlu0 %2775, %v2457
        %v2777 = vpop.permute.xlu0 %2776
        %v2779 = vmul.f32 %v2702, %v2683
        %v2780 = vmul.f32 %v2707, %v2684
        %v2781 = vmul.f32 %v2712, %v2685
        %v2782 = vmul.f32 %v2717, %v2686
        %v2783 = vmul.f32 %v2722, %v2687
        %v2784 = vmul.f32 %v2727, %v2688
        %v2785 = vmul.f32 %v2732, %v2689
        %v2786 = vmul.f32 %v2737, %v2690
        %v2787 = vmul.f32 %v2742, %v2691
        %v2788 = vmul.f32 %v2747, %v2692
        %v2789 = vmul.f32 %v2752, %v2693
        %v2790 = vmul.f32 %v2757, %v2694
        %v2791 = vmul.f32 %v2762, %v2695
        %v2792 = vmul.f32 %v2767, %v2696
        %v2793 = vmul.f32 %v2772, %v2697
        %v2794 = vmul.f32 %v2777, %v2698
        %v2795 = vpack.c.bf16 %v2557, %v2555
        %v2796 = vpack.c.bf16 %v2561, %v2559
        %v2797 = vpack.c.bf16 %v2565, %v2563
        %v2798 = vpack.c.bf16 %v2569, %v2567
        %v2799 = vpack.c.bf16 %v2573, %v2571
        %v2800 = vpack.c.bf16 %v2577, %v2575
        %v2801 = vpack.c.bf16 %v2581, %v2579
        %v2802 = vpack.c.bf16 %v2585, %v2583
        %2803 = vmatprep.subr.bf16.mxu0 0
        %2804 = vmatpush1.bf16.msra.mxu0 %v2127
        %2805 = vmatprep.subr.bf16.mxu0 0
        %2806 = vmatpush1.bf16.msra.mxu0 %v2126
        %2807 = vmatprep.subr.bf16.mxu0 0
        %2808 = vmatpush1.bf16.msra.mxu0 %v2125
        %2809 = vmatprep.subr.bf16.mxu0 0
        %2810 = vmatpush1.bf16.msra.mxu0 %v2124
        %2811 = vmatprep.subr.bf16.mxu0 0
        %2812 = vmatpush1.bf16.msra.mxu0 %v2123
        %2813 = vmatprep.subr.bf16.mxu0 0
        %2814 = vmatpush1.bf16.msra.mxu0 %v2122
        %2815 = vmatprep.subr.bf16.mxu0 0
        %2816 = vmatpush1.bf16.msra.mxu0 %v2121
        %2817 = vmatprep.subr.bf16.mxu0 0
        %2818 = vmatpush1.bf16.msra.mxu0 %v2120
        %2819 = vmatprep.subr.bf16.mxu0 0
        %2820 = vmatpush2.bf16.msra.mxu0 0
        %2821 = vmatprep.subr.bf16.mxu0 0
        %2822 = vmatpush2.bf16.msra.mxu0 0
        %2823 = vmatprep.subr.bf16.mxu0 0
        %2824 = vmatpush2.bf16.msra.mxu0 0
        %2825 = vmatprep.subr.bf16.mxu0 0
        %2826 = vmatpush2.bf16.msra.mxu0 0
        %2827 = vmatprep.subr.bf16.mxu0 0
        %2828 = vmatpush2.bf16.msra.mxu0 0
        %2829 = vmatprep.subr.bf16.mxu0 0
        %2830 = vmatpush2.bf16.msra.mxu0 0
        %2831 = vmatprep.subr.bf16.mxu0 0
        %2832 = vmatpush2.bf16.msra.mxu0 0
        %2833 = vmatprep.subr.bf16.mxu0 0
        %2834 = vmatpush2.bf16.msra.mxu0 0
        %2835 = vmatprep.mubr.bf16.mxu0 0
        %2836 = vmatmul.mubr.bf16.gmra.mxu0 %v2795
        %v2837 = vpop.f32.mrf.mxu0
        %v2838 = vadd.f32 0.0, %v2837
        %v2839 = vpop.f32.mrf.mxu0
        %v2840 = vpop.f32.mrf.mxu0
        %v2841 = vadd.f32 0.0, %v2840
        %v2842 = vpop.f32.mrf.mxu0
        %2843 = vmatprep.mubr.bf16.mxu0 0
        %2844 = vmatmul.mubr.bf16.gmra.mxu0 %v2796
        %v2845 = vpop.f32.mrf.mxu0
        %v2846 = vadd.f32 0.0, %v2845
        %v2847 = vpop.f32.mrf.mxu0
        %v2848 = vpop.f32.mrf.mxu0
        %v2849 = vadd.f32 0.0, %v2848
        %v2850 = vpop.f32.mrf.mxu0
        %2851 = vmatprep.mubr.bf16.mxu0 0
        %2852 = vmatmul.mubr.bf16.gmra.mxu0 %v2797
        %v2853 = vpop.f32.mrf.mxu0
        %v2854 = vadd.f32 0.0, %v2853
        %v2855 = vpop.f32.mrf.mxu0
        %v2856 = vpop.f32.mrf.mxu0
        %v2857 = vadd.f32 0.0, %v2856
        %v2858 = vpop.f32.mrf.mxu0
        %2859 = vmatprep.mubr.bf16.mxu0 0
        %2860 = vmatmul.mubr.bf16.gmra.mxu0 %v2798
        %v2861 = vpop.f32.mrf.mxu0
        %v2862 = vadd.f32 0.0, %v2861
        %v2863 = vpop.f32.mrf.mxu0
        %v2864 = vpop.f32.mrf.mxu0
        %v2865 = vadd.f32 0.0, %v2864
        %v2866 = vpop.f32.mrf.mxu0
        %2867 = vmatprep.mubr.bf16.mxu0 0
        %2868 = vmatmul.mubr.bf16.gmra.mxu0 %v2799
        %v2869 = vpop.f32.mrf.mxu0
        %v2870 = vadd.f32 0.0, %v2869
        %v2871 = vpop.f32.mrf.mxu0
        %v2872 = vpop.f32.mrf.mxu0
        %v2873 = vadd.f32 0.0, %v2872
        %v2874 = vpop.f32.mrf.mxu0
        %2875 = vmatprep.mubr.bf16.mxu0 0
        %2876 = vmatmul.mubr.bf16.gmra.mxu0 %v2800
        %v2877 = vpop.f32.mrf.mxu0
        %v2878 = vadd.f32 0.0, %v2877
        %v2879 = vpop.f32.mrf.mxu0
        %v2880 = vpop.f32.mrf.mxu0
        %v2881 = vadd.f32 0.0, %v2880
        %v2882 = vpop.f32.mrf.mxu0
        %2883 = vmatprep.mubr.bf16.mxu0 0
        %2884 = vmatmul.mubr.bf16.gmra.mxu0 %v2801
        %v2885 = vpop.f32.mrf.mxu0
        %v2886 = vadd.f32 0.0, %v2885
        %v2887 = vpop.f32.mrf.mxu0
        %v2888 = vpop.f32.mrf.mxu0
        %v2889 = vadd.f32 0.0, %v2888
        %v2890 = vpop.f32.mrf.mxu0
        %2891 = vmatprep.mubr.bf16.mxu0 0
        %2892 = vmatmul.mubr.bf16.gmra.mxu0 %v2802
        %v2893 = vpop.f32.mrf.mxu0
        %v2894 = vadd.f32 0.0, %v2893
        %v2895 = vpop.f32.mrf.mxu0
        %v2896 = vpop.f32.mrf.mxu0
        %v2897 = vadd.f32 0.0, %v2896
        %v2898 = vpop.f32.mrf.mxu0
        %2899 = vdwg.mxu0
        %v2900 = vadd.f32 %v2779, %v2838
        %v2901 = vadd.f32 %v2780, %v2841
        %v2902 = vadd.f32 %v2781, %v2846
        %v2903 = vadd.f32 %v2782, %v2849
        %v2904 = vadd.f32 %v2783, %v2854
        %v2905 = vadd.f32 %v2784, %v2857
        %v2906 = vadd.f32 %v2785, %v2862
        %v2907 = vadd.f32 %v2786, %v2865
        %v2908 = vadd.f32 %v2787, %v2870
        %v2909 = vadd.f32 %v2788, %v2873
        %v2910 = vadd.f32 %v2789, %v2878
        %v2911 = vadd.f32 %v2790, %v2881
        %v2912 = vadd.f32 %v2791, %v2886
        %v2913 = vadd.f32 %v2792, %v2889
        %v2914 = vadd.f32 %v2793, %v2894
        %v2915 = vadd.f32 %v2794, %v2897
        %2916 = vst.msk [vmem:[#allocation5] sm:$0xff] %vm2184, %v2900
        %2917 = vst.msk [vmem:[#allocation5 + $0x8] sm:$0xff] %vm2184, %v2901
        %2918 = vst.msk [vmem:[#allocation5 + $0x10] sm:$0xff] %vm2184, %v2902
        %2919 = vst.msk [vmem:[#allocation5 + $0x18] sm:$0xff] %vm2184, %v2903
        %2920 = vst.msk [vmem:[#allocation5 + $0x20] sm:$0xff] %vm2184, %v2904
        %2921 = vst.msk [vmem:[#allocation5 + $0x28] sm:$0xff] %vm2184, %v2905
        %2922 = vst.msk [vmem:[#allocation5 + $0x30] sm:$0xff] %vm2184, %v2906
        %2923 = vst.msk [vmem:[#allocation5 + $0x38] sm:$0xff] %vm2184, %v2907
        %2924 = vst.msk [vmem:[#allocation5 + $0x40] sm:$0xff] %vm2184, %v2908
        %2925 = vst.msk [vmem:[#allocation5 + $0x48] sm:$0xff] %vm2184, %v2909
        %2926 = vst.msk [vmem:[#allocation5 + $0x50] sm:$0xff] %vm2184, %v2910
        %2927 = vst.msk [vmem:[#allocation5 + $0x58] sm:$0xff] %vm2184, %v2911
        %2928 = vst.msk [vmem:[#allocation5 + $0x60] sm:$0xff] %vm2184, %v2912
        %2929 = vst.msk [vmem:[#allocation5 + $0x68] sm:$0xff] %vm2184, %v2913
        %2930 = vst.msk [vmem:[#allocation5 + $0x70] sm:$0xff] %vm2184, %v2914
        %2931 = vst.msk [vmem:[#allocation5 + $0x78] sm:$0xff] %vm2184, %v2915
        %2932 = vst.msk [vmem:[#allocation3] sm:$0xff] %vm2666, %v2394
        %2933 = vst.msk [vmem:[#allocation3 + $0x8] sm:$0xff] %vm2666, %v2395
        %2934 = vst.msk [vmem:[#allocation3 + $0x10] sm:$0xff] %vm2666, %v2396
        %2935 = vst.msk [vmem:[#allocation3 + $0x18] sm:$0xff] %vm2666, %v2397
        %2936 = vst.msk [vmem:[#allocation3 + $0x20] sm:$0xff] %vm2666, %v2398
        %2937 = vst.msk [vmem:[#allocation3 + $0x28] sm:$0xff] %vm2666, %v2399
        %2938 = vst.msk [vmem:[#allocation3 + $0x30] sm:$0xff] %vm2666, %v2400
        %2939 = vst.msk [vmem:[#allocation3 + $0x38] sm:$0xff] %vm2666, %v2401
        %2940 = vst.msk [vmem:[#allocation3 + $0x40] sm:$0xff] %vm2666, %v2402
        %2941 = vst.msk [vmem:[#allocation3 + $0x48] sm:$0xff] %vm2666, %v2403
        %2942 = vst.msk [vmem:[#allocation3 + $0x50] sm:$0xff] %vm2666, %v2404
        %2943 = vst.msk [vmem:[#allocation3 + $0x58] sm:$0xff] %vm2666, %v2405
        %2944 = vst.msk [vmem:[#allocation3 + $0x60] sm:$0xff] %vm2666, %v2406
        %2945 = vst.msk [vmem:[#allocation3 + $0x68] sm:$0xff] %vm2666, %v2407
        %2946 = vst.msk [vmem:[#allocation3 + $0x70] sm:$0xff] %vm2666, %v2408
        %2947 = vst.msk [vmem:[#allocation3 + $0x78] sm:$0xff] %vm2666, %v2409
        %s2948 = scalar_lea.vmem %s4, 64
        %v2949 = vld [vmem:[%s2948] sm:$0xf]
        %v2950 = vld [vmem:[%s2948 + $0x4] sm:$0xf]
        %v2951 = vld [vmem:[%s2948 + $0x8] sm:$0xf]
        %v2952 = vld [vmem:[%s2948 + $0xc] sm:$0xf]
        %v2953 = vld [vmem:[%s2948 + $0x10] sm:$0xf]
        %v2954 = vld [vmem:[%s2948 + $0x14] sm:$0xf]
        %v2955 = vld [vmem:[%s2948 + $0x18] sm:$0xf]
        %v2956 = vld [vmem:[%s2948 + $0x1c] sm:$0xf]
        %v2957 = vld [vmem:[%s2948 + $0x20] sm:$0xf]
        %v2958 = vld [vmem:[%s2948 + $0x24] sm:$0xf]
        %v2959 = vld [vmem:[%s2948 + $0x28] sm:$0xf]
        %v2960 = vld [vmem:[%s2948 + $0x2c] sm:$0xf]
        %v2961 = vld [vmem:[%s2948 + $0x30] sm:$0xf]
        %v2962 = vld [vmem:[%s2948 + $0x34] sm:$0xf]
        %v2963 = vld [vmem:[%s2948 + $0x38] sm:$0xf]
        %v2964 = vld [vmem:[%s2948 + $0x3c] sm:$0xf]
        %v2981 = vunpack.c.l.b16 %v2949
        %v2982 = vunpack.c.l.b16 %v2950
        %v2983 = vunpack.c.l.b16 %v2951
        %v2984 = vunpack.c.l.b16 %v2952
        %v2985 = vunpack.c.l.b16 %v2953
        %v2986 = vunpack.c.l.b16 %v2954
        %v2987 = vunpack.c.l.b16 %v2955
        %v2988 = vunpack.c.l.b16 %v2956
        %v2989 = vunpack.c.l.b16 %v2957
        %v2990 = vunpack.c.l.b16 %v2958
        %v2991 = vunpack.c.l.b16 %v2959
        %v2992 = vunpack.c.l.b16 %v2960
        %v2993 = vunpack.c.l.b16 %v2961
        %v2994 = vunpack.c.l.b16 %v2962
        %v2995 = vunpack.c.l.b16 %v2963
        %v2996 = vunpack.c.l.b16 %v2964
        %v2997 = vpack.c.b16 %v2982, %v2981
        %v2998 = vpack.c.b16 %v2984, %v2983
        %v2999 = vpack.c.b16 %v2986, %v2985
        %v3000 = vpack.c.b16 %v2988, %v2987
        %v3001 = vpack.c.b16 %v2990, %v2989
        %v3002 = vpack.c.b16 %v2992, %v2991
        %v3003 = vpack.c.b16 %v2994, %v2993
        %v3004 = vpack.c.b16 %v2996, %v2995
        %3013 = vmatprep.subr.bf16.mxu0 0
        %3014 = vmatpush1.bf16.msra.mxu0 %v3004
        %3015 = vmatprep.subr.bf16.mxu0 0
        %3016 = vmatpush1.bf16.msra.mxu0 %v3003
        %3017 = vmatprep.subr.bf16.mxu0 0
        %3018 = vmatpush1.bf16.msra.mxu0 %v3002
        %3019 = vmatprep.subr.bf16.mxu0 0
        %3020 = vmatpush1.bf16.msra.mxu0 %v3001
        %3021 = vmatprep.subr.bf16.mxu0 0
        %3022 = vmatpush1.bf16.msra.mxu0 %v3000
        %3023 = vmatprep.subr.bf16.mxu0 0
        %3024 = vmatpush1.bf16.msra.mxu0 %v2999
        %3025 = vmatprep.subr.bf16.mxu0 0
        %3026 = vmatpush1.bf16.msra.mxu0 %v2998
        %3027 = vmatprep.subr.bf16.mxu0 0
        %3028 = vmatpush1.bf16.msra.mxu0 %v2997
        %3029 = vmatprep.subr.bf16.mxu0 0
        %3030 = vmatpush2.bf16.msra.mxu0 0
        %3031 = vmatprep.subr.bf16.mxu0 0
        %3032 = vmatpush2.bf16.msra.mxu0 0
        %3033 = vmatprep.subr.bf16.mxu0 0
        %3034 = vmatpush2.bf16.msra.mxu0 0
        %3035 = vmatprep.subr.bf16.mxu0 0
        %3036 = vmatpush2.bf16.msra.mxu0 0
        %3037 = vmatprep.subr.bf16.mxu0 0
        %3038 = vmatpush2.bf16.msra.mxu0 0
        %3039 = vmatprep.subr.bf16.mxu0 0
        %3040 = vmatpush2.bf16.msra.mxu0 0
        %3041 = vmatprep.subr.bf16.mxu0 0
        %3042 = vmatpush2.bf16.msra.mxu0 0
        %3043 = vmatprep.subr.bf16.mxu0 0
        %3044 = vmatpush2.bf16.msra.mxu0 0
        %3045 = vmatprep.mubr.bf16.mxu0 0
        %3046 = vmatmul.mubr.bf16.gmra.mxu0 %v1742
        %v3047 = vpop.f32.mrf.mxu0
        %v3048 = vadd.f32 0.0, %v3047
        %v3049 = vpop.f32.mrf.mxu0
        %v3050 = vpop.f32.mrf.mxu0
        %v3051 = vadd.f32 0.0, %v3050
        %v3052 = vpop.f32.mrf.mxu0
        %3053 = vmatprep.mubr.bf16.mxu0 0
        %3054 = vmatmul.mubr.bf16.gmra.mxu0 %v1743
        %v3055 = vpop.f32.mrf.mxu0
        %v3056 = vadd.f32 0.0, %v3055
        %v3057 = vpop.f32.mrf.mxu0
        %v3058 = vpop.f32.mrf.mxu0
        %v3059 = vadd.f32 0.0, %v3058
        %v3060 = vpop.f32.mrf.mxu0
        %3061 = vmatprep.mubr.bf16.mxu0 0
        %3062 = vmatmul.mubr.bf16.gmra.mxu0 %v1744
        %v3063 = vpop.f32.mrf.mxu0
        %v3064 = vadd.f32 0.0, %v3063
        %v3065 = vpop.f32.mrf.mxu0
        %v3066 = vpop.f32.mrf.mxu0
        %v3067 = vadd.f32 0.0, %v3066
        %v3068 = vpop.f32.mrf.mxu0
        %3069 = vmatprep.mubr.bf16.mxu0 0
        %3070 = vmatmul.mubr.bf16.gmra.mxu0 %v1745
        %v3071 = vpop.f32.mrf.mxu0
        %v3072 = vadd.f32 0.0, %v3071
        %v3073 = vpop.f32.mrf.mxu0
        %v3074 = vpop.f32.mrf.mxu0
        %v3075 = vadd.f32 0.0, %v3074
        %v3076 = vpop.f32.mrf.mxu0
        %3077 = vmatprep.mubr.bf16.mxu0 0
        %3078 = vmatmul.mubr.bf16.gmra.mxu0 %v1746
        %v3079 = vpop.f32.mrf.mxu0
        %v3080 = vadd.f32 0.0, %v3079
        %v3081 = vpop.f32.mrf.mxu0
        %v3082 = vpop.f32.mrf.mxu0
        %v3083 = vadd.f32 0.0, %v3082
        %v3084 = vpop.f32.mrf.mxu0
        %3085 = vmatprep.mubr.bf16.mxu0 0
        %3086 = vmatmul.mubr.bf16.gmra.mxu0 %v1747
        %v3087 = vpop.f32.mrf.mxu0
        %v3088 = vadd.f32 0.0, %v3087
        %v3089 = vpop.f32.mrf.mxu0
        %v3090 = vpop.f32.mrf.mxu0
        %v3091 = vadd.f32 0.0, %v3090
        %v3092 = vpop.f32.mrf.mxu0
        %3093 = vmatprep.mubr.bf16.mxu0 0
        %3094 = vmatmul.mubr.bf16.gmra.mxu0 %v1748
        %v3095 = vpop.f32.mrf.mxu0
        %v3096 = vadd.f32 0.0, %v3095
        %v3097 = vpop.f32.mrf.mxu0
        %v3098 = vpop.f32.mrf.mxu0
        %v3099 = vadd.f32 0.0, %v3098
        %v3100 = vpop.f32.mrf.mxu0
        %3101 = vmatprep.mubr.bf16.mxu0 0
        %3102 = vmatmul.mubr.bf16.gmra.mxu0 %v1749
        %v3103 = vpop.f32.mrf.mxu0
        %v3104 = vadd.f32 0.0, %v3103
        %v3105 = vpop.f32.mrf.mxu0
        %v3106 = vpop.f32.mrf.mxu0
        %v3107 = vadd.f32 0.0, %v3106
        %v3108 = vpop.f32.mrf.mxu0
        %3109 = vdwg.mxu0
        %v3110 = vpack.c.bf16 %v3051, %v3048
        %v3111 = vpack.c.bf16 %v3059, %v3056
        %v3112 = vpack.c.bf16 %v3067, %v3064
        %v3113 = vpack.c.bf16 %v3075, %v3072
        %v3114 = vpack.c.bf16 %v3083, %v3080
        %v3115 = vpack.c.bf16 %v3091, %v3088
        %v3116 = vpack.c.bf16 %v3099, %v3096
        %v3117 = vpack.c.bf16 %v3107, %v3104
        %s3118 = scalar_lea.vmem %s5, 64
        %v3119 = vld [vmem:[%s3118] sm:$0xf]
        %v3120 = vld [vmem:[%s3118 + $0x4] sm:$0xf]
        %v3121 = vld [vmem:[%s3118 + $0x8] sm:$0xf]
        %v3122 = vld [vmem:[%s3118 + $0xc] sm:$0xf]
        %v3123 = vld [vmem:[%s3118 + $0x10] sm:$0xf]
        %v3124 = vld [vmem:[%s3118 + $0x14] sm:$0xf]
        %v3125 = vld [vmem:[%s3118 + $0x18] sm:$0xf]
        %v3126 = vld [vmem:[%s3118 + $0x1c] sm:$0xf]
        %v3127 = vld [vmem:[%s3118 + $0x20] sm:$0xf]
        %v3128 = vld [vmem:[%s3118 + $0x24] sm:$0xf]
        %v3129 = vld [vmem:[%s3118 + $0x28] sm:$0xf]
        %v3130 = vld [vmem:[%s3118 + $0x2c] sm:$0xf]
        %v3131 = vld [vmem:[%s3118 + $0x30] sm:$0xf]
        %v3132 = vld [vmem:[%s3118 + $0x34] sm:$0xf]
        %v3133 = vld [vmem:[%s3118 + $0x38] sm:$0xf]
        %v3134 = vld [vmem:[%s3118 + $0x3c] sm:$0xf]
        %v3151 = vunpack.c.l.b16 %v3119
        %v3152 = vunpack.c.l.b16 %v3120
        %v3153 = vunpack.c.l.b16 %v3121
        %v3154 = vunpack.c.l.b16 %v3122
        %v3155 = vunpack.c.l.b16 %v3123
        %v3156 = vunpack.c.l.b16 %v3124
        %v3157 = vunpack.c.l.b16 %v3125
        %v3158 = vunpack.c.l.b16 %v3126
        %v3159 = vunpack.c.l.b16 %v3127
        %v3160 = vunpack.c.l.b16 %v3128
        %v3161 = vunpack.c.l.b16 %v3129
        %v3162 = vunpack.c.l.b16 %v3130
        %v3163 = vunpack.c.l.b16 %v3131
        %v3164 = vunpack.c.l.b16 %v3132
        %v3165 = vunpack.c.l.b16 %v3133
        %v3166 = vunpack.c.l.b16 %v3134
        %v3167 = vpack.c.b16 %v3152, %v3151
        %v3168 = vpack.c.b16 %v3154, %v3153
        %v3169 = vpack.c.b16 %v3156, %v3155
        %v3170 = vpack.c.b16 %v3158, %v3157
        %v3171 = vpack.c.b16 %v3160, %v3159
        %v3172 = vpack.c.b16 %v3162, %v3161
        %v3173 = vpack.c.b16 %v3164, %v3163
        %v3174 = vpack.c.b16 %v3166, %v3165
        %3183 = vmatprep.subr.bf16.mxu0 0
        %3184 = vmatpush1.bf16.msra.mxu0 %v3174
        %3185 = vmatprep.subr.bf16.mxu0 0
        %3186 = vmatpush1.bf16.msra.mxu0 %v3173
        %3187 = vmatprep.subr.bf16.mxu0 0
        %3188 = vmatpush1.bf16.msra.mxu0 %v3172
        %3189 = vmatprep.subr.bf16.mxu0 0
        %3190 = vmatpush1.bf16.msra.mxu0 %v3171
        %3191 = vmatprep.subr.bf16.mxu0 0
        %3192 = vmatpush1.bf16.msra.mxu0 %v3170
        %3193 = vmatprep.subr.bf16.mxu0 0
        %3194 = vmatpush1.bf16.msra.mxu0 %v3169
        %3195 = vmatprep.subr.bf16.mxu0 0
        %3196 = vmatpush1.bf16.msra.mxu0 %v3168
        %3197 = vmatprep.subr.bf16.mxu0 0
        %3198 = vmatpush1.bf16.msra.mxu0 %v3167
        %3199 = vmatprep.subr.bf16.mxu0 0
        %3200 = vmatpush2.bf16.msra.mxu0 0
        %3201 = vmatprep.subr.bf16.mxu0 0
        %3202 = vmatpush2.bf16.msra.mxu0 0
        %3203 = vmatprep.subr.bf16.mxu0 0
        %3204 = vmatpush2.bf16.msra.mxu0 0
        %3205 = vmatprep.subr.bf16.mxu0 0
        %3206 = vmatpush2.bf16.msra.mxu0 0
        %3207 = vmatprep.subr.bf16.mxu0 0
        %3208 = vmatpush2.bf16.msra.mxu0 0
        %3209 = vmatprep.subr.bf16.mxu0 0
        %3210 = vmatpush2.bf16.msra.mxu0 0
        %3211 = vmatprep.subr.bf16.mxu0 0
        %3212 = vmatpush2.bf16.msra.mxu0 0
        %3213 = vmatprep.subr.bf16.mxu0 0
        %3214 = vmatpush2.bf16.msra.mxu0 0
        %3215 = vmatprep.mubr.bf16.mxu0 0
        %3216 = vmatmul.mubr.bf16.gmra.mxu0 %v1959
        %v3217 = vpop.f32.mrf.mxu0
        %v3218 = vadd.f32 0.0, %v3217
        %v3219 = vpop.f32.mrf.mxu0
        %v3220 = vpop.f32.mrf.mxu0
        %v3221 = vadd.f32 0.0, %v3220
        %v3222 = vpop.f32.mrf.mxu0
        %3223 = vmatprep.mubr.bf16.mxu0 0
        %3224 = vmatmul.mubr.bf16.gmra.mxu0 %v1960
        %v3225 = vpop.f32.mrf.mxu0
        %v3226 = vadd.f32 0.0, %v3225
        %v3227 = vpop.f32.mrf.mxu0
        %v3228 = vpop.f32.mrf.mxu0
        %v3229 = vadd.f32 0.0, %v3228
        %v3230 = vpop.f32.mrf.mxu0
        %3231 = vmatprep.mubr.bf16.mxu0 0
        %3232 = vmatmul.mubr.bf16.gmra.mxu0 %v1961
        %v3233 = vpop.f32.mrf.mxu0
        %v3234 = vadd.f32 0.0, %v3233
        %v3235 = vpop.f32.mrf.mxu0
        %v3236 = vpop.f32.mrf.mxu0
        %v3237 = vadd.f32 0.0, %v3236
        %v3238 = vpop.f32.mrf.mxu0
        %3239 = vmatprep.mubr.bf16.mxu0 0
        %3240 = vmatmul.mubr.bf16.gmra.mxu0 %v1962
        %v3241 = vpop.f32.mrf.mxu0
        %v3242 = vadd.f32 0.0, %v3241
        %v3243 = vpop.f32.mrf.mxu0
        %v3244 = vpop.f32.mrf.mxu0
        %v3245 = vadd.f32 0.0, %v3244
        %v3246 = vpop.f32.mrf.mxu0
        %3247 = vmatprep.mubr.bf16.mxu0 0
        %3248 = vmatmul.mubr.bf16.gmra.mxu0 %v1963
        %v3249 = vpop.f32.mrf.mxu0
        %v3250 = vadd.f32 0.0, %v3249
        %v3251 = vpop.f32.mrf.mxu0
        %v3252 = vpop.f32.mrf.mxu0
        %v3253 = vadd.f32 0.0, %v3252
        %v3254 = vpop.f32.mrf.mxu0
        %3255 = vmatprep.mubr.bf16.mxu0 0
        %3256 = vmatmul.mubr.bf16.gmra.mxu0 %v1964
        %v3257 = vpop.f32.mrf.mxu0
        %v3258 = vadd.f32 0.0, %v3257
        %v3259 = vpop.f32.mrf.mxu0
        %v3260 = vpop.f32.mrf.mxu0
        %v3261 = vadd.f32 0.0, %v3260
        %v3262 = vpop.f32.mrf.mxu0
        %3263 = vmatprep.mubr.bf16.mxu0 0
        %3264 = vmatmul.mubr.bf16.gmra.mxu0 %v1965
        %v3265 = vpop.f32.mrf.mxu0
        %v3266 = vadd.f32 0.0, %v3265
        %v3267 = vpop.f32.mrf.mxu0
        %v3268 = vpop.f32.mrf.mxu0
        %v3269 = vadd.f32 0.0, %v3268
        %v3270 = vpop.f32.mrf.mxu0
        %3271 = vmatprep.mubr.bf16.mxu0 0
        %3272 = vmatmul.mubr.bf16.gmra.mxu0 %v1966
        %v3273 = vpop.f32.mrf.mxu0
        %v3274 = vadd.f32 0.0, %v3273
        %v3275 = vpop.f32.mrf.mxu0
        %v3276 = vpop.f32.mrf.mxu0
        %v3277 = vadd.f32 0.0, %v3276
        %v3278 = vpop.f32.mrf.mxu0
        %3279 = vdwg.mxu0
        %v3280 = vpack.c.bf16 %v3221, %v3218
        %v3281 = vpack.c.bf16 %v3229, %v3226
        %v3282 = vpack.c.bf16 %v3237, %v3234
        %v3283 = vpack.c.bf16 %v3245, %v3242
        %v3284 = vpack.c.bf16 %v3253, %v3250
        %v3285 = vpack.c.bf16 %v3261, %v3258
        %v3286 = vpack.c.bf16 %v3269, %v3266
        %v3287 = vpack.c.bf16 %v3277, %v3274
        %s3288 = scalar_lea.vmem [#allocation2], 64
        %v3289 = vld [vmem:[%s3288] sm:$0xf]
        %v3290 = vld [vmem:[%s3288 + $0x4] sm:$0xf]
        %v3291 = vld [vmem:[%s3288 + $0x8] sm:$0xf]
        %v3292 = vld [vmem:[%s3288 + $0xc] sm:$0xf]
        %v3293 = vld [vmem:[%s3288 + $0x10] sm:$0xf]
        %v3294 = vld [vmem:[%s3288 + $0x14] sm:$0xf]
        %v3295 = vld [vmem:[%s3288 + $0x18] sm:$0xf]
        %v3296 = vld [vmem:[%s3288 + $0x1c] sm:$0xf]
        %v3297 = vld [vmem:[%s3288 + $0x20] sm:$0xf]
        %v3298 = vld [vmem:[%s3288 + $0x24] sm:$0xf]
        %v3299 = vld [vmem:[%s3288 + $0x28] sm:$0xf]
        %v3300 = vld [vmem:[%s3288 + $0x2c] sm:$0xf]
        %v3301 = vld [vmem:[%s3288 + $0x30] sm:$0xf]
        %v3302 = vld [vmem:[%s3288 + $0x34] sm:$0xf]
        %v3303 = vld [vmem:[%s3288 + $0x38] sm:$0xf]
        %v3304 = vld [vmem:[%s3288 + $0x3c] sm:$0xf]
        %v3321 = vunpack.c.l.b16 %v3289
        %v3322 = vunpack.c.l.b16 %v3290
        %v3323 = vunpack.c.l.b16 %v3291
        %v3324 = vunpack.c.l.b16 %v3292
        %v3325 = vunpack.c.l.b16 %v3293
        %v3326 = vunpack.c.l.b16 %v3294
        %v3327 = vunpack.c.l.b16 %v3295
        %v3328 = vunpack.c.l.b16 %v3296
        %v3329 = vunpack.c.l.b16 %v3297
        %v3330 = vunpack.c.l.b16 %v3298
        %v3331 = vunpack.c.l.b16 %v3299
        %v3332 = vunpack.c.l.b16 %v3300
        %v3333 = vunpack.c.l.b16 %v3301
        %v3334 = vunpack.c.l.b16 %v3302
        %v3335 = vunpack.c.l.b16 %v3303
        %v3336 = vunpack.c.l.b16 %v3304
        %v3337 = vpack.c.b16 %v3322, %v3321
        %v3338 = vpack.c.b16 %v3324, %v3323
        %v3339 = vpack.c.b16 %v3326, %v3325
        %v3340 = vpack.c.b16 %v3328, %v3327
        %v3341 = vpack.c.b16 %v3330, %v3329
        %v3342 = vpack.c.b16 %v3332, %v3331
        %v3343 = vpack.c.b16 %v3334, %v3333
        %v3344 = vpack.c.b16 %v3336, %v3335
        %v3346 = vsel %vm2184, %v3337, 0
        %v3349 = vsel %vm2184, %v3338, 0
        %v3352 = vsel %vm2184, %v3339, 0
        %v3355 = vsel %vm2184, %v3340, 0
        %v3358 = vsel %vm2184, %v3341, 0
        %v3361 = vsel %vm2184, %v3342, 0
        %v3364 = vsel %vm2184, %v3343, 0
        %v3367 = vsel %vm2184, %v3344, 0
        %v3370 = vsel %vm2184, %v3110, 0
        %v3373 = vsel %vm2184, %v3111, 0
        %v3376 = vsel %vm2184, %v3112, 0
        %v3379 = vsel %vm2184, %v3113, 0
        %v3382 = vsel %vm2184, %v3114, 0
        %v3385 = vsel %vm2184, %v3115, 0
        %v3388 = vsel %vm2184, %v3116, 0
        %v3391 = vsel %vm2184, %v3117, 0
        %3393 = vmatprep.subr.bf16.mxu0 0
        %3394 = vmatpush1.bf16.xpose.msra.mxu0 %v3391
        %3395 = vmatprep.subr.bf16.mxu0 0
        %3396 = vmatpush1.bf16.xpose.msra.mxu0 %v3388
        %3397 = vmatprep.subr.bf16.mxu0 0
        %3398 = vmatpush1.bf16.xpose.msra.mxu0 %v3385
        %3399 = vmatprep.subr.bf16.mxu0 0
        %3400 = vmatpush1.bf16.xpose.msra.mxu0 %v3382
        %3401 = vmatprep.subr.bf16.mxu0 0
        %3402 = vmatpush1.bf16.xpose.msra.mxu0 %v3379
        %3403 = vmatprep.subr.bf16.mxu0 0
        %3404 = vmatpush1.bf16.xpose.msra.mxu0 %v3376
        %3405 = vmatprep.subr.bf16.mxu0 0
        %3406 = vmatpush1.bf16.xpose.msra.mxu0 %v3373
        %3407 = vmatprep.subr.bf16.mxu0 0
        %3408 = vmatpush1.bf16.xpose.msra.mxu0 %v3370
        %3409 = vmatprep.subr.bf16.mxu0 0
        %3410 = vmatpush2.bf16.xpose.msra.mxu0 0
        %3411 = vmatprep.subr.bf16.mxu0 0
        %3412 = vmatpush2.bf16.xpose.msra.mxu0 0
        %3413 = vmatprep.subr.bf16.mxu0 0
        %3414 = vmatpush2.bf16.xpose.msra.mxu0 0
        %3415 = vmatprep.subr.bf16.mxu0 0
        %3416 = vmatpush2.bf16.xpose.msra.mxu0 0
        %3417 = vmatprep.subr.bf16.mxu0 0
        %3418 = vmatpush2.bf16.xpose.msra.mxu0 0
        %3419 = vmatprep.subr.bf16.mxu0 0
        %3420 = vmatpush2.bf16.xpose.msra.mxu0 0
        %3421 = vmatprep.subr.bf16.mxu0 0
        %3422 = vmatpush2.bf16.xpose.msra.mxu0 0
        %3423 = vmatprep.subr.bf16.mxu0 0
        %3424 = vmatpush2.bf16.xpose.msra.mxu0 0
        %3425 = vmatprep.mubr.bf16.mxu0 0
        %3426 = vmatmul.mubr.bf16.gmra.mxu0 %v3346
        %v3427 = vpop.f32.mrf.mxu0
        %v3428 = vadd.f32 0.0, %v3427
        %v3429 = vpop.f32.mrf.mxu0
        %v3430 = vpop.f32.mrf.mxu0
        %v3431 = vadd.f32 0.0, %v3430
        %v3432 = vpop.f32.mrf.mxu0
        %3433 = vmatprep.mubr.bf16.mxu0 0
        %3434 = vmatmul.mubr.bf16.gmra.mxu0 %v3349
        %v3435 = vpop.f32.mrf.mxu0
        %v3436 = vadd.f32 0.0, %v3435
        %v3437 = vpop.f32.mrf.mxu0
        %v3438 = vpop.f32.mrf.mxu0
        %v3439 = vadd.f32 0.0, %v3438
        %v3440 = vpop.f32.mrf.mxu0
        %3441 = vmatprep.mubr.bf16.mxu0 0
        %3442 = vmatmul.mubr.bf16.gmra.mxu0 %v3352
        %v3443 = vpop.f32.mrf.mxu0
        %v3444 = vadd.f32 0.0, %v3443
        %v3445 = vpop.f32.mrf.mxu0
        %v3446 = vpop.f32.mrf.mxu0
        %v3447 = vadd.f32 0.0, %v3446
        %v3448 = vpop.f32.mrf.mxu0
        %3449 = vmatprep.mubr.bf16.mxu0 0
        %3450 = vmatmul.mubr.bf16.gmra.mxu0 %v3355
        %v3451 = vpop.f32.mrf.mxu0
        %v3452 = vadd.f32 0.0, %v3451
        %v3453 = vpop.f32.mrf.mxu0
        %v3454 = vpop.f32.mrf.mxu0
        %v3455 = vadd.f32 0.0, %v3454
        %v3456 = vpop.f32.mrf.mxu0
        %3457 = vmatprep.mubr.bf16.mxu0 0
        %3458 = vmatmul.mubr.bf16.gmra.mxu0 %v3358
        %v3459 = vpop.f32.mrf.mxu0
        %v3460 = vadd.f32 0.0, %v3459
        %v3461 = vpop.f32.mrf.mxu0
        %v3462 = vpop.f32.mrf.mxu0
        %v3463 = vadd.f32 0.0, %v3462
        %v3464 = vpop.f32.mrf.mxu0
        %3465 = vmatprep.mubr.bf16.mxu0 0
        %3466 = vmatmul.mubr.bf16.gmra.mxu0 %v3361
        %v3467 = vpop.f32.mrf.mxu0
        %v3468 = vadd.f32 0.0, %v3467
        %v3469 = vpop.f32.mrf.mxu0
        %v3470 = vpop.f32.mrf.mxu0
        %v3471 = vadd.f32 0.0, %v3470
        %v3472 = vpop.f32.mrf.mxu0
        %3473 = vmatprep.mubr.bf16.mxu0 0
        %3474 = vmatmul.mubr.bf16.gmra.mxu0 %v3364
        %v3475 = vpop.f32.mrf.mxu0
        %v3476 = vadd.f32 0.0, %v3475
        %v3477 = vpop.f32.mrf.mxu0
        %v3478 = vpop.f32.mrf.mxu0
        %v3479 = vadd.f32 0.0, %v3478
        %v3480 = vpop.f32.mrf.mxu0
        %3481 = vmatprep.mubr.bf16.mxu0 0
        %3482 = vmatmul.mubr.bf16.gmra.mxu0 %v3367
        %v3483 = vpop.f32.mrf.mxu0
        %v3484 = vadd.f32 0.0, %v3483
        %v3485 = vpop.f32.mrf.mxu0
        %v3486 = vpop.f32.mrf.mxu0
        %v3487 = vadd.f32 0.0, %v3486
        %v3488 = vpop.f32.mrf.mxu0
        %3489 = vdwg.mxu0
        %v3490 = vmul.f32 %v3428, 0.17677669
        %v3491 = vmul.f32 %v3431, 0.17677669
        %v3492 = vmul.f32 %v3436, 0.17677669
        %v3493 = vmul.f32 %v3439, 0.17677669
        %v3494 = vmul.f32 %v3444, 0.17677669
        %v3495 = vmul.f32 %v3447, 0.17677669
        %v3496 = vmul.f32 %v3452, 0.17677669
        %v3497 = vmul.f32 %v3455, 0.17677669
        %v3498 = vmul.f32 %v3460, 0.17677669
        %v3499 = vmul.f32 %v3463, 0.17677669
        %v3500 = vmul.f32 %v3468, 0.17677669
        %v3501 = vmul.f32 %v3471, 0.17677669
        %v3502 = vmul.f32 %v3476, 0.17677669
        %v3503 = vmul.f32 %v3479, 0.17677669
        %v3504 = vmul.f32 %v3484, 0.17677669
        %v3505 = vmul.f32 %v3487, 0.17677669
        %s3506 = scalar_lea.vmem [#allocation3], 128
        %v3507 = vld [vmem:[%s3506] sm:$0xff]
        %v3508 = vld [vmem:[%s3506 + $0x8] sm:$0xff]
        %v3509 = vld [vmem:[%s3506 + $0x10] sm:$0xff]
        %v3510 = vld [vmem:[%s3506 + $0x18] sm:$0xff]
        %v3511 = vld [vmem:[%s3506 + $0x20] sm:$0xff]
        %v3512 = vld [vmem:[%s3506 + $0x28] sm:$0xff]
        %v3513 = vld [vmem:[%s3506 + $0x30] sm:$0xff]
        %v3514 = vld [vmem:[%s3506 + $0x38] sm:$0xff]
        %v3515 = vld [vmem:[%s3506 + $0x40] sm:$0xff]
        %v3516 = vld [vmem:[%s3506 + $0x48] sm:$0xff]
        %v3517 = vld [vmem:[%s3506 + $0x50] sm:$0xff]
        %v3518 = vld [vmem:[%s3506 + $0x58] sm:$0xff]
        %v3519 = vld [vmem:[%s3506 + $0x60] sm:$0xff]
        %v3520 = vld [vmem:[%s3506 + $0x68] sm:$0xff]
        %v3521 = vld [vmem:[%s3506 + $0x70] sm:$0xff]
        %v3522 = vld [vmem:[%s3506 + $0x78] sm:$0xff]
        %3523 = vmax.xlane.f32.xlu0 %v3490
        %v3524 = vpop.xlane.xlu0 %3523
        %3525 = vmax.xlane.f32.xlu0 %v3491
        %v3526 = vpop.xlane.xlu0 %3525
        %3527 = vmax.xlane.f32.xlu0 %v3492
        %v3528 = vpop.xlane.xlu0 %3527
        %3529 = vmax.xlane.f32.xlu0 %v3493
        %v3530 = vpop.xlane.xlu0 %3529
        %3531 = vmax.xlane.f32.xlu0 %v3494
        %v3532 = vpop.xlane.xlu0 %3531
        %3533 = vmax.xlane.f32.xlu0 %v3495
        %v3534 = vpop.xlane.xlu0 %3533
        %3535 = vmax.xlane.f32.xlu0 %v3496
        %v3536 = vpop.xlane.xlu0 %3535
        %3537 = vmax.xlane.f32.xlu0 %v3497
        %v3538 = vpop.xlane.xlu0 %3537
        %3539 = vmax.xlane.f32.xlu0 %v3498
        %v3540 = vpop.xlane.xlu0 %3539
        %3541 = vmax.xlane.f32.xlu0 %v3499
        %v3542 = vpop.xlane.xlu0 %3541
        %3543 = vmax.xlane.f32.xlu0 %v3500
        %v3544 = vpop.xlane.xlu0 %3543
        %3545 = vmax.xlane.f32.xlu0 %v3501
        %v3546 = vpop.xlane.xlu0 %3545
        %3547 = vmax.xlane.f32.xlu0 %v3502
        %v3548 = vpop.xlane.xlu0 %3547
        %3549 = vmax.xlane.f32.xlu0 %v3503
        %v3550 = vpop.xlane.xlu0 %3549
        %3551 = vmax.xlane.f32.xlu0 %v3504
        %v3552 = vpop.xlane.xlu0 %3551
        %3553 = vmax.xlane.f32.xlu0 %v3505
        %v3554 = vpop.xlane.xlu0 %3553
        %v3555 = vmax.f32 %v3507, %v3524
        %v3556 = vmax.f32 %v3508, %v3526
        %v3557 = vmax.f32 %v3509, %v3528
        %v3558 = vmax.f32 %v3510, %v3530
        %v3559 = vmax.f32 %v3511, %v3532
        %v3560 = vmax.f32 %v3512, %v3534
        %v3561 = vmax.f32 %v3513, %v3536
        %v3562 = vmax.f32 %v3514, %v3538
        %v3563 = vmax.f32 %v3515, %v3540
        %v3564 = vmax.f32 %v3516, %v3542
        %v3565 = vmax.f32 %v3517, %v3544
        %v3566 = vmax.f32 %v3518, %v3546
        %v3567 = vmax.f32 %v3519, %v3548
        %v3568 = vmax.f32 %v3520, %v3550
        %v3569 = vmax.f32 %v3521, %v3552
        %v3570 = vmax.f32 %v3522, %v3554
        %v3571 = vsub.f32 %v3507, %v3555
        %v3572 = vsub.f32 %v3508, %v3556
        %v3573 = vsub.f32 %v3509, %v3557
        %v3574 = vsub.f32 %v3510, %v3558
        %v3575 = vsub.f32 %v3511, %v3559
        %v3576 = vsub.f32 %v3512, %v3560
        %v3577 = vsub.f32 %v3513, %v3561
        %v3578 = vsub.f32 %v3514, %v3562
        %v3579 = vsub.f32 %v3515, %v3563
        %v3580 = vsub.f32 %v3516, %v3564
        %v3581 = vsub.f32 %v3517, %v3565
        %v3582 = vsub.f32 %v3518, %v3566
        %v3583 = vsub.f32 %v3519, %v3567
        %v3584 = vsub.f32 %v3520, %v3568
        %v3585 = vsub.f32 %v3521, %v3569
        %v3586 = vsub.f32 %v3522, %v3570
        %v3587 = vmul.f32 %v3571, 1.442695
        %v3588 = vpow.pop %v3587
        %v3589 = vmul.f32 %v3572, 1.442695
        %v3590 = vpow.pop %v3589
        %v3591 = vmul.f32 %v3573, 1.442695
        %v3592 = vpow.pop %v3591
        %v3593 = vmul.f32 %v3574, 1.442695
        %v3594 = vpow.pop %v3593
        %v3595 = vmul.f32 %v3575, 1.442695
        %v3596 = vpow.pop %v3595
        %v3597 = vmul.f32 %v3576, 1.442695
        %v3598 = vpow.pop %v3597
        %v3599 = vmul.f32 %v3577, 1.442695
        %v3600 = vpow.pop %v3599
        %v3601 = vmul.f32 %v3578, 1.442695
        %v3602 = vpow.pop %v3601
        %v3603 = vmul.f32 %v3579, 1.442695
        %v3604 = vpow.pop %v3603
        %v3605 = vmul.f32 %v3580, 1.442695
        %v3606 = vpow.pop %v3605
        %v3607 = vmul.f32 %v3581, 1.442695
        %v3608 = vpow.pop %v3607
        %v3609 = vmul.f32 %v3582, 1.442695
        %v3610 = vpow.pop %v3609
        %v3611 = vmul.f32 %v3583, 1.442695
        %v3612 = vpow.pop %v3611
        %v3613 = vmul.f32 %v3584, 1.442695
        %v3614 = vpow.pop %v3613
        %v3615 = vmul.f32 %v3585, 1.442695
        %v3616 = vpow.pop %v3615
        %v3617 = vmul.f32 %v3586, 1.442695
        %v3618 = vpow.pop %v3617
        %3620 = vset.pattern.permute.xlu0 0
        %3621 = vperm.xlu0 %3620, %v3555
        %v3622 = vpop.permute.xlu0 %3621
        %3625 = vset.pattern.permute.xlu0 0
        %3626 = vperm.xlu0 %3625, %v3556
        %v3627 = vpop.permute.xlu0 %3626
        %3630 = vset.pattern.permute.xlu0 0
        %3631 = vperm.xlu0 %3630, %v3557
        %v3632 = vpop.permute.xlu0 %3631
        %3635 = vset.pattern.permute.xlu0 0
        %3636 = vperm.xlu0 %3635, %v3558
        %v3637 = vpop.permute.xlu0 %3636
        %3640 = vset.pattern.permute.xlu0 0
        %3641 = vperm.xlu0 %3640, %v3559
        %v3642 = vpop.permute.xlu0 %3641
        %3645 = vset.pattern.permute.xlu0 0
        %3646 = vperm.xlu0 %3645, %v3560
        %v3647 = vpop.permute.xlu0 %3646
        %3650 = vset.pattern.permute.xlu0 0
        %3651 = vperm.xlu0 %3650, %v3561
        %v3652 = vpop.permute.xlu0 %3651
        %3655 = vset.pattern.permute.xlu0 0
        %3656 = vperm.xlu0 %3655, %v3562
        %v3657 = vpop.permute.xlu0 %3656
        %3660 = vset.pattern.permute.xlu0 0
        %3661 = vperm.xlu0 %3660, %v3563
        %v3662 = vpop.permute.xlu0 %3661
        %3665 = vset.pattern.permute.xlu0 0
        %3666 = vperm.xlu0 %3665, %v3564
        %v3667 = vpop.permute.xlu0 %3666
        %3670 = vset.pattern.permute.xlu0 0
        %3671 = vperm.xlu0 %3670, %v3565
        %v3672 = vpop.permute.xlu0 %3671
        %3675 = vset.pattern.permute.xlu0 0
        %3676 = vperm.xlu0 %3675, %v3566
        %v3677 = vpop.permute.xlu0 %3676
        %3680 = vset.pattern.permute.xlu0 0
        %3681 = vperm.xlu0 %3680, %v3567
        %v3682 = vpop.permute.xlu0 %3681
        %3685 = vset.pattern.permute.xlu0 0
        %3686 = vperm.xlu0 %3685, %v3568
        %v3687 = vpop.permute.xlu0 %3686
        %3690 = vset.pattern.permute.xlu0 0
        %3691 = vperm.xlu0 %3690, %v3569
        %v3692 = vpop.permute.xlu0 %3691
        %3695 = vset.pattern.permute.xlu0 0
        %3696 = vperm.xlu0 %3695, %v3570
        %v3697 = vpop.permute.xlu0 %3696
        %v3699 = vsub.f32 %v3490, %v3622
        %v3700 = vsub.f32 %v3491, %v3627
        %v3701 = vsub.f32 %v3492, %v3632
        %v3702 = vsub.f32 %v3493, %v3637
        %v3703 = vsub.f32 %v3494, %v3642
        %v3704 = vsub.f32 %v3495, %v3647
        %v3705 = vsub.f32 %v3496, %v3652
        %v3706 = vsub.f32 %v3497, %v3657
        %v3707 = vsub.f32 %v3498, %v3662
        %v3708 = vsub.f32 %v3499, %v3667
        %v3709 = vsub.f32 %v3500, %v3672
        %v3710 = vsub.f32 %v3501, %v3677
        %v3711 = vsub.f32 %v3502, %v3682
        %v3712 = vsub.f32 %v3503, %v3687
        %v3713 = vsub.f32 %v3504, %v3692
        %v3714 = vsub.f32 %v3505, %v3697
        %v3715 = vmul.f32 %v3699, 1.442695
        %v3716 = vpow.pop %v3715
        %v3717 = vmul.f32 %v3700, 1.442695
        %v3718 = vpow.pop %v3717
        %v3719 = vmul.f32 %v3701, 1.442695
        %v3720 = vpow.pop %v3719
        %v3721 = vmul.f32 %v3702, 1.442695
        %v3722 = vpow.pop %v3721
        %v3723 = vmul.f32 %v3703, 1.442695
        %v3724 = vpow.pop %v3723
        %v3725 = vmul.f32 %v3704, 1.442695
        %v3726 = vpow.pop %v3725
        %v3727 = vmul.f32 %v3705, 1.442695
        %v3728 = vpow.pop %v3727
        %v3729 = vmul.f32 %v3706, 1.442695
        %v3730 = vpow.pop %v3729
        %v3731 = vmul.f32 %v3707, 1.442695
        %v3732 = vpow.pop %v3731
        %v3733 = vmul.f32 %v3708, 1.442695
        %v3734 = vpow.pop %v3733
        %v3735 = vmul.f32 %v3709, 1.442695
        %v3736 = vpow.pop %v3735
        %v3737 = vmul.f32 %v3710, 1.442695
        %v3738 = vpow.pop %v3737
        %v3739 = vmul.f32 %v3711, 1.442695
        %v3740 = vpow.pop %v3739
        %v3741 = vmul.f32 %v3712, 1.442695
        %v3742 = vpow.pop %v3741
        %v3743 = vmul.f32 %v3713, 1.442695
        %v3744 = vpow.pop %v3743
        %v3745 = vmul.f32 %v3714, 1.442695
        %v3746 = vpow.pop %v3745
        %s3747 = scalar_lea.vmem [#allocation4], 128
        %v3748 = vld [vmem:[%s3747] sm:$0xff]
        %v3749 = vld [vmem:[%s3747 + $0x8] sm:$0xff]
        %v3750 = vld [vmem:[%s3747 + $0x10] sm:$0xff]
        %v3751 = vld [vmem:[%s3747 + $0x18] sm:$0xff]
        %v3752 = vld [vmem:[%s3747 + $0x20] sm:$0xff]
        %v3753 = vld [vmem:[%s3747 + $0x28] sm:$0xff]
        %v3754 = vld [vmem:[%s3747 + $0x30] sm:$0xff]
        %v3755 = vld [vmem:[%s3747 + $0x38] sm:$0xff]
        %v3756 = vld [vmem:[%s3747 + $0x40] sm:$0xff]
        %v3757 = vld [vmem:[%s3747 + $0x48] sm:$0xff]
        %v3758 = vld [vmem:[%s3747 + $0x50] sm:$0xff]
        %v3759 = vld [vmem:[%s3747 + $0x58] sm:$0xff]
        %v3760 = vld [vmem:[%s3747 + $0x60] sm:$0xff]
        %v3761 = vld [vmem:[%s3747 + $0x68] sm:$0xff]
        %v3762 = vld [vmem:[%s3747 + $0x70] sm:$0xff]
        %v3763 = vld [vmem:[%s3747 + $0x78] sm:$0xff]
        %v3764 = vmul.f32 %v3588, %v3748
        %v3765 = vmul.f32 %v3590, %v3749
        %v3766 = vmul.f32 %v3592, %v3750
        %v3767 = vmul.f32 %v3594, %v3751
        %v3768 = vmul.f32 %v3596, %v3752
        %v3769 = vmul.f32 %v3598, %v3753
        %v3770 = vmul.f32 %v3600, %v3754
        %v3771 = vmul.f32 %v3602, %v3755
        %v3772 = vmul.f32 %v3604, %v3756
        %v3773 = vmul.f32 %v3606, %v3757
        %v3774 = vmul.f32 %v3608, %v3758
        %v3775 = vmul.f32 %v3610, %v3759
        %v3776 = vmul.f32 %v3612, %v3760
        %v3777 = vmul.f32 %v3614, %v3761
        %v3778 = vmul.f32 %v3616, %v3762
        %v3779 = vmul.f32 %v3618, %v3763
        %3780 = vadd.xlane.f32.xlu0 %v3716
        %v3781 = vpop.xlane.xlu0 %3780
        %3782 = vadd.xlane.f32.xlu0 %v3718
        %v3783 = vpop.xlane.xlu0 %3782
        %3784 = vadd.xlane.f32.xlu0 %v3720
        %v3785 = vpop.xlane.xlu0 %3784
        %3786 = vadd.xlane.f32.xlu0 %v3722
        %v3787 = vpop.xlane.xlu0 %3786
        %3788 = vadd.xlane.f32.xlu0 %v3724
        %v3789 = vpop.xlane.xlu0 %3788
        %3790 = vadd.xlane.f32.xlu0 %v3726
        %v3791 = vpop.xlane.xlu0 %3790
        %3792 = vadd.xlane.f32.xlu0 %v3728
        %v3793 = vpop.xlane.xlu0 %3792
        %3794 = vadd.xlane.f32.xlu0 %v3730
        %v3795 = vpop.xlane.xlu0 %3794
        %3796 = vadd.xlane.f32.xlu0 %v3732
        %v3797 = vpop.xlane.xlu0 %3796
        %3798 = vadd.xlane.f32.xlu0 %v3734
        %v3799 = vpop.xlane.xlu0 %3798
        %3800 = vadd.xlane.f32.xlu0 %v3736
        %v3801 = vpop.xlane.xlu0 %3800
        %3802 = vadd.xlane.f32.xlu0 %v3738
        %v3803 = vpop.xlane.xlu0 %3802
        %3804 = vadd.xlane.f32.xlu0 %v3740
        %v3805 = vpop.xlane.xlu0 %3804
        %3806 = vadd.xlane.f32.xlu0 %v3742
        %v3807 = vpop.xlane.xlu0 %3806
        %3808 = vadd.xlane.f32.xlu0 %v3744
        %v3809 = vpop.xlane.xlu0 %3808
        %3810 = vadd.xlane.f32.xlu0 %v3746
        %v3811 = vpop.xlane.xlu0 %3810
        %v3812 = vadd.f32 %v3764, %v3781
        %v3813 = vadd.f32 %v3765, %v3783
        %v3814 = vadd.f32 %v3766, %v3785
        %v3815 = vadd.f32 %v3767, %v3787
        %v3816 = vadd.f32 %v3768, %v3789
        %v3817 = vadd.f32 %v3769, %v3791
        %v3818 = vadd.f32 %v3770, %v3793
        %v3819 = vadd.f32 %v3771, %v3795
        %v3820 = vadd.f32 %v3772, %v3797
        %v3821 = vadd.f32 %v3773, %v3799
        %v3822 = vadd.f32 %v3774, %v3801
        %v3823 = vadd.f32 %v3775, %v3803
        %v3824 = vadd.f32 %v3776, %v3805
        %v3825 = vadd.f32 %v3777, %v3807
        %v3826 = vadd.f32 %v3778, %v3809
        %v3827 = vadd.f32 %v3779, %v3811
        %3828 = vst.msk [vmem:[%s3747] sm:$0xff] %vm2666, %v3812
        %3829 = vst.msk [vmem:[%s3747 + $0x8] sm:$0xff] %vm2666, %v3813
        %3830 = vst.msk [vmem:[%s3747 + $0x10] sm:$0xff] %vm2666, %v3814
        %3831 = vst.msk [vmem:[%s3747 + $0x18] sm:$0xff] %vm2666, %v3815
        %3832 = vst.msk [vmem:[%s3747 + $0x20] sm:$0xff] %vm2666, %v3816
        %3833 = vst.msk [vmem:[%s3747 + $0x28] sm:$0xff] %vm2666, %v3817
        %3834 = vst.msk [vmem:[%s3747 + $0x30] sm:$0xff] %vm2666, %v3818
        %3835 = vst.msk [vmem:[%s3747 + $0x38] sm:$0xff] %vm2666, %v3819
        %3836 = vst.msk [vmem:[%s3747 + $0x40] sm:$0xff] %vm2666, %v3820
        %3837 = vst.msk [vmem:[%s3747 + $0x48] sm:$0xff] %vm2666, %v3821
        %3838 = vst.msk [vmem:[%s3747 + $0x50] sm:$0xff] %vm2666, %v3822
        %3839 = vst.msk [vmem:[%s3747 + $0x58] sm:$0xff] %vm2666, %v3823
        %3840 = vst.msk [vmem:[%s3747 + $0x60] sm:$0xff] %vm2666, %v3824
        %3841 = vst.msk [vmem:[%s3747 + $0x68] sm:$0xff] %vm2666, %v3825
        %3842 = vst.msk [vmem:[%s3747 + $0x70] sm:$0xff] %vm2666, %v3826
        %3843 = vst.msk [vmem:[%s3747 + $0x78] sm:$0xff] %vm2666, %v3827
        %s3844 = scalar_lea.vmem [#allocation5], 128
        %v3845 = vld [vmem:[%s3844] sm:$0xff]
        %v3846 = vld [vmem:[%s3844 + $0x8] sm:$0xff]
        %v3847 = vld [vmem:[%s3844 + $0x10] sm:$0xff]
        %v3848 = vld [vmem:[%s3844 + $0x18] sm:$0xff]
        %v3849 = vld [vmem:[%s3844 + $0x20] sm:$0xff]
        %v3850 = vld [vmem:[%s3844 + $0x28] sm:$0xff]
        %v3851 = vld [vmem:[%s3844 + $0x30] sm:$0xff]
        %v3852 = vld [vmem:[%s3844 + $0x38] sm:$0xff]
        %v3853 = vld [vmem:[%s3844 + $0x40] sm:$0xff]
        %v3854 = vld [vmem:[%s3844 + $0x48] sm:$0xff]
        %v3855 = vld [vmem:[%s3844 + $0x50] sm:$0xff]
        %v3856 = vld [vmem:[%s3844 + $0x58] sm:$0xff]
        %v3857 = vld [vmem:[%s3844 + $0x60] sm:$0xff]
        %v3858 = vld [vmem:[%s3844 + $0x68] sm:$0xff]
        %v3859 = vld [vmem:[%s3844 + $0x70] sm:$0xff]
        %v3860 = vld [vmem:[%s3844 + $0x78] sm:$0xff]
        %3862 = vset.pattern.permute.xlu0 0
        %3863 = vperm.xlu0 %3862, %v3588
        %v3864 = vpop.permute.xlu0 %3863
        %3867 = vset.pattern.permute.xlu0 0
        %3868 = vperm.xlu0 %3867, %v3590
        %v3869 = vpop.permute.xlu0 %3868
        %3872 = vset.pattern.permute.xlu0 0
        %3873 = vperm.xlu0 %3872, %v3592
        %v3874 = vpop.permute.xlu0 %3873
        %3877 = vset.pattern.permute.xlu0 0
        %3878 = vperm.xlu0 %3877, %v3594
        %v3879 = vpop.permute.xlu0 %3878
        %3882 = vset.pattern.permute.xlu0 0
        %3883 = vperm.xlu0 %3882, %v3596
        %v3884 = vpop.permute.xlu0 %3883
        %3887 = vset.pattern.permute.xlu0 0
        %3888 = vperm.xlu0 %3887, %v3598
        %v3889 = vpop.permute.xlu0 %3888
        %3892 = vset.pattern.permute.xlu0 0
        %3893 = vperm.xlu0 %3892, %v3600
        %v3894 = vpop.permute.xlu0 %3893
        %3897 = vset.pattern.permute.xlu0 0
        %3898 = vperm.xlu0 %3897, %v3602
        %v3899 = vpop.permute.xlu0 %3898
        %3902 = vset.pattern.permute.xlu0 0
        %3903 = vperm.xlu0 %3902, %v3604
        %v3904 = vpop.permute.xlu0 %3903
        %3907 = vset.pattern.permute.xlu0 0
        %3908 = vperm.xlu0 %3907, %v3606
        %v3909 = vpop.permute.xlu0 %3908
        %3912 = vset.pattern.permute.xlu0 0
        %3913 = vperm.xlu0 %3912, %v3608
        %v3914 = vpop.permute.xlu0 %3913
        %3917 = vset.pattern.permute.xlu0 0
        %3918 = vperm.xlu0 %3917, %v3610
        %v3919 = vpop.permute.xlu0 %3918
        %3922 = vset.pattern.permute.xlu0 0
        %3923 = vperm.xlu0 %3922, %v3612
        %v3924 = vpop.permute.xlu0 %3923
        %3927 = vset.pattern.permute.xlu0 0
        %3928 = vperm.xlu0 %3927, %v3614
        %v3929 = vpop.permute.xlu0 %3928
        %3932 = vset.pattern.permute.xlu0 0
        %3933 = vperm.xlu0 %3932, %v3616
        %v3934 = vpop.permute.xlu0 %3933
        %3937 = vset.pattern.permute.xlu0 0
        %3938 = vperm.xlu0 %3937, %v3618
        %v3939 = vpop.permute.xlu0 %3938
        %v3941 = vmul.f32 %v3864, %v3845
        %v3942 = vmul.f32 %v3869, %v3846
        %v3943 = vmul.f32 %v3874, %v3847
        %v3944 = vmul.f32 %v3879, %v3848
        %v3945 = vmul.f32 %v3884, %v3849
        %v3946 = vmul.f32 %v3889, %v3850
        %v3947 = vmul.f32 %v3894, %v3851
        %v3948 = vmul.f32 %v3899, %v3852
        %v3949 = vmul.f32 %v3904, %v3853
        %v3950 = vmul.f32 %v3909, %v3854
        %v3951 = vmul.f32 %v3914, %v3855
        %v3952 = vmul.f32 %v3919, %v3856
        %v3953 = vmul.f32 %v3924, %v3857
        %v3954 = vmul.f32 %v3929, %v3858
        %v3955 = vmul.f32 %v3934, %v3859
        %v3956 = vmul.f32 %v3939, %v3860
        %v3957 = vpack.c.bf16 %v3718, %v3716
        %v3958 = vpack.c.bf16 %v3722, %v3720
        %v3959 = vpack.c.bf16 %v3726, %v3724
        %v3960 = vpack.c.bf16 %v3730, %v3728
        %v3961 = vpack.c.bf16 %v3734, %v3732
        %v3962 = vpack.c.bf16 %v3738, %v3736
        %v3963 = vpack.c.bf16 %v3742, %v3740
        %v3964 = vpack.c.bf16 %v3746, %v3744
        %3965 = vmatprep.subr.bf16.mxu0 0
        %3966 = vmatpush1.bf16.msra.mxu0 %v3287
        %3967 = vmatprep.subr.bf16.mxu0 0
        %3968 = vmatpush1.bf16.msra.mxu0 %v3286
        %3969 = vmatprep.subr.bf16.mxu0 0
        %3970 = vmatpush1.bf16.msra.mxu0 %v3285
        %3971 = vmatprep.subr.bf16.mxu0 0
        %3972 = vmatpush1.bf16.msra.mxu0 %v3284
        %3973 = vmatprep.subr.bf16.mxu0 0
        %3974 = vmatpush1.bf16.msra.mxu0 %v3283
        %3975 = vmatprep.subr.bf16.mxu0 0
        %3976 = vmatpush1.bf16.msra.mxu0 %v3282
        %3977 = vmatprep.subr.bf16.mxu0 0
        %3978 = vmatpush1.bf16.msra.mxu0 %v3281
        %3979 = vmatprep.subr.bf16.mxu0 0
        %3980 = vmatpush1.bf16.msra.mxu0 %v3280
        %3981 = vmatprep.subr.bf16.mxu0 0
        %3982 = vmatpush2.bf16.msra.mxu0 0
        %3983 = vmatprep.subr.bf16.mxu0 0
        %3984 = vmatpush2.bf16.msra.mxu0 0
        %3985 = vmatprep.subr.bf16.mxu0 0
        %3986 = vmatpush2.bf16.msra.mxu0 0
        %3987 = vmatprep.subr.bf16.mxu0 0
        %3988 = vmatpush2.bf16.msra.mxu0 0
        %3989 = vmatprep.subr.bf16.mxu0 0
        %3990 = vmatpush2.bf16.msra.mxu0 0
        %3991 = vmatprep.subr.bf16.mxu0 0
        %3992 = vmatpush2.bf16.msra.mxu0 0
        %3993 = vmatprep.subr.bf16.mxu0 0
        %3994 = vmatpush2.bf16.msra.mxu0 0
        %3995 = vmatprep.subr.bf16.mxu0 0
        %3996 = vmatpush2.bf16.msra.mxu0 0
        %3997 = vmatprep.mubr.bf16.mxu0 0
        %3998 = vmatmul.mubr.bf16.gmra.mxu0 %v3957
        %v3999 = vpop.f32.mrf.mxu0
        %v4000 = vadd.f32 0.0, %v3999
        %v4001 = vpop.f32.mrf.mxu0
        %v4002 = vpop.f32.mrf.mxu0
        %v4003 = vadd.f32 0.0, %v4002
        %v4004 = vpop.f32.mrf.mxu0
        %4005 = vmatprep.mubr.bf16.mxu0 0
        %4006 = vmatmul.mubr.bf16.gmra.mxu0 %v3958
        %v4007 = vpop.f32.mrf.mxu0
        %v4008 = vadd.f32 0.0, %v4007
        %v4009 = vpop.f32.mrf.mxu0
        %v4010 = vpop.f32.mrf.mxu0
        %v4011 = vadd.f32 0.0, %v4010
        %v4012 = vpop.f32.mrf.mxu0
        %4013 = vmatprep.mubr.bf16.mxu0 0
        %4014 = vmatmul.mubr.bf16.gmra.mxu0 %v3959
        %v4015 = vpop.f32.mrf.mxu0
        %v4016 = vadd.f32 0.0, %v4015
        %v4017 = vpop.f32.mrf.mxu0
        %v4018 = vpop.f32.mrf.mxu0
        %v4019 = vadd.f32 0.0, %v4018
        %v4020 = vpop.f32.mrf.mxu0
        %4021 = vmatprep.mubr.bf16.mxu0 0
        %4022 = vmatmul.mubr.bf16.gmra.mxu0 %v3960
        %v4023 = vpop.f32.mrf.mxu0
        %v4024 = vadd.f32 0.0, %v4023
        %v4025 = vpop.f32.mrf.mxu0
        %v4026 = vpop.f32.mrf.mxu0
        %v4027 = vadd.f32 0.0, %v4026
        %v4028 = vpop.f32.mrf.mxu0
        %4029 = vmatprep.mubr.bf16.mxu0 0
        %4030 = vmatmul.mubr.bf16.gmra.mxu0 %v3961
        %v4031 = vpop.f32.mrf.mxu0
        %v4032 = vadd.f32 0.0, %v4031
        %v4033 = vpop.f32.mrf.mxu0
        %v4034 = vpop.f32.mrf.mxu0
        %v4035 = vadd.f32 0.0, %v4034
        %v4036 = vpop.f32.mrf.mxu0
        %4037 = vmatprep.mubr.bf16.mxu0 0
        %4038 = vmatmul.mubr.bf16.gmra.mxu0 %v3962
        %v4039 = vpop.f32.mrf.mxu0
        %v4040 = vadd.f32 0.0, %v4039
        %v4041 = vpop.f32.mrf.mxu0
        %v4042 = vpop.f32.mrf.mxu0
        %v4043 = vadd.f32 0.0, %v4042
        %v4044 = vpop.f32.mrf.mxu0
        %4045 = vmatprep.mubr.bf16.mxu0 0
        %4046 = vmatmul.mubr.bf16.gmra.mxu0 %v3963
        %v4047 = vpop.f32.mrf.mxu0
        %v4048 = vadd.f32 0.0, %v4047
        %v4049 = vpop.f32.mrf.mxu0
        %v4050 = vpop.f32.mrf.mxu0
        %v4051 = vadd.f32 0.0, %v4050
        %v4052 = vpop.f32.mrf.mxu0
        %4053 = vmatprep.mubr.bf16.mxu0 0
        %4054 = vmatmul.mubr.bf16.gmra.mxu0 %v3964
        %v4055 = vpop.f32.mrf.mxu0
        %v4056 = vadd.f32 0.0, %v4055
        %v4057 = vpop.f32.mrf.mxu0
        %v4058 = vpop.f32.mrf.mxu0
        %v4059 = vadd.f32 0.0, %v4058
        %v4060 = vpop.f32.mrf.mxu0
        %4061 = vdwg.mxu0
        %v4062 = vadd.f32 %v3941, %v4000
        %v4063 = vadd.f32 %v3942, %v4003
        %v4064 = vadd.f32 %v3943, %v4008
        %v4065 = vadd.f32 %v3944, %v4011
        %v4066 = vadd.f32 %v3945, %v4016
        %v4067 = vadd.f32 %v3946, %v4019
        %v4068 = vadd.f32 %v3947, %v4024
        %v4069 = vadd.f32 %v3948, %v4027
        %v4070 = vadd.f32 %v3949, %v4032
        %v4071 = vadd.f32 %v3950, %v4035
        %v4072 = vadd.f32 %v3951, %v4040
        %v4073 = vadd.f32 %v3952, %v4043
        %v4074 = vadd.f32 %v3953, %v4048
        %v4075 = vadd.f32 %v3954, %v4051
        %v4076 = vadd.f32 %v3955, %v4056
        %v4077 = vadd.f32 %v3956, %v4059
        %4078 = vst.msk [vmem:[%s3844] sm:$0xff] %vm2184, %v4062
        %4079 = vst.msk [vmem:[%s3844 + $0x8] sm:$0xff] %vm2184, %v4063
        %4080 = vst.msk [vmem:[%s3844 + $0x10] sm:$0xff] %vm2184, %v4064
        %4081 = vst.msk [vmem:[%s3844 + $0x18] sm:$0xff] %vm2184, %v4065
        %4082 = vst.msk [vmem:[%s3844 + $0x20] sm:$0xff] %vm2184, %v4066
        %4083 = vst.msk [vmem:[%s3844 + $0x28] sm:$0xff] %vm2184, %v4067
        %4084 = vst.msk [vmem:[%s3844 + $0x30] sm:$0xff] %vm2184, %v4068
        %4085 = vst.msk [vmem:[%s3844 + $0x38] sm:$0xff] %vm2184, %v4069
        %4086 = vst.msk [vmem:[%s3844 + $0x40] sm:$0xff] %vm2184, %v4070
        %4087 = vst.msk [vmem:[%s3844 + $0x48] sm:$0xff] %vm2184, %v4071
        %4088 = vst.msk [vmem:[%s3844 + $0x50] sm:$0xff] %vm2184, %v4072
        %4089 = vst.msk [vmem:[%s3844 + $0x58] sm:$0xff] %vm2184, %v4073
        %4090 = vst.msk [vmem:[%s3844 + $0x60] sm:$0xff] %vm2184, %v4074
        %4091 = vst.msk [vmem:[%s3844 + $0x68] sm:$0xff] %vm2184, %v4075
        %4092 = vst.msk [vmem:[%s3844 + $0x70] sm:$0xff] %vm2184, %v4076
        %4093 = vst.msk [vmem:[%s3844 + $0x78] sm:$0xff] %vm2184, %v4077
        %4094 = vst.msk [vmem:[%s3506] sm:$0xff] %vm2666, %v3555
        %4095 = vst.msk [vmem:[%s3506 + $0x8] sm:$0xff] %vm2666, %v3556
        %4096 = vst.msk [vmem:[%s3506 + $0x10] sm:$0xff] %vm2666, %v3557
        %4097 = vst.msk [vmem:[%s3506 + $0x18] sm:$0xff] %vm2666, %v3558
        %4098 = vst.msk [vmem:[%s3506 + $0x20] sm:$0xff] %vm2666, %v3559
        %4099 = vst.msk [vmem:[%s3506 + $0x28] sm:$0xff] %vm2666, %v3560
        %4100 = vst.msk [vmem:[%s3506 + $0x30] sm:$0xff] %vm2666, %v3561
        %4101 = vst.msk [vmem:[%s3506 + $0x38] sm:$0xff] %vm2666, %v3562
        %4102 = vst.msk [vmem:[%s3506 + $0x40] sm:$0xff] %vm2666, %v3563
        %4103 = vst.msk [vmem:[%s3506 + $0x48] sm:$0xff] %vm2666, %v3564
        %4104 = vst.msk [vmem:[%s3506 + $0x50] sm:$0xff] %vm2666, %v3565
        %4105 = vst.msk [vmem:[%s3506 + $0x58] sm:$0xff] %vm2666, %v3566
        %4106 = vst.msk [vmem:[%s3506 + $0x60] sm:$0xff] %vm2666, %v3567
        %4107 = vst.msk [vmem:[%s3506 + $0x68] sm:$0xff] %vm2666, %v3568
        %4108 = vst.msk [vmem:[%s3506 + $0x70] sm:$0xff] %vm2666, %v3569
        %4109 = vst.msk [vmem:[%s3506 + $0x78] sm:$0xff] %vm2666, %v3570
        %s4110 = scalar_lea.vmem %s4, 128
        %v4111 = vld [vmem:[%s4110] sm:$0xf]
        %v4112 = vld [vmem:[%s4110 + $0x4] sm:$0xf]
        %v4113 = vld [vmem:[%s4110 + $0x8] sm:$0xf]
        %v4114 = vld [vmem:[%s4110 + $0xc] sm:$0xf]
        %v4115 = vld [vmem:[%s4110 + $0x10] sm:$0xf]
        %v4116 = vld [vmem:[%s4110 + $0x14] sm:$0xf]
        %v4117 = vld [vmem:[%s4110 + $0x18] sm:$0xf]
        %v4118 = vld [vmem:[%s4110 + $0x1c] sm:$0xf]
        %v4119 = vld [vmem:[%s4110 + $0x20] sm:$0xf]
        %v4120 = vld [vmem:[%s4110 + $0x24] sm:$0xf]
        %v4121 = vld [vmem:[%s4110 + $0x28] sm:$0xf]
        %v4122 = vld [vmem:[%s4110 + $0x2c] sm:$0xf]
        %v4123 = vld [vmem:[%s4110 + $0x30] sm:$0xf]
        %v4124 = vld [vmem:[%s4110 + $0x34] sm:$0xf]
        %v4125 = vld [vmem:[%s4110 + $0x38] sm:$0xf]
        %v4126 = vld [vmem:[%s4110 + $0x3c] sm:$0xf]
        %v4143 = vunpack.c.l.b16 %v4111
        %v4144 = vunpack.c.l.b16 %v4112
        %v4145 = vunpack.c.l.b16 %v4113
        %v4146 = vunpack.c.l.b16 %v4114
        %v4147 = vunpack.c.l.b16 %v4115
        %v4148 = vunpack.c.l.b16 %v4116
        %v4149 = vunpack.c.l.b16 %v4117
        %v4150 = vunpack.c.l.b16 %v4118
        %v4151 = vunpack.c.l.b16 %v4119
        %v4152 = vunpack.c.l.b16 %v4120
        %v4153 = vunpack.c.l.b16 %v4121
        %v4154 = vunpack.c.l.b16 %v4122
        %v4155 = vunpack.c.l.b16 %v4123
        %v4156 = vunpack.c.l.b16 %v4124
        %v4157 = vunpack.c.l.b16 %v4125
        %v4158 = vunpack.c.l.b16 %v4126
        %v4159 = vpack.c.b16 %v4144, %v4143
        %v4160 = vpack.c.b16 %v4146, %v4145
        %v4161 = vpack.c.b16 %v4148, %v4147
        %v4162 = vpack.c.b16 %v4150, %v4149
        %v4163 = vpack.c.b16 %v4152, %v4151
        %v4164 = vpack.c.b16 %v4154, %v4153
        %v4165 = vpack.c.b16 %v4156, %v4155
        %v4166 = vpack.c.b16 %v4158, %v4157
        %4175 = vmatprep.subr.bf16.mxu0 0
        %4176 = vmatpush1.bf16.msra.mxu0 %v4166
        %4177 = vmatprep.subr.bf16.mxu0 0
        %4178 = vmatpush1.bf16.msra.mxu0 %v4165
        %4179 = vmatprep.subr.bf16.mxu0 0
        %4180 = vmatpush1.bf16.msra.mxu0 %v4164
        %4181 = vmatprep.subr.bf16.mxu0 0
        %4182 = vmatpush1.bf16.msra.mxu0 %v4163
        %4183 = vmatprep.subr.bf16.mxu0 0
        %4184 = vmatpush1.bf16.msra.mxu0 %v4162
        %4185 = vmatprep.subr.bf16.mxu0 0
        %4186 = vmatpush1.bf16.msra.mxu0 %v4161
        %4187 = vmatprep.subr.bf16.mxu0 0
        %4188 = vmatpush1.bf16.msra.mxu0 %v4160
        %4189 = vmatprep.subr.bf16.mxu0 0
        %4190 = vmatpush1.bf16.msra.mxu0 %v4159
        %4191 = vmatprep.subr.bf16.mxu0 0
        %4192 = vmatpush2.bf16.msra.mxu0 0
        %4193 = vmatprep.subr.bf16.mxu0 0
        %4194 = vmatpush2.bf16.msra.mxu0 0
        %4195 = vmatprep.subr.bf16.mxu0 0
        %4196 = vmatpush2.bf16.msra.mxu0 0
        %4197 = vmatprep.subr.bf16.mxu0 0
        %4198 = vmatpush2.bf16.msra.mxu0 0
        %4199 = vmatprep.subr.bf16.mxu0 0
        %4200 = vmatpush2.bf16.msra.mxu0 0
        %4201 = vmatprep.subr.bf16.mxu0 0
        %4202 = vmatpush2.bf16.msra.mxu0 0
        %4203 = vmatprep.subr.bf16.mxu0 0
        %4204 = vmatpush2.bf16.msra.mxu0 0
        %4205 = vmatprep.subr.bf16.mxu0 0
        %4206 = vmatpush2.bf16.msra.mxu0 0
        %4207 = vmatprep.mubr.bf16.mxu0 0
        %4208 = vmatmul.mubr.bf16.gmra.mxu0 %v1742
        %v4209 = vpop.f32.mrf.mxu0
        %v4210 = vadd.f32 0.0, %v4209
        %v4211 = vpop.f32.mrf.mxu0
        %v4212 = vpop.f32.mrf.mxu0
        %v4213 = vadd.f32 0.0, %v4212
        %v4214 = vpop.f32.mrf.mxu0
        %4215 = vmatprep.mubr.bf16.mxu0 0
        %4216 = vmatmul.mubr.bf16.gmra.mxu0 %v1743
        %v4217 = vpop.f32.mrf.mxu0
        %v4218 = vadd.f32 0.0, %v4217
        %v4219 = vpop.f32.mrf.mxu0
        %v4220 = vpop.f32.mrf.mxu0
        %v4221 = vadd.f32 0.0, %v4220
        %v4222 = vpop.f32.mrf.mxu0
        %4223 = vmatprep.mubr.bf16.mxu0 0
        %4224 = vmatmul.mubr.bf16.gmra.mxu0 %v1744
        %v4225 = vpop.f32.mrf.mxu0
        %v4226 = vadd.f32 0.0, %v4225
        %v4227 = vpop.f32.mrf.mxu0
        %v4228 = vpop.f32.mrf.mxu0
        %v4229 = vadd.f32 0.0, %v4228
        %v4230 = vpop.f32.mrf.mxu0
        %4231 = vmatprep.mubr.bf16.mxu0 0
        %4232 = vmatmul.mubr.bf16.gmra.mxu0 %v1745
        %v4233 = vpop.f32.mrf.mxu0
        %v4234 = vadd.f32 0.0, %v4233
        %v4235 = vpop.f32.mrf.mxu0
        %v4236 = vpop.f32.mrf.mxu0
        %v4237 = vadd.f32 0.0, %v4236
        %v4238 = vpop.f32.mrf.mxu0
        %4239 = vmatprep.mubr.bf16.mxu0 0
        %4240 = vmatmul.mubr.bf16.gmra.mxu0 %v1746
        %v4241 = vpop.f32.mrf.mxu0
        %v4242 = vadd.f32 0.0, %v4241
        %v4243 = vpop.f32.mrf.mxu0
        %v4244 = vpop.f32.mrf.mxu0
        %v4245 = vadd.f32 0.0, %v4244
        %v4246 = vpop.f32.mrf.mxu0
        %4247 = vmatprep.mubr.bf16.mxu0 0
        %4248 = vmatmul.mubr.bf16.gmra.mxu0 %v1747
        %v4249 = vpop.f32.mrf.mxu0
        %v4250 = vadd.f32 0.0, %v4249
        %v4251 = vpop.f32.mrf.mxu0
        %v4252 = vpop.f32.mrf.mxu0
        %v4253 = vadd.f32 0.0, %v4252
        %v4254 = vpop.f32.mrf.mxu0
        %4255 = vmatprep.mubr.bf16.mxu0 0
        %4256 = vmatmul.mubr.bf16.gmra.mxu0 %v1748
        %v4257 = vpop.f32.mrf.mxu0
        %v4258 = vadd.f32 0.0, %v4257
        %v4259 = vpop.f32.mrf.mxu0
        %v4260 = vpop.f32.mrf.mxu0
        %v4261 = vadd.f32 0.0, %v4260
        %v4262 = vpop.f32.mrf.mxu0
        %4263 = vmatprep.mubr.bf16.mxu0 0
        %4264 = vmatmul.mubr.bf16.gmra.mxu0 %v1749
        %v4265 = vpop.f32.mrf.mxu0
        %v4266 = vadd.f32 0.0, %v4265
        %v4267 = vpop.f32.mrf.mxu0
        %v4268 = vpop.f32.mrf.mxu0
        %v4269 = vadd.f32 0.0, %v4268
        %v4270 = vpop.f32.mrf.mxu0
        %4271 = vdwg.mxu0
        %v4272 = vpack.c.bf16 %v4213, %v4210
        %v4273 = vpack.c.bf16 %v4221, %v4218
        %v4274 = vpack.c.bf16 %v4229, %v4226
        %v4275 = vpack.c.bf16 %v4237, %v4234
        %v4276 = vpack.c.bf16 %v4245, %v4242
        %v4277 = vpack.c.bf16 %v4253, %v4250
        %v4278 = vpack.c.bf16 %v4261, %v4258
        %v4279 = vpack.c.bf16 %v4269, %v4266
        %s4280 = scalar_lea.vmem %s5, 128
        %v4281 = vld [vmem:[%s4280] sm:$0xf]
        %v4282 = vld [vmem:[%s4280 + $0x4] sm:$0xf]
        %v4283 = vld [vmem:[%s4280 + $0x8] sm:$0xf]
        %v4284 = vld [vmem:[%s4280 + $0xc] sm:$0xf]
        %v4285 = vld [vmem:[%s4280 + $0x10] sm:$0xf]
        %v4286 = vld [vmem:[%s4280 + $0x14] sm:$0xf]
        %v4287 = vld [vmem:[%s4280 + $0x18] sm:$0xf]
        %v4288 = vld [vmem:[%s4280 + $0x1c] sm:$0xf]
        %v4289 = vld [vmem:[%s4280 + $0x20] sm:$0xf]
        %v4290 = vld [vmem:[%s4280 + $0x24] sm:$0xf]
        %v4291 = vld [vmem:[%s4280 + $0x28] sm:$0xf]
        %v4292 = vld [vmem:[%s4280 + $0x2c] sm:$0xf]
        %v4293 = vld [vmem:[%s4280 + $0x30] sm:$0xf]
        %v4294 = vld [vmem:[%s4280 + $0x34] sm:$0xf]
        %v4295 = vld [vmem:[%s4280 + $0x38] sm:$0xf]
        %v4296 = vld [vmem:[%s4280 + $0x3c] sm:$0xf]
        %v4313 = vunpack.c.l.b16 %v4281
        %v4314 = vunpack.c.l.b16 %v4282
        %v4315 = vunpack.c.l.b16 %v4283
        %v4316 = vunpack.c.l.b16 %v4284
        %v4317 = vunpack.c.l.b16 %v4285
        %v4318 = vunpack.c.l.b16 %v4286
        %v4319 = vunpack.c.l.b16 %v4287
        %v4320 = vunpack.c.l.b16 %v4288
        %v4321 = vunpack.c.l.b16 %v4289
        %v4322 = vunpack.c.l.b16 %v4290
        %v4323 = vunpack.c.l.b16 %v4291
        %v4324 = vunpack.c.l.b16 %v4292
        %v4325 = vunpack.c.l.b16 %v4293
        %v4326 = vunpack.c.l.b16 %v4294
        %v4327 = vunpack.c.l.b16 %v4295
        %v4328 = vunpack.c.l.b16 %v4296
        %v4329 = vpack.c.b16 %v4314, %v4313
        %v4330 = vpack.c.b16 %v4316, %v4315
        %v4331 = vpack.c.b16 %v4318, %v4317
        %v4332 = vpack.c.b16 %v4320, %v4319
        %v4333 = vpack.c.b16 %v4322, %v4321
        %v4334 = vpack.c.b16 %v4324, %v4323
        %v4335 = vpack.c.b16 %v4326, %v4325
        %v4336 = vpack.c.b16 %v4328, %v4327
        %4345 = vmatprep.subr.bf16.mxu0 0
        %4346 = vmatpush1.bf16.msra.mxu0 %v4336
        %4347 = vmatprep.subr.bf16.mxu0 0
        %4348 = vmatpush1.bf16.msra.mxu0 %v4335
        %4349 = vmatprep.subr.bf16.mxu0 0
        %4350 = vmatpush1.bf16.msra.mxu0 %v4334
        %4351 = vmatprep.subr.bf16.mxu0 0
        %4352 = vmatpush1.bf16.msra.mxu0 %v4333
        %4353 = vmatprep.subr.bf16.mxu0 0
        %4354 = vmatpush1.bf16.msra.mxu0 %v4332
        %4355 = vmatprep.subr.bf16.mxu0 0
        %4356 = vmatpush1.bf16.msra.mxu0 %v4331
        %4357 = vmatprep.subr.bf16.mxu0 0
        %4358 = vmatpush1.bf16.msra.mxu0 %v4330
        %4359 = vmatprep.subr.bf16.mxu0 0
        %4360 = vmatpush1.bf16.msra.mxu0 %v4329
        %4361 = vmatprep.subr.bf16.mxu0 0
        %4362 = vmatpush2.bf16.msra.mxu0 0
        %4363 = vmatprep.subr.bf16.mxu0 0
        %4364 = vmatpush2.bf16.msra.mxu0 0
        %4365 = vmatprep.subr.bf16.mxu0 0
        %4366 = vmatpush2.bf16.msra.mxu0 0
        %4367 = vmatprep.subr.bf16.mxu0 0
        %4368 = vmatpush2.bf16.msra.mxu0 0
        %4369 = vmatprep.subr.bf16.mxu0 0
        %4370 = vmatpush2.bf16.msra.mxu0 0
        %4371 = vmatprep.subr.bf16.mxu0 0
        %4372 = vmatpush2.bf16.msra.mxu0 0
        %4373 = vmatprep.subr.bf16.mxu0 0
        %4374 = vmatpush2.bf16.msra.mxu0 0
        %4375 = vmatprep.subr.bf16.mxu0 0
        %4376 = vmatpush2.bf16.msra.mxu0 0
        %4377 = vmatprep.mubr.bf16.mxu0 0
        %4378 = vmatmul.mubr.bf16.gmra.mxu0 %v1959
        %v4379 = vpop.f32.mrf.mxu0
        %v4380 = vadd.f32 0.0, %v4379
        %v4381 = vpop.f32.mrf.mxu0
        %v4382 = vpop.f32.mrf.mxu0
        %v4383 = vadd.f32 0.0, %v4382
        %v4384 = vpop.f32.mrf.mxu0
        %4385 = vmatprep.mubr.bf16.mxu0 0
        %4386 = vmatmul.mubr.bf16.gmra.mxu0 %v1960
        %v4387 = vpop.f32.mrf.mxu0
        %v4388 = vadd.f32 0.0, %v4387
        %v4389 = vpop.f32.mrf.mxu0
        %v4390 = vpop.f32.mrf.mxu0
        %v4391 = vadd.f32 0.0, %v4390
        %v4392 = vpop.f32.mrf.mxu0
        %4393 = vmatprep.mubr.bf16.mxu0 0
        %4394 = vmatmul.mubr.bf16.gmra.mxu0 %v1961
        %v4395 = vpop.f32.mrf.mxu0
        %v4396 = vadd.f32 0.0, %v4395
        %v4397 = vpop.f32.mrf.mxu0
        %v4398 = vpop.f32.mrf.mxu0
        %v4399 = vadd.f32 0.0, %v4398
        %v4400 = vpop.f32.mrf.mxu0
        %4401 = vmatprep.mubr.bf16.mxu0 0
        %4402 = vmatmul.mubr.bf16.gmra.mxu0 %v1962
        %v4403 = vpop.f32.mrf.mxu0
        %v4404 = vadd.f32 0.0, %v4403
        %v4405 = vpop.f32.mrf.mxu0
        %v4406 = vpop.f32.mrf.mxu0
        %v4407 = vadd.f32 0.0, %v4406
        %v4408 = vpop.f32.mrf.mxu0
        %4409 = vmatprep.mubr.bf16.mxu0 0
        %4410 = vmatmul.mubr.bf16.gmra.mxu0 %v1963
        %v4411 = vpop.f32.mrf.mxu0
        %v4412 = vadd.f32 0.0, %v4411
        %v4413 = vpop.f32.mrf.mxu0
        %v4414 = vpop.f32.mrf.mxu0
        %v4415 = vadd.f32 0.0, %v4414
        %v4416 = vpop.f32.mrf.mxu0
        %4417 = vmatprep.mubr.bf16.mxu0 0
        %4418 = vmatmul.mubr.bf16.gmra.mxu0 %v1964
        %v4419 = vpop.f32.mrf.mxu0
        %v4420 = vadd.f32 0.0, %v4419
        %v4421 = vpop.f32.mrf.mxu0
        %v4422 = vpop.f32.mrf.mxu0
        %v4423 = vadd.f32 0.0, %v4422
        %v4424 = vpop.f32.mrf.mxu0
        %4425 = vmatprep.mubr.bf16.mxu0 0
        %4426 = vmatmul.mubr.bf16.gmra.mxu0 %v1965
        %v4427 = vpop.f32.mrf.mxu0
        %v4428 = vadd.f32 0.0, %v4427
        %v4429 = vpop.f32.mrf.mxu0
        %v4430 = vpop.f32.mrf.mxu0
        %v4431 = vadd.f32 0.0, %v4430
        %v4432 = vpop.f32.mrf.mxu0
        %4433 = vmatprep.mubr.bf16.mxu0 0
        %4434 = vmatmul.mubr.bf16.gmra.mxu0 %v1966
        %v4435 = vpop.f32.mrf.mxu0
        %v4436 = vadd.f32 0.0, %v4435
        %v4437 = vpop.f32.mrf.mxu0
        %v4438 = vpop.f32.mrf.mxu0
        %v4439 = vadd.f32 0.0, %v4438
        %v4440 = vpop.f32.mrf.mxu0
        %4441 = vdwg.mxu0
        %v4442 = vpack.c.bf16 %v4383, %v4380
        %v4443 = vpack.c.bf16 %v4391, %v4388
        %v4444 = vpack.c.bf16 %v4399, %v4396
        %v4445 = vpack.c.bf16 %v4407, %v4404
        %v4446 = vpack.c.bf16 %v4415, %v4412
        %v4447 = vpack.c.bf16 %v4423, %v4420
        %v4448 = vpack.c.bf16 %v4431, %v4428
        %v4449 = vpack.c.bf16 %v4439, %v4436
        %s4450 = scalar_lea.vmem [#allocation2], 128
        %v4451 = vld [vmem:[%s4450] sm:$0xf]
        %v4452 = vld [vmem:[%s4450 + $0x4] sm:$0xf]
        %v4453 = vld [vmem:[%s4450 + $0x8] sm:$0xf]
        %v4454 = vld [vmem:[%s4450 + $0xc] sm:$0xf]
        %v4455 = vld [vmem:[%s4450 + $0x10] sm:$0xf]
        %v4456 = vld [vmem:[%s4450 + $0x14] sm:$0xf]
        %v4457 = vld [vmem:[%s4450 + $0x18] sm:$0xf]
        %v4458 = vld [vmem:[%s4450 + $0x1c] sm:$0xf]
        %v4459 = vld [vmem:[%s4450 + $0x20] sm:$0xf]
        %v4460 = vld [vmem:[%s4450 + $0x24] sm:$0xf]
        %v4461 = vld [vmem:[%s4450 + $0x28] sm:$0xf]
        %v4462 = vld [vmem:[%s4450 + $0x2c] sm:$0xf]
        %v4463 = vld [vmem:[%s4450 + $0x30] sm:$0xf]
        %v4464 = vld [vmem:[%s4450 + $0x34] sm:$0xf]
        %v4465 = vld [vmem:[%s4450 + $0x38] sm:$0xf]
        %v4466 = vld [vmem:[%s4450 + $0x3c] sm:$0xf]
        %v4483 = vunpack.c.l.b16 %v4451
        %v4484 = vunpack.c.l.b16 %v4452
        %v4485 = vunpack.c.l.b16 %v4453
        %v4486 = vunpack.c.l.b16 %v4454
        %v4487 = vunpack.c.l.b16 %v4455
        %v4488 = vunpack.c.l.b16 %v4456
        %v4489 = vunpack.c.l.b16 %v4457
        %v4490 = vunpack.c.l.b16 %v4458
        %v4491 = vunpack.c.l.b16 %v4459
        %v4492 = vunpack.c.l.b16 %v4460
        %v4493 = vunpack.c.l.b16 %v4461
        %v4494 = vunpack.c.l.b16 %v4462
        %v4495 = vunpack.c.l.b16 %v4463
        %v4496 = vunpack.c.l.b16 %v4464
        %v4497 = vunpack.c.l.b16 %v4465
        %v4498 = vunpack.c.l.b16 %v4466
        %v4499 = vpack.c.b16 %v4484, %v4483
        %v4500 = vpack.c.b16 %v4486, %v4485
        %v4501 = vpack.c.b16 %v4488, %v4487
        %v4502 = vpack.c.b16 %v4490, %v4489
        %v4503 = vpack.c.b16 %v4492, %v4491
        %v4504 = vpack.c.b16 %v4494, %v4493
        %v4505 = vpack.c.b16 %v4496, %v4495
        %v4506 = vpack.c.b16 %v4498, %v4497
        %v4508 = vsel %vm2184, %v4499, 0
        %v4511 = vsel %vm2184, %v4500, 0
        %v4514 = vsel %vm2184, %v4501, 0
        %v4517 = vsel %vm2184, %v4502, 0
        %v4520 = vsel %vm2184, %v4503, 0
        %v4523 = vsel %vm2184, %v4504, 0
        %v4526 = vsel %vm2184, %v4505, 0
        %v4529 = vsel %vm2184, %v4506, 0
        %v4532 = vsel %vm2184, %v4272, 0
        %v4535 = vsel %vm2184, %v4273, 0
        %v4538 = vsel %vm2184, %v4274, 0
        %v4541 = vsel %vm2184, %v4275, 0
        %v4544 = vsel %vm2184, %v4276, 0
        %v4547 = vsel %vm2184, %v4277, 0
        %v4550 = vsel %vm2184, %v4278, 0
        %v4553 = vsel %vm2184, %v4279, 0
        %4555 = vmatprep.subr.bf16.mxu0 0
        %4556 = vmatpush1.bf16.xpose.msra.mxu0 %v4553
        %4557 = vmatprep.subr.bf16.mxu0 0
        %4558 = vmatpush1.bf16.xpose.msra.mxu0 %v4550
        %4559 = vmatprep.subr.bf16.mxu0 0
        %4560 = vmatpush1.bf16.xpose.msra.mxu0 %v4547
        %4561 = vmatprep.subr.bf16.mxu0 0
        %4562 = vmatpush1.bf16.xpose.msra.mxu0 %v4544
        %4563 = vmatprep.subr.bf16.mxu0 0
        %4564 = vmatpush1.bf16.xpose.msra.mxu0 %v4541
        %4565 = vmatprep.subr.bf16.mxu0 0
        %4566 = vmatpush1.bf16.xpose.msra.mxu0 %v4538
        %4567 = vmatprep.subr.bf16.mxu0 0
        %4568 = vmatpush1.bf16.xpose.msra.mxu0 %v4535
        %4569 = vmatprep.subr.bf16.mxu0 0
        %4570 = vmatpush1.bf16.xpose.msra.mxu0 %v4532
        %4571 = vmatprep.subr.bf16.mxu0 0
        %4572 = vmatpush2.bf16.xpose.msra.mxu0 0
        %4573 = vmatprep.subr.bf16.mxu0 0
        %4574 = vmatpush2.bf16.xpose.msra.mxu0 0
        %4575 = vmatprep.subr.bf16.mxu0 0
        %4576 = vmatpush2.bf16.xpose.msra.mxu0 0
        %4577 = vmatprep.subr.bf16.mxu0 0
        %4578 = vmatpush2.bf16.xpose.msra.mxu0 0
        %4579 = vmatprep.subr.bf16.mxu0 0
        %4580 = vmatpush2.bf16.xpose.msra.mxu0 0
        %4581 = vmatprep.subr.bf16.mxu0 0
        %4582 = vmatpush2.bf16.xpose.msra.mxu0 0
        %4583 = vmatprep.subr.bf16.mxu0 0
        %4584 = vmatpush2.bf16.xpose.msra.mxu0 0
        %4585 = vmatprep.subr.bf16.mxu0 0
        %4586 = vmatpush2.bf16.xpose.msra.mxu0 0
        %4587 = vmatprep.mubr.bf16.mxu0 0
        %4588 = vmatmul.mubr.bf16.gmra.mxu0 %v4508
        %v4589 = vpop.f32.mrf.mxu0
        %v4590 = vadd.f32 0.0, %v4589
        %v4591 = vpop.f32.mrf.mxu0
        %v4592 = vpop.f32.mrf.mxu0
        %v4593 = vadd.f32 0.0, %v4592
        %v4594 = vpop.f32.mrf.mxu0
        %4595 = vmatprep.mubr.bf16.mxu0 0
        %4596 = vmatmul.mubr.bf16.gmra.mxu0 %v4511
        %v4597 = vpop.f32.mrf.mxu0
        %v4598 = vadd.f32 0.0, %v4597
        %v4599 = vpop.f32.mrf.mxu0
        %v4600 = vpop.f32.mrf.mxu0
        %v4601 = vadd.f32 0.0, %v4600
        %v4602 = vpop.f32.mrf.mxu0
        %4603 = vmatprep.mubr.bf16.mxu0 0
        %4604 = vmatmul.mubr.bf16.gmra.mxu0 %v4514
        %v4605 = vpop.f32.mrf.mxu0
        %v4606 = vadd.f32 0.0, %v4605
        %v4607 = vpop.f32.mrf.mxu0
        %v4608 = vpop.f32.mrf.mxu0
        %v4609 = vadd.f32 0.0, %v4608
        %v4610 = vpop.f32.mrf.mxu0
        %4611 = vmatprep.mubr.bf16.mxu0 0
        %4612 = vmatmul.mubr.bf16.gmra.mxu0 %v4517
        %v4613 = vpop.f32.mrf.mxu0
        %v4614 = vadd.f32 0.0, %v4613
        %v4615 = vpop.f32.mrf.mxu0
        %v4616 = vpop.f32.mrf.mxu0
        %v4617 = vadd.f32 0.0, %v4616
        %v4618 = vpop.f32.mrf.mxu0
        %4619 = vmatprep.mubr.bf16.mxu0 0
        %4620 = vmatmul.mubr.bf16.gmra.mxu0 %v4520
        %v4621 = vpop.f32.mrf.mxu0
        %v4622 = vadd.f32 0.0, %v4621
        %v4623 = vpop.f32.mrf.mxu0
        %v4624 = vpop.f32.mrf.mxu0
        %v4625 = vadd.f32 0.0, %v4624
        %v4626 = vpop.f32.mrf.mxu0
        %4627 = vmatprep.mubr.bf16.mxu0 0
        %4628 = vmatmul.mubr.bf16.gmra.mxu0 %v4523
        %v4629 = vpop.f32.mrf.mxu0
        %v4630 = vadd.f32 0.0, %v4629
        %v4631 = vpop.f32.mrf.mxu0
        %v4632 = vpop.f32.mrf.mxu0
        %v4633 = vadd.f32 0.0, %v4632
        %v4634 = vpop.f32.mrf.mxu0
        %4635 = vmatprep.mubr.bf16.mxu0 0
        %4636 = vmatmul.mubr.bf16.gmra.mxu0 %v4526
        %v4637 = vpop.f32.mrf.mxu0
        %v4638 = vadd.f32 0.0, %v4637
        %v4639 = vpop.f32.mrf.mxu0
        %v4640 = vpop.f32.mrf.mxu0
        %v4641 = vadd.f32 0.0, %v4640
        %v4642 = vpop.f32.mrf.mxu0
        %4643 = vmatprep.mubr.bf16.mxu0 0
        %4644 = vmatmul.mubr.bf16.gmra.mxu0 %v4529
        %v4645 = vpop.f32.mrf.mxu0
        %v4646 = vadd.f32 0.0, %v4645
        %v4647 = vpop.f32.mrf.mxu0
        %v4648 = vpop.f32.mrf.mxu0
        %v4649 = vadd.f32 0.0, %v4648
        %v4650 = vpop.f32.mrf.mxu0
        %4651 = vdwg.mxu0
        %v4652 = vmul.f32 %v4590, 0.17677669
        %v4653 = vmul.f32 %v4593, 0.17677669
        %v4654 = vmul.f32 %v4598, 0.17677669
        %v4655 = vmul.f32 %v4601, 0.17677669
        %v4656 = vmul.f32 %v4606, 0.17677669
        %v4657 = vmul.f32 %v4609, 0.17677669
        %v4658 = vmul.f32 %v4614, 0.17677669
        %v4659 = vmul.f32 %v4617, 0.17677669
        %v4660 = vmul.f32 %v4622, 0.17677669
        %v4661 = vmul.f32 %v4625, 0.17677669
        %v4662 = vmul.f32 %v4630, 0.17677669
        %v4663 = vmul.f32 %v4633, 0.17677669
        %v4664 = vmul.f32 %v4638, 0.17677669
        %v4665 = vmul.f32 %v4641, 0.17677669
        %v4666 = vmul.f32 %v4646, 0.17677669
        %v4667 = vmul.f32 %v4649, 0.17677669
        %s4668 = scalar_lea.vmem [#allocation3], 256
        %v4669 = vld [vmem:[%s4668] sm:$0xff]
        %v4670 = vld [vmem:[%s4668 + $0x8] sm:$0xff]
        %v4671 = vld [vmem:[%s4668 + $0x10] sm:$0xff]
        %v4672 = vld [vmem:[%s4668 + $0x18] sm:$0xff]
        %v4673 = vld [vmem:[%s4668 + $0x20] sm:$0xff]
        %v4674 = vld [vmem:[%s4668 + $0x28] sm:$0xff]
        %v4675 = vld [vmem:[%s4668 + $0x30] sm:$0xff]
        %v4676 = vld [vmem:[%s4668 + $0x38] sm:$0xff]
        %v4677 = vld [vmem:[%s4668 + $0x40] sm:$0xff]
        %v4678 = vld [vmem:[%s4668 + $0x48] sm:$0xff]
        %v4679 = vld [vmem:[%s4668 + $0x50] sm:$0xff]
        %v4680 = vld [vmem:[%s4668 + $0x58] sm:$0xff]
        %v4681 = vld [vmem:[%s4668 + $0x60] sm:$0xff]
        %v4682 = vld [vmem:[%s4668 + $0x68] sm:$0xff]
        %v4683 = vld [vmem:[%s4668 + $0x70] sm:$0xff]
        %v4684 = vld [vmem:[%s4668 + $0x78] sm:$0xff]
        %4685 = vmax.xlane.f32.xlu0 %v4652
        %v4686 = vpop.xlane.xlu0 %4685
        %4687 = vmax.xlane.f32.xlu0 %v4653
        %v4688 = vpop.xlane.xlu0 %4687
        %4689 = vmax.xlane.f32.xlu0 %v4654
        %v4690 = vpop.xlane.xlu0 %4689
        %4691 = vmax.xlane.f32.xlu0 %v4655
        %v4692 = vpop.xlane.xlu0 %4691
        %4693 = vmax.xlane.f32.xlu0 %v4656
        %v4694 = vpop.xlane.xlu0 %4693
        %4695 = vmax.xlane.f32.xlu0 %v4657
        %v4696 = vpop.xlane.xlu0 %4695
        %4697 = vmax.xlane.f32.xlu0 %v4658
        %v4698 = vpop.xlane.xlu0 %4697
        %4699 = vmax.xlane.f32.xlu0 %v4659
        %v4700 = vpop.xlane.xlu0 %4699
        %4701 = vmax.xlane.f32.xlu0 %v4660
        %v4702 = vpop.xlane.xlu0 %4701
        %4703 = vmax.xlane.f32.xlu0 %v4661
        %v4704 = vpop.xlane.xlu0 %4703
        %4705 = vmax.xlane.f32.xlu0 %v4662
        %v4706 = vpop.xlane.xlu0 %4705
        %4707 = vmax.xlane.f32.xlu0 %v4663
        %v4708 = vpop.xlane.xlu0 %4707
        %4709 = vmax.xlane.f32.xlu0 %v4664
        %v4710 = vpop.xlane.xlu0 %4709
        %4711 = vmax.xlane.f32.xlu0 %v4665
        %v4712 = vpop.xlane.xlu0 %4711
        %4713 = vmax.xlane.f32.xlu0 %v4666
        %v4714 = vpop.xlane.xlu0 %4713
        %4715 = vmax.xlane.f32.xlu0 %v4667
        %v4716 = vpop.xlane.xlu0 %4715
        %v4717 = vmax.f32 %v4669, %v4686
        %v4718 = vmax.f32 %v4670, %v4688
        %v4719 = vmax.f32 %v4671, %v4690
        %v4720 = vmax.f32 %v4672, %v4692
        %v4721 = vmax.f32 %v4673, %v4694
        %v4722 = vmax.f32 %v4674, %v4696
        %v4723 = vmax.f32 %v4675, %v4698
        %v4724 = vmax.f32 %v4676, %v4700
        %v4725 = vmax.f32 %v4677, %v4702
        %v4726 = vmax.f32 %v4678, %v4704
        %v4727 = vmax.f32 %v4679, %v4706
        %v4728 = vmax.f32 %v4680, %v4708
        %v4729 = vmax.f32 %v4681, %v4710
        %v4730 = vmax.f32 %v4682, %v4712
        %v4731 = vmax.f32 %v4683, %v4714
        %v4732 = vmax.f32 %v4684, %v4716
        %v4733 = vsub.f32 %v4669, %v4717
        %v4734 = vsub.f32 %v4670, %v4718
        %v4735 = vsub.f32 %v4671, %v4719
        %v4736 = vsub.f32 %v4672, %v4720
        %v4737 = vsub.f32 %v4673, %v4721
        %v4738 = vsub.f32 %v4674, %v4722
        %v4739 = vsub.f32 %v4675, %v4723
        %v4740 = vsub.f32 %v4676, %v4724
        %v4741 = vsub.f32 %v4677, %v4725
        %v4742 = vsub.f32 %v4678, %v4726
        %v4743 = vsub.f32 %v4679, %v4727
        %v4744 = vsub.f32 %v4680, %v4728
        %v4745 = vsub.f32 %v4681, %v4729
        %v4746 = vsub.f32 %v4682, %v4730
        %v4747 = vsub.f32 %v4683, %v4731
        %v4748 = vsub.f32 %v4684, %v4732
        %v4749 = vmul.f32 %v4733, 1.442695
        %v4750 = vpow.pop %v4749
        %v4751 = vmul.f32 %v4734, 1.442695
        %v4752 = vpow.pop %v4751
        %v4753 = vmul.f32 %v4735, 1.442695
        %v4754 = vpow.pop %v4753
        %v4755 = vmul.f32 %v4736, 1.442695
        %v4756 = vpow.pop %v4755
        %v4757 = vmul.f32 %v4737, 1.442695
        %v4758 = vpow.pop %v4757
        %v4759 = vmul.f32 %v4738, 1.442695
        %v4760 = vpow.pop %v4759
        %v4761 = vmul.f32 %v4739, 1.442695
        %v4762 = vpow.pop %v4761
        %v4763 = vmul.f32 %v4740, 1.442695
        %v4764 = vpow.pop %v4763
        %v4765 = vmul.f32 %v4741, 1.442695
        %v4766 = vpow.pop %v4765
        %v4767 = vmul.f32 %v4742, 1.442695
        %v4768 = vpow.pop %v4767
        %v4769 = vmul.f32 %v4743, 1.442695
        %v4770 = vpow.pop %v4769
        %v4771 = vmul.f32 %v4744, 1.442695
        %v4772 = vpow.pop %v4771
        %v4773 = vmul.f32 %v4745, 1.442695
        %v4774 = vpow.pop %v4773
        %v4775 = vmul.f32 %v4746, 1.442695
        %v4776 = vpow.pop %v4775
        %v4777 = vmul.f32 %v4747, 1.442695
        %v4778 = vpow.pop %v4777
        %v4779 = vmul.f32 %v4748, 1.442695
        %v4780 = vpow.pop %v4779
        %4782 = vset.pattern.permute.xlu0 0
        %4783 = vperm.xlu0 %4782, %v4717
        %v4784 = vpop.permute.xlu0 %4783
        %4787 = vset.pattern.permute.xlu0 0
        %4788 = vperm.xlu0 %4787, %v4718
        %v4789 = vpop.permute.xlu0 %4788
        %4792 = vset.pattern.permute.xlu0 0
        %4793 = vperm.xlu0 %4792, %v4719
        %v4794 = vpop.permute.xlu0 %4793
        %4797 = vset.pattern.permute.xlu0 0
        %4798 = vperm.xlu0 %4797, %v4720
        %v4799 = vpop.permute.xlu0 %4798
        %4802 = vset.pattern.permute.xlu0 0
        %4803 = vperm.xlu0 %4802, %v4721
        %v4804 = vpop.permute.xlu0 %4803
        %4807 = vset.pattern.permute.xlu0 0
        %4808 = vperm.xlu0 %4807, %v4722
        %v4809 = vpop.permute.xlu0 %4808
        %4812 = vset.pattern.permute.xlu0 0
        %4813 = vperm.xlu0 %4812, %v4723
        %v4814 = vpop.permute.xlu0 %4813
        %4817 = vset.pattern.permute.xlu0 0
        %4818 = vperm.xlu0 %4817, %v4724
        %v4819 = vpop.permute.xlu0 %4818
        %4822 = vset.pattern.permute.xlu0 0
        %4823 = vperm.xlu0 %4822, %v4725
        %v4824 = vpop.permute.xlu0 %4823
        %4827 = vset.pattern.permute.xlu0 0
        %4828 = vperm.xlu0 %4827, %v4726
        %v4829 = vpop.permute.xlu0 %4828
        %4832 = vset.pattern.permute.xlu0 0
        %4833 = vperm.xlu0 %4832, %v4727
        %v4834 = vpop.permute.xlu0 %4833
        %4837 = vset.pattern.permute.xlu0 0
        %4838 = vperm.xlu0 %4837, %v4728
        %v4839 = vpop.permute.xlu0 %4838
        %4842 = vset.pattern.permute.xlu0 0
        %4843 = vperm.xlu0 %4842, %v4729
        %v4844 = vpop.permute.xlu0 %4843
        %4847 = vset.pattern.permute.xlu0 0
        %4848 = vperm.xlu0 %4847, %v4730
        %v4849 = vpop.permute.xlu0 %4848
        %4852 = vset.pattern.permute.xlu0 0
        %4853 = vperm.xlu0 %4852, %v4731
        %v4854 = vpop.permute.xlu0 %4853
        %4857 = vset.pattern.permute.xlu0 0
        %4858 = vperm.xlu0 %4857, %v4732
        %v4859 = vpop.permute.xlu0 %4858
        %v4861 = vsub.f32 %v4652, %v4784
        %v4862 = vsub.f32 %v4653, %v4789
        %v4863 = vsub.f32 %v4654, %v4794
        %v4864 = vsub.f32 %v4655, %v4799
        %v4865 = vsub.f32 %v4656, %v4804
        %v4866 = vsub.f32 %v4657, %v4809
        %v4867 = vsub.f32 %v4658, %v4814
        %v4868 = vsub.f32 %v4659, %v4819
        %v4869 = vsub.f32 %v4660, %v4824
        %v4870 = vsub.f32 %v4661, %v4829
        %v4871 = vsub.f32 %v4662, %v4834
        %v4872 = vsub.f32 %v4663, %v4839
        %v4873 = vsub.f32 %v4664, %v4844
        %v4874 = vsub.f32 %v4665, %v4849
        %v4875 = vsub.f32 %v4666, %v4854
        %v4876 = vsub.f32 %v4667, %v4859
        %v4877 = vmul.f32 %v4861, 1.442695
        %v4878 = vpow.pop %v4877
        %v4879 = vmul.f32 %v4862, 1.442695
        %v4880 = vpow.pop %v4879
        %v4881 = vmul.f32 %v4863, 1.442695
        %v4882 = vpow.pop %v4881
        %v4883 = vmul.f32 %v4864, 1.442695
        %v4884 = vpow.pop %v4883
        %v4885 = vmul.f32 %v4865, 1.442695
        %v4886 = vpow.pop %v4885
        %v4887 = vmul.f32 %v4866, 1.442695
        %v4888 = vpow.pop %v4887
        %v4889 = vmul.f32 %v4867, 1.442695
        %v4890 = vpow.pop %v4889
        %v4891 = vmul.f32 %v4868, 1.442695
        %v4892 = vpow.pop %v4891
        %v4893 = vmul.f32 %v4869, 1.442695
        %v4894 = vpow.pop %v4893
        %v4895 = vmul.f32 %v4870, 1.442695
        %v4896 = vpow.pop %v4895
        %v4897 = vmul.f32 %v4871, 1.442695
        %v4898 = vpow.pop %v4897
        %v4899 = vmul.f32 %v4872, 1.442695
        %v4900 = vpow.pop %v4899
        %v4901 = vmul.f32 %v4873, 1.442695
        %v4902 = vpow.pop %v4901
        %v4903 = vmul.f32 %v4874, 1.442695
        %v4904 = vpow.pop %v4903
        %v4905 = vmul.f32 %v4875, 1.442695
        %v4906 = vpow.pop %v4905
        %v4907 = vmul.f32 %v4876, 1.442695
        %v4908 = vpow.pop %v4907
        %s4909 = scalar_lea.vmem [#allocation4], 256
        %v4910 = vld [vmem:[%s4909] sm:$0xff]
        %v4911 = vld [vmem:[%s4909 + $0x8] sm:$0xff]
        %v4912 = vld [vmem:[%s4909 + $0x10] sm:$0xff]
        %v4913 = vld [vmem:[%s4909 + $0x18] sm:$0xff]
        %v4914 = vld [vmem:[%s4909 + $0x20] sm:$0xff]
        %v4915 = vld [vmem:[%s4909 + $0x28] sm:$0xff]
        %v4916 = vld [vmem:[%s4909 + $0x30] sm:$0xff]
        %v4917 = vld [vmem:[%s4909 + $0x38] sm:$0xff]
        %v4918 = vld [vmem:[%s4909 + $0x40] sm:$0xff]
        %v4919 = vld [vmem:[%s4909 + $0x48] sm:$0xff]
        %v4920 = vld [vmem:[%s4909 + $0x50] sm:$0xff]
        %v4921 = vld [vmem:[%s4909 + $0x58] sm:$0xff]
        %v4922 = vld [vmem:[%s4909 + $0x60] sm:$0xff]
        %v4923 = vld [vmem:[%s4909 + $0x68] sm:$0xff]
        %v4924 = vld [vmem:[%s4909 + $0x70] sm:$0xff]
        %v4925 = vld [vmem:[%s4909 + $0x78] sm:$0xff]
        %v4926 = vmul.f32 %v4750, %v4910
        %v4927 = vmul.f32 %v4752, %v4911
        %v4928 = vmul.f32 %v4754, %v4912
        %v4929 = vmul.f32 %v4756, %v4913
        %v4930 = vmul.f32 %v4758, %v4914
        %v4931 = vmul.f32 %v4760, %v4915
        %v4932 = vmul.f32 %v4762, %v4916
        %v4933 = vmul.f32 %v4764, %v4917
        %v4934 = vmul.f32 %v4766, %v4918
        %v4935 = vmul.f32 %v4768, %v4919
        %v4936 = vmul.f32 %v4770, %v4920
        %v4937 = vmul.f32 %v4772, %v4921
        %v4938 = vmul.f32 %v4774, %v4922
        %v4939 = vmul.f32 %v4776, %v4923
        %v4940 = vmul.f32 %v4778, %v4924
        %v4941 = vmul.f32 %v4780, %v4925
        %4942 = vadd.xlane.f32.xlu0 %v4878
        %v4943 = vpop.xlane.xlu0 %4942
        %4944 = vadd.xlane.f32.xlu0 %v4880
        %v4945 = vpop.xlane.xlu0 %4944
        %4946 = vadd.xlane.f32.xlu0 %v4882
        %v4947 = vpop.xlane.xlu0 %4946
        %4948 = vadd.xlane.f32.xlu0 %v4884
        %v4949 = vpop.xlane.xlu0 %4948
        %4950 = vadd.xlane.f32.xlu0 %v4886
        %v4951 = vpop.xlane.xlu0 %4950
        %4952 = vadd.xlane.f32.xlu0 %v4888
        %v4953 = vpop.xlane.xlu0 %4952
        %4954 = vadd.xlane.f32.xlu0 %v4890
        %v4955 = vpop.xlane.xlu0 %4954
        %4956 = vadd.xlane.f32.xlu0 %v4892
        %v4957 = vpop.xlane.xlu0 %4956
        %4958 = vadd.xlane.f32.xlu0 %v4894
        %v4959 = vpop.xlane.xlu0 %4958
        %4960 = vadd.xlane.f32.xlu0 %v4896
        %v4961 = vpop.xlane.xlu0 %4960
        %4962 = vadd.xlane.f32.xlu0 %v4898
        %v4963 = vpop.xlane.xlu0 %4962
        %4964 = vadd.xlane.f32.xlu0 %v4900
        %v4965 = vpop.xlane.xlu0 %4964
        %4966 = vadd.xlane.f32.xlu0 %v4902
        %v4967 = vpop.xlane.xlu0 %4966
        %4968 = vadd.xlane.f32.xlu0 %v4904
        %v4969 = vpop.xlane.xlu0 %4968
        %4970 = vadd.xlane.f32.xlu0 %v4906
        %v4971 = vpop.xlane.xlu0 %4970
        %4972 = vadd.xlane.f32.xlu0 %v4908
        %v4973 = vpop.xlane.xlu0 %4972
        %v4974 = vadd.f32 %v4926, %v4943
        %v4975 = vadd.f32 %v4927, %v4945
        %v4976 = vadd.f32 %v4928, %v4947
        %v4977 = vadd.f32 %v4929, %v4949
        %v4978 = vadd.f32 %v4930, %v4951
        %v4979 = vadd.f32 %v4931, %v4953
        %v4980 = vadd.f32 %v4932, %v4955
        %v4981 = vadd.f32 %v4933, %v4957
        %v4982 = vadd.f32 %v4934, %v4959
        %v4983 = vadd.f32 %v4935, %v4961
        %v4984 = vadd.f32 %v4936, %v4963
        %v4985 = vadd.f32 %v4937, %v4965
        %v4986 = vadd.f32 %v4938, %v4967
        %v4987 = vadd.f32 %v4939, %v4969
        %v4988 = vadd.f32 %v4940, %v4971
        %v4989 = vadd.f32 %v4941, %v4973
        %4990 = vst.msk [vmem:[%s4909] sm:$0xff] %vm2666, %v4974
        %4991 = vst.msk [vmem:[%s4909 + $0x8] sm:$0xff] %vm2666, %v4975
        %4992 = vst.msk [vmem:[%s4909 + $0x10] sm:$0xff] %vm2666, %v4976
        %4993 = vst.msk [vmem:[%s4909 + $0x18] sm:$0xff] %vm2666, %v4977
        %4994 = vst.msk [vmem:[%s4909 + $0x20] sm:$0xff] %vm2666, %v4978
        %4995 = vst.msk [vmem:[%s4909 + $0x28] sm:$0xff] %vm2666, %v4979
        %4996 = vst.msk [vmem:[%s4909 + $0x30] sm:$0xff] %vm2666, %v4980
        %4997 = vst.msk [vmem:[%s4909 + $0x38] sm:$0xff] %vm2666, %v4981
        %4998 = vst.msk [vmem:[%s4909 + $0x40] sm:$0xff] %vm2666, %v4982
        %4999 = vst.msk [vmem:[%s4909 + $0x48] sm:$0xff] %vm2666, %v4983
        %5000 = vst.msk [vmem:[%s4909 + $0x50] sm:$0xff] %vm2666, %v4984
        %5001 = vst.msk [vmem:[%s4909 + $0x58] sm:$0xff] %vm2666, %v4985
        %5002 = vst.msk [vmem:[%s4909 + $0x60] sm:$0xff] %vm2666, %v4986
        %5003 = vst.msk [vmem:[%s4909 + $0x68] sm:$0xff] %vm2666, %v4987
        %5004 = vst.msk [vmem:[%s4909 + $0x70] sm:$0xff] %vm2666, %v4988
        %5005 = vst.msk [vmem:[%s4909 + $0x78] sm:$0xff] %vm2666, %v4989
        %s5006 = scalar_lea.vmem [#allocation5], 256
        %v5007 = vld [vmem:[%s5006] sm:$0xff]
        %v5008 = vld [vmem:[%s5006 + $0x8] sm:$0xff]
        %v5009 = vld [vmem:[%s5006 + $0x10] sm:$0xff]
        %v5010 = vld [vmem:[%s5006 + $0x18] sm:$0xff]
        %v5011 = vld [vmem:[%s5006 + $0x20] sm:$0xff]
        %v5012 = vld [vmem:[%s5006 + $0x28] sm:$0xff]
        %v5013 = vld [vmem:[%s5006 + $0x30] sm:$0xff]
        %v5014 = vld [vmem:[%s5006 + $0x38] sm:$0xff]
        %v5015 = vld [vmem:[%s5006 + $0x40] sm:$0xff]
        %v5016 = vld [vmem:[%s5006 + $0x48] sm:$0xff]
        %v5017 = vld [vmem:[%s5006 + $0x50] sm:$0xff]
        %v5018 = vld [vmem:[%s5006 + $0x58] sm:$0xff]
        %v5019 = vld [vmem:[%s5006 + $0x60] sm:$0xff]
        %v5020 = vld [vmem:[%s5006 + $0x68] sm:$0xff]
        %v5021 = vld [vmem:[%s5006 + $0x70] sm:$0xff]
        %v5022 = vld [vmem:[%s5006 + $0x78] sm:$0xff]
        %5024 = vset.pattern.permute.xlu0 0
        %5025 = vperm.xlu0 %5024, %v4750
        %v5026 = vpop.permute.xlu0 %5025
        %5029 = vset.pattern.permute.xlu0 0
        %5030 = vperm.xlu0 %5029, %v4752
        %v5031 = vpop.permute.xlu0 %5030
        %5034 = vset.pattern.permute.xlu0 0
        %5035 = vperm.xlu0 %5034, %v4754
        %v5036 = vpop.permute.xlu0 %5035
        %5039 = vset.pattern.permute.xlu0 0
        %5040 = vperm.xlu0 %5039, %v4756
        %v5041 = vpop.permute.xlu0 %5040
        %5044 = vset.pattern.permute.xlu0 0
        %5045 = vperm.xlu0 %5044, %v4758
        %v5046 = vpop.permute.xlu0 %5045
        %5049 = vset.pattern.permute.xlu0 0
        %5050 = vperm.xlu0 %5049, %v4760
        %v5051 = vpop.permute.xlu0 %5050
        %5054 = vset.pattern.permute.xlu0 0
        %5055 = vperm.xlu0 %5054, %v4762
        %v5056 = vpop.permute.xlu0 %5055
        %5059 = vset.pattern.permute.xlu0 0
        %5060 = vperm.xlu0 %5059, %v4764
        %v5061 = vpop.permute.xlu0 %5060
        %5064 = vset.pattern.permute.xlu0 0
        %5065 = vperm.xlu0 %5064, %v4766
        %v5066 = vpop.permute.xlu0 %5065
        %5069 = vset.pattern.permute.xlu0 0
        %5070 = vperm.xlu0 %5069, %v4768
        %v5071 = vpop.permute.xlu0 %5070
        %5074 = vset.pattern.permute.xlu0 0
        %5075 = vperm.xlu0 %5074, %v4770
        %v5076 = vpop.permute.xlu0 %5075
        %5079 = vset.pattern.permute.xlu0 0
        %5080 = vperm.xlu0 %5079, %v4772
        %v5081 = vpop.permute.xlu0 %5080
        %5084 = vset.pattern.permute.xlu0 0
        %5085 = vperm.xlu0 %5084, %v4774
        %v5086 = vpop.permute.xlu0 %5085
        %5089 = vset.pattern.permute.xlu0 0
        %5090 = vperm.xlu0 %5089, %v4776
        %v5091 = vpop.permute.xlu0 %5090
        %5094 = vset.pattern.permute.xlu0 0
        %5095 = vperm.xlu0 %5094, %v4778
        %v5096 = vpop.permute.xlu0 %5095
        %5099 = vset.pattern.permute.xlu0 0
        %5100 = vperm.xlu0 %5099, %v4780
        %v5101 = vpop.permute.xlu0 %5100
        %v5103 = vmul.f32 %v5026, %v5007
        %v5104 = vmul.f32 %v5031, %v5008
        %v5105 = vmul.f32 %v5036, %v5009
        %v5106 = vmul.f32 %v5041, %v5010
        %v5107 = vmul.f32 %v5046, %v5011
        %v5108 = vmul.f32 %v5051, %v5012
        %v5109 = vmul.f32 %v5056, %v5013
        %v5110 = vmul.f32 %v5061, %v5014
        %v5111 = vmul.f32 %v5066, %v5015
        %v5112 = vmul.f32 %v5071, %v5016
        %v5113 = vmul.f32 %v5076, %v5017
        %v5114 = vmul.f32 %v5081, %v5018
        %v5115 = vmul.f32 %v5086, %v5019
        %v5116 = vmul.f32 %v5091, %v5020
        %v5117 = vmul.f32 %v5096, %v5021
        %v5118 = vmul.f32 %v5101, %v5022
        %v5119 = vpack.c.bf16 %v4880, %v4878
        %v5120 = vpack.c.bf16 %v4884, %v4882
        %v5121 = vpack.c.bf16 %v4888, %v4886
        %v5122 = vpack.c.bf16 %v4892, %v4890
        %v5123 = vpack.c.bf16 %v4896, %v4894
        %v5124 = vpack.c.bf16 %v4900, %v4898
        %v5125 = vpack.c.bf16 %v4904, %v4902
        %v5126 = vpack.c.bf16 %v4908, %v4906
        %5127 = vmatprep.subr.bf16.mxu0 0
        %5128 = vmatpush1.bf16.msra.mxu0 %v4449
        %5129 = vmatprep.subr.bf16.mxu0 0
        %5130 = vmatpush1.bf16.msra.mxu0 %v4448
        %5131 = vmatprep.subr.bf16.mxu0 0
        %5132 = vmatpush1.bf16.msra.mxu0 %v4447
        %5133 = vmatprep.subr.bf16.mxu0 0
        %5134 = vmatpush1.bf16.msra.mxu0 %v4446
        %5135 = vmatprep.subr.bf16.mxu0 0
        %5136 = vmatpush1.bf16.msra.mxu0 %v4445
        %5137 = vmatprep.subr.bf16.mxu0 0
        %5138 = vmatpush1.bf16.msra.mxu0 %v4444
        %5139 = vmatprep.subr.bf16.mxu0 0
        %5140 = vmatpush1.bf16.msra.mxu0 %v4443
        %5141 = vmatprep.subr.bf16.mxu0 0
        %5142 = vmatpush1.bf16.msra.mxu0 %v4442
        %5143 = vmatprep.subr.bf16.mxu0 0
        %5144 = vmatpush2.bf16.msra.mxu0 0
        %5145 = vmatprep.subr.bf16.mxu0 0
        %5146 = vmatpush2.bf16.msra.mxu0 0
        %5147 = vmatprep.subr.bf16.mxu0 0
        %5148 = vmatpush2.bf16.msra.mxu0 0
        %5149 = vmatprep.subr.bf16.mxu0 0
        %5150 = vmatpush2.bf16.msra.mxu0 0
        %5151 = vmatprep.subr.bf16.mxu0 0
        %5152 = vmatpush2.bf16.msra.mxu0 0
        %5153 = vmatprep.subr.bf16.mxu0 0
        %5154 = vmatpush2.bf16.msra.mxu0 0
        %5155 = vmatprep.subr.bf16.mxu0 0
        %5156 = vmatpush2.bf16.msra.mxu0 0
        %5157 = vmatprep.subr.bf16.mxu0 0
        %5158 = vmatpush2.bf16.msra.mxu0 0
        %5159 = vmatprep.mubr.bf16.mxu0 0
        %5160 = vmatmul.mubr.bf16.gmra.mxu0 %v5119
        %v5161 = vpop.f32.mrf.mxu0
        %v5162 = vadd.f32 0.0, %v5161
        %v5163 = vpop.f32.mrf.mxu0
        %v5164 = vpop.f32.mrf.mxu0
        %v5165 = vadd.f32 0.0, %v5164
        %v5166 = vpop.f32.mrf.mxu0
        %5167 = vmatprep.mubr.bf16.mxu0 0
        %5168 = vmatmul.mubr.bf16.gmra.mxu0 %v5120
        %v5169 = vpop.f32.mrf.mxu0
        %v5170 = vadd.f32 0.0, %v5169
        %v5171 = vpop.f32.mrf.mxu0
        %v5172 = vpop.f32.mrf.mxu0
        %v5173 = vadd.f32 0.0, %v5172
        %v5174 = vpop.f32.mrf.mxu0
        %5175 = vmatprep.mubr.bf16.mxu0 0
        %5176 = vmatmul.mubr.bf16.gmra.mxu0 %v5121
        %v5177 = vpop.f32.mrf.mxu0
        %v5178 = vadd.f32 0.0, %v5177
        %v5179 = vpop.f32.mrf.mxu0
        %v5180 = vpop.f32.mrf.mxu0
        %v5181 = vadd.f32 0.0, %v5180
        %v5182 = vpop.f32.mrf.mxu0
        %5183 = vmatprep.mubr.bf16.mxu0 0
        %5184 = vmatmul.mubr.bf16.gmra.mxu0 %v5122
        %v5185 = vpop.f32.mrf.mxu0
        %v5186 = vadd.f32 0.0, %v5185
        %v5187 = vpop.f32.mrf.mxu0
        %v5188 = vpop.f32.mrf.mxu0
        %v5189 = vadd.f32 0.0, %v5188
        %v5190 = vpop.f32.mrf.mxu0
        %5191 = vmatprep.mubr.bf16.mxu0 0
        %5192 = vmatmul.mubr.bf16.gmra.mxu0 %v5123
        %v5193 = vpop.f32.mrf.mxu0
        %v5194 = vadd.f32 0.0, %v5193
        %v5195 = vpop.f32.mrf.mxu0
        %v5196 = vpop.f32.mrf.mxu0
        %v5197 = vadd.f32 0.0, %v5196
        %v5198 = vpop.f32.mrf.mxu0
        %5199 = vmatprep.mubr.bf16.mxu0 0
        %5200 = vmatmul.mubr.bf16.gmra.mxu0 %v5124
        %v5201 = vpop.f32.mrf.mxu0
        %v5202 = vadd.f32 0.0, %v5201
        %v5203 = vpop.f32.mrf.mxu0
        %v5204 = vpop.f32.mrf.mxu0
        %v5205 = vadd.f32 0.0, %v5204
        %v5206 = vpop.f32.mrf.mxu0
        %5207 = vmatprep.mubr.bf16.mxu0 0
        %5208 = vmatmul.mubr.bf16.gmra.mxu0 %v5125
        %v5209 = vpop.f32.mrf.mxu0
        %v5210 = vadd.f32 0.0, %v5209
        %v5211 = vpop.f32.mrf.mxu0
        %v5212 = vpop.f32.mrf.mxu0
        %v5213 = vadd.f32 0.0, %v5212
        %v5214 = vpop.f32.mrf.mxu0
        %5215 = vmatprep.mubr.bf16.mxu0 0
        %5216 = vmatmul.mubr.bf16.gmra.mxu0 %v5126
        %v5217 = vpop.f32.mrf.mxu0
        %v5218 = vadd.f32 0.0, %v5217
        %v5219 = vpop.f32.mrf.mxu0
        %v5220 = vpop.f32.mrf.mxu0
        %v5221 = vadd.f32 0.0, %v5220
        %v5222 = vpop.f32.mrf.mxu0
        %5223 = vdwg.mxu0
        %v5224 = vadd.f32 %v5103, %v5162
        %v5225 = vadd.f32 %v5104, %v5165
        %v5226 = vadd.f32 %v5105, %v5170
        %v5227 = vadd.f32 %v5106, %v5173
        %v5228 = vadd.f32 %v5107, %v5178
        %v5229 = vadd.f32 %v5108, %v5181
        %v5230 = vadd.f32 %v5109, %v5186
        %v5231 = vadd.f32 %v5110, %v5189
        %v5232 = vadd.f32 %v5111, %v5194
        %v5233 = vadd.f32 %v5112, %v5197
        %v5234 = vadd.f32 %v5113, %v5202
        %v5235 = vadd.f32 %v5114, %v5205
        %v5236 = vadd.f32 %v5115, %v5210
        %v5237 = vadd.f32 %v5116, %v5213
        %v5238 = vadd.f32 %v5117, %v5218
        %v5239 = vadd.f32 %v5118, %v5221
        %5240 = vst.msk [vmem:[%s5006] sm:$0xff] %vm2184, %v5224
        %5241 = vst.msk [vmem:[%s5006 + $0x8] sm:$0xff] %vm2184, %v5225
        %5242 = vst.msk [vmem:[%s5006 + $0x10] sm:$0xff] %vm2184, %v5226
        %5243 = vst.msk [vmem:[%s5006 + $0x18] sm:$0xff] %vm2184, %v5227
        %5244 = vst.msk [vmem:[%s5006 + $0x20] sm:$0xff] %vm2184, %v5228
        %5245 = vst.msk [vmem:[%s5006 + $0x28] sm:$0xff] %vm2184, %v5229
        %5246 = vst.msk [vmem:[%s5006 + $0x30] sm:$0xff] %vm2184, %v5230
        %5247 = vst.msk [vmem:[%s5006 + $0x38] sm:$0xff] %vm2184, %v5231
        %5248 = vst.msk [vmem:[%s5006 + $0x40] sm:$0xff] %vm2184, %v5232
        %5249 = vst.msk [vmem:[%s5006 + $0x48] sm:$0xff] %vm2184, %v5233
        %5250 = vst.msk [vmem:[%s5006 + $0x50] sm:$0xff] %vm2184, %v5234
        %5251 = vst.msk [vmem:[%s5006 + $0x58] sm:$0xff] %vm2184, %v5235
        %5252 = vst.msk [vmem:[%s5006 + $0x60] sm:$0xff] %vm2184, %v5236
        %5253 = vst.msk [vmem:[%s5006 + $0x68] sm:$0xff] %vm2184, %v5237
        %5254 = vst.msk [vmem:[%s5006 + $0x70] sm:$0xff] %vm2184, %v5238
        %5255 = vst.msk [vmem:[%s5006 + $0x78] sm:$0xff] %vm2184, %v5239
        %5256 = vst.msk [vmem:[%s4668] sm:$0xff] %vm2666, %v4717
        %5257 = vst.msk [vmem:[%s4668 + $0x8] sm:$0xff] %vm2666, %v4718
        %5258 = vst.msk [vmem:[%s4668 + $0x10] sm:$0xff] %vm2666, %v4719
        %5259 = vst.msk [vmem:[%s4668 + $0x18] sm:$0xff] %vm2666, %v4720
        %5260 = vst.msk [vmem:[%s4668 + $0x20] sm:$0xff] %vm2666, %v4721
        %5261 = vst.msk [vmem:[%s4668 + $0x28] sm:$0xff] %vm2666, %v4722
        %5262 = vst.msk [vmem:[%s4668 + $0x30] sm:$0xff] %vm2666, %v4723
        %5263 = vst.msk [vmem:[%s4668 + $0x38] sm:$0xff] %vm2666, %v4724
        %5264 = vst.msk [vmem:[%s4668 + $0x40] sm:$0xff] %vm2666, %v4725
        %5265 = vst.msk [vmem:[%s4668 + $0x48] sm:$0xff] %vm2666, %v4726
        %5266 = vst.msk [vmem:[%s4668 + $0x50] sm:$0xff] %vm2666, %v4727
        %5267 = vst.msk [vmem:[%s4668 + $0x58] sm:$0xff] %vm2666, %v4728
        %5268 = vst.msk [vmem:[%s4668 + $0x60] sm:$0xff] %vm2666, %v4729
        %5269 = vst.msk [vmem:[%s4668 + $0x68] sm:$0xff] %vm2666, %v4730
        %5270 = vst.msk [vmem:[%s4668 + $0x70] sm:$0xff] %vm2666, %v4731
        %5271 = vst.msk [vmem:[%s4668 + $0x78] sm:$0xff] %vm2666, %v4732
        %s5272 = scalar_lea.vmem %s4, 192
        %v5273 = vld [vmem:[%s5272] sm:$0xf]
        %v5274 = vld [vmem:[%s5272 + $0x4] sm:$0xf]
        %v5275 = vld [vmem:[%s5272 + $0x8] sm:$0xf]
        %v5276 = vld [vmem:[%s5272 + $0xc] sm:$0xf]
        %v5277 = vld [vmem:[%s5272 + $0x10] sm:$0xf]
        %v5278 = vld [vmem:[%s5272 + $0x14] sm:$0xf]
        %v5279 = vld [vmem:[%s5272 + $0x18] sm:$0xf]
        %v5280 = vld [vmem:[%s5272 + $0x1c] sm:$0xf]
        %v5281 = vld [vmem:[%s5272 + $0x20] sm:$0xf]
        %v5282 = vld [vmem:[%s5272 + $0x24] sm:$0xf]
        %v5283 = vld [vmem:[%s5272 + $0x28] sm:$0xf]
        %v5284 = vld [vmem:[%s5272 + $0x2c] sm:$0xf]
        %v5285 = vld [vmem:[%s5272 + $0x30] sm:$0xf]
        %v5286 = vld [vmem:[%s5272 + $0x34] sm:$0xf]
        %v5287 = vld [vmem:[%s5272 + $0x38] sm:$0xf]
        %v5288 = vld [vmem:[%s5272 + $0x3c] sm:$0xf]
        %v5305 = vunpack.c.l.b16 %v5273
        %v5306 = vunpack.c.l.b16 %v5274
        %v5307 = vunpack.c.l.b16 %v5275
        %v5308 = vunpack.c.l.b16 %v5276
        %v5309 = vunpack.c.l.b16 %v5277
        %v5310 = vunpack.c.l.b16 %v5278
        %v5311 = vunpack.c.l.b16 %v5279
        %v5312 = vunpack.c.l.b16 %v5280
        %v5313 = vunpack.c.l.b16 %v5281
        %v5314 = vunpack.c.l.b16 %v5282
        %v5315 = vunpack.c.l.b16 %v5283
        %v5316 = vunpack.c.l.b16 %v5284
        %v5317 = vunpack.c.l.b16 %v5285
        %v5318 = vunpack.c.l.b16 %v5286
        %v5319 = vunpack.c.l.b16 %v5287
        %v5320 = vunpack.c.l.b16 %v5288
        %v5321 = vpack.c.b16 %v5306, %v5305
        %v5322 = vpack.c.b16 %v5308, %v5307
        %v5323 = vpack.c.b16 %v5310, %v5309
        %v5324 = vpack.c.b16 %v5312, %v5311
        %v5325 = vpack.c.b16 %v5314, %v5313
        %v5326 = vpack.c.b16 %v5316, %v5315
        %v5327 = vpack.c.b16 %v5318, %v5317
        %v5328 = vpack.c.b16 %v5320, %v5319
        %5337 = vmatprep.subr.bf16.mxu0 0
        %5338 = vmatpush1.bf16.msra.mxu0 %v5328
        %5339 = vmatprep.subr.bf16.mxu0 0
        %5340 = vmatpush1.bf16.msra.mxu0 %v5327
        %5341 = vmatprep.subr.bf16.mxu0 0
        %5342 = vmatpush1.bf16.msra.mxu0 %v5326
        %5343 = vmatprep.subr.bf16.mxu0 0
        %5344 = vmatpush1.bf16.msra.mxu0 %v5325
        %5345 = vmatprep.subr.bf16.mxu0 0
        %5346 = vmatpush1.bf16.msra.mxu0 %v5324
        %5347 = vmatprep.subr.bf16.mxu0 0
        %5348 = vmatpush1.bf16.msra.mxu0 %v5323
        %5349 = vmatprep.subr.bf16.mxu0 0
        %5350 = vmatpush1.bf16.msra.mxu0 %v5322
        %5351 = vmatprep.subr.bf16.mxu0 0
        %5352 = vmatpush1.bf16.msra.mxu0 %v5321
        %5353 = vmatprep.subr.bf16.mxu0 0
        %5354 = vmatpush2.bf16.msra.mxu0 0
        %5355 = vmatprep.subr.bf16.mxu0 0
        %5356 = vmatpush2.bf16.msra.mxu0 0
        %5357 = vmatprep.subr.bf16.mxu0 0
        %5358 = vmatpush2.bf16.msra.mxu0 0
        %5359 = vmatprep.subr.bf16.mxu0 0
        %5360 = vmatpush2.bf16.msra.mxu0 0
        %5361 = vmatprep.subr.bf16.mxu0 0
        %5362 = vmatpush2.bf16.msra.mxu0 0
        %5363 = vmatprep.subr.bf16.mxu0 0
        %5364 = vmatpush2.bf16.msra.mxu0 0
        %5365 = vmatprep.subr.bf16.mxu0 0
        %5366 = vmatpush2.bf16.msra.mxu0 0
        %5367 = vmatprep.subr.bf16.mxu0 0
        %5368 = vmatpush2.bf16.msra.mxu0 0
        %5369 = vmatprep.mubr.bf16.mxu0 0
        %5370 = vmatmul.mubr.bf16.gmra.mxu0 %v1742
        %v5371 = vpop.f32.mrf.mxu0
        %v5372 = vadd.f32 0.0, %v5371
        %v5373 = vpop.f32.mrf.mxu0
        %v5374 = vpop.f32.mrf.mxu0
        %v5375 = vadd.f32 0.0, %v5374
        %v5376 = vpop.f32.mrf.mxu0
        %5377 = vmatprep.mubr.bf16.mxu0 0
        %5378 = vmatmul.mubr.bf16.gmra.mxu0 %v1743
        %v5379 = vpop.f32.mrf.mxu0
        %v5380 = vadd.f32 0.0, %v5379
        %v5381 = vpop.f32.mrf.mxu0
        %v5382 = vpop.f32.mrf.mxu0
        %v5383 = vadd.f32 0.0, %v5382
        %v5384 = vpop.f32.mrf.mxu0
        %5385 = vmatprep.mubr.bf16.mxu0 0
        %5386 = vmatmul.mubr.bf16.gmra.mxu0 %v1744
        %v5387 = vpop.f32.mrf.mxu0
        %v5388 = vadd.f32 0.0, %v5387
        %v5389 = vpop.f32.mrf.mxu0
        %v5390 = vpop.f32.mrf.mxu0
        %v5391 = vadd.f32 0.0, %v5390
        %v5392 = vpop.f32.mrf.mxu0
        %5393 = vmatprep.mubr.bf16.mxu0 0
        %5394 = vmatmul.mubr.bf16.gmra.mxu0 %v1745
        %v5395 = vpop.f32.mrf.mxu0
        %v5396 = vadd.f32 0.0, %v5395
        %v5397 = vpop.f32.mrf.mxu0
        %v5398 = vpop.f32.mrf.mxu0
        %v5399 = vadd.f32 0.0, %v5398
        %v5400 = vpop.f32.mrf.mxu0
        %5401 = vmatprep.mubr.bf16.mxu0 0
        %5402 = vmatmul.mubr.bf16.gmra.mxu0 %v1746
        %v5403 = vpop.f32.mrf.mxu0
        %v5404 = vadd.f32 0.0, %v5403
        %v5405 = vpop.f32.mrf.mxu0
        %v5406 = vpop.f32.mrf.mxu0
        %v5407 = vadd.f32 0.0, %v5406
        %v5408 = vpop.f32.mrf.mxu0
        %5409 = vmatprep.mubr.bf16.mxu0 0
        %5410 = vmatmul.mubr.bf16.gmra.mxu0 %v1747
        %v5411 = vpop.f32.mrf.mxu0
        %v5412 = vadd.f32 0.0, %v5411
        %v5413 = vpop.f32.mrf.mxu0
        %v5414 = vpop.f32.mrf.mxu0
        %v5415 = vadd.f32 0.0, %v5414
        %v5416 = vpop.f32.mrf.mxu0
        %5417 = vmatprep.mubr.bf16.mxu0 0
        %5418 = vmatmul.mubr.bf16.gmra.mxu0 %v1748
        %v5419 = vpop.f32.mrf.mxu0
        %v5420 = vadd.f32 0.0, %v5419
        %v5421 = vpop.f32.mrf.mxu0
        %v5422 = vpop.f32.mrf.mxu0
        %v5423 = vadd.f32 0.0, %v5422
        %v5424 = vpop.f32.mrf.mxu0
        %5425 = vmatprep.mubr.bf16.mxu0 0
        %5426 = vmatmul.mubr.bf16.gmra.mxu0 %v1749
        %v5427 = vpop.f32.mrf.mxu0
        %v5428 = vadd.f32 0.0, %v5427
        %v5429 = vpop.f32.mrf.mxu0
        %v5430 = vpop.f32.mrf.mxu0
        %v5431 = vadd.f32 0.0, %v5430
        %v5432 = vpop.f32.mrf.mxu0
        %5433 = vdwg.mxu0
        %v5434 = vpack.c.bf16 %v5375, %v5372
        %v5435 = vpack.c.bf16 %v5383, %v5380
        %v5436 = vpack.c.bf16 %v5391, %v5388
        %v5437 = vpack.c.bf16 %v5399, %v5396
        %v5438 = vpack.c.bf16 %v5407, %v5404
        %v5439 = vpack.c.bf16 %v5415, %v5412
        %v5440 = vpack.c.bf16 %v5423, %v5420
        %v5441 = vpack.c.bf16 %v5431, %v5428
        %s5442 = scalar_lea.vmem %s5, 192
        %v5443 = vld [vmem:[%s5442] sm:$0xf]
        %v5444 = vld [vmem:[%s5442 + $0x4] sm:$0xf]
        %v5445 = vld [vmem:[%s5442 + $0x8] sm:$0xf]
        %v5446 = vld [vmem:[%s5442 + $0xc] sm:$0xf]
        %v5447 = vld [vmem:[%s5442 + $0x10] sm:$0xf]
        %v5448 = vld [vmem:[%s5442 + $0x14] sm:$0xf]
        %v5449 = vld [vmem:[%s5442 + $0x18] sm:$0xf]
        %v5450 = vld [vmem:[%s5442 + $0x1c] sm:$0xf]
        %v5451 = vld [vmem:[%s5442 + $0x20] sm:$0xf]
        %v5452 = vld [vmem:[%s5442 + $0x24] sm:$0xf]
        %v5453 = vld [vmem:[%s5442 + $0x28] sm:$0xf]
        %v5454 = vld [vmem:[%s5442 + $0x2c] sm:$0xf]
        %v5455 = vld [vmem:[%s5442 + $0x30] sm:$0xf]
        %v5456 = vld [vmem:[%s5442 + $0x34] sm:$0xf]
        %v5457 = vld [vmem:[%s5442 + $0x38] sm:$0xf]
        %v5458 = vld [vmem:[%s5442 + $0x3c] sm:$0xf]
        %v5475 = vunpack.c.l.b16 %v5443
        %v5476 = vunpack.c.l.b16 %v5444
        %v5477 = vunpack.c.l.b16 %v5445
        %v5478 = vunpack.c.l.b16 %v5446
        %v5479 = vunpack.c.l.b16 %v5447
        %v5480 = vunpack.c.l.b16 %v5448
        %v5481 = vunpack.c.l.b16 %v5449
        %v5482 = vunpack.c.l.b16 %v5450
        %v5483 = vunpack.c.l.b16 %v5451
        %v5484 = vunpack.c.l.b16 %v5452
        %v5485 = vunpack.c.l.b16 %v5453
        %v5486 = vunpack.c.l.b16 %v5454
        %v5487 = vunpack.c.l.b16 %v5455
        %v5488 = vunpack.c.l.b16 %v5456
        %v5489 = vunpack.c.l.b16 %v5457
        %v5490 = vunpack.c.l.b16 %v5458
        %v5491 = vpack.c.b16 %v5476, %v5475
        %v5492 = vpack.c.b16 %v5478, %v5477
        %v5493 = vpack.c.b16 %v5480, %v5479
        %v5494 = vpack.c.b16 %v5482, %v5481
        %v5495 = vpack.c.b16 %v5484, %v5483
        %v5496 = vpack.c.b16 %v5486, %v5485
        %v5497 = vpack.c.b16 %v5488, %v5487
        %v5498 = vpack.c.b16 %v5490, %v5489
        %5507 = vmatprep.subr.bf16.mxu0 0
        %5508 = vmatpush1.bf16.msra.mxu0 %v5498
        %5509 = vmatprep.subr.bf16.mxu0 0
        %5510 = vmatpush1.bf16.msra.mxu0 %v5497
        %5511 = vmatprep.subr.bf16.mxu0 0
        %5512 = vmatpush1.bf16.msra.mxu0 %v5496
        %5513 = vmatprep.subr.bf16.mxu0 0
        %5514 = vmatpush1.bf16.msra.mxu0 %v5495
        %5515 = vmatprep.subr.bf16.mxu0 0
        %5516 = vmatpush1.bf16.msra.mxu0 %v5494
        %5517 = vmatprep.subr.bf16.mxu0 0
        %5518 = vmatpush1.bf16.msra.mxu0 %v5493
        %5519 = vmatprep.subr.bf16.mxu0 0
        %5520 = vmatpush1.bf16.msra.mxu0 %v5492
        %5521 = vmatprep.subr.bf16.mxu0 0
        %5522 = vmatpush1.bf16.msra.mxu0 %v5491
        %5523 = vmatprep.subr.bf16.mxu0 0
        %5524 = vmatpush2.bf16.msra.mxu0 0
        %5525 = vmatprep.subr.bf16.mxu0 0
        %5526 = vmatpush2.bf16.msra.mxu0 0
        %5527 = vmatprep.subr.bf16.mxu0 0
        %5528 = vmatpush2.bf16.msra.mxu0 0
        %5529 = vmatprep.subr.bf16.mxu0 0
        %5530 = vmatpush2.bf16.msra.mxu0 0
        %5531 = vmatprep.subr.bf16.mxu0 0
        %5532 = vmatpush2.bf16.msra.mxu0 0
        %5533 = vmatprep.subr.bf16.mxu0 0
        %5534 = vmatpush2.bf16.msra.mxu0 0
        %5535 = vmatprep.subr.bf16.mxu0 0
        %5536 = vmatpush2.bf16.msra.mxu0 0
        %5537 = vmatprep.subr.bf16.mxu0 0
        %5538 = vmatpush2.bf16.msra.mxu0 0
        %5539 = vmatprep.mubr.bf16.mxu0 0
        %5540 = vmatmul.mubr.bf16.gmra.mxu0 %v1959
        %v5541 = vpop.f32.mrf.mxu0
        %v5542 = vadd.f32 0.0, %v5541
        %v5543 = vpop.f32.mrf.mxu0
        %v5544 = vpop.f32.mrf.mxu0
        %v5545 = vadd.f32 0.0, %v5544
        %v5546 = vpop.f32.mrf.mxu0
        %5547 = vmatprep.mubr.bf16.mxu0 0
        %5548 = vmatmul.mubr.bf16.gmra.mxu0 %v1960
        %v5549 = vpop.f32.mrf.mxu0
        %v5550 = vadd.f32 0.0, %v5549
        %v5551 = vpop.f32.mrf.mxu0
        %v5552 = vpop.f32.mrf.mxu0
        %v5553 = vadd.f32 0.0, %v5552
        %v5554 = vpop.f32.mrf.mxu0
        %5555 = vmatprep.mubr.bf16.mxu0 0
        %5556 = vmatmul.mubr.bf16.gmra.mxu0 %v1961
        %v5557 = vpop.f32.mrf.mxu0
        %v5558 = vadd.f32 0.0, %v5557
        %v5559 = vpop.f32.mrf.mxu0
        %v5560 = vpop.f32.mrf.mxu0
        %v5561 = vadd.f32 0.0, %v5560
        %v5562 = vpop.f32.mrf.mxu0
        %5563 = vmatprep.mubr.bf16.mxu0 0
        %5564 = vmatmul.mubr.bf16.gmra.mxu0 %v1962
        %v5565 = vpop.f32.mrf.mxu0
        %v5566 = vadd.f32 0.0, %v5565
        %v5567 = vpop.f32.mrf.mxu0
        %v5568 = vpop.f32.mrf.mxu0
        %v5569 = vadd.f32 0.0, %v5568
        %v5570 = vpop.f32.mrf.mxu0
        %5571 = vmatprep.mubr.bf16.mxu0 0
        %5572 = vmatmul.mubr.bf16.gmra.mxu0 %v1963
        %v5573 = vpop.f32.mrf.mxu0
        %v5574 = vadd.f32 0.0, %v5573
        %v5575 = vpop.f32.mrf.mxu0
        %v5576 = vpop.f32.mrf.mxu0
        %v5577 = vadd.f32 0.0, %v5576
        %v5578 = vpop.f32.mrf.mxu0
        %5579 = vmatprep.mubr.bf16.mxu0 0
        %5580 = vmatmul.mubr.bf16.gmra.mxu0 %v1964
        %v5581 = vpop.f32.mrf.mxu0
        %v5582 = vadd.f32 0.0, %v5581
        %v5583 = vpop.f32.mrf.mxu0
        %v5584 = vpop.f32.mrf.mxu0
        %v5585 = vadd.f32 0.0, %v5584
        %v5586 = vpop.f32.mrf.mxu0
        %5587 = vmatprep.mubr.bf16.mxu0 0
        %5588 = vmatmul.mubr.bf16.gmra.mxu0 %v1965
        %v5589 = vpop.f32.mrf.mxu0
        %v5590 = vadd.f32 0.0, %v5589
        %v5591 = vpop.f32.mrf.mxu0
        %v5592 = vpop.f32.mrf.mxu0
        %v5593 = vadd.f32 0.0, %v5592
        %v5594 = vpop.f32.mrf.mxu0
        %5595 = vmatprep.mubr.bf16.mxu0 0
        %5596 = vmatmul.mubr.bf16.gmra.mxu0 %v1966
        %v5597 = vpop.f32.mrf.mxu0
        %v5598 = vadd.f32 0.0, %v5597
        %v5599 = vpop.f32.mrf.mxu0
        %v5600 = vpop.f32.mrf.mxu0
        %v5601 = vadd.f32 0.0, %v5600
        %v5602 = vpop.f32.mrf.mxu0
        %5603 = vdwg.mxu0
        %v5604 = vpack.c.bf16 %v5545, %v5542
        %v5605 = vpack.c.bf16 %v5553, %v5550
        %v5606 = vpack.c.bf16 %v5561, %v5558
        %v5607 = vpack.c.bf16 %v5569, %v5566
        %v5608 = vpack.c.bf16 %v5577, %v5574
        %v5609 = vpack.c.bf16 %v5585, %v5582
        %v5610 = vpack.c.bf16 %v5593, %v5590
        %v5611 = vpack.c.bf16 %v5601, %v5598
        %s5612 = scalar_lea.vmem [#allocation2], 192
        %v5613 = vld [vmem:[%s5612] sm:$0xf]
        %v5614 = vld [vmem:[%s5612 + $0x4] sm:$0xf]
        %v5615 = vld [vmem:[%s5612 + $0x8] sm:$0xf]
        %v5616 = vld [vmem:[%s5612 + $0xc] sm:$0xf]
        %v5617 = vld [vmem:[%s5612 + $0x10] sm:$0xf]
        %v5618 = vld [vmem:[%s5612 + $0x14] sm:$0xf]
        %v5619 = vld [vmem:[%s5612 + $0x18] sm:$0xf]
        %v5620 = vld [vmem:[%s5612 + $0x1c] sm:$0xf]
        %v5621 = vld [vmem:[%s5612 + $0x20] sm:$0xf]
        %v5622 = vld [vmem:[%s5612 + $0x24] sm:$0xf]
        %v5623 = vld [vmem:[%s5612 + $0x28] sm:$0xf]
        %v5624 = vld [vmem:[%s5612 + $0x2c] sm:$0xf]
        %v5625 = vld [vmem:[%s5612 + $0x30] sm:$0xf]
        %v5626 = vld [vmem:[%s5612 + $0x34] sm:$0xf]
        %v5627 = vld [vmem:[%s5612 + $0x38] sm:$0xf]
        %v5628 = vld [vmem:[%s5612 + $0x3c] sm:$0xf]
        %v5645 = vunpack.c.l.b16 %v5613
        %v5646 = vunpack.c.l.b16 %v5614
        %v5647 = vunpack.c.l.b16 %v5615
        %v5648 = vunpack.c.l.b16 %v5616
        %v5649 = vunpack.c.l.b16 %v5617
        %v5650 = vunpack.c.l.b16 %v5618
        %v5651 = vunpack.c.l.b16 %v5619
        %v5652 = vunpack.c.l.b16 %v5620
        %v5653 = vunpack.c.l.b16 %v5621
        %v5654 = vunpack.c.l.b16 %v5622
        %v5655 = vunpack.c.l.b16 %v5623
        %v5656 = vunpack.c.l.b16 %v5624
        %v5657 = vunpack.c.l.b16 %v5625
        %v5658 = vunpack.c.l.b16 %v5626
        %v5659 = vunpack.c.l.b16 %v5627
        %v5660 = vunpack.c.l.b16 %v5628
        %v5661 = vpack.c.b16 %v5646, %v5645
        %v5662 = vpack.c.b16 %v5648, %v5647
        %v5663 = vpack.c.b16 %v5650, %v5649
        %v5664 = vpack.c.b16 %v5652, %v5651
        %v5665 = vpack.c.b16 %v5654, %v5653
        %v5666 = vpack.c.b16 %v5656, %v5655
        %v5667 = vpack.c.b16 %v5658, %v5657
        %v5668 = vpack.c.b16 %v5660, %v5659
        %v5670 = vsel %vm2184, %v5661, 0
        %v5673 = vsel %vm2184, %v5662, 0
        %v5676 = vsel %vm2184, %v5663, 0
        %v5679 = vsel %vm2184, %v5664, 0
        %v5682 = vsel %vm2184, %v5665, 0
        %v5685 = vsel %vm2184, %v5666, 0
        %v5688 = vsel %vm2184, %v5667, 0
        %v5691 = vsel %vm2184, %v5668, 0
        %v5694 = vsel %vm2184, %v5434, 0
        %v5697 = vsel %vm2184, %v5435, 0
        %v5700 = vsel %vm2184, %v5436, 0
        %v5703 = vsel %vm2184, %v5437, 0
        %v5706 = vsel %vm2184, %v5438, 0
        %v5709 = vsel %vm2184, %v5439, 0
        %v5712 = vsel %vm2184, %v5440, 0
        %v5715 = vsel %vm2184, %v5441, 0
        %5717 = vmatprep.subr.bf16.mxu0 0
        %5718 = vmatpush1.bf16.xpose.msra.mxu0 %v5715
        %5719 = vmatprep.subr.bf16.mxu0 0
        %5720 = vmatpush1.bf16.xpose.msra.mxu0 %v5712
        %5721 = vmatprep.subr.bf16.mxu0 0
        %5722 = vmatpush1.bf16.xpose.msra.mxu0 %v5709
        %5723 = vmatprep.subr.bf16.mxu0 0
        %5724 = vmatpush1.bf16.xpose.msra.mxu0 %v5706
        %5725 = vmatprep.subr.bf16.mxu0 0
        %5726 = vmatpush1.bf16.xpose.msra.mxu0 %v5703
        %5727 = vmatprep.subr.bf16.mxu0 0
        %5728 = vmatpush1.bf16.xpose.msra.mxu0 %v5700
        %5729 = vmatprep.subr.bf16.mxu0 0
        %5730 = vmatpush1.bf16.xpose.msra.mxu0 %v5697
        %5731 = vmatprep.subr.bf16.mxu0 0
        %5732 = vmatpush1.bf16.xpose.msra.mxu0 %v5694
        %5733 = vmatprep.subr.bf16.mxu0 0
        %5734 = vmatpush2.bf16.xpose.msra.mxu0 0
        %5735 = vmatprep.subr.bf16.mxu0 0
        %5736 = vmatpush2.bf16.xpose.msra.mxu0 0
        %5737 = vmatprep.subr.bf16.mxu0 0
        %5738 = vmatpush2.bf16.xpose.msra.mxu0 0
        %5739 = vmatprep.subr.bf16.mxu0 0
        %5740 = vmatpush2.bf16.xpose.msra.mxu0 0
        %5741 = vmatprep.subr.bf16.mxu0 0
        %5742 = vmatpush2.bf16.xpose.msra.mxu0 0
        %5743 = vmatprep.subr.bf16.mxu0 0
        %5744 = vmatpush2.bf16.xpose.msra.mxu0 0
        %5745 = vmatprep.subr.bf16.mxu0 0
        %5746 = vmatpush2.bf16.xpose.msra.mxu0 0
        %5747 = vmatprep.subr.bf16.mxu0 0
        %5748 = vmatpush2.bf16.xpose.msra.mxu0 0
        %5749 = vmatprep.mubr.bf16.mxu0 0
        %5750 = vmatmul.mubr.bf16.gmra.mxu0 %v5670
        %v5751 = vpop.f32.mrf.mxu0
        %v5752 = vadd.f32 0.0, %v5751
        %v5753 = vpop.f32.mrf.mxu0
        %v5754 = vpop.f32.mrf.mxu0
        %v5755 = vadd.f32 0.0, %v5754
        %v5756 = vpop.f32.mrf.mxu0
        %5757 = vmatprep.mubr.bf16.mxu0 0
        %5758 = vmatmul.mubr.bf16.gmra.mxu0 %v5673
        %v5759 = vpop.f32.mrf.mxu0
        %v5760 = vadd.f32 0.0, %v5759
        %v5761 = vpop.f32.mrf.mxu0
        %v5762 = vpop.f32.mrf.mxu0
        %v5763 = vadd.f32 0.0, %v5762
        %v5764 = vpop.f32.mrf.mxu0
        %5765 = vmatprep.mubr.bf16.mxu0 0
        %5766 = vmatmul.mubr.bf16.gmra.mxu0 %v5676
        %v5767 = vpop.f32.mrf.mxu0
        %v5768 = vadd.f32 0.0, %v5767
        %v5769 = vpop.f32.mrf.mxu0
        %v5770 = vpop.f32.mrf.mxu0
        %v5771 = vadd.f32 0.0, %v5770
        %v5772 = vpop.f32.mrf.mxu0
        %5773 = vmatprep.mubr.bf16.mxu0 0
        %5774 = vmatmul.mubr.bf16.gmra.mxu0 %v5679
        %v5775 = vpop.f32.mrf.mxu0
        %v5776 = vadd.f32 0.0, %v5775
        %v5777 = vpop.f32.mrf.mxu0
        %v5778 = vpop.f32.mrf.mxu0
        %v5779 = vadd.f32 0.0, %v5778
        %v5780 = vpop.f32.mrf.mxu0
        %5781 = vmatprep.mubr.bf16.mxu0 0
        %5782 = vmatmul.mubr.bf16.gmra.mxu0 %v5682
        %v5783 = vpop.f32.mrf.mxu0
        %v5784 = vadd.f32 0.0, %v5783
        %v5785 = vpop.f32.mrf.mxu0
        %v5786 = vpop.f32.mrf.mxu0
        %v5787 = vadd.f32 0.0, %v5786
        %v5788 = vpop.f32.mrf.mxu0
        %5789 = vmatprep.mubr.bf16.mxu0 0
        %5790 = vmatmul.mubr.bf16.gmra.mxu0 %v5685
        %v5791 = vpop.f32.mrf.mxu0
        %v5792 = vadd.f32 0.0, %v5791
        %v5793 = vpop.f32.mrf.mxu0
        %v5794 = vpop.f32.mrf.mxu0
        %v5795 = vadd.f32 0.0, %v5794
        %v5796 = vpop.f32.mrf.mxu0
        %5797 = vmatprep.mubr.bf16.mxu0 0
        %5798 = vmatmul.mubr.bf16.gmra.mxu0 %v5688
        %v5799 = vpop.f32.mrf.mxu0
        %v5800 = vadd.f32 0.0, %v5799
        %v5801 = vpop.f32.mrf.mxu0
        %v5802 = vpop.f32.mrf.mxu0
        %v5803 = vadd.f32 0.0, %v5802
        %v5804 = vpop.f32.mrf.mxu0
        %5805 = vmatprep.mubr.bf16.mxu0 0
        %5806 = vmatmul.mubr.bf16.gmra.mxu0 %v5691
        %v5807 = vpop.f32.mrf.mxu0
        %v5808 = vadd.f32 0.0, %v5807
        %v5809 = vpop.f32.mrf.mxu0
        %v5810 = vpop.f32.mrf.mxu0
        %v5811 = vadd.f32 0.0, %v5810
        %v5812 = vpop.f32.mrf.mxu0
        %5813 = vdwg.mxu0
        %v5814 = vmul.f32 %v5752, 0.17677669
        %v5815 = vmul.f32 %v5755, 0.17677669
        %v5816 = vmul.f32 %v5760, 0.17677669
        %v5817 = vmul.f32 %v5763, 0.17677669
        %v5818 = vmul.f32 %v5768, 0.17677669
        %v5819 = vmul.f32 %v5771, 0.17677669
        %v5820 = vmul.f32 %v5776, 0.17677669
        %v5821 = vmul.f32 %v5779, 0.17677669
        %v5822 = vmul.f32 %v5784, 0.17677669
        %v5823 = vmul.f32 %v5787, 0.17677669
        %v5824 = vmul.f32 %v5792, 0.17677669
        %v5825 = vmul.f32 %v5795, 0.17677669
        %v5826 = vmul.f32 %v5800, 0.17677669
        %v5827 = vmul.f32 %v5803, 0.17677669
        %v5828 = vmul.f32 %v5808, 0.17677669
        %v5829 = vmul.f32 %v5811, 0.17677669
        %s5830 = scalar_lea.vmem [#allocation3], 384
        %v5831 = vld [vmem:[%s5830] sm:$0xff]
        %v5832 = vld [vmem:[%s5830 + $0x8] sm:$0xff]
        %v5833 = vld [vmem:[%s5830 + $0x10] sm:$0xff]
        %v5834 = vld [vmem:[%s5830 + $0x18] sm:$0xff]
        %v5835 = vld [vmem:[%s5830 + $0x20] sm:$0xff]
        %v5836 = vld [vmem:[%s5830 + $0x28] sm:$0xff]
        %v5837 = vld [vmem:[%s5830 + $0x30] sm:$0xff]
        %v5838 = vld [vmem:[%s5830 + $0x38] sm:$0xff]
        %v5839 = vld [vmem:[%s5830 + $0x40] sm:$0xff]
        %v5840 = vld [vmem:[%s5830 + $0x48] sm:$0xff]
        %v5841 = vld [vmem:[%s5830 + $0x50] sm:$0xff]
        %v5842 = vld [vmem:[%s5830 + $0x58] sm:$0xff]
        %v5843 = vld [vmem:[%s5830 + $0x60] sm:$0xff]
        %v5844 = vld [vmem:[%s5830 + $0x68] sm:$0xff]
        %v5845 = vld [vmem:[%s5830 + $0x70] sm:$0xff]
        %v5846 = vld [vmem:[%s5830 + $0x78] sm:$0xff]
        %5847 = vmax.xlane.f32.xlu0 %v5814
        %v5848 = vpop.xlane.xlu0 %5847
        %5849 = vmax.xlane.f32.xlu0 %v5815
        %v5850 = vpop.xlane.xlu0 %5849
        %5851 = vmax.xlane.f32.xlu0 %v5816
        %v5852 = vpop.xlane.xlu0 %5851
        %5853 = vmax.xlane.f32.xlu0 %v5817
        %v5854 = vpop.xlane.xlu0 %5853
        %5855 = vmax.xlane.f32.xlu0 %v5818
        %v5856 = vpop.xlane.xlu0 %5855
        %5857 = vmax.xlane.f32.xlu0 %v5819
        %v5858 = vpop.xlane.xlu0 %5857
        %5859 = vmax.xlane.f32.xlu0 %v5820
        %v5860 = vpop.xlane.xlu0 %5859
        %5861 = vmax.xlane.f32.xlu0 %v5821
        %v5862 = vpop.xlane.xlu0 %5861
        %5863 = vmax.xlane.f32.xlu0 %v5822
        %v5864 = vpop.xlane.xlu0 %5863
        %5865 = vmax.xlane.f32.xlu0 %v5823
        %v5866 = vpop.xlane.xlu0 %5865
        %5867 = vmax.xlane.f32.xlu0 %v5824
        %v5868 = vpop.xlane.xlu0 %5867
        %5869 = vmax.xlane.f32.xlu0 %v5825
        %v5870 = vpop.xlane.xlu0 %5869
        %5871 = vmax.xlane.f32.xlu0 %v5826
        %v5872 = vpop.xlane.xlu0 %5871
        %5873 = vmax.xlane.f32.xlu0 %v5827
        %v5874 = vpop.xlane.xlu0 %5873
        %5875 = vmax.xlane.f32.xlu0 %v5828
        %v5876 = vpop.xlane.xlu0 %5875
        %5877 = vmax.xlane.f32.xlu0 %v5829
        %v5878 = vpop.xlane.xlu0 %5877
        %v5879 = vmax.f32 %v5831, %v5848
        %v5880 = vmax.f32 %v5832, %v5850
        %v5881 = vmax.f32 %v5833, %v5852
        %v5882 = vmax.f32 %v5834, %v5854
        %v5883 = vmax.f32 %v5835, %v5856
        %v5884 = vmax.f32 %v5836, %v5858
        %v5885 = vmax.f32 %v5837, %v5860
        %v5886 = vmax.f32 %v5838, %v5862
        %v5887 = vmax.f32 %v5839, %v5864
        %v5888 = vmax.f32 %v5840, %v5866
        %v5889 = vmax.f32 %v5841, %v5868
        %v5890 = vmax.f32 %v5842, %v5870
        %v5891 = vmax.f32 %v5843, %v5872
        %v5892 = vmax.f32 %v5844, %v5874
        %v5893 = vmax.f32 %v5845, %v5876
        %v5894 = vmax.f32 %v5846, %v5878
        %v5895 = vsub.f32 %v5831, %v5879
        %v5896 = vsub.f32 %v5832, %v5880
        %v5897 = vsub.f32 %v5833, %v5881
        %v5898 = vsub.f32 %v5834, %v5882
        %v5899 = vsub.f32 %v5835, %v5883
        %v5900 = vsub.f32 %v5836, %v5884
        %v5901 = vsub.f32 %v5837, %v5885
        %v5902 = vsub.f32 %v5838, %v5886
        %v5903 = vsub.f32 %v5839, %v5887
        %v5904 = vsub.f32 %v5840, %v5888
        %v5905 = vsub.f32 %v5841, %v5889
        %v5906 = vsub.f32 %v5842, %v5890
        %v5907 = vsub.f32 %v5843, %v5891
        %v5908 = vsub.f32 %v5844, %v5892
        %v5909 = vsub.f32 %v5845, %v5893
        %v5910 = vsub.f32 %v5846, %v5894
        %v5911 = vmul.f32 %v5895, 1.442695
        %v5912 = vpow.pop %v5911
        %v5913 = vmul.f32 %v5896, 1.442695
        %v5914 = vpow.pop %v5913
        %v5915 = vmul.f32 %v5897, 1.442695
        %v5916 = vpow.pop %v5915
        %v5917 = vmul.f32 %v5898, 1.442695
        %v5918 = vpow.pop %v5917
        %v5919 = vmul.f32 %v5899, 1.442695
        %v5920 = vpow.pop %v5919
        %v5921 = vmul.f32 %v5900, 1.442695
        %v5922 = vpow.pop %v5921
        %v5923 = vmul.f32 %v5901, 1.442695
        %v5924 = vpow.pop %v5923
        %v5925 = vmul.f32 %v5902, 1.442695
        %v5926 = vpow.pop %v5925
        %v5927 = vmul.f32 %v5903, 1.442695
        %v5928 = vpow.pop %v5927
        %v5929 = vmul.f32 %v5904, 1.442695
        %v5930 = vpow.pop %v5929
        %v5931 = vmul.f32 %v5905, 1.442695
        %v5932 = vpow.pop %v5931
        %v5933 = vmul.f32 %v5906, 1.442695
        %v5934 = vpow.pop %v5933
        %v5935 = vmul.f32 %v5907, 1.442695
        %v5936 = vpow.pop %v5935
        %v5937 = vmul.f32 %v5908, 1.442695
        %v5938 = vpow.pop %v5937
        %v5939 = vmul.f32 %v5909, 1.442695
        %v5940 = vpow.pop %v5939
        %v5941 = vmul.f32 %v5910, 1.442695
        %v5942 = vpow.pop %v5941
        %5944 = vset.pattern.permute.xlu0 0
        %5945 = vperm.xlu0 %5944, %v5879
        %v5946 = vpop.permute.xlu0 %5945
        %5949 = vset.pattern.permute.xlu0 0
        %5950 = vperm.xlu0 %5949, %v5880
        %v5951 = vpop.permute.xlu0 %5950
        %5954 = vset.pattern.permute.xlu0 0
        %5955 = vperm.xlu0 %5954, %v5881
        %v5956 = vpop.permute.xlu0 %5955
        %5959 = vset.pattern.permute.xlu0 0
        %5960 = vperm.xlu0 %5959, %v5882
        %v5961 = vpop.permute.xlu0 %5960
        %5964 = vset.pattern.permute.xlu0 0
        %5965 = vperm.xlu0 %5964, %v5883
        %v5966 = vpop.permute.xlu0 %5965
        %5969 = vset.pattern.permute.xlu0 0
        %5970 = vperm.xlu0 %5969, %v5884
        %v5971 = vpop.permute.xlu0 %5970
        %5974 = vset.pattern.permute.xlu0 0
        %5975 = vperm.xlu0 %5974, %v5885
        %v5976 = vpop.permute.xlu0 %5975
        %5979 = vset.pattern.permute.xlu0 0
        %5980 = vperm.xlu0 %5979, %v5886
        %v5981 = vpop.permute.xlu0 %5980
        %5984 = vset.pattern.permute.xlu0 0
        %5985 = vperm.xlu0 %5984, %v5887
        %v5986 = vpop.permute.xlu0 %5985
        %5989 = vset.pattern.permute.xlu0 0
        %5990 = vperm.xlu0 %5989, %v5888
        %v5991 = vpop.permute.xlu0 %5990
        %5994 = vset.pattern.permute.xlu0 0
        %5995 = vperm.xlu0 %5994, %v5889
        %v5996 = vpop.permute.xlu0 %5995
        %5999 = vset.pattern.permute.xlu0 0
        %6000 = vperm.xlu0 %5999, %v5890
        %v6001 = vpop.permute.xlu0 %6000
        %6004 = vset.pattern.permute.xlu0 0
        %6005 = vperm.xlu0 %6004, %v5891
        %v6006 = vpop.permute.xlu0 %6005
        %6009 = vset.pattern.permute.xlu0 0
        %6010 = vperm.xlu0 %6009, %v5892
        %v6011 = vpop.permute.xlu0 %6010
        %6014 = vset.pattern.permute.xlu0 0
        %6015 = vperm.xlu0 %6014, %v5893
        %v6016 = vpop.permute.xlu0 %6015
        %6019 = vset.pattern.permute.xlu0 0
        %6020 = vperm.xlu0 %6019, %v5894
        %v6021 = vpop.permute.xlu0 %6020
        %v6023 = vsub.f32 %v5814, %v5946
        %v6024 = vsub.f32 %v5815, %v5951
        %v6025 = vsub.f32 %v5816, %v5956
        %v6026 = vsub.f32 %v5817, %v5961
        %v6027 = vsub.f32 %v5818, %v5966
        %v6028 = vsub.f32 %v5819, %v5971
        %v6029 = vsub.f32 %v5820, %v5976
        %v6030 = vsub.f32 %v5821, %v5981
        %v6031 = vsub.f32 %v5822, %v5986
        %v6032 = vsub.f32 %v5823, %v5991
        %v6033 = vsub.f32 %v5824, %v5996
        %v6034 = vsub.f32 %v5825, %v6001
        %v6035 = vsub.f32 %v5826, %v6006
        %v6036 = vsub.f32 %v5827, %v6011
        %v6037 = vsub.f32 %v5828, %v6016
        %v6038 = vsub.f32 %v5829, %v6021
        %v6039 = vmul.f32 %v6023, 1.442695
        %v6040 = vpow.pop %v6039
        %v6041 = vmul.f32 %v6024, 1.442695
        %v6042 = vpow.pop %v6041
        %v6043 = vmul.f32 %v6025, 1.442695
        %v6044 = vpow.pop %v6043
        %v6045 = vmul.f32 %v6026, 1.442695
        %v6046 = vpow.pop %v6045
        %v6047 = vmul.f32 %v6027, 1.442695
        %v6048 = vpow.pop %v6047
        %v6049 = vmul.f32 %v6028, 1.442695
        %v6050 = vpow.pop %v6049
        %v6051 = vmul.f32 %v6029, 1.442695
        %v6052 = vpow.pop %v6051
        %v6053 = vmul.f32 %v6030, 1.442695
        %v6054 = vpow.pop %v6053
        %v6055 = vmul.f32 %v6031, 1.442695
        %v6056 = vpow.pop %v6055
        %v6057 = vmul.f32 %v6032, 1.442695
        %v6058 = vpow.pop %v6057
        %v6059 = vmul.f32 %v6033, 1.442695
        %v6060 = vpow.pop %v6059
        %v6061 = vmul.f32 %v6034, 1.442695
        %v6062 = vpow.pop %v6061
        %v6063 = vmul.f32 %v6035, 1.442695
        %v6064 = vpow.pop %v6063
        %v6065 = vmul.f32 %v6036, 1.442695
        %v6066 = vpow.pop %v6065
        %v6067 = vmul.f32 %v6037, 1.442695
        %v6068 = vpow.pop %v6067
        %v6069 = vmul.f32 %v6038, 1.442695
        %v6070 = vpow.pop %v6069
        %s6071 = scalar_lea.vmem [#allocation4], 384
        %v6072 = vld [vmem:[%s6071] sm:$0xff]
        %v6073 = vld [vmem:[%s6071 + $0x8] sm:$0xff]
        %v6074 = vld [vmem:[%s6071 + $0x10] sm:$0xff]
        %v6075 = vld [vmem:[%s6071 + $0x18] sm:$0xff]
        %v6076 = vld [vmem:[%s6071 + $0x20] sm:$0xff]
        %v6077 = vld [vmem:[%s6071 + $0x28] sm:$0xff]
        %v6078 = vld [vmem:[%s6071 + $0x30] sm:$0xff]
        %v6079 = vld [vmem:[%s6071 + $0x38] sm:$0xff]
        %v6080 = vld [vmem:[%s6071 + $0x40] sm:$0xff]
        %v6081 = vld [vmem:[%s6071 + $0x48] sm:$0xff]
        %v6082 = vld [vmem:[%s6071 + $0x50] sm:$0xff]
        %v6083 = vld [vmem:[%s6071 + $0x58] sm:$0xff]
        %v6084 = vld [vmem:[%s6071 + $0x60] sm:$0xff]
        %v6085 = vld [vmem:[%s6071 + $0x68] sm:$0xff]
        %v6086 = vld [vmem:[%s6071 + $0x70] sm:$0xff]
        %v6087 = vld [vmem:[%s6071 + $0x78] sm:$0xff]
        %v6088 = vmul.f32 %v5912, %v6072
        %v6089 = vmul.f32 %v5914, %v6073
        %v6090 = vmul.f32 %v5916, %v6074
        %v6091 = vmul.f32 %v5918, %v6075
        %v6092 = vmul.f32 %v5920, %v6076
        %v6093 = vmul.f32 %v5922, %v6077
        %v6094 = vmul.f32 %v5924, %v6078
        %v6095 = vmul.f32 %v5926, %v6079
        %v6096 = vmul.f32 %v5928, %v6080
        %v6097 = vmul.f32 %v5930, %v6081
        %v6098 = vmul.f32 %v5932, %v6082
        %v6099 = vmul.f32 %v5934, %v6083
        %v6100 = vmul.f32 %v5936, %v6084
        %v6101 = vmul.f32 %v5938, %v6085
        %v6102 = vmul.f32 %v5940, %v6086
        %v6103 = vmul.f32 %v5942, %v6087
        %6104 = vadd.xlane.f32.xlu0 %v6040
        %v6105 = vpop.xlane.xlu0 %6104
        %6106 = vadd.xlane.f32.xlu0 %v6042
        %v6107 = vpop.xlane.xlu0 %6106
        %6108 = vadd.xlane.f32.xlu0 %v6044
        %v6109 = vpop.xlane.xlu0 %6108
        %6110 = vadd.xlane.f32.xlu0 %v6046
        %v6111 = vpop.xlane.xlu0 %6110
        %6112 = vadd.xlane.f32.xlu0 %v6048
        %v6113 = vpop.xlane.xlu0 %6112
        %6114 = vadd.xlane.f32.xlu0 %v6050
        %v6115 = vpop.xlane.xlu0 %6114
        %6116 = vadd.xlane.f32.xlu0 %v6052
        %v6117 = vpop.xlane.xlu0 %6116
        %6118 = vadd.xlane.f32.xlu0 %v6054
        %v6119 = vpop.xlane.xlu0 %6118
        %6120 = vadd.xlane.f32.xlu0 %v6056
        %v6121 = vpop.xlane.xlu0 %6120
        %6122 = vadd.xlane.f32.xlu0 %v6058
        %v6123 = vpop.xlane.xlu0 %6122
        %6124 = vadd.xlane.f32.xlu0 %v6060
        %v6125 = vpop.xlane.xlu0 %6124
        %6126 = vadd.xlane.f32.xlu0 %v6062
        %v6127 = vpop.xlane.xlu0 %6126
        %6128 = vadd.xlane.f32.xlu0 %v6064
        %v6129 = vpop.xlane.xlu0 %6128
        %6130 = vadd.xlane.f32.xlu0 %v6066
        %v6131 = vpop.xlane.xlu0 %6130
        %6132 = vadd.xlane.f32.xlu0 %v6068
        %v6133 = vpop.xlane.xlu0 %6132
        %6134 = vadd.xlane.f32.xlu0 %v6070
        %v6135 = vpop.xlane.xlu0 %6134
        %v6136 = vadd.f32 %v6088, %v6105
        %v6137 = vadd.f32 %v6089, %v6107
        %v6138 = vadd.f32 %v6090, %v6109
        %v6139 = vadd.f32 %v6091, %v6111
        %v6140 = vadd.f32 %v6092, %v6113
        %v6141 = vadd.f32 %v6093, %v6115
        %v6142 = vadd.f32 %v6094, %v6117
        %v6143 = vadd.f32 %v6095, %v6119
        %v6144 = vadd.f32 %v6096, %v6121
        %v6145 = vadd.f32 %v6097, %v6123
        %v6146 = vadd.f32 %v6098, %v6125
        %v6147 = vadd.f32 %v6099, %v6127
        %v6148 = vadd.f32 %v6100, %v6129
        %v6149 = vadd.f32 %v6101, %v6131
        %v6150 = vadd.f32 %v6102, %v6133
        %v6151 = vadd.f32 %v6103, %v6135
        %6152 = vst.msk [vmem:[%s6071] sm:$0xff] %vm2666, %v6136
        %6153 = vst.msk [vmem:[%s6071 + $0x8] sm:$0xff] %vm2666, %v6137
        %6154 = vst.msk [vmem:[%s6071 + $0x10] sm:$0xff] %vm2666, %v6138
        %6155 = vst.msk [vmem:[%s6071 + $0x18] sm:$0xff] %vm2666, %v6139
        %6156 = vst.msk [vmem:[%s6071 + $0x20] sm:$0xff] %vm2666, %v6140
        %6157 = vst.msk [vmem:[%s6071 + $0x28] sm:$0xff] %vm2666, %v6141
        %6158 = vst.msk [vmem:[%s6071 + $0x30] sm:$0xff] %vm2666, %v6142
        %6159 = vst.msk [vmem:[%s6071 + $0x38] sm:$0xff] %vm2666, %v6143
        %6160 = vst.msk [vmem:[%s6071 + $0x40] sm:$0xff] %vm2666, %v6144
        %6161 = vst.msk [vmem:[%s6071 + $0x48] sm:$0xff] %vm2666, %v6145
        %6162 = vst.msk [vmem:[%s6071 + $0x50] sm:$0xff] %vm2666, %v6146
        %6163 = vst.msk [vmem:[%s6071 + $0x58] sm:$0xff] %vm2666, %v6147
        %6164 = vst.msk [vmem:[%s6071 + $0x60] sm:$0xff] %vm2666, %v6148
        %6165 = vst.msk [vmem:[%s6071 + $0x68] sm:$0xff] %vm2666, %v6149
        %6166 = vst.msk [vmem:[%s6071 + $0x70] sm:$0xff] %vm2666, %v6150
        %6167 = vst.msk [vmem:[%s6071 + $0x78] sm:$0xff] %vm2666, %v6151
        %s6168 = scalar_lea.vmem [#allocation5], 384
        %v6169 = vld [vmem:[%s6168] sm:$0xff]
        %v6170 = vld [vmem:[%s6168 + $0x8] sm:$0xff]
        %v6171 = vld [vmem:[%s6168 + $0x10] sm:$0xff]
        %v6172 = vld [vmem:[%s6168 + $0x18] sm:$0xff]
        %v6173 = vld [vmem:[%s6168 + $0x20] sm:$0xff]
        %v6174 = vld [vmem:[%s6168 + $0x28] sm:$0xff]
        %v6175 = vld [vmem:[%s6168 + $0x30] sm:$0xff]
        %v6176 = vld [vmem:[%s6168 + $0x38] sm:$0xff]
        %v6177 = vld [vmem:[%s6168 + $0x40] sm:$0xff]
        %v6178 = vld [vmem:[%s6168 + $0x48] sm:$0xff]
        %v6179 = vld [vmem:[%s6168 + $0x50] sm:$0xff]
        %v6180 = vld [vmem:[%s6168 + $0x58] sm:$0xff]
        %v6181 = vld [vmem:[%s6168 + $0x60] sm:$0xff]
        %v6182 = vld [vmem:[%s6168 + $0x68] sm:$0xff]
        %v6183 = vld [vmem:[%s6168 + $0x70] sm:$0xff]
        %v6184 = vld [vmem:[%s6168 + $0x78] sm:$0xff]
        %6186 = vset.pattern.permute.xlu0 0
        %6187 = vperm.xlu0 %6186, %v5912
        %v6188 = vpop.permute.xlu0 %6187
        %6191 = vset.pattern.permute.xlu0 0
        %6192 = vperm.xlu0 %6191, %v5914
        %v6193 = vpop.permute.xlu0 %6192
        %6196 = vset.pattern.permute.xlu0 0
        %6197 = vperm.xlu0 %6196, %v5916
        %v6198 = vpop.permute.xlu0 %6197
        %6201 = vset.pattern.permute.xlu0 0
        %6202 = vperm.xlu0 %6201, %v5918
        %v6203 = vpop.permute.xlu0 %6202
        %6206 = vset.pattern.permute.xlu0 0
        %6207 = vperm.xlu0 %6206, %v5920
        %v6208 = vpop.permute.xlu0 %6207
        %6211 = vset.pattern.permute.xlu0 0
        %6212 = vperm.xlu0 %6211, %v5922
        %v6213 = vpop.permute.xlu0 %6212
        %6216 = vset.pattern.permute.xlu0 0
        %6217 = vperm.xlu0 %6216, %v5924
        %v6218 = vpop.permute.xlu0 %6217
        %6221 = vset.pattern.permute.xlu0 0
        %6222 = vperm.xlu0 %6221, %v5926
        %v6223 = vpop.permute.xlu0 %6222
        %6226 = vset.pattern.permute.xlu0 0
        %6227 = vperm.xlu0 %6226, %v5928
        %v6228 = vpop.permute.xlu0 %6227
        %6231 = vset.pattern.permute.xlu0 0
        %6232 = vperm.xlu0 %6231, %v5930
        %v6233 = vpop.permute.xlu0 %6232
        %6236 = vset.pattern.permute.xlu0 0
        %6237 = vperm.xlu0 %6236, %v5932
        %v6238 = vpop.permute.xlu0 %6237
        %6241 = vset.pattern.permute.xlu0 0
        %6242 = vperm.xlu0 %6241, %v5934
        %v6243 = vpop.permute.xlu0 %6242
        %6246 = vset.pattern.permute.xlu0 0
        %6247 = vperm.xlu0 %6246, %v5936
        %v6248 = vpop.permute.xlu0 %6247
        %6251 = vset.pattern.permute.xlu0 0
        %6252 = vperm.xlu0 %6251, %v5938
        %v6253 = vpop.permute.xlu0 %6252
        %6256 = vset.pattern.permute.xlu0 0
        %6257 = vperm.xlu0 %6256, %v5940
        %v6258 = vpop.permute.xlu0 %6257
        %6261 = vset.pattern.permute.xlu0 0
        %6262 = vperm.xlu0 %6261, %v5942
        %v6263 = vpop.permute.xlu0 %6262
        %v6265 = vmul.f32 %v6188, %v6169
        %v6266 = vmul.f32 %v6193, %v6170
        %v6267 = vmul.f32 %v6198, %v6171
        %v6268 = vmul.f32 %v6203, %v6172
        %v6269 = vmul.f32 %v6208, %v6173
        %v6270 = vmul.f32 %v6213, %v6174
        %v6271 = vmul.f32 %v6218, %v6175
        %v6272 = vmul.f32 %v6223, %v6176
        %v6273 = vmul.f32 %v6228, %v6177
        %v6274 = vmul.f32 %v6233, %v6178
        %v6275 = vmul.f32 %v6238, %v6179
        %v6276 = vmul.f32 %v6243, %v6180
        %v6277 = vmul.f32 %v6248, %v6181
        %v6278 = vmul.f32 %v6253, %v6182
        %v6279 = vmul.f32 %v6258, %v6183
        %v6280 = vmul.f32 %v6263, %v6184
        %v6281 = vpack.c.bf16 %v6042, %v6040
        %v6282 = vpack.c.bf16 %v6046, %v6044
        %v6283 = vpack.c.bf16 %v6050, %v6048
        %v6284 = vpack.c.bf16 %v6054, %v6052
        %v6285 = vpack.c.bf16 %v6058, %v6056
        %v6286 = vpack.c.bf16 %v6062, %v6060
        %v6287 = vpack.c.bf16 %v6066, %v6064
        %v6288 = vpack.c.bf16 %v6070, %v6068
        %6289 = vmatprep.subr.bf16.mxu0 0
        %6290 = vmatpush1.bf16.msra.mxu0 %v5611
        %6291 = vmatprep.subr.bf16.mxu0 0
        %6292 = vmatpush1.bf16.msra.mxu0 %v5610
        %6293 = vmatprep.subr.bf16.mxu0 0
        %6294 = vmatpush1.bf16.msra.mxu0 %v5609
        %6295 = vmatprep.subr.bf16.mxu0 0
        %6296 = vmatpush1.bf16.msra.mxu0 %v5608
        %6297 = vmatprep.subr.bf16.mxu0 0
        %6298 = vmatpush1.bf16.msra.mxu0 %v5607
        %6299 = vmatprep.subr.bf16.mxu0 0
        %6300 = vmatpush1.bf16.msra.mxu0 %v5606
        %6301 = vmatprep.subr.bf16.mxu0 0
        %6302 = vmatpush1.bf16.msra.mxu0 %v5605
        %6303 = vmatprep.subr.bf16.mxu0 0
        %6304 = vmatpush1.bf16.msra.mxu0 %v5604
        %6305 = vmatprep.subr.bf16.mxu0 0
        %6306 = vmatpush2.bf16.msra.mxu0 0
        %6307 = vmatprep.subr.bf16.mxu0 0
        %6308 = vmatpush2.bf16.msra.mxu0 0
        %6309 = vmatprep.subr.bf16.mxu0 0
        %6310 = vmatpush2.bf16.msra.mxu0 0
        %6311 = vmatprep.subr.bf16.mxu0 0
        %6312 = vmatpush2.bf16.msra.mxu0 0
        %6313 = vmatprep.subr.bf16.mxu0 0
        %6314 = vmatpush2.bf16.msra.mxu0 0
        %6315 = vmatprep.subr.bf16.mxu0 0
        %6316 = vmatpush2.bf16.msra.mxu0 0
        %6317 = vmatprep.subr.bf16.mxu0 0
        %6318 = vmatpush2.bf16.msra.mxu0 0
        %6319 = vmatprep.subr.bf16.mxu0 0
        %6320 = vmatpush2.bf16.msra.mxu0 0
        %6321 = vmatprep.mubr.bf16.mxu0 0
        %6322 = vmatmul.mubr.bf16.gmra.mxu0 %v6281
        %v6323 = vpop.f32.mrf.mxu0
        %v6324 = vadd.f32 0.0, %v6323
        %v6325 = vpop.f32.mrf.mxu0
        %v6326 = vpop.f32.mrf.mxu0
        %v6327 = vadd.f32 0.0, %v6326
        %v6328 = vpop.f32.mrf.mxu0
        %6329 = vmatprep.mubr.bf16.mxu0 0
        %6330 = vmatmul.mubr.bf16.gmra.mxu0 %v6282
        %v6331 = vpop.f32.mrf.mxu0
        %v6332 = vadd.f32 0.0, %v6331
        %v6333 = vpop.f32.mrf.mxu0
        %v6334 = vpop.f32.mrf.mxu0
        %v6335 = vadd.f32 0.0, %v6334
        %v6336 = vpop.f32.mrf.mxu0
        %6337 = vmatprep.mubr.bf16.mxu0 0
        %6338 = vmatmul.mubr.bf16.gmra.mxu0 %v6283
        %v6339 = vpop.f32.mrf.mxu0
        %v6340 = vadd.f32 0.0, %v6339
        %v6341 = vpop.f32.mrf.mxu0
        %v6342 = vpop.f32.mrf.mxu0
        %v6343 = vadd.f32 0.0, %v6342
        %v6344 = vpop.f32.mrf.mxu0
        %6345 = vmatprep.mubr.bf16.mxu0 0
        %6346 = vmatmul.mubr.bf16.gmra.mxu0 %v6284
        %v6347 = vpop.f32.mrf.mxu0
        %v6348 = vadd.f32 0.0, %v6347
        %v6349 = vpop.f32.mrf.mxu0
        %v6350 = vpop.f32.mrf.mxu0
        %v6351 = vadd.f32 0.0, %v6350
        %v6352 = vpop.f32.mrf.mxu0
        %6353 = vmatprep.mubr.bf16.mxu0 0
        %6354 = vmatmul.mubr.bf16.gmra.mxu0 %v6285
        %v6355 = vpop.f32.mrf.mxu0
        %v6356 = vadd.f32 0.0, %v6355
        %v6357 = vpop.f32.mrf.mxu0
        %v6358 = vpop.f32.mrf.mxu0
        %v6359 = vadd.f32 0.0, %v6358
        %v6360 = vpop.f32.mrf.mxu0
        %6361 = vmatprep.mubr.bf16.mxu0 0
        %6362 = vmatmul.mubr.bf16.gmra.mxu0 %v6286
        %v6363 = vpop.f32.mrf.mxu0
        %v6364 = vadd.f32 0.0, %v6363
        %v6365 = vpop.f32.mrf.mxu0
        %v6366 = vpop.f32.mrf.mxu0
        %v6367 = vadd.f32 0.0, %v6366
        %v6368 = vpop.f32.mrf.mxu0
        %6369 = vmatprep.mubr.bf16.mxu0 0
        %6370 = vmatmul.mubr.bf16.gmra.mxu0 %v6287
        %v6371 = vpop.f32.mrf.mxu0
        %v6372 = vadd.f32 0.0, %v6371
        %v6373 = vpop.f32.mrf.mxu0
        %v6374 = vpop.f32.mrf.mxu0
        %v6375 = vadd.f32 0.0, %v6374
        %v6376 = vpop.f32.mrf.mxu0
        %6377 = vmatprep.mubr.bf16.mxu0 0
        %6378 = vmatmul.mubr.bf16.gmra.mxu0 %v6288
        %v6379 = vpop.f32.mrf.mxu0
        %v6380 = vadd.f32 0.0, %v6379
        %v6381 = vpop.f32.mrf.mxu0
        %v6382 = vpop.f32.mrf.mxu0
        %v6383 = vadd.f32 0.0, %v6382
        %v6384 = vpop.f32.mrf.mxu0
        %6385 = vdwg.mxu0
        %v6386 = vadd.f32 %v6265, %v6324
        %v6387 = vadd.f32 %v6266, %v6327
        %v6388 = vadd.f32 %v6267, %v6332
        %v6389 = vadd.f32 %v6268, %v6335
        %v6390 = vadd.f32 %v6269, %v6340
        %v6391 = vadd.f32 %v6270, %v6343
        %v6392 = vadd.f32 %v6271, %v6348
        %v6393 = vadd.f32 %v6272, %v6351
        %v6394 = vadd.f32 %v6273, %v6356
        %v6395 = vadd.f32 %v6274, %v6359
        %v6396 = vadd.f32 %v6275, %v6364
        %v6397 = vadd.f32 %v6276, %v6367
        %v6398 = vadd.f32 %v6277, %v6372
        %v6399 = vadd.f32 %v6278, %v6375
        %v6400 = vadd.f32 %v6279, %v6380
        %v6401 = vadd.f32 %v6280, %v6383
        %6402 = vst.msk [vmem:[%s6168] sm:$0xff] %vm2184, %v6386
        %6403 = vst.msk [vmem:[%s6168 + $0x8] sm:$0xff] %vm2184, %v6387
        %6404 = vst.msk [vmem:[%s6168 + $0x10] sm:$0xff] %vm2184, %v6388
        %6405 = vst.msk [vmem:[%s6168 + $0x18] sm:$0xff] %vm2184, %v6389
        %6406 = vst.msk [vmem:[%s6168 + $0x20] sm:$0xff] %vm2184, %v6390
        %6407 = vst.msk [vmem:[%s6168 + $0x28] sm:$0xff] %vm2184, %v6391
        %6408 = vst.msk [vmem:[%s6168 + $0x30] sm:$0xff] %vm2184, %v6392
        %6409 = vst.msk [vmem:[%s6168 + $0x38] sm:$0xff] %vm2184, %v6393
        %6410 = vst.msk [vmem:[%s6168 + $0x40] sm:$0xff] %vm2184, %v6394
        %6411 = vst.msk [vmem:[%s6168 + $0x48] sm:$0xff] %vm2184, %v6395
        %6412 = vst.msk [vmem:[%s6168 + $0x50] sm:$0xff] %vm2184, %v6396
        %6413 = vst.msk [vmem:[%s6168 + $0x58] sm:$0xff] %vm2184, %v6397
        %6414 = vst.msk [vmem:[%s6168 + $0x60] sm:$0xff] %vm2184, %v6398
        %6415 = vst.msk [vmem:[%s6168 + $0x68] sm:$0xff] %vm2184, %v6399
        %6416 = vst.msk [vmem:[%s6168 + $0x70] sm:$0xff] %vm2184, %v6400
        %6417 = vst.msk [vmem:[%s6168 + $0x78] sm:$0xff] %vm2184, %v6401
        %6418 = vst.msk [vmem:[%s5830] sm:$0xff] %vm2666, %v5879
        %6419 = vst.msk [vmem:[%s5830 + $0x8] sm:$0xff] %vm2666, %v5880
        %6420 = vst.msk [vmem:[%s5830 + $0x10] sm:$0xff] %vm2666, %v5881
        %6421 = vst.msk [vmem:[%s5830 + $0x18] sm:$0xff] %vm2666, %v5882
        %6422 = vst.msk [vmem:[%s5830 + $0x20] sm:$0xff] %vm2666, %v5883
        %6423 = vst.msk [vmem:[%s5830 + $0x28] sm:$0xff] %vm2666, %v5884
        %6424 = vst.msk [vmem:[%s5830 + $0x30] sm:$0xff] %vm2666, %v5885
        %6425 = vst.msk [vmem:[%s5830 + $0x38] sm:$0xff] %vm2666, %v5886
        %6426 = vst.msk [vmem:[%s5830 + $0x40] sm:$0xff] %vm2666, %v5887
        %6427 = vst.msk [vmem:[%s5830 + $0x48] sm:$0xff] %vm2666, %v5888
        %6428 = vst.msk [vmem:[%s5830 + $0x50] sm:$0xff] %vm2666, %v5889
        %6429 = vst.msk [vmem:[%s5830 + $0x58] sm:$0xff] %vm2666, %v5890
        %6430 = vst.msk [vmem:[%s5830 + $0x60] sm:$0xff] %vm2666, %v5891
        %6431 = vst.msk [vmem:[%s5830 + $0x68] sm:$0xff] %vm2666, %v5892
        %6432 = vst.msk [vmem:[%s5830 + $0x70] sm:$0xff] %vm2666, %v5893
        %6433 = vst.msk [vmem:[%s5830 + $0x78] sm:$0xff] %vm2666, %v5894
        // Predicated region
        $region65: #{tpu_custom_call.1} parent=59 // pred_check
          %p6434 = pneg %p469
        $region66: #{tpu_custom_call.1} parent=59 // pred_check_branch
          %6436 = sbr.rel (%p6434) target = $region68
        $region67: #{tpu_custom_call.1} parent=59 // pred_region
          %v6437 = vld [vmem:[#allocation4] sm:$0xff]
          %v6438 = vld [vmem:[#allocation4 + $0x8] sm:$0xff]
          %v6439 = vld [vmem:[#allocation4 + $0x10] sm:$0xff]
          %v6440 = vld [vmem:[#allocation4 + $0x18] sm:$0xff]
          %v6441 = vld [vmem:[#allocation4 + $0x20] sm:$0xff]
          %v6442 = vld [vmem:[#allocation4 + $0x28] sm:$0xff]
          %v6443 = vld [vmem:[#allocation4 + $0x30] sm:$0xff]
          %v6444 = vld [vmem:[#allocation4 + $0x38] sm:$0xff]
          %v6445 = vld [vmem:[#allocation4 + $0x40] sm:$0xff]
          %v6446 = vld [vmem:[#allocation4 + $0x48] sm:$0xff]
          %v6447 = vld [vmem:[#allocation4 + $0x50] sm:$0xff]
          %v6448 = vld [vmem:[#allocation4 + $0x58] sm:$0xff]
          %v6449 = vld [vmem:[#allocation4 + $0x60] sm:$0xff]
          %v6450 = vld [vmem:[#allocation4 + $0x68] sm:$0xff]
          %v6451 = vld [vmem:[#allocation4 + $0x70] sm:$0xff]
          %v6452 = vld [vmem:[#allocation4 + $0x78] sm:$0xff]
          %v6453 = vrcp.pop %v6437
          %v6454 = vrcp.pop %v6438
          %v6455 = vrcp.pop %v6439
          %v6456 = vrcp.pop %v6440
          %v6457 = vrcp.pop %v6441
          %v6458 = vrcp.pop %v6442
          %v6459 = vrcp.pop %v6443
          %v6460 = vrcp.pop %v6444
          %v6461 = vrcp.pop %v6445
          %v6462 = vrcp.pop %v6446
          %v6463 = vrcp.pop %v6447
          %v6464 = vrcp.pop %v6448
          %v6465 = vrcp.pop %v6449
          %v6466 = vrcp.pop %v6450
          %v6467 = vrcp.pop %v6451
          %v6468 = vrcp.pop %v6452
          %v6469 = vld [vmem:[#allocation5] sm:$0xff]
          %v6470 = vld [vmem:[#allocation5 + $0x8] sm:$0xff]
          %v6471 = vld [vmem:[#allocation5 + $0x10] sm:$0xff]
          %v6472 = vld [vmem:[#allocation5 + $0x18] sm:$0xff]
          %v6473 = vld [vmem:[#allocation5 + $0x20] sm:$0xff]
          %v6474 = vld [vmem:[#allocation5 + $0x28] sm:$0xff]
          %v6475 = vld [vmem:[#allocation5 + $0x30] sm:$0xff]
          %v6476 = vld [vmem:[#allocation5 + $0x38] sm:$0xff]
          %v6477 = vld [vmem:[#allocation5 + $0x40] sm:$0xff]
          %v6478 = vld [vmem:[#allocation5 + $0x48] sm:$0xff]
          %v6479 = vld [vmem:[#allocation5 + $0x50] sm:$0xff]
          %v6480 = vld [vmem:[#allocation5 + $0x58] sm:$0xff]
          %v6481 = vld [vmem:[#allocation5 + $0x60] sm:$0xff]
          %v6482 = vld [vmem:[#allocation5 + $0x68] sm:$0xff]
          %v6483 = vld [vmem:[#allocation5 + $0x70] sm:$0xff]
          %v6484 = vld [vmem:[#allocation5 + $0x78] sm:$0xff]
          %6486 = vset.pattern.permute.xlu0 0
          %6487 = vperm.xlu0 %6486, %v6453
          %v6488 = vpop.permute.xlu0 %6487
          %6491 = vset.pattern.permute.xlu0 0
          %6492 = vperm.xlu0 %6491, %v6454
          %v6493 = vpop.permute.xlu0 %6492
          %6496 = vset.pattern.permute.xlu0 0
          %6497 = vperm.xlu0 %6496, %v6455
          %v6498 = vpop.permute.xlu0 %6497
          %6501 = vset.pattern.permute.xlu0 0
          %6502 = vperm.xlu0 %6501, %v6456
          %v6503 = vpop.permute.xlu0 %6502
          %6506 = vset.pattern.permute.xlu0 0
          %6507 = vperm.xlu0 %6506, %v6457
          %v6508 = vpop.permute.xlu0 %6507
          %6511 = vset.pattern.permute.xlu0 0
          %6512 = vperm.xlu0 %6511, %v6458
          %v6513 = vpop.permute.xlu0 %6512
          %6516 = vset.pattern.permute.xlu0 0
          %6517 = vperm.xlu0 %6516, %v6459
          %v6518 = vpop.permute.xlu0 %6517
          %6521 = vset.pattern.permute.xlu0 0
          %6522 = vperm.xlu0 %6521, %v6460
          %v6523 = vpop.permute.xlu0 %6522
          %6526 = vset.pattern.permute.xlu0 0
          %6527 = vperm.xlu0 %6526, %v6461
          %v6528 = vpop.permute.xlu0 %6527
          %6531 = vset.pattern.permute.xlu0 0
          %6532 = vperm.xlu0 %6531, %v6462
          %v6533 = vpop.permute.xlu0 %6532
          %6536 = vset.pattern.permute.xlu0 0
          %6537 = vperm.xlu0 %6536, %v6463
          %v6538 = vpop.permute.xlu0 %6537
          %6541 = vset.pattern.permute.xlu0 0
          %6542 = vperm.xlu0 %6541, %v6464
          %v6543 = vpop.permute.xlu0 %6542
          %6546 = vset.pattern.permute.xlu0 0
          %6547 = vperm.xlu0 %6546, %v6465
          %v6548 = vpop.permute.xlu0 %6547
          %6551 = vset.pattern.permute.xlu0 0
          %6552 = vperm.xlu0 %6551, %v6466
          %v6553 = vpop.permute.xlu0 %6552
          %6556 = vset.pattern.permute.xlu0 0
          %6557 = vperm.xlu0 %6556, %v6467
          %v6558 = vpop.permute.xlu0 %6557
          %6561 = vset.pattern.permute.xlu0 0
          %6562 = vperm.xlu0 %6561, %v6468
          %v6563 = vpop.permute.xlu0 %6562
          %v6565 = vmul.f32 %v6469, %v6488
          %v6566 = vmul.f32 %v6470, %v6493
          %v6567 = vmul.f32 %v6471, %v6498
          %v6568 = vmul.f32 %v6472, %v6503
          %v6569 = vmul.f32 %v6473, %v6508
          %v6570 = vmul.f32 %v6474, %v6513
          %v6571 = vmul.f32 %v6475, %v6518
          %v6572 = vmul.f32 %v6476, %v6523
          %v6573 = vmul.f32 %v6477, %v6528
          %v6574 = vmul.f32 %v6478, %v6533
          %v6575 = vmul.f32 %v6479, %v6538
          %v6576 = vmul.f32 %v6480, %v6543
          %v6577 = vmul.f32 %v6481, %v6548
          %v6578 = vmul.f32 %v6482, %v6553
          %v6579 = vmul.f32 %v6483, %v6558
          %v6580 = vmul.f32 %v6484, %v6563
          %v6581 = vpack.c.bf16 %v6566, %v6565
          %v6582 = vpack.c.bf16 %v6568, %v6567
          %v6583 = vpack.c.bf16 %v6570, %v6569
          %v6584 = vpack.c.bf16 %v6572, %v6571
          %v6585 = vpack.c.bf16 %v6574, %v6573
          %v6586 = vpack.c.bf16 %v6576, %v6575
          %v6587 = vpack.c.bf16 %v6578, %v6577
          %v6588 = vpack.c.bf16 %v6580, %v6579
          %v6589 = vld [vmem:[%s6] sm:$0xf]
          %v6590 = vld [vmem:[%s6 + $0x4] sm:$0xf]
          %v6591 = vld [vmem:[%s6 + $0x8] sm:$0xf]
          %v6592 = vld [vmem:[%s6 + $0xc] sm:$0xf]
          %v6593 = vld [vmem:[%s3747] sm:$0xff]
          %v6594 = vld [vmem:[%s3747 + $0x8] sm:$0xff]
          %v6595 = vld [vmem:[%s3747 + $0x10] sm:$0xff]
          %v6596 = vld [vmem:[%s3747 + $0x18] sm:$0xff]
          %v6597 = vld [vmem:[%s3747 + $0x20] sm:$0xff]
          %v6598 = vld [vmem:[%s3747 + $0x28] sm:$0xff]
          %v6599 = vld [vmem:[%s3747 + $0x30] sm:$0xff]
          %v6600 = vld [vmem:[%s3747 + $0x38] sm:$0xff]
          %v6601 = vld [vmem:[%s3747 + $0x40] sm:$0xff]
          %v6602 = vld [vmem:[%s3747 + $0x48] sm:$0xff]
          %v6603 = vld [vmem:[%s3747 + $0x50] sm:$0xff]
          %v6604 = vld [vmem:[%s3747 + $0x58] sm:$0xff]
          %v6605 = vld [vmem:[%s3747 + $0x60] sm:$0xff]
          %v6606 = vld [vmem:[%s3747 + $0x68] sm:$0xff]
          %v6607 = vld [vmem:[%s3747 + $0x70] sm:$0xff]
          %v6608 = vld [vmem:[%s3747 + $0x78] sm:$0xff]
          %v6609 = vrcp.pop %v6593
          %v6610 = vrcp.pop %v6594
          %v6611 = vrcp.pop %v6595
          %v6612 = vrcp.pop %v6596
          %v6613 = vrcp.pop %v6597
          %v6614 = vrcp.pop %v6598
          %v6615 = vrcp.pop %v6599
          %v6616 = vrcp.pop %v6600
          %v6617 = vrcp.pop %v6601
          %v6618 = vrcp.pop %v6602
          %v6619 = vrcp.pop %v6603
          %v6620 = vrcp.pop %v6604
          %v6621 = vrcp.pop %v6605
          %v6622 = vrcp.pop %v6606
          %v6623 = vrcp.pop %v6607
          %v6624 = vrcp.pop %v6608
          %v6625 = vld [vmem:[%s3844] sm:$0xff]
          %v6626 = vld [vmem:[%s3844 + $0x8] sm:$0xff]
          %v6627 = vld [vmem:[%s3844 + $0x10] sm:$0xff]
          %v6628 = vld [vmem:[%s3844 + $0x18] sm:$0xff]
          %v6629 = vld [vmem:[%s3844 + $0x20] sm:$0xff]
          %v6630 = vld [vmem:[%s3844 + $0x28] sm:$0xff]
          %v6631 = vld [vmem:[%s3844 + $0x30] sm:$0xff]
          %v6632 = vld [vmem:[%s3844 + $0x38] sm:$0xff]
          %v6633 = vld [vmem:[%s3844 + $0x40] sm:$0xff]
          %v6634 = vld [vmem:[%s3844 + $0x48] sm:$0xff]
          %v6635 = vld [vmem:[%s3844 + $0x50] sm:$0xff]
          %v6636 = vld [vmem:[%s3844 + $0x58] sm:$0xff]
          %v6637 = vld [vmem:[%s3844 + $0x60] sm:$0xff]
          %v6638 = vld [vmem:[%s3844 + $0x68] sm:$0xff]
          %v6639 = vld [vmem:[%s3844 + $0x70] sm:$0xff]
          %v6640 = vld [vmem:[%s3844 + $0x78] sm:$0xff]
          %6642 = vset.pattern.permute.xlu0 0
          %6643 = vperm.xlu0 %6642, %v6609
          %v6644 = vpop.permute.xlu0 %6643
          %6647 = vset.pattern.permute.xlu0 0
          %6648 = vperm.xlu0 %6647, %v6610
          %v6649 = vpop.permute.xlu0 %6648
          %6652 = vset.pattern.permute.xlu0 0
          %6653 = vperm.xlu0 %6652, %v6611
          %v6654 = vpop.permute.xlu0 %6653
          %6657 = vset.pattern.permute.xlu0 0
          %6658 = vperm.xlu0 %6657, %v6612
          %v6659 = vpop.permute.xlu0 %6658
          %6662 = vset.pattern.permute.xlu0 0
          %6663 = vperm.xlu0 %6662, %v6613
          %v6664 = vpop.permute.xlu0 %6663
          %6667 = vset.pattern.permute.xlu0 0
          %6668 = vperm.xlu0 %6667, %v6614
          %v6669 = vpop.permute.xlu0 %6668
          %6672 = vset.pattern.permute.xlu0 0
          %6673 = vperm.xlu0 %6672, %v6615
          %v6674 = vpop.permute.xlu0 %6673
          %6677 = vset.pattern.permute.xlu0 0
          %6678 = vperm.xlu0 %6677, %v6616
          %v6679 = vpop.permute.xlu0 %6678
          %6682 = vset.pattern.permute.xlu0 0
          %6683 = vperm.xlu0 %6682, %v6617
          %v6684 = vpop.permute.xlu0 %6683
          %6687 = vset.pattern.permute.xlu0 0
          %6688 = vperm.xlu0 %6687, %v6618
          %v6689 = vpop.permute.xlu0 %6688
          %6692 = vset.pattern.permute.xlu0 0
          %6693 = vperm.xlu0 %6692, %v6619
          %v6694 = vpop.permute.xlu0 %6693
          %6697 = vset.pattern.permute.xlu0 0
          %6698 = vperm.xlu0 %6697, %v6620
          %v6699 = vpop.permute.xlu0 %6698
          %6702 = vset.pattern.permute.xlu0 0
          %6703 = vperm.xlu0 %6702, %v6621
          %v6704 = vpop.permute.xlu0 %6703
          %6707 = vset.pattern.permute.xlu0 0
          %6708 = vperm.xlu0 %6707, %v6622
          %v6709 = vpop.permute.xlu0 %6708
          %6712 = vset.pattern.permute.xlu0 0
          %6713 = vperm.xlu0 %6712, %v6623
          %v6714 = vpop.permute.xlu0 %6713
          %6717 = vset.pattern.permute.xlu0 0
          %6718 = vperm.xlu0 %6717, %v6624
          %v6719 = vpop.permute.xlu0 %6718
          %v6721 = vmul.f32 %v6625, %v6644
          %v6722 = vmul.f32 %v6626, %v6649
          %v6723 = vmul.f32 %v6627, %v6654
          %v6724 = vmul.f32 %v6628, %v6659
          %v6725 = vmul.f32 %v6629, %v6664
          %v6726 = vmul.f32 %v6630, %v6669
          %v6727 = vmul.f32 %v6631, %v6674
          %v6728 = vmul.f32 %v6632, %v6679
          %v6729 = vmul.f32 %v6633, %v6684
          %v6730 = vmul.f32 %v6634, %v6689
          %v6731 = vmul.f32 %v6635, %v6694
          %v6732 = vmul.f32 %v6636, %v6699
          %v6733 = vmul.f32 %v6637, %v6704
          %v6734 = vmul.f32 %v6638, %v6709
          %v6735 = vmul.f32 %v6639, %v6714
          %v6736 = vmul.f32 %v6640, %v6719
          %v6737 = vpack.c.bf16 %v6722, %v6721
          %v6738 = vpack.c.bf16 %v6724, %v6723
          %v6739 = vpack.c.bf16 %v6726, %v6725
          %v6740 = vpack.c.bf16 %v6728, %v6727
          %v6741 = vpack.c.bf16 %v6730, %v6729
          %v6742 = vpack.c.bf16 %v6732, %v6731
          %v6743 = vpack.c.bf16 %v6734, %v6733
          %v6744 = vpack.c.bf16 %v6736, %v6735
          %s6745 = scalar_lea.vmem %s6, 16
          %v6746 = vld [vmem:[%s6745] sm:$0xf]
          %v6747 = vld [vmem:[%s6745 + $0x4] sm:$0xf]
          %v6748 = vld [vmem:[%s6745 + $0x8] sm:$0xf]
          %v6749 = vld [vmem:[%s6745 + $0xc] sm:$0xf]
          %v6754 = vunpack.c.l.b16 %v6746
          %v6755 = vunpack.c.l.b16 %v6747
          %v6756 = vunpack.c.l.b16 %v6748
          %v6757 = vunpack.c.l.b16 %v6749
          %v6758 = vpack.c.b16 %v6755, %v6754
          %v6759 = vpack.c.b16 %v6757, %v6756
          %v6763 = vsel %vm2184, %v6737, 0
          %v6766 = vsel %vm2184, %v6738, 0
          %v6769 = vsel %vm2184, %v6739, 0
          %v6772 = vsel %vm2184, %v6740, 0
          %v6775 = vsel %vm2184, %v6741, 0
          %v6778 = vsel %vm2184, %v6742, 0
          %v6781 = vsel %vm2184, %v6743, 0
          %v6784 = vsel %vm2184, %v6744, 0
          %6786 = vmatprep.subr.bf16.mxu0 0
          %6787 = vmatpush1.bf16.msra.mxu0 0
          %6788 = vmatprep.subr.bf16.mxu0 0
          %6789 = vmatpush1.bf16.msra.mxu0 0
          %6790 = vmatprep.subr.bf16.mxu0 0
          %6791 = vmatpush1.bf16.msra.mxu0 0
          %6792 = vmatprep.subr.bf16.mxu0 0
          %6793 = vmatpush1.bf16.msra.mxu0 0
          %6794 = vmatprep.subr.bf16.mxu0 0
          %6795 = vmatpush1.bf16.msra.mxu0 0
          %6796 = vmatprep.subr.bf16.mxu0 0
          %6797 = vmatpush1.bf16.msra.mxu0 0
          %6798 = vmatprep.subr.bf16.mxu0 0
          %6799 = vmatpush1.bf16.msra.mxu0 %v6759
          %6800 = vmatprep.subr.bf16.mxu0 0
          %6801 = vmatpush1.bf16.msra.mxu0 %v6758
          %6802 = vmatprep.subr.bf16.mxu0 0
          %6803 = vmatpush2.bf16.msra.mxu0 0
          %6804 = vmatprep.subr.bf16.mxu0 0
          %6805 = vmatpush2.bf16.msra.mxu0 0
          %6806 = vmatprep.subr.bf16.mxu0 0
          %6807 = vmatpush2.bf16.msra.mxu0 0
          %6808 = vmatprep.subr.bf16.mxu0 0
          %6809 = vmatpush2.bf16.msra.mxu0 0
          %6810 = vmatprep.subr.bf16.mxu0 0
          %6811 = vmatpush2.bf16.msra.mxu0 0
          %6812 = vmatprep.subr.bf16.mxu0 0
          %6813 = vmatpush2.bf16.msra.mxu0 0
          %6814 = vmatprep.subr.bf16.mxu0 0
          %6815 = vmatpush2.bf16.msra.mxu0 0
          %6816 = vmatprep.subr.bf16.mxu0 0
          %6817 = vmatpush2.bf16.msra.mxu0 0
          %6818 = vmatprep.mubr.bf16.mxu0 0
          %6819 = vmatmul.mubr.bf16.gmra.mxu0 %v6763
          %v6820 = vpop.f32.mrf.mxu0
          %v6821 = vadd.f32 0.0, %v6820
          %v6822 = vpop.f32.mrf.mxu0
          %v6823 = vpop.f32.mrf.mxu0
          %v6824 = vadd.f32 0.0, %v6823
          %v6825 = vpop.f32.mrf.mxu0
          %6826 = vmatprep.mubr.bf16.mxu0 0
          %6827 = vmatmul.mubr.bf16.gmra.mxu0 %v6766
          %v6828 = vpop.f32.mrf.mxu0
          %v6829 = vadd.f32 0.0, %v6828
          %v6830 = vpop.f32.mrf.mxu0
          %v6831 = vpop.f32.mrf.mxu0
          %v6832 = vadd.f32 0.0, %v6831
          %v6833 = vpop.f32.mrf.mxu0
          %6834 = vmatprep.mubr.bf16.mxu0 0
          %6835 = vmatmul.mubr.bf16.gmra.mxu0 %v6769
          %v6836 = vpop.f32.mrf.mxu0
          %v6837 = vadd.f32 0.0, %v6836
          %v6838 = vpop.f32.mrf.mxu0
          %v6839 = vpop.f32.mrf.mxu0
          %v6840 = vadd.f32 0.0, %v6839
          %v6841 = vpop.f32.mrf.mxu0
          %6842 = vmatprep.mubr.bf16.mxu0 0
          %6843 = vmatmul.mubr.bf16.gmra.mxu0 %v6772
          %v6844 = vpop.f32.mrf.mxu0
          %v6845 = vadd.f32 0.0, %v6844
          %v6846 = vpop.f32.mrf.mxu0
          %v6847 = vpop.f32.mrf.mxu0
          %v6848 = vadd.f32 0.0, %v6847
          %v6849 = vpop.f32.mrf.mxu0
          %6850 = vmatprep.mubr.bf16.mxu0 0
          %6851 = vmatmul.mubr.bf16.gmra.mxu0 %v6775
          %v6852 = vpop.f32.mrf.mxu0
          %v6853 = vadd.f32 0.0, %v6852
          %v6854 = vpop.f32.mrf.mxu0
          %v6855 = vpop.f32.mrf.mxu0
          %v6856 = vadd.f32 0.0, %v6855
          %v6857 = vpop.f32.mrf.mxu0
          %6858 = vmatprep.mubr.bf16.mxu0 0
          %6859 = vmatmul.mubr.bf16.gmra.mxu0 %v6778
          %v6860 = vpop.f32.mrf.mxu0
          %v6861 = vadd.f32 0.0, %v6860
          %v6862 = vpop.f32.mrf.mxu0
          %v6863 = vpop.f32.mrf.mxu0
          %v6864 = vadd.f32 0.0, %v6863
          %v6865 = vpop.f32.mrf.mxu0
          %6866 = vmatprep.mubr.bf16.mxu0 0
          %6867 = vmatmul.mubr.bf16.gmra.mxu0 %v6781
          %v6868 = vpop.f32.mrf.mxu0
          %v6869 = vadd.f32 0.0, %v6868
          %v6870 = vpop.f32.mrf.mxu0
          %v6871 = vpop.f32.mrf.mxu0
          %v6872 = vadd.f32 0.0, %v6871
          %v6873 = vpop.f32.mrf.mxu0
          %6874 = vmatprep.mubr.bf16.mxu0 0
          %6875 = vmatmul.mubr.bf16.gmra.mxu0 %v6784
          %v6876 = vpop.f32.mrf.mxu0
          %v6877 = vadd.f32 0.0, %v6876
          %v6878 = vpop.f32.mrf.mxu0
          %v6879 = vpop.f32.mrf.mxu0
          %v6880 = vadd.f32 0.0, %v6879
          %v6881 = vpop.f32.mrf.mxu0
          %6882 = vdwg.mxu0
          %v6887 = vunpack.c.l.b16 %v6589
          %v6888 = vunpack.c.l.b16 %v6590
          %v6889 = vunpack.c.l.b16 %v6591
          %v6890 = vunpack.c.l.b16 %v6592
          %v6891 = vpack.c.b16 %v6888, %v6887
          %v6892 = vpack.c.b16 %v6890, %v6889
          %v6896 = vsel %vm2184, %v6581, 0
          %v6899 = vsel %vm2184, %v6582, 0
          %v6902 = vsel %vm2184, %v6583, 0
          %v6905 = vsel %vm2184, %v6584, 0
          %v6908 = vsel %vm2184, %v6585, 0
          %v6911 = vsel %vm2184, %v6586, 0
          %v6914 = vsel %vm2184, %v6587, 0
          %v6917 = vsel %vm2184, %v6588, 0
          %6919 = vmatprep.subr.bf16.mxu0 0
          %6920 = vmatpush1.bf16.msra.mxu0 0
          %6921 = vmatprep.subr.bf16.mxu0 0
          %6922 = vmatpush1.bf16.msra.mxu0 0
          %6923 = vmatprep.subr.bf16.mxu0 0
          %6924 = vmatpush1.bf16.msra.mxu0 0
          %6925 = vmatprep.subr.bf16.mxu0 0
          %6926 = vmatpush1.bf16.msra.mxu0 0
          %6927 = vmatprep.subr.bf16.mxu0 0
          %6928 = vmatpush1.bf16.msra.mxu0 0
          %6929 = vmatprep.subr.bf16.mxu0 0
          %6930 = vmatpush1.bf16.msra.mxu0 0
          %6931 = vmatprep.subr.bf16.mxu0 0
          %6932 = vmatpush1.bf16.msra.mxu0 %v6892
          %6933 = vmatprep.subr.bf16.mxu0 0
          %6934 = vmatpush1.bf16.msra.mxu0 %v6891
          %6935 = vmatprep.subr.bf16.mxu0 0
          %6936 = vmatpush2.bf16.msra.mxu0 0
          %6937 = vmatprep.subr.bf16.mxu0 0
          %6938 = vmatpush2.bf16.msra.mxu0 0
          %6939 = vmatprep.subr.bf16.mxu0 0
          %6940 = vmatpush2.bf16.msra.mxu0 0
          %6941 = vmatprep.subr.bf16.mxu0 0
          %6942 = vmatpush2.bf16.msra.mxu0 0
          %6943 = vmatprep.subr.bf16.mxu0 0
          %6944 = vmatpush2.bf16.msra.mxu0 0
          %6945 = vmatprep.subr.bf16.mxu0 0
          %6946 = vmatpush2.bf16.msra.mxu0 0
          %6947 = vmatprep.subr.bf16.mxu0 0
          %6948 = vmatpush2.bf16.msra.mxu0 0
          %6949 = vmatprep.subr.bf16.mxu0 0
          %6950 = vmatpush2.bf16.msra.mxu0 0
          %6951 = vmatprep.mubr.bf16.mxu0 0
          %6952 = vmatmul.mubr.bf16.gmra.mxu0 %v6896
          %v6953 = vpop.f32.mrf.mxu0
          %v6954 = vadd.f32 %v6821, %v6953
          %v6955 = vpop.f32.mrf.mxu0
          %v6956 = vpop.f32.mrf.mxu0
          %v6957 = vadd.f32 %v6824, %v6956
          %v6958 = vpop.f32.mrf.mxu0
          %6959 = vmatprep.mubr.bf16.mxu0 0
          %6960 = vmatmul.mubr.bf16.gmra.mxu0 %v6899
          %v6961 = vpop.f32.mrf.mxu0
          %v6962 = vadd.f32 %v6829, %v6961
          %v6963 = vpop.f32.mrf.mxu0
          %v6964 = vpop.f32.mrf.mxu0
          %v6965 = vadd.f32 %v6832, %v6964
          %v6966 = vpop.f32.mrf.mxu0
          %6967 = vmatprep.mubr.bf16.mxu0 0
          %6968 = vmatmul.mubr.bf16.gmra.mxu0 %v6902
          %v6969 = vpop.f32.mrf.mxu0
          %v6970 = vadd.f32 %v6837, %v6969
          %v6971 = vpop.f32.mrf.mxu0
          %v6972 = vpop.f32.mrf.mxu0
          %v6973 = vadd.f32 %v6840, %v6972
          %v6974 = vpop.f32.mrf.mxu0
          %6975 = vmatprep.mubr.bf16.mxu0 0
          %6976 = vmatmul.mubr.bf16.gmra.mxu0 %v6905
          %v6977 = vpop.f32.mrf.mxu0
          %v6978 = vadd.f32 %v6845, %v6977
          %v6979 = vpop.f32.mrf.mxu0
          %v6980 = vpop.f32.mrf.mxu0
          %v6981 = vadd.f32 %v6848, %v6980
          %v6982 = vpop.f32.mrf.mxu0
          %6983 = vmatprep.mubr.bf16.mxu0 0
          %6984 = vmatmul.mubr.bf16.gmra.mxu0 %v6908
          %v6985 = vpop.f32.mrf.mxu0
          %v6986 = vadd.f32 %v6853, %v6985
          %v6987 = vpop.f32.mrf.mxu0
          %v6988 = vpop.f32.mrf.mxu0
          %v6989 = vadd.f32 %v6856, %v6988
          %v6990 = vpop.f32.mrf.mxu0
          %6991 = vmatprep.mubr.bf16.mxu0 0
          %6992 = vmatmul.mubr.bf16.gmra.mxu0 %v6911
          %v6993 = vpop.f32.mrf.mxu0
          %v6994 = vadd.f32 %v6861, %v6993
          %v6995 = vpop.f32.mrf.mxu0
          %v6996 = vpop.f32.mrf.mxu0
          %v6997 = vadd.f32 %v6864, %v6996
          %v6998 = vpop.f32.mrf.mxu0
          %6999 = vmatprep.mubr.bf16.mxu0 0
          %7000 = vmatmul.mubr.bf16.gmra.mxu0 %v6914
          %v7001 = vpop.f32.mrf.mxu0
          %v7002 = vadd.f32 %v6869, %v7001
          %v7003 = vpop.f32.mrf.mxu0
          %v7004 = vpop.f32.mrf.mxu0
          %v7005 = vadd.f32 %v6872, %v7004
          %v7006 = vpop.f32.mrf.mxu0
          %7007 = vmatprep.mubr.bf16.mxu0 0
          %7008 = vmatmul.mubr.bf16.gmra.mxu0 %v6917
          %v7009 = vpop.f32.mrf.mxu0
          %v7010 = vadd.f32 %v6877, %v7009
          %v7011 = vpop.f32.mrf.mxu0
          %v7012 = vpop.f32.mrf.mxu0
          %v7013 = vadd.f32 %v6880, %v7012
          %v7014 = vpop.f32.mrf.mxu0
          %7015 = vdwg.mxu0
          %v7016 = vld [vmem:[%s4909] sm:$0xff]
          %v7017 = vld [vmem:[%s4909 + $0x8] sm:$0xff]
          %v7018 = vld [vmem:[%s4909 + $0x10] sm:$0xff]
          %v7019 = vld [vmem:[%s4909 + $0x18] sm:$0xff]
          %v7020 = vld [vmem:[%s4909 + $0x20] sm:$0xff]
          %v7021 = vld [vmem:[%s4909 + $0x28] sm:$0xff]
          %v7022 = vld [vmem:[%s4909 + $0x30] sm:$0xff]
          %v7023 = vld [vmem:[%s4909 + $0x38] sm:$0xff]
          %v7024 = vld [vmem:[%s4909 + $0x40] sm:$0xff]
          %v7025 = vld [vmem:[%s4909 + $0x48] sm:$0xff]
          %v7026 = vld [vmem:[%s4909 + $0x50] sm:$0xff]
          %v7027 = vld [vmem:[%s4909 + $0x58] sm:$0xff]
          %v7028 = vld [vmem:[%s4909 + $0x60] sm:$0xff]
          %v7029 = vld [vmem:[%s4909 + $0x68] sm:$0xff]
          %v7030 = vld [vmem:[%s4909 + $0x70] sm:$0xff]
          %v7031 = vld [vmem:[%s4909 + $0x78] sm:$0xff]
          %v7032 = vrcp.pop %v7016
          %v7033 = vrcp.pop %v7017
          %v7034 = vrcp.pop %v7018
          %v7035 = vrcp.pop %v7019
          %v7036 = vrcp.pop %v7020
          %v7037 = vrcp.pop %v7021
          %v7038 = vrcp.pop %v7022
          %v7039 = vrcp.pop %v7023
          %v7040 = vrcp.pop %v7024
          %v7041 = vrcp.pop %v7025
          %v7042 = vrcp.pop %v7026
          %v7043 = vrcp.pop %v7027
          %v7044 = vrcp.pop %v7028
          %v7045 = vrcp.pop %v7029
          %v7046 = vrcp.pop %v7030
          %v7047 = vrcp.pop %v7031
          %v7048 = vld [vmem:[%s5006] sm:$0xff]
          %v7049 = vld [vmem:[%s5006 + $0x8] sm:$0xff]
          %v7050 = vld [vmem:[%s5006 + $0x10] sm:$0xff]
          %v7051 = vld [vmem:[%s5006 + $0x18] sm:$0xff]
          %v7052 = vld [vmem:[%s5006 + $0x20] sm:$0xff]
          %v7053 = vld [vmem:[%s5006 + $0x28] sm:$0xff]
          %v7054 = vld [vmem:[%s5006 + $0x30] sm:$0xff]
          %v7055 = vld [vmem:[%s5006 + $0x38] sm:$0xff]
          %v7056 = vld [vmem:[%s5006 + $0x40] sm:$0xff]
          %v7057 = vld [vmem:[%s5006 + $0x48] sm:$0xff]
          %v7058 = vld [vmem:[%s5006 + $0x50] sm:$0xff]
          %v7059 = vld [vmem:[%s5006 + $0x58] sm:$0xff]
          %v7060 = vld [vmem:[%s5006 + $0x60] sm:$0xff]
          %v7061 = vld [vmem:[%s5006 + $0x68] sm:$0xff]
          %v7062 = vld [vmem:[%s5006 + $0x70] sm:$0xff]
          %v7063 = vld [vmem:[%s5006 + $0x78] sm:$0xff]
          %7065 = vset.pattern.permute.xlu0 0
          %7066 = vperm.xlu0 %7065, %v7032
          %v7067 = vpop.permute.xlu0 %7066
          %7070 = vset.pattern.permute.xlu0 0
          %7071 = vperm.xlu0 %7070, %v7033
          %v7072 = vpop.permute.xlu0 %7071
          %7075 = vset.pattern.permute.xlu0 0
          %7076 = vperm.xlu0 %7075, %v7034
          %v7077 = vpop.permute.xlu0 %7076
          %7080 = vset.pattern.permute.xlu0 0
          %7081 = vperm.xlu0 %7080, %v7035
          %v7082 = vpop.permute.xlu0 %7081
          %7085 = vset.pattern.permute.xlu0 0
          %7086 = vperm.xlu0 %7085, %v7036
          %v7087 = vpop.permute.xlu0 %7086
          %7090 = vset.pattern.permute.xlu0 0
          %7091 = vperm.xlu0 %7090, %v7037
          %v7092 = vpop.permute.xlu0 %7091
          %7095 = vset.pattern.permute.xlu0 0
          %7096 = vperm.xlu0 %7095, %v7038
          %v7097 = vpop.permute.xlu0 %7096
          %7100 = vset.pattern.permute.xlu0 0
          %7101 = vperm.xlu0 %7100, %v7039
          %v7102 = vpop.permute.xlu0 %7101
          %7105 = vset.pattern.permute.xlu0 0
          %7106 = vperm.xlu0 %7105, %v7040
          %v7107 = vpop.permute.xlu0 %7106
          %7110 = vset.pattern.permute.xlu0 0
          %7111 = vperm.xlu0 %7110, %v7041
          %v7112 = vpop.permute.xlu0 %7111
          %7115 = vset.pattern.permute.xlu0 0
          %7116 = vperm.xlu0 %7115, %v7042
          %v7117 = vpop.permute.xlu0 %7116
          %7120 = vset.pattern.permute.xlu0 0
          %7121 = vperm.xlu0 %7120, %v7043
          %v7122 = vpop.permute.xlu0 %7121
          %7125 = vset.pattern.permute.xlu0 0
          %7126 = vperm.xlu0 %7125, %v7044
          %v7127 = vpop.permute.xlu0 %7126
          %7130 = vset.pattern.permute.xlu0 0
          %7131 = vperm.xlu0 %7130, %v7045
          %v7132 = vpop.permute.xlu0 %7131
          %7135 = vset.pattern.permute.xlu0 0
          %7136 = vperm.xlu0 %7135, %v7046
          %v7137 = vpop.permute.xlu0 %7136
          %7140 = vset.pattern.permute.xlu0 0
          %7141 = vperm.xlu0 %7140, %v7047
          %v7142 = vpop.permute.xlu0 %7141
          %v7144 = vmul.f32 %v7048, %v7067
          %v7145 = vmul.f32 %v7049, %v7072
          %v7146 = vmul.f32 %v7050, %v7077
          %v7147 = vmul.f32 %v7051, %v7082
          %v7148 = vmul.f32 %v7052, %v7087
          %v7149 = vmul.f32 %v7053, %v7092
          %v7150 = vmul.f32 %v7054, %v7097
          %v7151 = vmul.f32 %v7055, %v7102
          %v7152 = vmul.f32 %v7056, %v7107
          %v7153 = vmul.f32 %v7057, %v7112
          %v7154 = vmul.f32 %v7058, %v7117
          %v7155 = vmul.f32 %v7059, %v7122
          %v7156 = vmul.f32 %v7060, %v7127
          %v7157 = vmul.f32 %v7061, %v7132
          %v7158 = vmul.f32 %v7062, %v7137
          %v7159 = vmul.f32 %v7063, %v7142
          %v7160 = vpack.c.bf16 %v7145, %v7144
          %v7161 = vpack.c.bf16 %v7147, %v7146
          %v7162 = vpack.c.bf16 %v7149, %v7148
          %v7163 = vpack.c.bf16 %v7151, %v7150
          %v7164 = vpack.c.bf16 %v7153, %v7152
          %v7165 = vpack.c.bf16 %v7155, %v7154
          %v7166 = vpack.c.bf16 %v7157, %v7156
          %v7167 = vpack.c.bf16 %v7159, %v7158
          %s7168 = scalar_lea.vmem %s6, 32
          %v7169 = vld [vmem:[%s7168] sm:$0xf]
          %v7170 = vld [vmem:[%s7168 + $0x4] sm:$0xf]
          %v7171 = vld [vmem:[%s7168 + $0x8] sm:$0xf]
          %v7172 = vld [vmem:[%s7168 + $0xc] sm:$0xf]
          %v7177 = vunpack.c.l.b16 %v7169
          %v7178 = vunpack.c.l.b16 %v7170
          %v7179 = vunpack.c.l.b16 %v7171
          %v7180 = vunpack.c.l.b16 %v7172
          %v7181 = vpack.c.b16 %v7178, %v7177
          %v7182 = vpack.c.b16 %v7180, %v7179
          %v7186 = vsel %vm2184, %v7160, 0
          %v7189 = vsel %vm2184, %v7161, 0
          %v7192 = vsel %vm2184, %v7162, 0
          %v7195 = vsel %vm2184, %v7163, 0
          %v7198 = vsel %vm2184, %v7164, 0
          %v7201 = vsel %vm2184, %v7165, 0
          %v7204 = vsel %vm2184, %v7166, 0
          %v7207 = vsel %vm2184, %v7167, 0
          %7209 = vmatprep.subr.bf16.mxu0 0
          %7210 = vmatpush1.bf16.msra.mxu0 0
          %7211 = vmatprep.subr.bf16.mxu0 0
          %7212 = vmatpush1.bf16.msra.mxu0 0
          %7213 = vmatprep.subr.bf16.mxu0 0
          %7214 = vmatpush1.bf16.msra.mxu0 0
          %7215 = vmatprep.subr.bf16.mxu0 0
          %7216 = vmatpush1.bf16.msra.mxu0 0
          %7217 = vmatprep.subr.bf16.mxu0 0
          %7218 = vmatpush1.bf16.msra.mxu0 0
          %7219 = vmatprep.subr.bf16.mxu0 0
          %7220 = vmatpush1.bf16.msra.mxu0 0
          %7221 = vmatprep.subr.bf16.mxu0 0
          %7222 = vmatpush1.bf16.msra.mxu0 %v7182
          %7223 = vmatprep.subr.bf16.mxu0 0
          %7224 = vmatpush1.bf16.msra.mxu0 %v7181
          %7225 = vmatprep.subr.bf16.mxu0 0
          %7226 = vmatpush2.bf16.msra.mxu0 0
          %7227 = vmatprep.subr.bf16.mxu0 0
          %7228 = vmatpush2.bf16.msra.mxu0 0
          %7229 = vmatprep.subr.bf16.mxu0 0
          %7230 = vmatpush2.bf16.msra.mxu0 0
          %7231 = vmatprep.subr.bf16.mxu0 0
          %7232 = vmatpush2.bf16.msra.mxu0 0
          %7233 = vmatprep.subr.bf16.mxu0 0
          %7234 = vmatpush2.bf16.msra.mxu0 0
          %7235 = vmatprep.subr.bf16.mxu0 0
          %7236 = vmatpush2.bf16.msra.mxu0 0
          %7237 = vmatprep.subr.bf16.mxu0 0
          %7238 = vmatpush2.bf16.msra.mxu0 0
          %7239 = vmatprep.subr.bf16.mxu0 0
          %7240 = vmatpush2.bf16.msra.mxu0 0
          %7241 = vmatprep.mubr.bf16.mxu0 0
          %7242 = vmatmul.mubr.bf16.gmra.mxu0 %v7186
          %v7243 = vpop.f32.mrf.mxu0
          %v7244 = vadd.f32 0.0, %v7243
          %v7245 = vpop.f32.mrf.mxu0
          %v7246 = vpop.f32.mrf.mxu0
          %v7247 = vadd.f32 0.0, %v7246
          %v7248 = vpop.f32.mrf.mxu0
          %7249 = vmatprep.mubr.bf16.mxu0 0
          %7250 = vmatmul.mubr.bf16.gmra.mxu0 %v7189
          %v7251 = vpop.f32.mrf.mxu0
          %v7252 = vadd.f32 0.0, %v7251
          %v7253 = vpop.f32.mrf.mxu0
          %v7254 = vpop.f32.mrf.mxu0
          %v7255 = vadd.f32 0.0, %v7254
          %v7256 = vpop.f32.mrf.mxu0
          %7257 = vmatprep.mubr.bf16.mxu0 0
          %7258 = vmatmul.mubr.bf16.gmra.mxu0 %v7192
          %v7259 = vpop.f32.mrf.mxu0
          %v7260 = vadd.f32 0.0, %v7259
          %v7261 = vpop.f32.mrf.mxu0
          %v7262 = vpop.f32.mrf.mxu0
          %v7263 = vadd.f32 0.0, %v7262
          %v7264 = vpop.f32.mrf.mxu0
          %7265 = vmatprep.mubr.bf16.mxu0 0
          %7266 = vmatmul.mubr.bf16.gmra.mxu0 %v7195
          %v7267 = vpop.f32.mrf.mxu0
          %v7268 = vadd.f32 0.0, %v7267
          %v7269 = vpop.f32.mrf.mxu0
          %v7270 = vpop.f32.mrf.mxu0
          %v7271 = vadd.f32 0.0, %v7270
          %v7272 = vpop.f32.mrf.mxu0
          %7273 = vmatprep.mubr.bf16.mxu0 0
          %7274 = vmatmul.mubr.bf16.gmra.mxu0 %v7198
          %v7275 = vpop.f32.mrf.mxu0
          %v7276 = vadd.f32 0.0, %v7275
          %v7277 = vpop.f32.mrf.mxu0
          %v7278 = vpop.f32.mrf.mxu0
          %v7279 = vadd.f32 0.0, %v7278
          %v7280 = vpop.f32.mrf.mxu0
          %7281 = vmatprep.mubr.bf16.mxu0 0
          %7282 = vmatmul.mubr.bf16.gmra.mxu0 %v7201
          %v7283 = vpop.f32.mrf.mxu0
          %v7284 = vadd.f32 0.0, %v7283
          %v7285 = vpop.f32.mrf.mxu0
          %v7286 = vpop.f32.mrf.mxu0
          %v7287 = vadd.f32 0.0, %v7286
          %v7288 = vpop.f32.mrf.mxu0
          %7289 = vmatprep.mubr.bf16.mxu0 0
          %7290 = vmatmul.mubr.bf16.gmra.mxu0 %v7204
          %v7291 = vpop.f32.mrf.mxu0
          %v7292 = vadd.f32 0.0, %v7291
          %v7293 = vpop.f32.mrf.mxu0
          %v7294 = vpop.f32.mrf.mxu0
          %v7295 = vadd.f32 0.0, %v7294
          %v7296 = vpop.f32.mrf.mxu0
          %7297 = vmatprep.mubr.bf16.mxu0 0
          %7298 = vmatmul.mubr.bf16.gmra.mxu0 %v7207
          %v7299 = vpop.f32.mrf.mxu0
          %v7300 = vadd.f32 0.0, %v7299
          %v7301 = vpop.f32.mrf.mxu0
          %v7302 = vpop.f32.mrf.mxu0
          %v7303 = vadd.f32 0.0, %v7302
          %v7304 = vpop.f32.mrf.mxu0
          %7305 = vdwg.mxu0
          %v7306 = vadd.f32 %v6954, %v7244
          %v7307 = vadd.f32 %v6957, %v7247
          %v7308 = vadd.f32 %v6962, %v7252
          %v7309 = vadd.f32 %v6965, %v7255
          %v7310 = vadd.f32 %v6970, %v7260
          %v7311 = vadd.f32 %v6973, %v7263
          %v7312 = vadd.f32 %v6978, %v7268
          %v7313 = vadd.f32 %v6981, %v7271
          %v7314 = vadd.f32 %v6986, %v7276
          %v7315 = vadd.f32 %v6989, %v7279
          %v7316 = vadd.f32 %v6994, %v7284
          %v7317 = vadd.f32 %v6997, %v7287
          %v7318 = vadd.f32 %v7002, %v7292
          %v7319 = vadd.f32 %v7005, %v7295
          %v7320 = vadd.f32 %v7010, %v7300
          %v7321 = vadd.f32 %v7013, %v7303
          %v7322 = vld [vmem:[%s6071] sm:$0xff]
          %v7323 = vld [vmem:[%s6071 + $0x8] sm:$0xff]
          %v7324 = vld [vmem:[%s6071 + $0x10] sm:$0xff]
          %v7325 = vld [vmem:[%s6071 + $0x18] sm:$0xff]
          %v7326 = vld [vmem:[%s6071 + $0x20] sm:$0xff]
          %v7327 = vld [vmem:[%s6071 + $0x28] sm:$0xff]
          %v7328 = vld [vmem:[%s6071 + $0x30] sm:$0xff]
          %v7329 = vld [vmem:[%s6071 + $0x38] sm:$0xff]
          %v7330 = vld [vmem:[%s6071 + $0x40] sm:$0xff]
          %v7331 = vld [vmem:[%s6071 + $0x48] sm:$0xff]
          %v7332 = vld [vmem:[%s6071 + $0x50] sm:$0xff]
          %v7333 = vld [vmem:[%s6071 + $0x58] sm:$0xff]
          %v7334 = vld [vmem:[%s6071 + $0x60] sm:$0xff]
          %v7335 = vld [vmem:[%s6071 + $0x68] sm:$0xff]
          %v7336 = vld [vmem:[%s6071 + $0x70] sm:$0xff]
          %v7337 = vld [vmem:[%s6071 + $0x78] sm:$0xff]
          %v7338 = vrcp.pop %v7322
          %v7339 = vrcp.pop %v7323
          %v7340 = vrcp.pop %v7324
          %v7341 = vrcp.pop %v7325
          %v7342 = vrcp.pop %v7326
          %v7343 = vrcp.pop %v7327
          %v7344 = vrcp.pop %v7328
          %v7345 = vrcp.pop %v7329
          %v7346 = vrcp.pop %v7330
          %v7347 = vrcp.pop %v7331
          %v7348 = vrcp.pop %v7332
          %v7349 = vrcp.pop %v7333
          %v7350 = vrcp.pop %v7334
          %v7351 = vrcp.pop %v7335
          %v7352 = vrcp.pop %v7336
          %v7353 = vrcp.pop %v7337
          %v7354 = vld [vmem:[%s6168] sm:$0xff]
          %v7355 = vld [vmem:[%s6168 + $0x8] sm:$0xff]
          %v7356 = vld [vmem:[%s6168 + $0x10] sm:$0xff]
          %v7357 = vld [vmem:[%s6168 + $0x18] sm:$0xff]
          %v7358 = vld [vmem:[%s6168 + $0x20] sm:$0xff]
          %v7359 = vld [vmem:[%s6168 + $0x28] sm:$0xff]
          %v7360 = vld [vmem:[%s6168 + $0x30] sm:$0xff]
          %v7361 = vld [vmem:[%s6168 + $0x38] sm:$0xff]
          %v7362 = vld [vmem:[%s6168 + $0x40] sm:$0xff]
          %v7363 = vld [vmem:[%s6168 + $0x48] sm:$0xff]
          %v7364 = vld [vmem:[%s6168 + $0x50] sm:$0xff]
          %v7365 = vld [vmem:[%s6168 + $0x58] sm:$0xff]
          %v7366 = vld [vmem:[%s6168 + $0x60] sm:$0xff]
          %v7367 = vld [vmem:[%s6168 + $0x68] sm:$0xff]
          %v7368 = vld [vmem:[%s6168 + $0x70] sm:$0xff]
          %v7369 = vld [vmem:[%s6168 + $0x78] sm:$0xff]
          %7371 = vset.pattern.permute.xlu0 0
          %7372 = vperm.xlu0 %7371, %v7338
          %v7373 = vpop.permute.xlu0 %7372
          %7376 = vset.pattern.permute.xlu0 0
          %7377 = vperm.xlu0 %7376, %v7339
          %v7378 = vpop.permute.xlu0 %7377
          %7381 = vset.pattern.permute.xlu0 0
          %7382 = vperm.xlu0 %7381, %v7340
          %v7383 = vpop.permute.xlu0 %7382
          %7386 = vset.pattern.permute.xlu0 0
          %7387 = vperm.xlu0 %7386, %v7341
          %v7388 = vpop.permute.xlu0 %7387
          %7391 = vset.pattern.permute.xlu0 0
          %7392 = vperm.xlu0 %7391, %v7342
          %v7393 = vpop.permute.xlu0 %7392
          %7396 = vset.pattern.permute.xlu0 0
          %7397 = vperm.xlu0 %7396, %v7343
          %v7398 = vpop.permute.xlu0 %7397
          %7401 = vset.pattern.permute.xlu0 0
          %7402 = vperm.xlu0 %7401, %v7344
          %v7403 = vpop.permute.xlu0 %7402
          %7406 = vset.pattern.permute.xlu0 0
          %7407 = vperm.xlu0 %7406, %v7345
          %v7408 = vpop.permute.xlu0 %7407
          %7411 = vset.pattern.permute.xlu0 0
          %7412 = vperm.xlu0 %7411, %v7346
          %v7413 = vpop.permute.xlu0 %7412
          %7416 = vset.pattern.permute.xlu0 0
          %7417 = vperm.xlu0 %7416, %v7347
          %v7418 = vpop.permute.xlu0 %7417
          %7421 = vset.pattern.permute.xlu0 0
          %7422 = vperm.xlu0 %7421, %v7348
          %v7423 = vpop.permute.xlu0 %7422
          %7426 = vset.pattern.permute.xlu0 0
          %7427 = vperm.xlu0 %7426, %v7349
          %v7428 = vpop.permute.xlu0 %7427
          %7431 = vset.pattern.permute.xlu0 0
          %7432 = vperm.xlu0 %7431, %v7350
          %v7433 = vpop.permute.xlu0 %7432
          %7436 = vset.pattern.permute.xlu0 0
          %7437 = vperm.xlu0 %7436, %v7351
          %v7438 = vpop.permute.xlu0 %7437
          %7441 = vset.pattern.permute.xlu0 0
          %7442 = vperm.xlu0 %7441, %v7352
          %v7443 = vpop.permute.xlu0 %7442
          %7446 = vset.pattern.permute.xlu0 0
          %7447 = vperm.xlu0 %7446, %v7353
          %v7448 = vpop.permute.xlu0 %7447
          %v7450 = vmul.f32 %v7354, %v7373
          %v7451 = vmul.f32 %v7355, %v7378
          %v7452 = vmul.f32 %v7356, %v7383
          %v7453 = vmul.f32 %v7357, %v7388
          %v7454 = vmul.f32 %v7358, %v7393
          %v7455 = vmul.f32 %v7359, %v7398
          %v7456 = vmul.f32 %v7360, %v7403
          %v7457 = vmul.f32 %v7361, %v7408
          %v7458 = vmul.f32 %v7362, %v7413
          %v7459 = vmul.f32 %v7363, %v7418
          %v7460 = vmul.f32 %v7364, %v7423
          %v7461 = vmul.f32 %v7365, %v7428
          %v7462 = vmul.f32 %v7366, %v7433
          %v7463 = vmul.f32 %v7367, %v7438
          %v7464 = vmul.f32 %v7368, %v7443
          %v7465 = vmul.f32 %v7369, %v7448
          %v7466 = vpack.c.bf16 %v7451, %v7450
          %v7467 = vpack.c.bf16 %v7453, %v7452
          %v7468 = vpack.c.bf16 %v7455, %v7454
          %v7469 = vpack.c.bf16 %v7457, %v7456
          %v7470 = vpack.c.bf16 %v7459, %v7458
          %v7471 = vpack.c.bf16 %v7461, %v7460
          %v7472 = vpack.c.bf16 %v7463, %v7462
          %v7473 = vpack.c.bf16 %v7465, %v7464
          %s7474 = scalar_lea.vmem %s6, 48
          %v7475 = vld [vmem:[%s7474] sm:$0xf]
          %v7476 = vld [vmem:[%s7474 + $0x4] sm:$0xf]
          %v7477 = vld [vmem:[%s7474 + $0x8] sm:$0xf]
          %v7478 = vld [vmem:[%s7474 + $0xc] sm:$0xf]
          %v7483 = vunpack.c.l.b16 %v7475
          %v7484 = vunpack.c.l.b16 %v7476
          %v7485 = vunpack.c.l.b16 %v7477
          %v7486 = vunpack.c.l.b16 %v7478
          %v7487 = vpack.c.b16 %v7484, %v7483
          %v7488 = vpack.c.b16 %v7486, %v7485
          %v7492 = vsel %vm2184, %v7466, 0
          %v7495 = vsel %vm2184, %v7467, 0
          %v7498 = vsel %vm2184, %v7468, 0
          %v7501 = vsel %vm2184, %v7469, 0
          %v7504 = vsel %vm2184, %v7470, 0
          %v7507 = vsel %vm2184, %v7471, 0
          %v7510 = vsel %vm2184, %v7472, 0
          %v7513 = vsel %vm2184, %v7473, 0
          %7515 = vmatprep.subr.bf16.mxu0 0
          %7516 = vmatpush1.bf16.msra.mxu0 0
          %7517 = vmatprep.subr.bf16.mxu0 0
          %7518 = vmatpush1.bf16.msra.mxu0 0
          %7519 = vmatprep.subr.bf16.mxu0 0
          %7520 = vmatpush1.bf16.msra.mxu0 0
          %7521 = vmatprep.subr.bf16.mxu0 0
          %7522 = vmatpush1.bf16.msra.mxu0 0
          %7523 = vmatprep.subr.bf16.mxu0 0
          %7524 = vmatpush1.bf16.msra.mxu0 0
          %7525 = vmatprep.subr.bf16.mxu0 0
          %7526 = vmatpush1.bf16.msra.mxu0 0
          %7527 = vmatprep.subr.bf16.mxu0 0
          %7528 = vmatpush1.bf16.msra.mxu0 %v7488
          %7529 = vmatprep.subr.bf16.mxu0 0
          %7530 = vmatpush1.bf16.msra.mxu0 %v7487
          %7531 = vmatprep.subr.bf16.mxu0 0
          %7532 = vmatpush2.bf16.msra.mxu0 0
          %7533 = vmatprep.subr.bf16.mxu0 0
          %7534 = vmatpush2.bf16.msra.mxu0 0
          %7535 = vmatprep.subr.bf16.mxu0 0
          %7536 = vmatpush2.bf16.msra.mxu0 0
          %7537 = vmatprep.subr.bf16.mxu0 0
          %7538 = vmatpush2.bf16.msra.mxu0 0
          %7539 = vmatprep.subr.bf16.mxu0 0
          %7540 = vmatpush2.bf16.msra.mxu0 0
          %7541 = vmatprep.subr.bf16.mxu0 0
          %7542 = vmatpush2.bf16.msra.mxu0 0
          %7543 = vmatprep.subr.bf16.mxu0 0
          %7544 = vmatpush2.bf16.msra.mxu0 0
          %7545 = vmatprep.subr.bf16.mxu0 0
          %7546 = vmatpush2.bf16.msra.mxu0 0
          %7547 = vmatprep.mubr.bf16.mxu0 0
          %7548 = vmatmul.mubr.bf16.gmra.mxu0 %v7492
          %v7549 = vpop.f32.mrf.mxu0
          %v7550 = vadd.f32 0.0, %v7549
          %v7551 = vpop.f32.mrf.mxu0
          %v7552 = vpop.f32.mrf.mxu0
          %v7553 = vadd.f32 0.0, %v7552
          %v7554 = vpop.f32.mrf.mxu0
          %7555 = vmatprep.mubr.bf16.mxu0 0
          %7556 = vmatmul.mubr.bf16.gmra.mxu0 %v7495
          %v7557 = vpop.f32.mrf.mxu0
          %v7558 = vadd.f32 0.0, %v7557
          %v7559 = vpop.f32.mrf.mxu0
          %v7560 = vpop.f32.mrf.mxu0
          %v7561 = vadd.f32 0.0, %v7560
          %v7562 = vpop.f32.mrf.mxu0
          %7563 = vmatprep.mubr.bf16.mxu0 0
          %7564 = vmatmul.mubr.bf16.gmra.mxu0 %v7498
          %v7565 = vpop.f32.mrf.mxu0
          %v7566 = vadd.f32 0.0, %v7565
          %v7567 = vpop.f32.mrf.mxu0
          %v7568 = vpop.f32.mrf.mxu0
          %v7569 = vadd.f32 0.0, %v7568
          %v7570 = vpop.f32.mrf.mxu0
          %7571 = vmatprep.mubr.bf16.mxu0 0
          %7572 = vmatmul.mubr.bf16.gmra.mxu0 %v7501
          %v7573 = vpop.f32.mrf.mxu0
          %v7574 = vadd.f32 0.0, %v7573
          %v7575 = vpop.f32.mrf.mxu0
          %v7576 = vpop.f32.mrf.mxu0
          %v7577 = vadd.f32 0.0, %v7576
          %v7578 = vpop.f32.mrf.mxu0
          %7579 = vmatprep.mubr.bf16.mxu0 0
          %7580 = vmatmul.mubr.bf16.gmra.mxu0 %v7504
          %v7581 = vpop.f32.mrf.mxu0
          %v7582 = vadd.f32 0.0, %v7581
          %v7583 = vpop.f32.mrf.mxu0
          %v7584 = vpop.f32.mrf.mxu0
          %v7585 = vadd.f32 0.0, %v7584
          %v7586 = vpop.f32.mrf.mxu0
          %7587 = vmatprep.mubr.bf16.mxu0 0
          %7588 = vmatmul.mubr.bf16.gmra.mxu0 %v7507
          %v7589 = vpop.f32.mrf.mxu0
          %v7590 = vadd.f32 0.0, %v7589
          %v7591 = vpop.f32.mrf.mxu0
          %v7592 = vpop.f32.mrf.mxu0
          %v7593 = vadd.f32 0.0, %v7592
          %v7594 = vpop.f32.mrf.mxu0
          %7595 = vmatprep.mubr.bf16.mxu0 0
          %7596 = vmatmul.mubr.bf16.gmra.mxu0 %v7510
          %v7597 = vpop.f32.mrf.mxu0
          %v7598 = vadd.f32 0.0, %v7597
          %v7599 = vpop.f32.mrf.mxu0
          %v7600 = vpop.f32.mrf.mxu0
          %v7601 = vadd.f32 0.0, %v7600
          %v7602 = vpop.f32.mrf.mxu0
          %7603 = vmatprep.mubr.bf16.mxu0 0
          %7604 = vmatmul.mubr.bf16.gmra.mxu0 %v7513
          %v7605 = vpop.f32.mrf.mxu0
          %v7606 = vadd.f32 0.0, %v7605
          %v7607 = vpop.f32.mrf.mxu0
          %v7608 = vpop.f32.mrf.mxu0
          %v7609 = vadd.f32 0.0, %v7608
          %v7610 = vpop.f32.mrf.mxu0
          %7611 = vdwg.mxu0
          %v7612 = vadd.f32 %v7306, %v7550
          %v7613 = vadd.f32 %v7307, %v7553
          %v7614 = vadd.f32 %v7308, %v7558
          %v7615 = vadd.f32 %v7309, %v7561
          %v7616 = vadd.f32 %v7310, %v7566
          %v7617 = vadd.f32 %v7311, %v7569
          %v7618 = vadd.f32 %v7312, %v7574
          %v7619 = vadd.f32 %v7313, %v7577
          %v7620 = vadd.f32 %v7314, %v7582
          %v7621 = vadd.f32 %v7315, %v7585
          %v7622 = vadd.f32 %v7316, %v7590
          %v7623 = vadd.f32 %v7317, %v7593
          %v7624 = vadd.f32 %v7318, %v7598
          %v7625 = vadd.f32 %v7319, %v7601
          %v7626 = vadd.f32 %v7320, %v7606
          %v7627 = vadd.f32 %v7321, %v7609
          %v7628 = vld [vmem:[%s7] sm:$0x1]
          %v7630 = vlaneseq
          %v7631 = vshrl.u32 %v7630, 7
          %v7632 = vsub.s32 0, %v7631
          %v7633 = vrot.slane %v7628, %v7632
          %v7635 = vadd.f32 %v7612, %v7633
          %v7636 = vadd.f32 %v7613, %v7633
          %v7637 = vadd.f32 %v7614, %v7633
          %v7638 = vadd.f32 %v7615, %v7633
          %v7639 = vadd.f32 %v7616, %v7633
          %v7640 = vadd.f32 %v7617, %v7633
          %v7641 = vadd.f32 %v7618, %v7633
          %v7642 = vadd.f32 %v7619, %v7633
          %v7643 = vadd.f32 %v7620, %v7633
          %v7644 = vadd.f32 %v7621, %v7633
          %v7645 = vadd.f32 %v7622, %v7633
          %v7646 = vadd.f32 %v7623, %v7633
          %v7647 = vadd.f32 %v7624, %v7633
          %v7648 = vadd.f32 %v7625, %v7633
          %v7649 = vadd.f32 %v7626, %v7633
          %v7650 = vadd.f32 %v7627, %v7633
          %v7651 = vld [vmem:[%s445] sm:$0xff]
          %v7652 = vld [vmem:[%s445 + $0x8] sm:$0xff]
          %v7653 = vld [vmem:[%s445 + $0x10] sm:$0xff]
          %v7654 = vld [vmem:[%s445 + $0x18] sm:$0xff]
          %v7655 = vld [vmem:[%s445 + $0x20] sm:$0xff]
          %v7656 = vld [vmem:[%s445 + $0x28] sm:$0xff]
          %v7657 = vld [vmem:[%s445 + $0x30] sm:$0xff]
          %v7658 = vld [vmem:[%s445 + $0x38] sm:$0xff]
          %v7659 = vld [vmem:[%s445 + $0x40] sm:$0xff]
          %v7660 = vld [vmem:[%s445 + $0x48] sm:$0xff]
          %v7661 = vld [vmem:[%s445 + $0x50] sm:$0xff]
          %v7662 = vld [vmem:[%s445 + $0x58] sm:$0xff]
          %v7663 = vld [vmem:[%s445 + $0x60] sm:$0xff]
          %v7664 = vld [vmem:[%s445 + $0x68] sm:$0xff]
          %v7665 = vld [vmem:[%s445 + $0x70] sm:$0xff]
          %v7666 = vld [vmem:[%s445 + $0x78] sm:$0xff]
          %v7667 = vadd.f32 %v7635, %v7651
          %v7668 = vadd.f32 %v7636, %v7652
          %v7669 = vadd.f32 %v7637, %v7653
          %v7670 = vadd.f32 %v7638, %v7654
          %v7671 = vadd.f32 %v7639, %v7655
          %v7672 = vadd.f32 %v7640, %v7656
          %v7673 = vadd.f32 %v7641, %v7657
          %v7674 = vadd.f32 %v7642, %v7658
          %v7675 = vadd.f32 %v7643, %v7659
          %v7676 = vadd.f32 %v7644, %v7660
          %v7677 = vadd.f32 %v7645, %v7661
          %v7678 = vadd.f32 %v7646, %v7662
          %v7679 = vadd.f32 %v7647, %v7663
          %v7680 = vadd.f32 %v7648, %v7664
          %v7681 = vadd.f32 %v7649, %v7665
          %v7682 = vadd.f32 %v7650, %v7666
          %7683 = vadd.xlane.f32.xlu0 %v7667
          %v7684 = vpop.xlane.xlu0 %7683
          %7685 = vadd.xlane.f32.xlu0 %v7668
          %v7686 = vpop.xlane.xlu0 %7685
          %7687 = vadd.xlane.f32.xlu0 %v7669
          %v7688 = vpop.xlane.xlu0 %7687
          %7689 = vadd.xlane.f32.xlu0 %v7670
          %v7690 = vpop.xlane.xlu0 %7689
          %7691 = vadd.xlane.f32.xlu0 %v7671
          %v7692 = vpop.xlane.xlu0 %7691
          %7693 = vadd.xlane.f32.xlu0 %v7672
          %v7694 = vpop.xlane.xlu0 %7693
          %7695 = vadd.xlane.f32.xlu0 %v7673
          %v7696 = vpop.xlane.xlu0 %7695
          %7697 = vadd.xlane.f32.xlu0 %v7674
          %v7698 = vpop.xlane.xlu0 %7697
          %7699 = vadd.xlane.f32.xlu0 %v7675
          %v7700 = vpop.xlane.xlu0 %7699
          %7701 = vadd.xlane.f32.xlu0 %v7676
          %v7702 = vpop.xlane.xlu0 %7701
          %7703 = vadd.xlane.f32.xlu0 %v7677
          %v7704 = vpop.xlane.xlu0 %7703
          %7705 = vadd.xlane.f32.xlu0 %v7678
          %v7706 = vpop.xlane.xlu0 %7705
          %7707 = vadd.xlane.f32.xlu0 %v7679
          %v7708 = vpop.xlane.xlu0 %7707
          %7709 = vadd.xlane.f32.xlu0 %v7680
          %v7710 = vpop.xlane.xlu0 %7709
          %7711 = vadd.xlane.f32.xlu0 %v7681
          %v7712 = vpop.xlane.xlu0 %7711
          %7713 = vadd.xlane.f32.xlu0 %v7682
          %v7714 = vpop.xlane.xlu0 %7713
          %v7715 = vrcp.pop 128.0
          %v7716 = vmul.f32 %v7684, %v7715
          %v7717 = vmul.f32 %v7686, %v7715
          %v7718 = vmul.f32 %v7688, %v7715
          %v7719 = vmul.f32 %v7690, %v7715
          %v7720 = vmul.f32 %v7692, %v7715
          %v7721 = vmul.f32 %v7694, %v7715
          %v7722 = vmul.f32 %v7696, %v7715
          %v7723 = vmul.f32 %v7698, %v7715
          %v7724 = vmul.f32 %v7700, %v7715
          %v7725 = vmul.f32 %v7702, %v7715
          %v7726 = vmul.f32 %v7704, %v7715
          %v7727 = vmul.f32 %v7706, %v7715
          %v7728 = vmul.f32 %v7708, %v7715
          %v7729 = vmul.f32 %v7710, %v7715
          %v7730 = vmul.f32 %v7712, %v7715
          %v7731 = vmul.f32 %v7714, %v7715
          %v7732 = vsub.f32 %v7667, %v7716
          %v7733 = vsub.f32 %v7668, %v7717
          %v7734 = vsub.f32 %v7669, %v7718
          %v7735 = vsub.f32 %v7670, %v7719
          %v7736 = vsub.f32 %v7671, %v7720
          %v7737 = vsub.f32 %v7672, %v7721
          %v7738 = vsub.f32 %v7673, %v7722
          %v7739 = vsub.f32 %v7674, %v7723
          %v7740 = vsub.f32 %v7675, %v7724
          %v7741 = vsub.f32 %v7676, %v7725
          %v7742 = vsub.f32 %v7677, %v7726
          %v7743 = vsub.f32 %v7678, %v7727
          %v7744 = vsub.f32 %v7679, %v7728
          %v7745 = vsub.f32 %v7680, %v7729
          %v7746 = vsub.f32 %v7681, %v7730
          %v7747 = vsub.f32 %v7682, %v7731
          %v7748 = vmul.f32 %v7732, %v7732
          %v7749 = vmul.f32 %v7733, %v7733
          %v7750 = vmul.f32 %v7734, %v7734
          %v7751 = vmul.f32 %v7735, %v7735
          %v7752 = vmul.f32 %v7736, %v7736
          %v7753 = vmul.f32 %v7737, %v7737
          %v7754 = vmul.f32 %v7738, %v7738
          %v7755 = vmul.f32 %v7739, %v7739
          %v7756 = vmul.f32 %v7740, %v7740
          %v7757 = vmul.f32 %v7741, %v7741
          %v7758 = vmul.f32 %v7742, %v7742
          %v7759 = vmul.f32 %v7743, %v7743
          %v7760 = vmul.f32 %v7744, %v7744
          %v7761 = vmul.f32 %v7745, %v7745
          %v7762 = vmul.f32 %v7746, %v7746
          %v7763 = vmul.f32 %v7747, %v7747
          %7764 = vadd.xlane.f32.xlu0 %v7748
          %v7765 = vpop.xlane.xlu0 %7764
          %7766 = vadd.xlane.f32.xlu0 %v7749
          %v7767 = vpop.xlane.xlu0 %7766
          %7768 = vadd.xlane.f32.xlu0 %v7750
          %v7769 = vpop.xlane.xlu0 %7768
          %7770 = vadd.xlane.f32.xlu0 %v7751
          %v7771 = vpop.xlane.xlu0 %7770
          %7772 = vadd.xlane.f32.xlu0 %v7752
          %v7773 = vpop.xlane.xlu0 %7772
          %7774 = vadd.xlane.f32.xlu0 %v7753
          %v7775 = vpop.xlane.xlu0 %7774
          %7776 = vadd.xlane.f32.xlu0 %v7754
          %v7777 = vpop.xlane.xlu0 %7776
          %7778 = vadd.xlane.f32.xlu0 %v7755
          %v7779 = vpop.xlane.xlu0 %7778
          %7780 = vadd.xlane.f32.xlu0 %v7756
          %v7781 = vpop.xlane.xlu0 %7780
          %7782 = vadd.xlane.f32.xlu0 %v7757
          %v7783 = vpop.xlane.xlu0 %7782
          %7784 = vadd.xlane.f32.xlu0 %v7758
          %v7785 = vpop.xlane.xlu0 %7784
          %7786 = vadd.xlane.f32.xlu0 %v7759
          %v7787 = vpop.xlane.xlu0 %7786
          %7788 = vadd.xlane.f32.xlu0 %v7760
          %v7789 = vpop.xlane.xlu0 %7788
          %7790 = vadd.xlane.f32.xlu0 %v7761
          %v7791 = vpop.xlane.xlu0 %7790
          %7792 = vadd.xlane.f32.xlu0 %v7762
          %v7793 = vpop.xlane.xlu0 %7792
          %7794 = vadd.xlane.f32.xlu0 %v7763
          %v7795 = vpop.xlane.xlu0 %7794
          %v7796 = vmul.f32 %v7765, %v7715
          %v7797 = vmul.f32 %v7767, %v7715
          %v7798 = vmul.f32 %v7769, %v7715
          %v7799 = vmul.f32 %v7771, %v7715
          %v7800 = vmul.f32 %v7773, %v7715
          %v7801 = vmul.f32 %v7775, %v7715
          %v7802 = vmul.f32 %v7777, %v7715
          %v7803 = vmul.f32 %v7779, %v7715
          %v7804 = vmul.f32 %v7781, %v7715
          %v7805 = vmul.f32 %v7783, %v7715
          %v7806 = vmul.f32 %v7785, %v7715
          %v7807 = vmul.f32 %v7787, %v7715
          %v7808 = vmul.f32 %v7789, %v7715
          %v7809 = vmul.f32 %v7791, %v7715
          %v7810 = vmul.f32 %v7793, %v7715
          %v7811 = vmul.f32 %v7795, %v7715
          %v7812 = vadd.f32 %v7796, 1e-05
          %v7813 = vadd.f32 %v7797, 1e-05
          %v7814 = vadd.f32 %v7798, 1e-05
          %v7815 = vadd.f32 %v7799, 1e-05
          %v7816 = vadd.f32 %v7800, 1e-05
          %v7817 = vadd.f32 %v7801, 1e-05
          %v7818 = vadd.f32 %v7802, 1e-05
          %v7819 = vadd.f32 %v7803, 1e-05
          %v7820 = vadd.f32 %v7804, 1e-05
          %v7821 = vadd.f32 %v7805, 1e-05
          %v7822 = vadd.f32 %v7806, 1e-05
          %v7823 = vadd.f32 %v7807, 1e-05
          %v7824 = vadd.f32 %v7808, 1e-05
          %v7825 = vadd.f32 %v7809, 1e-05
          %v7826 = vadd.f32 %v7810, 1e-05
          %v7827 = vadd.f32 %v7811, 1e-05
          %v7828 = vrsqrt.pop %v7812
          %v7829 = vrsqrt.pop %v7813
          %v7830 = vrsqrt.pop %v7814
          %v7831 = vrsqrt.pop %v7815
          %v7832 = vrsqrt.pop %v7816
          %v7833 = vrsqrt.pop %v7817
          %v7834 = vrsqrt.pop %v7818
          %v7835 = vrsqrt.pop %v7819
          %v7836 = vrsqrt.pop %v7820
          %v7837 = vrsqrt.pop %v7821
          %v7838 = vrsqrt.pop %v7822
          %v7839 = vrsqrt.pop %v7823
          %v7840 = vrsqrt.pop %v7824
          %v7841 = vrsqrt.pop %v7825
          %v7842 = vrsqrt.pop %v7826
          %v7843 = vrsqrt.pop %v7827
          %v7844 = vmul.f32 %v7732, %v7828
          %v7845 = vmul.f32 %v7733, %v7829
          %v7846 = vmul.f32 %v7734, %v7830
          %v7847 = vmul.f32 %v7735, %v7831
          %v7848 = vmul.f32 %v7736, %v7832
          %v7849 = vmul.f32 %v7737, %v7833
          %v7850 = vmul.f32 %v7738, %v7834
          %v7851 = vmul.f32 %v7739, %v7835
          %v7852 = vmul.f32 %v7740, %v7836
          %v7853 = vmul.f32 %v7741, %v7837
          %v7854 = vmul.f32 %v7742, %v7838
          %v7855 = vmul.f32 %v7743, %v7839
          %v7856 = vmul.f32 %v7744, %v7840
          %v7857 = vmul.f32 %v7745, %v7841
          %v7858 = vmul.f32 %v7746, %v7842
          %v7859 = vmul.f32 %v7747, %v7843
          %v7860 = vld [vmem:[%s8] sm:$0x1]
          %v7862 = vlaneseq
          %v7863 = vshrl.u32 %v7862, 7
          %v7864 = vsub.s32 0, %v7863
          %v7865 = vrot.slane %v7860, %v7864
          %v7867 = vmul.f32 %v7844, %v7865
          %v7868 = vmul.f32 %v7845, %v7865
          %v7869 = vmul.f32 %v7846, %v7865
          %v7870 = vmul.f32 %v7847, %v7865
          %v7871 = vmul.f32 %v7848, %v7865
          %v7872 = vmul.f32 %v7849, %v7865
          %v7873 = vmul.f32 %v7850, %v7865
          %v7874 = vmul.f32 %v7851, %v7865
          %v7875 = vmul.f32 %v7852, %v7865
          %v7876 = vmul.f32 %v7853, %v7865
          %v7877 = vmul.f32 %v7854, %v7865
          %v7878 = vmul.f32 %v7855, %v7865
          %v7879 = vmul.f32 %v7856, %v7865
          %v7880 = vmul.f32 %v7857, %v7865
          %v7881 = vmul.f32 %v7858, %v7865
          %v7882 = vmul.f32 %v7859, %v7865
          %v7883 = vld [vmem:[%s9] sm:$0x1]
          %v7885 = vlaneseq
          %v7886 = vshrl.u32 %v7885, 7
          %v7887 = vsub.s32 0, %v7886
          %v7888 = vrot.slane %v7883, %v7887
          %v7890 = vadd.f32 %v7867, %v7888
          %v7891 = vadd.f32 %v7868, %v7888
          %v7892 = vadd.f32 %v7869, %v7888
          %v7893 = vadd.f32 %v7870, %v7888
          %v7894 = vadd.f32 %v7871, %v7888
          %v7895 = vadd.f32 %v7872, %v7888
          %v7896 = vadd.f32 %v7873, %v7888
          %v7897 = vadd.f32 %v7874, %v7888
          %v7898 = vadd.f32 %v7875, %v7888
          %v7899 = vadd.f32 %v7876, %v7888
          %v7900 = vadd.f32 %v7877, %v7888
          %v7901 = vadd.f32 %v7878, %v7888
          %v7902 = vadd.f32 %v7879, %v7888
          %v7903 = vadd.f32 %v7880, %v7888
          %v7904 = vadd.f32 %v7881, %v7888
          %v7905 = vadd.f32 %v7882, %v7888
          %7906 = vst [vmem:[%s436] sm:$0xff] %v7890
          %7907 = vst [vmem:[%s436 + $0x8] sm:$0xff] %v7891
          %7908 = vst [vmem:[%s436 + $0x10] sm:$0xff] %v7892
          %7909 = vst [vmem:[%s436 + $0x18] sm:$0xff] %v7893
          %7910 = vst [vmem:[%s436 + $0x20] sm:$0xff] %v7894
          %7911 = vst [vmem:[%s436 + $0x28] sm:$0xff] %v7895
          %7912 = vst [vmem:[%s436 + $0x30] sm:$0xff] %v7896
          %7913 = vst [vmem:[%s436 + $0x38] sm:$0xff] %v7897
          %7914 = vst [vmem:[%s436 + $0x40] sm:$0xff] %v7898
          %7915 = vst [vmem:[%s436 + $0x48] sm:$0xff] %v7899
          %7916 = vst [vmem:[%s436 + $0x50] sm:$0xff] %v7900
          %7917 = vst [vmem:[%s436 + $0x58] sm:$0xff] %v7901
          %7918 = vst [vmem:[%s436 + $0x60] sm:$0xff] %v7902
          %7919 = vst [vmem:[%s436 + $0x68] sm:$0xff] %v7903
          %7920 = vst [vmem:[%s436 + $0x70] sm:$0xff] %v7904
          %7921 = vst [vmem:[%s436 + $0x78] sm:$0xff] %v7905
        $region68: #{tpu_custom_call.1} parent=59 // pred_fallthru
          _
        %s7922 = sand.u32 %s284, 1
        %s7923 = scalar_lea.sflag [#allocation7], %s7922
        %s7924 = sand.u32 %s284, 1
        %s7925 = smul.addr %s7924, 128
        %s7926 = scalar_lea.vmem [#allocation6], %s7925
        // Predicated region
        $region69: #{tpu_custom_call.1} parent=59 // pred_check
          %p7927 = pneg %p294
        $region70: #{tpu_custom_call.1} parent=59 // pred_check_branch
          %7929 = sbr.rel (%p7927) target = $region72
        $region71: #{tpu_custom_call.1} parent=59 // pred_region
          %s7930 = smul.u32 16, %s30
          %s7932 = ssub.s32 2048, 2048
          %7933 = vsyncadd %s7923, %s7932
          %s7934 = smul.addr %s29, 16
          %s7935 = sadd.s32 %s7930, %s7934
          %s7936 = smul.addr %s7935, 128
          %s7937 = scalar_lea.hbm %s10, %s7936
          %s7938 = sshll.u32 %s7926, 4
          %s7939 = int_to_ptr.vmem [resolvable:$true] %s7938
          %7944 = dma.vmem_to_hbm [thread:$0]  %s7939, 2048, %s7937, %s7923, 128, 128, 8
        $region72: #{tpu_custom_call.1} parent=59 // pred_fallthru
          _
      $region60: #{tpu_custom_call.1} parent=5 // pred_fallthru
        _
      %p7945 = scmp.le.s32.totalorder 2, %s19
      // Predicated region
      $region73: #{tpu_custom_call.1} parent=5 // pred_check
        %p7946 = pneg %p7945
      $region74: #{tpu_custom_call.1} parent=5 // pred_check_branch
        %7948 = sbr.rel (%p7946) target = $region76
      $region75: #{tpu_custom_call.1} parent=5 // pred_region
        %s7949 = ssub.s32 %s19, 2
        // Predicated region
        $region77: #{tpu_custom_call.1} parent=75 // pred_check
          %p7950 = pneg %p300
        $region78: #{tpu_custom_call.1} parent=75 // pred_check_branch
          %7952 = sbr.rel (%p7950) target = $region80
        $region79: #{tpu_custom_call.1} parent=75 // pred_region
          %s7953 = sand.u32 %s285, 1
          %s7954 = scalar_lea.sflag [#allocation7], %s7953
          %s7955 = sand.u32 %s285, 1
          %s7956 = smul.addr %s7955, 128
          %s7957 = scalar_lea.vmem [#allocation6], %s7956
          %7958 = dma.done %s7954, 2048
        $region80: #{tpu_custom_call.1} parent=75 // pred_fallthru
          _
      $region76: #{tpu_custom_call.1} parent=5 // pred_fallthru
        _
    $region6: #{tpu_custom_call.1} parent=1 // loop_footer
      %s23 = sadd.s32 1, %s19
    $region7: #{tpu_custom_call.1} parent=1 // loop_footer_branch
      %18 = sbr.rel target = $region3
    $region8: #{tpu_custom_call.1} parent=1 // loop_exit
      _
    %7959 = vsyncpa [#allocation7], 1
    %s7960 = scalar_lea.sflag [#allocation7], 1
    %7961 = vsyncpa %s7960, 1

</llo_original>
